<compile_context>
chip_gen: v6e
topology: v6e:2x2x1
jax: 0.10.0
libtpu: 0.0.40
codegen_flags: <defaults>
</compile_context>

<pallas_src>
import functools
import math

import jax
import jax.numpy as jnp
from jax import lax
from jax.experimental import pallas as pl
from jax.experimental.pallas import tpu as pltpu

LANES = 128                      # pad output-channel dims to multiples of this
MAX_TM = 256                     # cap on the flattened-row tile
EPS = 1e-5                       # BatchNorm eps
VMEM_LIMIT = 32 * 1024 * 1024    # explicit scoped-VMEM budget (v7x-safe)


# ----------------------------------------------------------------------------
# Small helpers
# ----------------------------------------------------------------------------
def _round_up(x, m):
    return ((x + m - 1) // m) * m


def _choose_tm(m):
    """Row tile: multiple of 16 (bf16 sublane packing), <=256, and when the
    layer is big enough pick a tile that yields >=2 grid steps (megacore)."""
    if m <= 16:
        return 16
    return min(MAX_TM, _round_up((m + 1) // 2, 16))


# ----------------------------------------------------------------------------
# Pallas kernels
# ----------------------------------------------------------------------------
def _mm_bias_act_kernel(a_ref, w_ref, b_ref, o_ref, *, relu):
    """Fused (bf16 patches @ BN-folded bf16 W) -> f32 acc, + shift [+ relu]."""
    acc = jnp.dot(a_ref[...], w_ref[...], preferred_element_type=jnp.float32)
    y = acc + b_ref[...]
    if relu:
        y = jnp.maximum(y, 0.0)
    o_ref[...] = y.astype(o_ref.dtype)


def _dw_pool_kernel(p_ref, w_ref, b_ref, dw_ref, pool_ref, *, kk):
    """Fused depthwise 3x3 s2 conv (BN folded, no relu) AND 3x3 s2 avg pool.

    Both consume the same 9-tap patch tensor; taps accumulate in f32 on the
    VPU: a MAC for the depthwise branch and a plain sum for the pool branch."""
    p0 = p_ref[0].astype(jnp.float32)
    acc_dw = p0 * w_ref[0]
    acc_pool = p0
    for t in range(1, kk):
        pt = p_ref[t].astype(jnp.float32)
        acc_dw = acc_dw + pt * w_ref[t]
        acc_pool = acc_pool + pt
    dw_ref[...] = (acc_dw + b_ref[...]).astype(dw_ref.dtype)
    pool_ref[...] = (acc_pool * (1.0 / kk)).astype(pool_ref.dtype)


# ----------------------------------------------------------------------------
# Pallas wrappers
# ----------------------------------------------------------------------------
def matmul_bias_act(a, w, shift, relu=True):
    """a: (M, K), w: (K, N) BN-folded f32 -> (M, N) bf16 with fused shift/ReLU."""
    m, k = a.shape
    n = w.shape[1]
    n_pad = _round_up(n, LANES)           # lane-dense output
    tm = _choose_tm(m)
    m_pad = _round_up(m, tm)

    a = a.astype(jnp.bfloat16)
    if m_pad != m:
        a = jnp.pad(a, ((0, m_pad - m), (0, 0)))
    wp = w.astype(jnp.bfloat16)
    bp = shift.astype(jnp.float32)
    if n_pad != n:                        # zero weights/shift in the pad lanes
        wp = jnp.pad(wp, ((0, 0), (0, n_pad - n)))
        bp = jnp.pad(bp, ((0, n_pad - n),))
    bp = bp.reshape(1, n_pad)

    flops = 2 * m_pad * k * n_pad
    bytes_accessed = (m_pad * k + k * n_pad + m_pad * n_pad) * 2 + n_pad * 4

    out = pl.pallas_call(
        functools.partial(_mm_bias_act_kernel, relu=relu),
        out_shape=jax.ShapeDtypeStruct((m_pad, n_pad), jnp.bfloat16),
        grid=(m_pad // tm,),
        in_specs=[
            pl.BlockSpec((tm, k), lambda i: (i, 0)),
            pl.BlockSpec((k, n_pad), lambda i: (0, 0)),
            pl.BlockSpec((1, n_pad), lambda i: (0, 0)),
        ],
        out_specs=pl.BlockSpec((tm, n_pad), lambda i: (i, 0)),
        compiler_params=pltpu.CompilerParams(
            dimension_semantics=("parallel",),
            vmem_limit_bytes=VMEM_LIMIT),
        cost_estimate=pl.CostEstimate(flops=flops, transcendentals=0,
                                      bytes_accessed=bytes_accessed),
    )(a, wp, bp)
    return out[:m, :n]


def dw_pool_fused(patches, w, shift):
    """patches: (9, M, C); w: (9, C) BN-folded f32 -> (dw (M, C), avgpool (M, C))."""
    kk, m, c = patches.shape
    c_pad = _round_up(c, LANES)
    tm = _choose_tm(m)
    m_pad = _round_up(m, tm)

    patches = patches.astype(jnp.bfloat16)
    if m_pad != m or c_pad != c:
        patches = jnp.pad(patches, ((0, 0), (0, m_pad - m), (0, c_pad - c)))
    wp = w.astype(jnp.float32)
    bp = shift.astype(jnp.float32)
    if c_pad != c:
        wp = jnp.pad(wp, ((0, 0), (0, c_pad - c)))
        bp = jnp.pad(bp, ((0, c_pad - c),))
    wp = wp.reshape(kk, 1, c_pad)
    bp = bp.reshape(1, c_pad)

    flops = 3 * kk * m_pad * c_pad
    bytes_accessed = kk * m_pad * c_pad * 2 + 2 * m_pad * c_pad * 2 + 2 * kk * c_pad * 4

    dw, pool = pl.pallas_call(
        functools.partial(_dw_pool_kernel, kk=kk),
        out_shape=(jax.ShapeDtypeStruct((m_pad, c_pad), jnp.bfloat16),
                   jax.ShapeDtypeStruct((m_pad, c_pad), jnp.bfloat16)),
        grid=(m_pad // tm,),
        in_specs=[
            pl.BlockSpec((kk, tm, c_pad), lambda i: (0, i, 0)),
            pl.BlockSpec((kk, 1, c_pad), lambda i: (0, 0, 0)),
            pl.BlockSpec((1, c_pad), lambda i: (0, 0)),
        ],
        out_specs=(pl.BlockSpec((tm, c_pad), lambda i: (i, 0)),
                   pl.BlockSpec((tm, c_pad), lambda i: (i, 0))),
        compiler_params=pltpu.CompilerParams(
            dimension_semantics=("parallel",),
            vmem_limit_bytes=VMEM_LIMIT),
        cost_estimate=pl.CostEstimate(flops=flops, transcendentals=0,
                                      bytes_accessed=bytes_accessed),
    )(patches, wp, bp)
    return dw[:m, :c], pool[:m, :c]


# ----------------------------------------------------------------------------
# im2col glue (plain JAX slicing on bf16 activations, no compute)
# ----------------------------------------------------------------------------
def _pad_hw(x, pad):
    if pad:
        x = jnp.pad(x, ((0, 0), (pad, pad), (pad, pad), (0, 0)))
    return x


def extract_patches_im2col(x, k, stride, pad):
    """x: NHWC -> (N*Ho*Wo, k*k*C); tap order (dy, dx) matches weight reshape."""
    n, h, w, c = x.shape
    x = _pad_hw(x, pad)
    ho = (h + 2 * pad - k) // stride + 1
    wo = (w + 2 * pad - k) // stride + 1
    cols = []
    for dy in range(k):
        for dx in range(k):
            sl = lax.slice(
                x,
                (0, dy, dx, 0),
                (n, dy + (ho - 1) * stride + 1, dx + (wo - 1) * stride + 1, c),
                (1, stride, stride, 1),
            )
            cols.append(sl)
    patches = jnp.stack(cols, axis=3)                 # (N, Ho, Wo, k*k, C)
    return patches.reshape(n * ho * wo, k * k * c), ho, wo


def extract_patches_taps_first(x, k, stride, pad):
    """x: NHWC -> (k*k, N*Ho*Wo, C) built tap-major (no transpose HLO)."""
    n, h, w, c = x.shape
    x = _pad_hw(x, pad)
    ho = (h + 2 * pad - k) // stride + 1
    wo = (w + 2 * pad - k) // stride + 1
    cols = []
    for dy in range(k):
        for dx in range(k):
            sl = lax.slice(
                x,
                (0, dy, dx, 0),
                (n, dy + (ho - 1) * stride + 1, dx + (wo - 1) * stride + 1, c),
                (1, stride, stride, 1),
            )
            cols.append(sl.reshape(n * ho * wo, c))
    return jnp.stack(cols, axis=0), ho, wo            # (k*k, M, C)


# ----------------------------------------------------------------------------
# Module building blocks
# ----------------------------------------------------------------------------
def convx(x, p, stride):
    """ConvX: Conv2d(k, stride, pad=k//2, bias=False) + BN(folded) + ReLU."""
    w = p["w"]                                       # (kh, kw, cin, cout), BN folded
    kh = w.shape[0]
    pad = kh // 2
    n, h, wd, cin = x.shape
    cout = w.shape[3]
    if kh == 1 and stride == 1:
        a = x.reshape(n * h * wd, cin)
        out = matmul_bias_act(a, w.reshape(cin, cout), p["shift"])
        return out.reshape(n, h, wd, cout)
    a, ho, wo = extract_patches_im2col(x, kh, stride, pad)
    out = matmul_bias_act(a, w.reshape(kh * kh * cin, cout), p["shift"])
    return out.reshape(n, ho, wo, cout)


def cat_bottleneck(x, p, stride):
    """CatBottleneck with block_num=4."""
    out1 = convx(x, p["convs"][0], 1)                # 1x1 -> out//2
    if stride == 2:
        n, _, _, c = out1.shape
        # avd_layer (dw 3x3 s2 + BN) and AvgPool2d(3,2,1) share one patch tensor
        patches, ho, wo = extract_patches_taps_first(out1, 3, 2, 1)
        dw_w = p["avd"]["w"].reshape(9, c)
        mid, out1_pool = dw_pool_fused(patches, dw_w, p["avd"]["shift"])
        mid = mid.reshape(n, ho, wo, c)
        out1 = out1_pool.reshape(n, ho, wo, c)       # skip branch (avg pool)
        out = convx(mid, p["convs"][1], 1)
    else:
        out = convx(out1, p["convs"][1], 1)
    outs = [out]
    for pc in p["convs"][2:]:
        out = convx(out, pc, 1)
        outs.append(out)
    return jnp.concatenate([out1] + outs, axis=-1)


# ----------------------------------------------------------------------------
# Deterministic parameter init (kaiming_normal fan_out; BN: gamma=1, beta=0,
# running stats 0/1 -> folded per-channel scale into weights + additive shift)
# ----------------------------------------------------------------------------
def _fold_bn(w, gamma, beta, mean, var):
    """Fold inference-mode BN into conv weights (last axis = out channels)."""
    scale = gamma / jnp.sqrt(var + EPS)
    return w * scale, beta - mean * scale


def init_convx(key, cin, cout, k):
    std = math.sqrt(2.0 / (cout * k * k))
    w = jax.random.normal(key, (k, k, cin, cout), jnp.float32) * std
    gamma = jnp.ones((cout,), jnp.float32)
    beta = jnp.zeros((cout,), jnp.float32)
    mean = jnp.zeros((cout,), jnp.float32)
    var = jnp.ones((cout,), jnp.float32)
    wf, shift = _fold_bn(w, gamma, beta, mean, var)
    return {"w": wf, "shift": shift}


def init_dw(key, c):
    std = math.sqrt(2.0 / (c * 9))
    w = jax.random.normal(key, (3, 3, c), jnp.float32) * std
    gamma = jnp.ones((c,), jnp.float32)
    beta = jnp.zeros((c,), jnp.float32)
    mean = jnp.zeros((c,), jnp.float32)
    var = jnp.ones((c,), jnp.float32)
    wf, shift = _fold_bn(w, gamma, beta, mean, var)
    return {"w": wf, "shift": shift}


def init_stdcnet(key, base):
    keys = iter(jax.random.split(key, 64))
    params = {
        "conv1": init_convx(next(keys), 3, base // 2, 3),
        "conv2": init_convx(next(keys), base // 2, base, 3),
    }

    def make_cat(cin, cout, stride):
        p = {"convs": [], "avd": None}
        p["convs"].append(init_convx(next(keys), cin, cout // 2, 1))
        p["convs"].append(init_convx(next(keys), cout // 2, cout // 4, 3))
        p["convs"].append(init_convx(next(keys), cout // 4, cout // 8, 3))
        p["convs"].append(init_convx(next(keys), cout // 8, cout // 8, 3))
        if stride == 2:
            p["avd"] = init_dw(next(keys), cout // 2)
        return p

    # layers=[2,2,2], block_num=4, type='cat'
    cfg = [
        (base, base * 4, 2), (base * 4, base * 4, 1),          # x8 stage
        (base * 4, base * 8, 2), (base * 8, base * 8, 1),      # x16 stage
        (base * 8, base * 16, 2), (base * 16, base * 16, 1),   # x32 stage
    ]
    params["stages"] = [(make_cat(ci, co, s), s) for ci, co, s in cfg]
    return params


# ----------------------------------------------------------------------------
# STDCNet813 forward (use_conv_last=False -> returns feat4, feat8, feat16, feat32)
# ----------------------------------------------------------------------------
def stdcnet813_forward(x_nchw, params):
    x = jnp.transpose(x_nchw.astype(jnp.bfloat16), (0, 2, 3, 1))   # NCHW -> NHWC
    feat2 = convx(x, params["conv1"], 2)
    feat4 = convx(feat2, params["conv2"], 2)
    f = feat4
    stage_feats = []
    for i, (p, s) in enumerate(params["stages"]):
        f = cat_bottleneck(f, p, s)
        if i % 2 == 1:
            stage_feats.append(f)
    feat8, feat16, feat32 = stage_feats
    to_nchw = lambda t: jnp.transpose(t, (0, 3, 1, 2)).astype(jnp.float32)
    return to_nchw(feat4), to_nchw(feat8), to_nchw(feat16), to_nchw(feat32)


# ----------------------------------------------------------------------------
if __name__ == "__main__":
    base = 16                     # scaled-down "base" (reference default is 64)
    key = jax.random.PRNGKey(0)
    pkey, xkey = jax.random.split(key)

    params = init_stdcnet(pkey, base)
    x = jax.random.normal(xkey, (2, 3, 64, 64), jnp.float32)   # NCHW input

    fwd = jax.jit(lambda inp: stdcnet813_forward(inp, params))
    feat4, feat8, feat16, feat32 = jax.block_until_ready(fwd(x))

    assert feat4.shape == (2, base, 16, 16)
    assert feat8.shape == (2, base * 4, 8, 8)
    assert feat16.shape == (2, base * 8, 4, 4)
    assert feat32.shape == (2, base * 16, 2, 2)
    for f in (feat4, feat8, feat16, feat32):
        assert f.dtype == jnp.float32
        assert bool(jnp.all(jnp.isfinite(f)))

    print("KERNEL_OK")
</pallas_src>

<mosaic_0001>
module attributes {stable_mosaic.version = 11 : i64} {
  func.func @_mm_bias_act_kernel(%arg0: i32, %arg1: memref<256x27xbf16, #tpu.memory_space<vmem>>, %arg2: memref<27x128xbf16, #tpu.memory_space<vmem>>, %arg3: memref<1x128xf32, #tpu.memory_space<vmem>>, %arg4: memref<256x128xbf16, #tpu.memory_space<vmem>>) attributes {dimension_semantics = [#tpu.dimension_semantics<parallel>], iteration_bounds = array<i64: 8>, scalar_prefetch = 0 : i64, scratch_operands = 0 : i64, tpu.core_type = #tpu.core_type<tc>, window_params = [{transform_indices = @transform_0, window_bounds = array<i64: 256, 27>}, {pipeline_mode = #tpu.pipeline_mode<synchronous>, transform_indices = @transform_1, window_bounds = array<i64: 27, 128>}, {pipeline_mode = #tpu.pipeline_mode<synchronous>, transform_indices = @transform_2, window_bounds = array<i64: 1, 128>}, {transform_indices = @transform_3, window_bounds = array<i64: 256, 128>}]} {
    %c0 = arith.constant 0 : index
    %c0_0 = arith.constant 0 : index
    %0 = vector.load %arg1[%c0, %c0_0] : memref<256x27xbf16, #tpu.memory_space<vmem>>, vector<256x27xbf16>
    %c0_1 = arith.constant 0 : index
    %c0_2 = arith.constant 0 : index
    %1 = vector.load %arg2[%c0_1, %c0_2] : memref<27x128xbf16, #tpu.memory_space<vmem>>, vector<27x128xbf16>
    %cst = arith.constant dense<0.000000e+00> : vector<256x128xf32>
    %2 = tpu.matmul %0, %1, %cst {dimension_numbers = #tpu.dot_dimension_numbers<[1], [0], [0], [1], [0, 0, 1, 1], [], []>} : vector<256x27xbf16>, vector<27x128xbf16>, vector<256x128xf32> -> vector<256x128xf32>
    %c0_3 = arith.constant 0 : index
    %c0_4 = arith.constant 0 : index
    %3 = vector.load %arg3[%c0_3, %c0_4] : memref<1x128xf32, #tpu.memory_space<vmem>>, vector<1x128xf32>
    %4 = vector.broadcast %3 : vector<1x128xf32> to vector<256x128xf32>
    %5 = arith.addf %2, %4 : vector<256x128xf32>
    %cst_5 = arith.constant 0.000000e+00 : f32
    %6 = vector.broadcast %cst_5 : f32 to vector<256x128xf32>
    %7 = arith.maximumf %5, %6 : vector<256x128xf32>
    %8 = arith.truncf %7 : vector<256x128xf32> to vector<256x128xbf16>
    %c0_6 = arith.constant 0 : index
    %c0_7 = arith.constant 0 : index
    %9 = vector.load %arg4[%c0_6, %c0_7] : memref<256x128xbf16, #tpu.memory_space<vmem>>, vector<256x128xbf16>
    tpu.vector_store %arg4[%c0_6, %c0_7], %8 {strides = array<i32>} : memref<256x128xbf16, #tpu.memory_space<vmem>>, vector<256x128xbf16>,
    return
  }
  func.func @transform_0(%arg0: i32) -> (i32, i32) {
    %c0_i32 = arith.constant 0 : i32
    %c0_i32_0 = arith.constant 0 : i32
    return %arg0, %c0_i32 : i32, i32
  }
  func.func @transform_1(%arg0: i32) -> (i32, i32) {
    %c0_i32 = arith.constant 0 : i32
    %c0_i32_0 = arith.constant 0 : i32
    %c0_i32_1 = arith.constant 0 : i32
    return %c0_i32, %c0_i32_0 : i32, i32
  }
  func.func @transform_2(%arg0: i32) -> (i32, i32) {
    %c0_i32 = arith.constant 0 : i32
    %c0_i32_0 = arith.constant 0 : i32
    %c0_i32_1 = arith.constant 0 : i32
    return %c0_i32, %c0_i32_0 : i32, i32
  }
  func.func @transform_3(%arg0: i32) -> (i32, i32) {
    %c0_i32 = arith.constant 0 : i32
    %c0_i32_0 = arith.constant 0 : i32
    return %arg0, %c0_i32 : i32, i32
  }
}

module attributes {stable_mosaic.version = 11 : i64} {
  func.func @_mm_bias_act_kernel(%arg0: i32, %arg1: memref<256x72xbf16, #tpu.memory_space<vmem>>, %arg2: memref<72x128xbf16, #tpu.memory_space<vmem>>, %arg3: memref<1x128xf32, #tpu.memory_space<vmem>>, %arg4: memref<256x128xbf16, #tpu.memory_space<vmem>>) attributes {dimension_semantics = [#tpu.dimension_semantics<parallel>], iteration_bounds = array<i64: 2>, scalar_prefetch = 0 : i64, scratch_operands = 0 : i64, tpu.core_type = #tpu.core_type<tc>, window_params = [{transform_indices = @transform_0, window_bounds = array<i64: 256, 72>}, {pipeline_mode = #tpu.pipeline_mode<synchronous>, transform_indices = @transform_1, window_bounds = array<i64: 72, 128>}, {pipeline_mode = #tpu.pipeline_mode<synchronous>, transform_indices = @transform_2, window_bounds = array<i64: 1, 128>}, {transform_indices = @transform_3, window_bounds = array<i64: 256, 128>}]} {
    %c0 = arith.constant 0 : index
    %c0_0 = arith.constant 0 : index
    %0 = vector.load %arg1[%c0, %c0_0] : memref<256x72xbf16, #tpu.memory_space<vmem>>, vector<256x72xbf16>
    %c0_1 = arith.constant 0 : index
    %c0_2 = arith.constant 0 : index
    %1 = vector.load %arg2[%c0_1, %c0_2] : memref<72x128xbf16, #tpu.memory_space<vmem>>, vector<72x128xbf16>
    %cst = arith.constant dense<0.000000e+00> : vector<256x128xf32>
    %2 = tpu.matmul %0, %1, %cst {dimension_numbers = #tpu.dot_dimension_numbers<[1], [0], [0], [1], [0, 0, 1, 1], [], []>} : vector<256x72xbf16>, vector<72x128xbf16>, vector<256x128xf32> -> vector<256x128xf32>
    %c0_3 = arith.constant 0 : index
    %c0_4 = arith.constant 0 : index
    %3 = vector.load %arg3[%c0_3, %c0_4] : memref<1x128xf32, #tpu.memory_space<vmem>>, vector<1x128xf32>
    %4 = vector.broadcast %3 : vector<1x128xf32> to vector<256x128xf32>
    %5 = arith.addf %2, %4 : vector<256x128xf32>
    %cst_5 = arith.constant 0.000000e+00 : f32
    %6 = vector.broadcast %cst_5 : f32 to vector<256x128xf32>
    %7 = arith.maximumf %5, %6 : vector<256x128xf32>
    %8 = arith.truncf %7 : vector<256x128xf32> to vector<256x128xbf16>
    %c0_6 = arith.constant 0 : index
    %c0_7 = arith.constant 0 : index
    %9 = vector.load %arg4[%c0_6, %c0_7] : memref<256x128xbf16, #tpu.memory_space<vmem>>, vector<256x128xbf16>
    tpu.vector_store %arg4[%c0_6, %c0_7], %8 {strides = array<i32>} : memref<256x128xbf16, #tpu.memory_space<vmem>>, vector<256x128xbf16>,
    return
  }
  func.func @transform_0(%arg0: i32) -> (i32, i32) {
    %c0_i32 = arith.constant 0 : i32
    %c0_i32_0 = arith.constant 0 : i32
    return %arg0, %c0_i32 : i32, i32
  }
  func.func @transform_1(%arg0: i32) -> (i32, i32) {
    %c0_i32 = arith.constant 0 : i32
    %c0_i32_0 = arith.constant 0 : i32
    %c0_i32_1 = arith.constant 0 : i32
    return %c0_i32, %c0_i32_0 : i32, i32
  }
  func.func @transform_2(%arg0: i32) -> (i32, i32) {
    %c0_i32 = arith.constant 0 : i32
    %c0_i32_0 = arith.constant 0 : i32
    %c0_i32_1 = arith.constant 0 : i32
    return %c0_i32, %c0_i32_0 : i32, i32
  }
  func.func @transform_3(%arg0: i32) -> (i32, i32) {
    %c0_i32 = arith.constant 0 : i32
    %c0_i32_0 = arith.constant 0 : i32
    return %arg0, %c0_i32 : i32, i32
  }
}

module attributes {stable_mosaic.version = 11 : i64} {
  func.func @_mm_bias_act_kernel(%arg0: i32, %arg1: memref<256x16xbf16, #tpu.memory_space<vmem>>, %arg2: memref<16x128xbf16, #tpu.memory_space<vmem>>, %arg3: memref<1x128xf32, #tpu.memory_space<vmem>>, %arg4: memref<256x128xbf16, #tpu.memory_space<vmem>>) attributes {dimension_semantics = [#tpu.dimension_semantics<parallel>], iteration_bounds = array<i64: 2>, scalar_prefetch = 0 : i64, scratch_operands = 0 : i64, tpu.core_type = #tpu.core_type<tc>, window_params = [{transform_indices = @transform_0, window_bounds = array<i64: 256, 16>}, {pipeline_mode = #tpu.pipeline_mode<synchronous>, transform_indices = @transform_1, window_bounds = array<i64: 16, 128>}, {pipeline_mode = #tpu.pipeline_mode<synchronous>, transform_indices = @transform_2, window_bounds = array<i64: 1, 128>}, {transform_indices = @transform_3, window_bounds = array<i64: 256, 128>}]} {
    %c0 = arith.constant 0 : index
    %c0_0 = arith.constant 0 : index
    %0 = vector.load %arg1[%c0, %c0_0] : memref<256x16xbf16, #tpu.memory_space<vmem>>, vector<256x16xbf16>
    %c0_1 = arith.constant 0 : index
    %c0_2 = arith.constant 0 : index
    %1 = vector.load %arg2[%c0_1, %c0_2] : memref<16x128xbf16, #tpu.memory_space<vmem>>, vector<16x128xbf16>
    %cst = arith.constant dense<0.000000e+00> : vector<256x128xf32>
    %2 = tpu.matmul %0, %1, %cst {dimension_numbers = #tpu.dot_dimension_numbers<[1], [0], [0], [1], [0, 0, 1, 1], [], []>} : vector<256x16xbf16>, vector<16x128xbf16>, vector<256x128xf32> -> vector<256x128xf32>
    %c0_3 = arith.constant 0 : index
    %c0_4 = arith.constant 0 : index
    %3 = vector.load %arg3[%c0_3, %c0_4] : memref<1x128xf32, #tpu.memory_space<vmem>>, vector<1x128xf32>
    %4 = vector.broadcast %3 : vector<1x128xf32> to vector<256x128xf32>
    %5 = arith.addf %2, %4 : vector<256x128xf32>
    %cst_5 = arith.constant 0.000000e+00 : f32
    %6 = vector.broadcast %cst_5 : f32 to vector<256x128xf32>
    %7 = arith.maximumf %5, %6 : vector<256x128xf32>
    %8 = arith.truncf %7 : vector<256x128xf32> to vector<256x128xbf16>
    %c0_6 = arith.constant 0 : index
    %c0_7 = arith.constant 0 : index
    %9 = vector.load %arg4[%c0_6, %c0_7] : memref<256x128xbf16, #tpu.memory_space<vmem>>, vector<256x128xbf16>
    tpu.vector_store %arg4[%c0_6, %c0_7], %8 {strides = array<i32>} : memref<256x128xbf16, #tpu.memory_space<vmem>>, vector<256x128xbf16>,
    return
  }
  func.func @transform_0(%arg0: i32) -> (i32, i32) {
    %c0_i32 = arith.constant 0 : i32
    %c0_i32_0 = arith.constant 0 : i32
    return %arg0, %c0_i32 : i32, i32
  }
  func.func @transform_1(%arg0: i32) -> (i32, i32) {
    %c0_i32 = arith.constant 0 : i32
    %c0_i32_0 = arith.constant 0 : i32
    %c0_i32_1 = arith.constant 0 : i32
    return %c0_i32, %c0_i32_0 : i32, i32
  }
  func.func @transform_2(%arg0: i32) -> (i32, i32) {
    %c0_i32 = arith.constant 0 : i32
    %c0_i32_0 = arith.constant 0 : i32
    %c0_i32_1 = arith.constant 0 : i32
    return %c0_i32, %c0_i32_0 : i32, i32
  }
  func.func @transform_3(%arg0: i32) -> (i32, i32) {
    %c0_i32 = arith.constant 0 : i32
    %c0_i32_0 = arith.constant 0 : i32
    return %arg0, %c0_i32 : i32, i32
  }
}

module attributes {stable_mosaic.version = 11 : i64} {
  func.func @_dw_pool_kernel(%arg0: i32, %arg1: memref<9x64x128xbf16, #tpu.memory_space<vmem>>, %arg2: memref<9x1x128xf32, #tpu.memory_space<vmem>>, %arg3: memref<1x128xf32, #tpu.memory_space<vmem>>, %arg4: memref<64x128xbf16, #tpu.memory_space<vmem>>, %arg5: memref<64x128xbf16, #tpu.memory_space<vmem>>) attributes {dimension_semantics = [#tpu.dimension_semantics<parallel>], iteration_bounds = array<i64: 2>, scalar_prefetch = 0 : i64, scratch_operands = 0 : i64, tpu.core_type = #tpu.core_type<tc>, window_params = [{transform_indices = @transform_0, window_bounds = array<i64: 9, 64, 128>}, {pipeline_mode = #tpu.pipeline_mode<synchronous>, transform_indices = @transform_1, window_bounds = array<i64: 9, 1, 128>}, {pipeline_mode = #tpu.pipeline_mode<synchronous>, transform_indices = @transform_2, window_bounds = array<i64: 1, 128>}, {transform_indices = @transform_3, window_bounds = array<i64: 64, 128>}, {transform_indices = @transform_4, window_bounds = array<i64: 64, 128>}]} {
    %c0 = arith.constant 0 : index
    %c0_0 = arith.constant 0 : index
    %c0_1 = arith.constant 0 : index
    %0 = vector.load %arg1[%c0, %c0_0, %c0_1] : memref<9x64x128xbf16, #tpu.memory_space<vmem>>, vector<1x64x128xbf16>
    %1 = vector.shape_cast %0 : vector<1x64x128xbf16> to vector<64x128xbf16>
    %2 = arith.extf %1 : vector<64x128xbf16> to vector<64x128xf32>
    %c0_2 = arith.constant 0 : index
    %c0_3 = arith.constant 0 : index
    %c0_4 = arith.constant 0 : index
    %3 = vector.load %arg2[%c0_2, %c0_3, %c0_4] : memref<9x1x128xf32, #tpu.memory_space<vmem>>, vector<1x1x128xf32>
    %4 = vector.shape_cast %3 : vector<1x1x128xf32> to vector<1x128xf32>
    %5 = vector.broadcast %4 : vector<1x128xf32> to vector<64x128xf32>
    %6 = arith.mulf %2, %5 : vector<64x128xf32>
    %c1 = arith.constant 1 : index
    %c0_5 = arith.constant 0 : index
    %c0_6 = arith.constant 0 : index
    %7 = vector.load %arg1[%c1, %c0_5, %c0_6] : memref<9x64x128xbf16, #tpu.memory_space<vmem>>, vector<1x64x128xbf16>
    %8 = vector.shape_cast %7 : vector<1x64x128xbf16> to vector<64x128xbf16>
    %9 = arith.extf %8 : vector<64x128xbf16> to vector<64x128xf32>
    %c1_7 = arith.constant 1 : index
    %c0_8 = arith.constant 0 : index
    %c0_9 = arith.constant 0 : index
    %10 = vector.load %arg2[%c1_7, %c0_8, %c0_9] : memref<9x1x128xf32, #tpu.memory_space<vmem>>, vector<1x1x128xf32>
    %11 = vector.shape_cast %10 : vector<1x1x128xf32> to vector<1x128xf32>
    %12 = vector.broadcast %11 : vector<1x128xf32> to vector<64x128xf32>
    %13 = arith.mulf %9, %12 : vector<64x128xf32>
    %14 = arith.addf %6, %13 : vector<64x128xf32>
    %15 = arith.addf %2, %9 : vector<64x128xf32>
    %c2 = arith.constant 2 : index
    %c0_10 = arith.constant 0 : index
    %c0_11 = arith.constant 0 : index
    %16 = vector.load %arg1[%c2, %c0_10, %c0_11] : memref<9x64x128xbf16, #tpu.memory_space<vmem>>, vector<1x64x128xbf16>
    %17 = vector.shape_cast %16 : vector<1x64x128xbf16> to vector<64x128xbf16>
    %18 = arith.extf %17 : vector<64x128xbf16> to vector<64x128xf32>
    %c2_12 = arith.constant 2 : index
    %c0_13 = arith.constant 0 : index
    %c0_14 = arith.constant 0 : index
    %19 = vector.load %arg2[%c2_12, %c0_13, %c0_14] : memref<9x1x128xf32, #tpu.memory_space<vmem>>, vector<1x1x128xf32>
    %20 = vector.shape_cast %19 : vector<1x1x128xf32> to vector<1x128xf32>
    %21 = vector.broadcast %20 : vector<1x128xf32> to vector<64x128xf32>
    %22 = arith.mulf %18, %21 : vector<64x128xf32>
    %23 = arith.addf %14, %22 : vector<64x128xf32>
    %24 = arith.addf %15, %18 : vector<64x128xf32>
    %c3 = arith.constant 3 : index
    %c0_15 = arith.constant 0 : index
    %c0_16 = arith.constant 0 : index
    %25 = vector.load %arg1[%c3, %c0_15, %c0_16] : memref<9x64x128xbf16, #tpu.memory_space<vmem>>, vector<1x64x128xbf16>
    %26 = vector.shape_cast %25 : vector<1x64x128xbf16> to vector<64x128xbf16>
    %27 = arith.extf %26 : vector<64x128xbf16> to vector<64x128xf32>
    %c3_17 = arith.constant 3 : index
    %c0_18 = arith.constant 0 : index
    %c0_19 = arith.constant 0 : index
    %28 = vector.load %arg2[%c3_17, %c0_18, %c0_19] : memref<9x1x128xf32, #tpu.memory_space<vmem>>, vector<1x1x128xf32>
    %29 = vector.shape_cast %28 : vector<1x1x128xf32> to vector<1x128xf32>
    %30 = vector.broadcast %29 : vector<1x128xf32> to vector<64x128xf32>
    %31 = arith.mulf %27, %30 : vector<64x128xf32>
    %32 = arith.addf %23, %31 : vector<64x128xf32>
    %33 = arith.addf %24, %27 : vector<64x128xf32>
    %c4 = arith.constant 4 : index
    %c0_20 = arith.constant 0 : index
    %c0_21 = arith.constant 0 : index
    %34 = vector.load %arg1[%c4, %c0_20, %c0_21] : memref<9x64x128xbf16, #tpu.memory_space<vmem>>, vector<1x64x128xbf16>
    %35 = vector.shape_cast %34 : vector<1x64x128xbf16> to vector<64x128xbf16>
    %36 = arith.extf %35 : vector<64x128xbf16> to vector<64x128xf32>
    %c4_22 = arith.constant 4 : index
    %c0_23 = arith.constant 0 : index
    %c0_24 = arith.constant 0 : index
    %37 = vector.load %arg2[%c4_22, %c0_23, %c0_24] : memref<9x1x128xf32, #tpu.memory_space<vmem>>, vector<1x1x128xf32>
    %38 = vector.shape_cast %37 : vector<1x1x128xf32> to vector<1x128xf32>
    %39 = vector.broadcast %38 : vector<1x128xf32> to vector<64x128xf32>
    %40 = arith.mulf %36, %39 : vector<64x128xf32>
    %41 = arith.addf %32, %40 : vector<64x128xf32>
    %42 = arith.addf %33, %36 : vector<64x128xf32>
    %c5 = arith.constant 5 : index
    %c0_25 = arith.constant 0 : index
    %c0_26 = arith.constant 0 : index
    %43 = vector.load %arg1[%c5, %c0_25, %c0_26] : memref<9x64x128xbf16, #tpu.memory_space<vmem>>, vector<1x64x128xbf16>
    %44 = vector.shape_cast %43 : vector<1x64x128xbf16> to vector<64x128xbf16>
    %45 = arith.extf %44 : vector<64x128xbf16> to vector<64x128xf32>
    %c5_27 = arith.constant 5 : index
    %c0_28 = arith.constant 0 : index
    %c0_29 = arith.constant 0 : index
    %46 = vector.load %arg2[%c5_27, %c0_28, %c0_29] : memref<9x1x128xf32, #tpu.memory_space<vmem>>, vector<1x1x128xf32>
    %47 = vector.shape_cast %46 : vector<1x1x128xf32> to vector<1x128xf32>
    %48 = vector.broadcast %47 : vector<1x128xf32> to vector<64x128xf32>
    %49 = arith.mulf %45, %48 : vector<64x128xf32>
    %50 = arith.addf %41, %49 : vector<64x128xf32>
    %51 = arith.addf %42, %45 : vector<64x128xf32>
    %c6 = arith.constant 6 : index
    %c0_30 = arith.constant 0 : index
    %c0_31 = arith.constant 0 : index
    %52 = vector.load %arg1[%c6, %c0_30, %c0_31] : memref<9x64x128xbf16, #tpu.memory_space<vmem>>, vector<1x64x128xbf16>
    %53 = vector.shape_cast %52 : vector<1x64x128xbf16> to vector<64x128xbf16>
    %54 = arith.extf %53 : vector<64x128xbf16> to vector<64x128xf32>
    %c6_32 = arith.constant 6 : index
    %c0_33 = arith.constant 0 : index
    %c0_34 = arith.constant 0 : index
    %55 = vector.load %arg2[%c6_32, %c0_33, %c0_34] : memref<9x1x128xf32, #tpu.memory_space<vmem>>, vector<1x1x128xf32>
    %56 = vector.shape_cast %55 : vector<1x1x128xf32> to vector<1x128xf32>
    %57 = vector.broadcast %56 : vector<1x128xf32> to vector<64x128xf32>
    %58 = arith.mulf %54, %57 : vector<64x128xf32>
    %59 = arith.addf %50, %58 : vector<64x128xf32>
    %60 = arith.addf %51, %54 : vector<64x128xf32>
    %c7 = arith.constant 7 : index
    %c0_35 = arith.constant 0 : index
    %c0_36 = arith.constant 0 : index
    %61 = vector.load %arg1[%c7, %c0_35, %c0_36] : memref<9x64x128xbf16, #tpu.memory_space<vmem>>, vector<1x64x128xbf16>
    %62 = vector.shape_cast %61 : vector<1x64x128xbf16> to vector<64x128xbf16>
    %63 = arith.extf %62 : vector<64x128xbf16> to vector<64x128xf32>
    %c7_37 = arith.constant 7 : index
    %c0_38 = arith.constant 0 : index
    %c0_39 = arith.constant 0 : index
    %64 = vector.load %arg2[%c7_37, %c0_38, %c0_39] : memref<9x1x128xf32, #tpu.memory_space<vmem>>, vector<1x1x128xf32>
    %65 = vector.shape_cast %64 : vector<1x1x128xf32> to vector<1x128xf32>
    %66 = vector.broadcast %65 : vector<1x128xf32> to vector<64x128xf32>
    %67 = arith.mulf %63, %66 : vector<64x128xf32>
    %68 = arith.addf %59, %67 : vector<64x128xf32>
    %69 = arith.addf %60, %63 : vector<64x128xf32>
    %c8 = arith.constant 8 : index
    %c0_40 = arith.constant 0 : index
    %c0_41 = arith.constant 0 : index
    %70 = vector.load %arg1[%c8, %c0_40, %c0_41] : memref<9x64x128xbf16, #tpu.memory_space<vmem>>, vector<1x64x128xbf16>
    %71 = vector.shape_cast %70 : vector<1x64x128xbf16> to vector<64x128xbf16>
    %72 = arith.extf %71 : vector<64x128xbf16> to vector<64x128xf32>
    %c8_42 = arith.constant 8 : index
    %c0_43 = arith.constant 0 : index
    %c0_44 = arith.constant 0 : index
    %73 = vector.load %arg2[%c8_42, %c0_43, %c0_44] : memref<9x1x128xf32, #tpu.memory_space<vmem>>, vector<1x1x128xf32>
    %74 = vector.shape_cast %73 : vector<1x1x128xf32> to vector<1x128xf32>
    %75 = vector.broadcast %74 : vector<1x128xf32> to vector<64x128xf32>
    %76 = arith.mulf %72, %75 : vector<64x128xf32>
    %77 = arith.addf %68, %76 : vector<64x128xf32>
    %78 = arith.addf %69, %72 : vector<64x128xf32>
    %c0_45 = arith.constant 0 : index
    %c0_46 = arith.constant 0 : index
    %79 = vector.load %arg3[%c0_45, %c0_46] : memref<1x128xf32, #tpu.memory_space<vmem>>, vector<1x128xf32>
    %80 = vector.broadcast %79 : vector<1x128xf32> to vector<64x128xf32>
    %81 = arith.addf %77, %80 : vector<64x128xf32>
    %82 = arith.truncf %81 : vector<64x128xf32> to vector<64x128xbf16>
    %c0_47 = arith.constant 0 : index
    %c0_48 = arith.constant 0 : index
    %83 = vector.load %arg4[%c0_47, %c0_48] : memref<64x128xbf16, #tpu.memory_space<vmem>>, vector<64x128xbf16>
    tpu.vector_store %arg4[%c0_47, %c0_48], %82 {strides = array<i32>} : memref<64x128xbf16, #tpu.memory_space<vmem>>, vector<64x128xbf16>,
    %cst = arith.constant 0.111111112 : f32
    %84 = vector.broadcast %cst : f32 to vector<64x128xf32>
    %85 = arith.mulf %78, %84 : vector<64x128xf32>
    %86 = arith.truncf %85 : vector<64x128xf32> to vector<64x128xbf16>
    %c0_49 = arith.constant 0 : index
    %c0_50 = arith.constant 0 : index
    %87 = vector.load %arg5[%c0_49, %c0_50] : memref<64x128xbf16, #tpu.memory_space<vmem>>, vector<64x128xbf16>
    tpu.vector_store %arg5[%c0_49, %c0_50], %86 {strides = array<i32>} : memref<64x128xbf16, #tpu.memory_space<vmem>>, vector<64x128xbf16>,
    return
  }
  func.func @transform_0(%arg0: i32) -> (i32, i32, i32) {
    %c0_i32 = arith.constant 0 : i32
    %c0_i32_0 = arith.constant 0 : i32
    %c0_i32_1 = arith.constant 0 : i32
    return %c0_i32, %arg0, %c0_i32_0 : i32, i32, i32
  }
  func.func @transform_1(%arg0: i32) -> (i32, i32, i32) {
    %c0_i32 = arith.constant 0 : i32
    %c0_i32_0 = arith.constant 0 : i32
    %c0_i32_1 = arith.constant 0 : i32
    %c0_i32_2 = arith.constant 0 : i32
    return %c0_i32, %c0_i32_0, %c0_i32_1 : i32, i32, i32
  }
  func.func @transform_2(%arg0: i32) -> (i32, i32) {
    %c0_i32 = arith.constant 0 : i32
    %c0_i32_0 = arith.constant 0 : i32
    %c0_i32_1 = arith.constant 0 : i32
    return %c0_i32, %c0_i32_0 : i32, i32
  }
  func.func @transform_3(%arg0: i32) -> (i32, i32) {
    %c0_i32 = arith.constant 0 : i32
    %c0_i32_0 = arith.constant 0 : i32
    return %arg0, %c0_i32 : i32, i32
  }
  func.func @transform_4(%arg0: i32) -> (i32, i32) {
    %c0_i32 = arith.constant 0 : i32
    %c0_i32_0 = arith.constant 0 : i32
    return %arg0, %c0_i32 : i32, i32
  }
}

module attributes {stable_mosaic.version = 11 : i64} {
  func.func @_mm_bias_act_kernel(%arg0: i32, %arg1: memref<64x288xbf16, #tpu.memory_space<vmem>>, %arg2: memref<288x128xbf16, #tpu.memory_space<vmem>>, %arg3: memref<1x128xf32, #tpu.memory_space<vmem>>, %arg4: memref<64x128xbf16, #tpu.memory_space<vmem>>) attributes {dimension_semantics = [#tpu.dimension_semantics<parallel>], iteration_bounds = array<i64: 2>, scalar_prefetch = 0 : i64, scratch_operands = 0 : i64, tpu.core_type = #tpu.core_type<tc>, window_params = [{transform_indices = @transform_0, window_bounds = array<i64: 64, 288>}, {pipeline_mode = #tpu.pipeline_mode<synchronous>, transform_indices = @transform_1, window_bounds = array<i64: 288, 128>}, {pipeline_mode = #tpu.pipeline_mode<synchronous>, transform_indices = @transform_2, window_bounds = array<i64: 1, 128>}, {transform_indices = @transform_3, window_bounds = array<i64: 64, 128>}]} {
    %c0 = arith.constant 0 : index
    %c0_0 = arith.constant 0 : index
    %0 = vector.load %arg1[%c0, %c0_0] : memref<64x288xbf16, #tpu.memory_space<vmem>>, vector<64x288xbf16>
    %c0_1 = arith.constant 0 : index
    %c0_2 = arith.constant 0 : index
    %1 = vector.load %arg2[%c0_1, %c0_2] : memref<288x128xbf16, #tpu.memory_space<vmem>>, vector<288x128xbf16>
    %cst = arith.constant dense<0.000000e+00> : vector<64x128xf32>
    %2 = tpu.matmul %0, %1, %cst {dimension_numbers = #tpu.dot_dimension_numbers<[1], [0], [0], [1], [0, 0, 1, 1], [], []>} : vector<64x288xbf16>, vector<288x128xbf16>, vector<64x128xf32> -> vector<64x128xf32>
    %c0_3 = arith.constant 0 : index
    %c0_4 = arith.constant 0 : index
    %3 = vector.load %arg3[%c0_3, %c0_4] : memref<1x128xf32, #tpu.memory_space<vmem>>, vector<1x128xf32>
    %4 = vector.broadcast %3 : vector<1x128xf32> to vector<64x128xf32>
    %5 = arith.addf %2, %4 : vector<64x128xf32>
    %cst_5 = arith.constant 0.000000e+00 : f32
    %6 = vector.broadcast %cst_5 : f32 to vector<64x128xf32>
    %7 = arith.maximumf %5, %6 : vector<64x128xf32>
    %8 = arith.truncf %7 : vector<64x128xf32> to vector<64x128xbf16>
    %c0_6 = arith.constant 0 : index
    %c0_7 = arith.constant 0 : index
    %9 = vector.load %arg4[%c0_6, %c0_7] : memref<64x128xbf16, #tpu.memory_space<vmem>>, vector<64x128xbf16>
    tpu.vector_store %arg4[%c0_6, %c0_7], %8 {strides = array<i32>} : memref<64x128xbf16, #tpu.memory_space<vmem>>, vector<64x128xbf16>,
    return
  }
  func.func @transform_0(%arg0: i32) -> (i32, i32) {
    %c0_i32 = arith.constant 0 : i32
    %c0_i32_0 = arith.constant 0 : i32
    return %arg0, %c0_i32 : i32, i32
  }
  func.func @transform_1(%arg0: i32) -> (i32, i32) {
    %c0_i32 = arith.constant 0 : i32
    %c0_i32_0 = arith.constant 0 : i32
    %c0_i32_1 = arith.constant 0 : i32
    return %c0_i32, %c0_i32_0 : i32, i32
  }
  func.func @transform_2(%arg0: i32) -> (i32, i32) {
    %c0_i32 = arith.constant 0 : i32
    %c0_i32_0 = arith.constant 0 : i32
    %c0_i32_1 = arith.constant 0 : i32
    return %c0_i32, %c0_i32_0 : i32, i32
  }
  func.func @transform_3(%arg0: i32) -> (i32, i32) {
    %c0_i32 = arith.constant 0 : i32
    %c0_i32_0 = arith.constant 0 : i32
    return %arg0, %c0_i32 : i32, i32
  }
}

module attributes {stable_mosaic.version = 11 : i64} {
  func.func @_mm_bias_act_kernel(%arg0: i32, %arg1: memref<64x144xbf16, #tpu.memory_space<vmem>>, %arg2: memref<144x128xbf16, #tpu.memory_space<vmem>>, %arg3: memref<1x128xf32, #tpu.memory_space<vmem>>, %arg4: memref<64x128xbf16, #tpu.memory_space<vmem>>) attributes {dimension_semantics = [#tpu.dimension_semantics<parallel>], iteration_bounds = array<i64: 2>, scalar_prefetch = 0 : i64, scratch_operands = 0 : i64, tpu.core_type = #tpu.core_type<tc>, window_params = [{transform_indices = @transform_0, window_bounds = array<i64: 64, 144>}, {pipeline_mode = #tpu.pipeline_mode<synchronous>, transform_indices = @transform_1, window_bounds = array<i64: 144, 128>}, {pipeline_mode = #tpu.pipeline_mode<synchronous>, transform_indices = @transform_2, window_bounds = array<i64: 1, 128>}, {transform_indices = @transform_3, window_bounds = array<i64: 64, 128>}]} {
    %c0 = arith.constant 0 : index
    %c0_0 = arith.constant 0 : index
    %0 = vector.load %arg1[%c0, %c0_0] : memref<64x144xbf16, #tpu.memory_space<vmem>>, vector<64x144xbf16>
    %c0_1 = arith.constant 0 : index
    %c0_2 = arith.constant 0 : index
    %1 = vector.load %arg2[%c0_1, %c0_2] : memref<144x128xbf16, #tpu.memory_space<vmem>>, vector<144x128xbf16>
    %cst = arith.constant dense<0.000000e+00> : vector<64x128xf32>
    %2 = tpu.matmul %0, %1, %cst {dimension_numbers = #tpu.dot_dimension_numbers<[1], [0], [0], [1], [0, 0, 1, 1], [], []>} : vector<64x144xbf16>, vector<144x128xbf16>, vector<64x128xf32> -> vector<64x128xf32>
    %c0_3 = arith.constant 0 : index
    %c0_4 = arith.constant 0 : index
    %3 = vector.load %arg3[%c0_3, %c0_4] : memref<1x128xf32, #tpu.memory_space<vmem>>, vector<1x128xf32>
    %4 = vector.broadcast %3 : vector<1x128xf32> to vector<64x128xf32>
    %5 = arith.addf %2, %4 : vector<64x128xf32>
    %cst_5 = arith.constant 0.000000e+00 : f32
    %6 = vector.broadcast %cst_5 : f32 to vector<64x128xf32>
    %7 = arith.maximumf %5, %6 : vector<64x128xf32>
    %8 = arith.truncf %7 : vector<64x128xf32> to vector<64x128xbf16>
    %c0_6 = arith.constant 0 : index
    %c0_7 = arith.constant 0 : index
    %9 = vector.load %arg4[%c0_6, %c0_7] : memref<64x128xbf16, #tpu.memory_space<vmem>>, vector<64x128xbf16>
    tpu.vector_store %arg4[%c0_6, %c0_7], %8 {strides = array<i32>} : memref<64x128xbf16, #tpu.memory_space<vmem>>, vector<64x128xbf16>,
    return
  }
  func.func @transform_0(%arg0: i32) -> (i32, i32) {
    %c0_i32 = arith.constant 0 : i32
    %c0_i32_0 = arith.constant 0 : i32
    return %arg0, %c0_i32 : i32, i32
  }
  func.func @transform_1(%arg0: i32) -> (i32, i32) {
    %c0_i32 = arith.constant 0 : i32
    %c0_i32_0 = arith.constant 0 : i32
    %c0_i32_1 = arith.constant 0 : i32
    return %c0_i32, %c0_i32_0 : i32, i32
  }
  func.func @transform_2(%arg0: i32) -> (i32, i32) {
    %c0_i32 = arith.constant 0 : i32
    %c0_i32_0 = arith.constant 0 : i32
    %c0_i32_1 = arith.constant 0 : i32
    return %c0_i32, %c0_i32_0 : i32, i32
  }
  func.func @transform_3(%arg0: i32) -> (i32, i32) {
    %c0_i32 = arith.constant 0 : i32
    %c0_i32_0 = arith.constant 0 : i32
    return %arg0, %c0_i32 : i32, i32
  }
}

module attributes {stable_mosaic.version = 11 : i64} {
  func.func @_mm_bias_act_kernel(%arg0: i32, %arg1: memref<64x72xbf16, #tpu.memory_space<vmem>>, %arg2: memref<72x128xbf16, #tpu.memory_space<vmem>>, %arg3: memref<1x128xf32, #tpu.memory_space<vmem>>, %arg4: memref<64x128xbf16, #tpu.memory_space<vmem>>) attributes {dimension_semantics = [#tpu.dimension_semantics<parallel>], iteration_bounds = array<i64: 2>, scalar_prefetch = 0 : i64, scratch_operands = 0 : i64, tpu.core_type = #tpu.core_type<tc>, window_params = [{transform_indices = @transform_0, window_bounds = array<i64: 64, 72>}, {pipeline_mode = #tpu.pipeline_mode<synchronous>, transform_indices = @transform_1, window_bounds = array<i64: 72, 128>}, {pipeline_mode = #tpu.pipeline_mode<synchronous>, transform_indices = @transform_2, window_bounds = array<i64: 1, 128>}, {transform_indices = @transform_3, window_bounds = array<i64: 64, 128>}]} {
    %c0 = arith.constant 0 : index
    %c0_0 = arith.constant 0 : index
    %0 = vector.load %arg1[%c0, %c0_0] : memref<64x72xbf16, #tpu.memory_space<vmem>>, vector<64x72xbf16>
    %c0_1 = arith.constant 0 : index
    %c0_2 = arith.constant 0 : index
    %1 = vector.load %arg2[%c0_1, %c0_2] : memref<72x128xbf16, #tpu.memory_space<vmem>>, vector<72x128xbf16>
    %cst = arith.constant dense<0.000000e+00> : vector<64x128xf32>
    %2 = tpu.matmul %0, %1, %cst {dimension_numbers = #tpu.dot_dimension_numbers<[1], [0], [0], [1], [0, 0, 1, 1], [], []>} : vector<64x72xbf16>, vector<72x128xbf16>, vector<64x128xf32> -> vector<64x128xf32>
    %c0_3 = arith.constant 0 : index
    %c0_4 = arith.constant 0 : index
    %3 = vector.load %arg3[%c0_3, %c0_4] : memref<1x128xf32, #tpu.memory_space<vmem>>, vector<1x128xf32>
    %4 = vector.broadcast %3 : vector<1x128xf32> to vector<64x128xf32>
    %5 = arith.addf %2, %4 : vector<64x128xf32>
    %cst_5 = arith.constant 0.000000e+00 : f32
    %6 = vector.broadcast %cst_5 : f32 to vector<64x128xf32>
    %7 = arith.maximumf %5, %6 : vector<64x128xf32>
    %8 = arith.truncf %7 : vector<64x128xf32> to vector<64x128xbf16>
    %c0_6 = arith.constant 0 : index
    %c0_7 = arith.constant 0 : index
    %9 = vector.load %arg4[%c0_6, %c0_7] : memref<64x128xbf16, #tpu.memory_space<vmem>>, vector<64x128xbf16>
    tpu.vector_store %arg4[%c0_6, %c0_7], %8 {strides = array<i32>} : memref<64x128xbf16, #tpu.memory_space<vmem>>, vector<64x128xbf16>,
    return
  }
  func.func @transform_0(%arg0: i32) -> (i32, i32) {
    %c0_i32 = arith.constant 0 : i32
    %c0_i32_0 = arith.constant 0 : i32
    return %arg0, %c0_i32 : i32, i32
  }
  func.func @transform_1(%arg0: i32) -> (i32, i32) {
    %c0_i32 = arith.constant 0 : i32
    %c0_i32_0 = arith.constant 0 : i32
    %c0_i32_1 = arith.constant 0 : i32
    return %c0_i32, %c0_i32_0 : i32, i32
  }
  func.func @transform_2(%arg0: i32) -> (i32, i32) {
    %c0_i32 = arith.constant 0 : i32
    %c0_i32_0 = arith.constant 0 : i32
    %c0_i32_1 = arith.constant 0 : i32
    return %c0_i32, %c0_i32_0 : i32, i32
  }
  func.func @transform_3(%arg0: i32) -> (i32, i32) {
    %c0_i32 = arith.constant 0 : i32
    %c0_i32_0 = arith.constant 0 : i32
    return %arg0, %c0_i32 : i32, i32
  }
}

module attributes {stable_mosaic.version = 11 : i64} {
  func.func @_mm_bias_act_kernel(%arg0: i32, %arg1: memref<64x64xbf16, #tpu.memory_space<vmem>>, %arg2: memref<64x128xbf16, #tpu.memory_space<vmem>>, %arg3: memref<1x128xf32, #tpu.memory_space<vmem>>, %arg4: memref<64x128xbf16, #tpu.memory_space<vmem>>) attributes {dimension_semantics = [#tpu.dimension_semantics<parallel>], iteration_bounds = array<i64: 2>, scalar_prefetch = 0 : i64, scratch_operands = 0 : i64, tpu.core_type = #tpu.core_type<tc>, window_params = [{transform_indices = @transform_0, window_bounds = array<i64: 64, 64>}, {pipeline_mode = #tpu.pipeline_mode<synchronous>, transform_indices = @transform_1, window_bounds = array<i64: 64, 128>}, {pipeline_mode = #tpu.pipeline_mode<synchronous>, transform_indices = @transform_2, window_bounds = array<i64: 1, 128>}, {transform_indices = @transform_3, window_bounds = array<i64: 64, 128>}]} {
    %c0 = arith.constant 0 : index
    %c0_0 = arith.constant 0 : index
    %0 = vector.load %arg1[%c0, %c0_0] : memref<64x64xbf16, #tpu.memory_space<vmem>>, vector<64x64xbf16>
    %c0_1 = arith.constant 0 : index
    %c0_2 = arith.constant 0 : index
    %1 = vector.load %arg2[%c0_1, %c0_2] : memref<64x128xbf16, #tpu.memory_space<vmem>>, vector<64x128xbf16>
    %cst = arith.constant dense<0.000000e+00> : vector<64x128xf32>
    %2 = tpu.matmul %0, %1, %cst {dimension_numbers = #tpu.dot_dimension_numbers<[1], [0], [0], [1], [0, 0, 1, 1], [], []>} : vector<64x64xbf16>, vector<64x128xbf16>, vector<64x128xf32> -> vector<64x128xf32>
    %c0_3 = arith.constant 0 : index
    %c0_4 = arith.constant 0 : index
    %3 = vector.load %arg3[%c0_3, %c0_4] : memref<1x128xf32, #tpu.memory_space<vmem>>, vector<1x128xf32>
    %4 = vector.broadcast %3 : vector<1x128xf32> to vector<64x128xf32>
    %5 = arith.addf %2, %4 : vector<64x128xf32>
    %cst_5 = arith.constant 0.000000e+00 : f32
    %6 = vector.broadcast %cst_5 : f32 to vector<64x128xf32>
    %7 = arith.maximumf %5, %6 : vector<64x128xf32>
    %8 = arith.truncf %7 : vector<64x128xf32> to vector<64x128xbf16>
    %c0_6 = arith.constant 0 : index
    %c0_7 = arith.constant 0 : index
    %9 = vector.load %arg4[%c0_6, %c0_7] : memref<64x128xbf16, #tpu.memory_space<vmem>>, vector<64x128xbf16>
    tpu.vector_store %arg4[%c0_6, %c0_7], %8 {strides = array<i32>} : memref<64x128xbf16, #tpu.memory_space<vmem>>, vector<64x128xbf16>,
    return
  }
  func.func @transform_0(%arg0: i32) -> (i32, i32) {
    %c0_i32 = arith.constant 0 : i32
    %c0_i32_0 = arith.constant 0 : i32
    return %arg0, %c0_i32 : i32, i32
  }
  func.func @transform_1(%arg0: i32) -> (i32, i32) {
    %c0_i32 = arith.constant 0 : i32
    %c0_i32_0 = arith.constant 0 : i32
    %c0_i32_1 = arith.constant 0 : i32
    return %c0_i32, %c0_i32_0 : i32, i32
  }
  func.func @transform_2(%arg0: i32) -> (i32, i32) {
    %c0_i32 = arith.constant 0 : i32
    %c0_i32_0 = arith.constant 0 : i32
    %c0_i32_1 = arith.constant 0 : i32
    return %c0_i32, %c0_i32_0 : i32, i32
  }
  func.func @transform_3(%arg0: i32) -> (i32, i32) {
    %c0_i32 = arith.constant 0 : i32
    %c0_i32_0 = arith.constant 0 : i32
    return %arg0, %c0_i32 : i32, i32
  }
}

module attributes {stable_mosaic.version = 11 : i64} {
  func.func @_dw_pool_kernel(%arg0: i32, %arg1: memref<9x16x128xbf16, #tpu.memory_space<vmem>>, %arg2: memref<9x1x128xf32, #tpu.memory_space<vmem>>, %arg3: memref<1x128xf32, #tpu.memory_space<vmem>>, %arg4: memref<16x128xbf16, #tpu.memory_space<vmem>>, %arg5: memref<16x128xbf16, #tpu.memory_space<vmem>>) attributes {dimension_semantics = [#tpu.dimension_semantics<parallel>], iteration_bounds = array<i64: 2>, scalar_prefetch = 0 : i64, scratch_operands = 0 : i64, tpu.core_type = #tpu.core_type<tc>, window_params = [{transform_indices = @transform_0, window_bounds = array<i64: 9, 16, 128>}, {pipeline_mode = #tpu.pipeline_mode<synchronous>, transform_indices = @transform_1, window_bounds = array<i64: 9, 1, 128>}, {pipeline_mode = #tpu.pipeline_mode<synchronous>, transform_indices = @transform_2, window_bounds = array<i64: 1, 128>}, {transform_indices = @transform_3, window_bounds = array<i64: 16, 128>}, {transform_indices = @transform_4, window_bounds = array<i64: 16, 128>}]} {
    %c0 = arith.constant 0 : index
    %c0_0 = arith.constant 0 : index
    %c0_1 = arith.constant 0 : index
    %0 = vector.load %arg1[%c0, %c0_0, %c0_1] : memref<9x16x128xbf16, #tpu.memory_space<vmem>>, vector<1x16x128xbf16>
    %1 = vector.shape_cast %0 : vector<1x16x128xbf16> to vector<16x128xbf16>
    %2 = arith.extf %1 : vector<16x128xbf16> to vector<16x128xf32>
    %c0_2 = arith.constant 0 : index
    %c0_3 = arith.constant 0 : index
    %c0_4 = arith.constant 0 : index
    %3 = vector.load %arg2[%c0_2, %c0_3, %c0_4] : memref<9x1x128xf32, #tpu.memory_space<vmem>>, vector<1x1x128xf32>
    %4 = vector.shape_cast %3 : vector<1x1x128xf32> to vector<1x128xf32>
    %5 = vector.broadcast %4 : vector<1x128xf32> to vector<16x128xf32>
    %6 = arith.mulf %2, %5 : vector<16x128xf32>
    %c1 = arith.constant 1 : index
    %c0_5 = arith.constant 0 : index
    %c0_6 = arith.constant 0 : index
    %7 = vector.load %arg1[%c1, %c0_5, %c0_6] : memref<9x16x128xbf16, #tpu.memory_space<vmem>>, vector<1x16x128xbf16>
    %8 = vector.shape_cast %7 : vector<1x16x128xbf16> to vector<16x128xbf16>
    %9 = arith.extf %8 : vector<16x128xbf16> to vector<16x128xf32>
    %c1_7 = arith.constant 1 : index
    %c0_8 = arith.constant 0 : index
    %c0_9 = arith.constant 0 : index
    %10 = vector.load %arg2[%c1_7, %c0_8, %c0_9] : memref<9x1x128xf32, #tpu.memory_space<vmem>>, vector<1x1x128xf32>
    %11 = vector.shape_cast %10 : vector<1x1x128xf32> to vector<1x128xf32>
    %12 = vector.broadcast %11 : vector<1x128xf32> to vector<16x128xf32>
    %13 = arith.mulf %9, %12 : vector<16x128xf32>
    %14 = arith.addf %6, %13 : vector<16x128xf32>
    %15 = arith.addf %2, %9 : vector<16x128xf32>
    %c2 = arith.constant 2 : index
    %c0_10 = arith.constant 0 : index
    %c0_11 = arith.constant 0 : index
    %16 = vector.load %arg1[%c2, %c0_10, %c0_11] : memref<9x16x128xbf16, #tpu.memory_space<vmem>>, vector<1x16x128xbf16>
    %17 = vector.shape_cast %16 : vector<1x16x128xbf16> to vector<16x128xbf16>
    %18 = arith.extf %17 : vector<16x128xbf16> to vector<16x128xf32>
    %c2_12 = arith.constant 2 : index
    %c0_13 = arith.constant 0 : index
    %c0_14 = arith.constant 0 : index
    %19 = vector.load %arg2[%c2_12, %c0_13, %c0_14] : memref<9x1x128xf32, #tpu.memory_space<vmem>>, vector<1x1x128xf32>
    %20 = vector.shape_cast %19 : vector<1x1x128xf32> to vector<1x128xf32>
    %21 = vector.broadcast %20 : vector<1x128xf32> to vector<16x128xf32>
    %22 = arith.mulf %18, %21 : vector<16x128xf32>
    %23 = arith.addf %14, %22 : vector<16x128xf32>
    %24 = arith.addf %15, %18 : vector<16x128xf32>
    %c3 = arith.constant 3 : index
    %c0_15 = arith.constant 0 : index
    %c0_16 = arith.constant 0 : index
    %25 = vector.load %arg1[%c3, %c0_15, %c0_16] : memref<9x16x128xbf16, #tpu.memory_space<vmem>>, vector<1x16x128xbf16>
    %26 = vector.shape_cast %25 : vector<1x16x128xbf16> to vector<16x128xbf16>
    %27 = arith.extf %26 : vector<16x128xbf16> to vector<16x128xf32>
    %c3_17 = arith.constant 3 : index
    %c0_18 = arith.constant 0 : index
    %c0_19 = arith.constant 0 : index
    %28 = vector.load %arg2[%c3_17, %c0_18, %c0_19] : memref<9x1x128xf32, #tpu.memory_space<vmem>>, vector<1x1x128xf32>
    %29 = vector.shape_cast %28 : vector<1x1x128xf32> to vector<1x128xf32>
    %30 = vector.broadcast %29 : vector<1x128xf32> to vector<16x128xf32>
    %31 = arith.mulf %27, %30 : vector<16x128xf32>
    %32 = arith.addf %23, %31 : vector<16x128xf32>
    %33 = arith.addf %24, %27 : vector<16x128xf32>
    %c4 = arith.constant 4 : index
    %c0_20 = arith.constant 0 : index
    %c0_21 = arith.constant 0 : index
    %34 = vector.load %arg1[%c4, %c0_20, %c0_21] : memref<9x16x128xbf16, #tpu.memory_space<vmem>>, vector<1x16x128xbf16>
    %35 = vector.shape_cast %34 : vector<1x16x128xbf16> to vector<16x128xbf16>
    %36 = arith.extf %35 : vector<16x128xbf16> to vector<16x128xf32>
    %c4_22 = arith.constant 4 : index
    %c0_23 = arith.constant 0 : index
    %c0_24 = arith.constant 0 : index
    %37 = vector.load %arg2[%c4_22, %c0_23, %c0_24] : memref<9x1x128xf32, #tpu.memory_space<vmem>>, vector<1x1x128xf32>
    %38 = vector.shape_cast %37 : vector<1x1x128xf32> to vector<1x128xf32>
    %39 = vector.broadcast %38 : vector<1x128xf32> to vector<16x128xf32>
    %40 = arith.mulf %36, %39 : vector<16x128xf32>
    %41 = arith.addf %32, %40 : vector<16x128xf32>
    %42 = arith.addf %33, %36 : vector<16x128xf32>
    %c5 = arith.constant 5 : index
    %c0_25 = arith.constant 0 : index
    %c0_26 = arith.constant 0 : index
    %43 = vector.load %arg1[%c5, %c0_25, %c0_26] : memref<9x16x128xbf16, #tpu.memory_space<vmem>>, vector<1x16x128xbf16>
    %44 = vector.shape_cast %43 : vector<1x16x128xbf16> to vector<16x128xbf16>
    %45 = arith.extf %44 : vector<16x128xbf16> to vector<16x128xf32>
    %c5_27 = arith.constant 5 : index
    %c0_28 = arith.constant 0 : index
    %c0_29 = arith.constant 0 : index
    %46 = vector.load %arg2[%c5_27, %c0_28, %c0_29] : memref<9x1x128xf32, #tpu.memory_space<vmem>>, vector<1x1x128xf32>
    %47 = vector.shape_cast %46 : vector<1x1x128xf32> to vector<1x128xf32>
    %48 = vector.broadcast %47 : vector<1x128xf32> to vector<16x128xf32>
    %49 = arith.mulf %45, %48 : vector<16x128xf32>
    %50 = arith.addf %41, %49 : vector<16x128xf32>
    %51 = arith.addf %42, %45 : vector<16x128xf32>
    %c6 = arith.constant 6 : index
    %c0_30 = arith.constant 0 : index
    %c0_31 = arith.constant 0 : index
    %52 = vector.load %arg1[%c6, %c0_30, %c0_31] : memref<9x16x128xbf16, #tpu.memory_space<vmem>>, vector<1x16x128xbf16>
    %53 = vector.shape_cast %52 : vector<1x16x128xbf16> to vector<16x128xbf16>
    %54 = arith.extf %53 : vector<16x128xbf16> to vector<16x128xf32>
    %c6_32 = arith.constant 6 : index
    %c0_33 = arith.constant 0 : index
    %c0_34 = arith.constant 0 : index
    %55 = vector.load %arg2[%c6_32, %c0_33, %c0_34] : memref<9x1x128xf32, #tpu.memory_space<vmem>>, vector<1x1x128xf32>
    %56 = vector.shape_cast %55 : vector<1x1x128xf32> to vector<1x128xf32>
    %57 = vector.broadcast %56 : vector<1x128xf32> to vector<16x128xf32>
    %58 = arith.mulf %54, %57 : vector<16x128xf32>
    %59 = arith.addf %50, %58 : vector<16x128xf32>
    %60 = arith.addf %51, %54 : vector<16x128xf32>
    %c7 = arith.constant 7 : index
    %c0_35 = arith.constant 0 : index
    %c0_36 = arith.constant 0 : index
    %61 = vector.load %arg1[%c7, %c0_35, %c0_36] : memref<9x16x128xbf16, #tpu.memory_space<vmem>>, vector<1x16x128xbf16>
    %62 = vector.shape_cast %61 : vector<1x16x128xbf16> to vector<16x128xbf16>
    %63 = arith.extf %62 : vector<16x128xbf16> to vector<16x128xf32>
    %c7_37 = arith.constant 7 : index
    %c0_38 = arith.constant 0 : index
    %c0_39 = arith.constant 0 : index
    %64 = vector.load %arg2[%c7_37, %c0_38, %c0_39] : memref<9x1x128xf32, #tpu.memory_space<vmem>>, vector<1x1x128xf32>
    %65 = vector.shape_cast %64 : vector<1x1x128xf32> to vector<1x128xf32>
    %66 = vector.broadcast %65 : vector<1x128xf32> to vector<16x128xf32>
    %67 = arith.mulf %63, %66 : vector<16x128xf32>
    %68 = arith.addf %59, %67 : vector<16x128xf32>
    %69 = arith.addf %60, %63 : vector<16x128xf32>
    %c8 = arith.constant 8 : index
    %c0_40 = arith.constant 0 : index
    %c0_41 = arith.constant 0 : index
    %70 = vector.load %arg1[%c8, %c0_40, %c0_41] : memref<9x16x128xbf16, #tpu.memory_space<vmem>>, vector<1x16x128xbf16>
    %71 = vector.shape_cast %70 : vector<1x16x128xbf16> to vector<16x128xbf16>
    %72 = arith.extf %71 : vector<16x128xbf16> to vector<16x128xf32>
    %c8_42 = arith.constant 8 : index
    %c0_43 = arith.constant 0 : index
    %c0_44 = arith.constant 0 : index
    %73 = vector.load %arg2[%c8_42, %c0_43, %c0_44] : memref<9x1x128xf32, #tpu.memory_space<vmem>>, vector<1x1x128xf32>
    %74 = vector.shape_cast %73 : vector<1x1x128xf32> to vector<1x128xf32>
    %75 = vector.broadcast %74 : vector<1x128xf32> to vector<16x128xf32>
    %76 = arith.mulf %72, %75 : vector<16x128xf32>
    %77 = arith.addf %68, %76 : vector<16x128xf32>
    %78 = arith.addf %69, %72 : vector<16x128xf32>
    %c0_45 = arith.constant 0 : index
    %c0_46 = arith.constant 0 : index
    %79 = vector.load %arg3[%c0_45, %c0_46] : memref<1x128xf32, #tpu.memory_space<vmem>>, vector<1x128xf32>
    %80 = vector.broadcast %79 : vector<1x128xf32> to vector<16x128xf32>
    %81 = arith.addf %77, %80 : vector<16x128xf32>
    %82 = arith.truncf %81 : vector<16x128xf32> to vector<16x128xbf16>
    %c0_47 = arith.constant 0 : index
    %c0_48 = arith.constant 0 : index
    %83 = vector.load %arg4[%c0_47, %c0_48] : memref<16x128xbf16, #tpu.memory_space<vmem>>, vector<16x128xbf16>
    tpu.vector_store %arg4[%c0_47, %c0_48], %82 {strides = array<i32>} : memref<16x128xbf16, #tpu.memory_space<vmem>>, vector<16x128xbf16>,
    %cst = arith.constant 0.111111112 : f32
    %84 = vector.broadcast %cst : f32 to vector<16x128xf32>
    %85 = arith.mulf %78, %84 : vector<16x128xf32>
    %86 = arith.truncf %85 : vector<16x128xf32> to vector<16x128xbf16>
    %c0_49 = arith.constant 0 : index
    %c0_50 = arith.constant 0 : index
    %87 = vector.load %arg5[%c0_49, %c0_50] : memref<16x128xbf16, #tpu.memory_space<vmem>>, vector<16x128xbf16>
    tpu.vector_store %arg5[%c0_49, %c0_50], %86 {strides = array<i32>} : memref<16x128xbf16, #tpu.memory_space<vmem>>, vector<16x128xbf16>,
    return
  }
  func.func @transform_0(%arg0: i32) -> (i32, i32, i32) {
    %c0_i32 = arith.constant 0 : i32
    %c0_i32_0 = arith.constant 0 : i32
    %c0_i32_1 = arith.constant 0 : i32
    return %c0_i32, %arg0, %c0_i32_0 : i32, i32, i32
  }
  func.func @transform_1(%arg0: i32) -> (i32, i32, i32) {
    %c0_i32 = arith.constant 0 : i32
    %c0_i32_0 = arith.constant 0 : i32
    %c0_i32_1 = arith.constant 0 : i32
    %c0_i32_2 = arith.constant 0 : i32
    return %c0_i32, %c0_i32_0, %c0_i32_1 : i32, i32, i32
  }
  func.func @transform_2(%arg0: i32) -> (i32, i32) {
    %c0_i32 = arith.constant 0 : i32
    %c0_i32_0 = arith.constant 0 : i32
    %c0_i32_1 = arith.constant 0 : i32
    return %c0_i32, %c0_i32_0 : i32, i32
  }
  func.func @transform_3(%arg0: i32) -> (i32, i32) {
    %c0_i32 = arith.constant 0 : i32
    %c0_i32_0 = arith.constant 0 : i32
    return %arg0, %c0_i32 : i32, i32
  }
  func.func @transform_4(%arg0: i32) -> (i32, i32) {
    %c0_i32 = arith.constant 0 : i32
    %c0_i32_0 = arith.constant 0 : i32
    return %arg0, %c0_i32 : i32, i32
  }
}

module attributes {stable_mosaic.version = 11 : i64} {
  func.func @_mm_bias_act_kernel(%arg0: i32, %arg1: memref<16x576xbf16, #tpu.memory_space<vmem>>, %arg2: memref<576x128xbf16, #tpu.memory_space<vmem>>, %arg3: memref<1x128xf32, #tpu.memory_space<vmem>>, %arg4: memref<16x128xbf16, #tpu.memory_space<vmem>>) attributes {dimension_semantics = [#tpu.dimension_semantics<parallel>], iteration_bounds = array<i64: 2>, scalar_prefetch = 0 : i64, scratch_operands = 0 : i64, tpu.core_type = #tpu.core_type<tc>, window_params = [{transform_indices = @transform_0, window_bounds = array<i64: 16, 576>}, {pipeline_mode = #tpu.pipeline_mode<synchronous>, transform_indices = @transform_1, window_bounds = array<i64: 576, 128>}, {pipeline_mode = #tpu.pipeline_mode<synchronous>, transform_indices = @transform_2, window_bounds = array<i64: 1, 128>}, {transform_indices = @transform_3, window_bounds = array<i64: 16, 128>}]} {
    %c0 = arith.constant 0 : index
    %c0_0 = arith.constant 0 : index
    %0 = vector.load %arg1[%c0, %c0_0] : memref<16x576xbf16, #tpu.memory_space<vmem>>, vector<16x576xbf16>
    %c0_1 = arith.constant 0 : index
    %c0_2 = arith.constant 0 : index
    %1 = vector.load %arg2[%c0_1, %c0_2] : memref<576x128xbf16, #tpu.memory_space<vmem>>, vector<576x128xbf16>
    %cst = arith.constant dense<0.000000e+00> : vector<16x128xf32>
    %2 = tpu.matmul %0, %1, %cst {dimension_numbers = #tpu.dot_dimension_numbers<[1], [0], [0], [1], [0, 0, 1, 1], [], []>} : vector<16x576xbf16>, vector<576x128xbf16>, vector<16x128xf32> -> vector<16x128xf32>
    %c0_3 = arith.constant 0 : index
    %c0_4 = arith.constant 0 : index
    %3 = vector.load %arg3[%c0_3, %c0_4] : memref<1x128xf32, #tpu.memory_space<vmem>>, vector<1x128xf32>
    %4 = vector.broadcast %3 : vector<1x128xf32> to vector<16x128xf32>
    %5 = arith.addf %2, %4 : vector<16x128xf32>
    %cst_5 = arith.constant 0.000000e+00 : f32
    %6 = vector.broadcast %cst_5 : f32 to vector<16x128xf32>
    %7 = arith.maximumf %5, %6 : vector<16x128xf32>
    %8 = arith.truncf %7 : vector<16x128xf32> to vector<16x128xbf16>
    %c0_6 = arith.constant 0 : index
    %c0_7 = arith.constant 0 : index
    %9 = vector.load %arg4[%c0_6, %c0_7] : memref<16x128xbf16, #tpu.memory_space<vmem>>, vector<16x128xbf16>
    tpu.vector_store %arg4[%c0_6, %c0_7], %8 {strides = array<i32>} : memref<16x128xbf16, #tpu.memory_space<vmem>>, vector<16x128xbf16>,
    return
  }
  func.func @transform_0(%arg0: i32) -> (i32, i32) {
    %c0_i32 = arith.constant 0 : i32
    %c0_i32_0 = arith.constant 0 : i32
    return %arg0, %c0_i32 : i32, i32
  }
  func.func @transform_1(%arg0: i32) -> (i32, i32) {
    %c0_i32 = arith.constant 0 : i32
    %c0_i32_0 = arith.constant 0 : i32
    %c0_i32_1 = arith.constant 0 : i32
    return %c0_i32, %c0_i32_0 : i32, i32
  }
  func.func @transform_2(%arg0: i32) -> (i32, i32) {
    %c0_i32 = arith.constant 0 : i32
    %c0_i32_0 = arith.constant 0 : i32
    %c0_i32_1 = arith.constant 0 : i32
    return %c0_i32, %c0_i32_0 : i32, i32
  }
  func.func @transform_3(%arg0: i32) -> (i32, i32) {
    %c0_i32 = arith.constant 0 : i32
    %c0_i32_0 = arith.constant 0 : i32
    return %arg0, %c0_i32 : i32, i32
  }
}

module attributes {stable_mosaic.version = 11 : i64} {
  func.func @_mm_bias_act_kernel(%arg0: i32, %arg1: memref<16x288xbf16, #tpu.memory_space<vmem>>, %arg2: memref<288x128xbf16, #tpu.memory_space<vmem>>, %arg3: memref<1x128xf32, #tpu.memory_space<vmem>>, %arg4: memref<16x128xbf16, #tpu.memory_space<vmem>>) attributes {dimension_semantics = [#tpu.dimension_semantics<parallel>], iteration_bounds = array<i64: 2>, scalar_prefetch = 0 : i64, scratch_operands = 0 : i64, tpu.core_type = #tpu.core_type<tc>, window_params = [{transform_indices = @transform_0, window_bounds = array<i64: 16, 288>}, {pipeline_mode = #tpu.pipeline_mode<synchronous>, transform_indices = @transform_1, window_bounds = array<i64: 288, 128>}, {pipeline_mode = #tpu.pipeline_mode<synchronous>, transform_indices = @transform_2, window_bounds = array<i64: 1, 128>}, {transform_indices = @transform_3, window_bounds = array<i64: 16, 128>}]} {
    %c0 = arith.constant 0 : index
    %c0_0 = arith.constant 0 : index
    %0 = vector.load %arg1[%c0, %c0_0] : memref<16x288xbf16, #tpu.memory_space<vmem>>, vector<16x288xbf16>
    %c0_1 = arith.constant 0 : index
    %c0_2 = arith.constant 0 : index
    %1 = vector.load %arg2[%c0_1, %c0_2] : memref<288x128xbf16, #tpu.memory_space<vmem>>, vector<288x128xbf16>
    %cst = arith.constant dense<0.000000e+00> : vector<16x128xf32>
    %2 = tpu.matmul %0, %1, %cst {dimension_numbers = #tpu.dot_dimension_numbers<[1], [0], [0], [1], [0, 0, 1, 1], [], []>} : vector<16x288xbf16>, vector<288x128xbf16>, vector<16x128xf32> -> vector<16x128xf32>
    %c0_3 = arith.constant 0 : index
    %c0_4 = arith.constant 0 : index
    %3 = vector.load %arg3[%c0_3, %c0_4] : memref<1x128xf32, #tpu.memory_space<vmem>>, vector<1x128xf32>
    %4 = vector.broadcast %3 : vector<1x128xf32> to vector<16x128xf32>
    %5 = arith.addf %2, %4 : vector<16x128xf32>
    %cst_5 = arith.constant 0.000000e+00 : f32
    %6 = vector.broadcast %cst_5 : f32 to vector<16x128xf32>
    %7 = arith.maximumf %5, %6 : vector<16x128xf32>
    %8 = arith.truncf %7 : vector<16x128xf32> to vector<16x128xbf16>
    %c0_6 = arith.constant 0 : index
    %c0_7 = arith.constant 0 : index
    %9 = vector.load %arg4[%c0_6, %c0_7] : memref<16x128xbf16, #tpu.memory_space<vmem>>, vector<16x128xbf16>
    tpu.vector_store %arg4[%c0_6, %c0_7], %8 {strides = array<i32>} : memref<16x128xbf16, #tpu.memory_space<vmem>>, vector<16x128xbf16>,
    return
  }
  func.func @transform_0(%arg0: i32) -> (i32, i32) {
    %c0_i32 = arith.constant 0 : i32
    %c0_i32_0 = arith.constant 0 : i32
    return %arg0, %c0_i32 : i32, i32
  }
  func.func @transform_1(%arg0: i32) -> (i32, i32) {
    %c0_i32 = arith.constant 0 : i32
    %c0_i32_0 = arith.constant 0 : i32
    %c0_i32_1 = arith.constant 0 : i32
    return %c0_i32, %c0_i32_0 : i32, i32
  }
  func.func @transform_2(%arg0: i32) -> (i32, i32) {
    %c0_i32 = arith.constant 0 : i32
    %c0_i32_0 = arith.constant 0 : i32
    %c0_i32_1 = arith.constant 0 : i32
    return %c0_i32, %c0_i32_0 : i32, i32
  }
  func.func @transform_3(%arg0: i32) -> (i32, i32) {
    %c0_i32 = arith.constant 0 : i32
    %c0_i32_0 = arith.constant 0 : i32
    return %arg0, %c0_i32 : i32, i32
  }
}

module attributes {stable_mosaic.version = 11 : i64} {
  func.func @_mm_bias_act_kernel(%arg0: i32, %arg1: memref<16x144xbf16, #tpu.memory_space<vmem>>, %arg2: memref<144x128xbf16, #tpu.memory_space<vmem>>, %arg3: memref<1x128xf32, #tpu.memory_space<vmem>>, %arg4: memref<16x128xbf16, #tpu.memory_space<vmem>>) attributes {dimension_semantics = [#tpu.dimension_semantics<parallel>], iteration_bounds = array<i64: 2>, scalar_prefetch = 0 : i64, scratch_operands = 0 : i64, tpu.core_type = #tpu.core_type<tc>, window_params = [{transform_indices = @transform_0, window_bounds = array<i64: 16, 144>}, {pipeline_mode = #tpu.pipeline_mode<synchronous>, transform_indices = @transform_1, window_bounds = array<i64: 144, 128>}, {pipeline_mode = #tpu.pipeline_mode<synchronous>, transform_indices = @transform_2, window_bounds = array<i64: 1, 128>}, {transform_indices = @transform_3, window_bounds = array<i64: 16, 128>}]} {
    %c0 = arith.constant 0 : index
    %c0_0 = arith.constant 0 : index
    %0 = vector.load %arg1[%c0, %c0_0] : memref<16x144xbf16, #tpu.memory_space<vmem>>, vector<16x144xbf16>
    %c0_1 = arith.constant 0 : index
    %c0_2 = arith.constant 0 : index
    %1 = vector.load %arg2[%c0_1, %c0_2] : memref<144x128xbf16, #tpu.memory_space<vmem>>, vector<144x128xbf16>
    %cst = arith.constant dense<0.000000e+00> : vector<16x128xf32>
    %2 = tpu.matmul %0, %1, %cst {dimension_numbers = #tpu.dot_dimension_numbers<[1], [0], [0], [1], [0, 0, 1, 1], [], []>} : vector<16x144xbf16>, vector<144x128xbf16>, vector<16x128xf32> -> vector<16x128xf32>
    %c0_3 = arith.constant 0 : index
    %c0_4 = arith.constant 0 : index
    %3 = vector.load %arg3[%c0_3, %c0_4] : memref<1x128xf32, #tpu.memory_space<vmem>>, vector<1x128xf32>
    %4 = vector.broadcast %3 : vector<1x128xf32> to vector<16x128xf32>
    %5 = arith.addf %2, %4 : vector<16x128xf32>
    %cst_5 = arith.constant 0.000000e+00 : f32
    %6 = vector.broadcast %cst_5 : f32 to vector<16x128xf32>
    %7 = arith.maximumf %5, %6 : vector<16x128xf32>
    %8 = arith.truncf %7 : vector<16x128xf32> to vector<16x128xbf16>
    %c0_6 = arith.constant 0 : index
    %c0_7 = arith.constant 0 : index
    %9 = vector.load %arg4[%c0_6, %c0_7] : memref<16x128xbf16, #tpu.memory_space<vmem>>, vector<16x128xbf16>
    tpu.vector_store %arg4[%c0_6, %c0_7], %8 {strides = array<i32>} : memref<16x128xbf16, #tpu.memory_space<vmem>>, vector<16x128xbf16>,
    return
  }
  func.func @transform_0(%arg0: i32) -> (i32, i32) {
    %c0_i32 = arith.constant 0 : i32
    %c0_i32_0 = arith.constant 0 : i32
    return %arg0, %c0_i32 : i32, i32
  }
  func.func @transform_1(%arg0: i32) -> (i32, i32) {
    %c0_i32 = arith.constant 0 : i32
    %c0_i32_0 = arith.constant 0 : i32
    %c0_i32_1 = arith.constant 0 : i32
    return %c0_i32, %c0_i32_0 : i32, i32
  }
  func.func @transform_2(%arg0: i32) -> (i32, i32) {
    %c0_i32 = arith.constant 0 : i32
    %c0_i32_0 = arith.constant 0 : i32
    %c0_i32_1 = arith.constant 0 : i32
    return %c0_i32, %c0_i32_0 : i32, i32
  }
  func.func @transform_3(%arg0: i32) -> (i32, i32) {
    %c0_i32 = arith.constant 0 : i32
    %c0_i32_0 = arith.constant 0 : i32
    return %arg0, %c0_i32 : i32, i32
  }
}

module attributes {stable_mosaic.version = 11 : i64} {
  func.func @_mm_bias_act_kernel(%arg0: i32, %arg1: memref<16x128xbf16, #tpu.memory_space<vmem>>, %arg2: memref<128x128xbf16, #tpu.memory_space<vmem>>, %arg3: memref<1x128xf32, #tpu.memory_space<vmem>>, %arg4: memref<16x128xbf16, #tpu.memory_space<vmem>>) attributes {dimension_semantics = [#tpu.dimension_semantics<parallel>], iteration_bounds = array<i64: 2>, scalar_prefetch = 0 : i64, scratch_operands = 0 : i64, tpu.core_type = #tpu.core_type<tc>, window_params = [{transform_indices = @transform_0, window_bounds = array<i64: 16, 128>}, {pipeline_mode = #tpu.pipeline_mode<synchronous>, transform_indices = @transform_1, window_bounds = array<i64: 128, 128>}, {pipeline_mode = #tpu.pipeline_mode<synchronous>, transform_indices = @transform_2, window_bounds = array<i64: 1, 128>}, {transform_indices = @transform_3, window_bounds = array<i64: 16, 128>}]} {
    %c0 = arith.constant 0 : index
    %c0_0 = arith.constant 0 : index
    %0 = vector.load %arg1[%c0, %c0_0] : memref<16x128xbf16, #tpu.memory_space<vmem>>, vector<16x128xbf16>
    %c0_1 = arith.constant 0 : index
    %c0_2 = arith.constant 0 : index
    %1 = vector.load %arg2[%c0_1, %c0_2] : memref<128x128xbf16, #tpu.memory_space<vmem>>, vector<128x128xbf16>
    %cst = arith.constant dense<0.000000e+00> : vector<16x128xf32>
    %2 = tpu.matmul %0, %1, %cst {dimension_numbers = #tpu.dot_dimension_numbers<[1], [0], [0], [1], [0, 0, 1, 1], [], []>} : vector<16x128xbf16>, vector<128x128xbf16>, vector<16x128xf32> -> vector<16x128xf32>
    %c0_3 = arith.constant 0 : index
    %c0_4 = arith.constant 0 : index
    %3 = vector.load %arg3[%c0_3, %c0_4] : memref<1x128xf32, #tpu.memory_space<vmem>>, vector<1x128xf32>
    %4 = vector.broadcast %3 : vector<1x128xf32> to vector<16x128xf32>
    %5 = arith.addf %2, %4 : vector<16x128xf32>
    %cst_5 = arith.constant 0.000000e+00 : f32
    %6 = vector.broadcast %cst_5 : f32 to vector<16x128xf32>
    %7 = arith.maximumf %5, %6 : vector<16x128xf32>
    %8 = arith.truncf %7 : vector<16x128xf32> to vector<16x128xbf16>
    %c0_6 = arith.constant 0 : index
    %c0_7 = arith.constant 0 : index
    %9 = vector.load %arg4[%c0_6, %c0_7] : memref<16x128xbf16, #tpu.memory_space<vmem>>, vector<16x128xbf16>
    tpu.vector_store %arg4[%c0_6, %c0_7], %8 {strides = array<i32>} : memref<16x128xbf16, #tpu.memory_space<vmem>>, vector<16x128xbf16>,
    return
  }
  func.func @transform_0(%arg0: i32) -> (i32, i32) {
    %c0_i32 = arith.constant 0 : i32
    %c0_i32_0 = arith.constant 0 : i32
    return %arg0, %c0_i32 : i32, i32
  }
  func.func @transform_1(%arg0: i32) -> (i32, i32) {
    %c0_i32 = arith.constant 0 : i32
    %c0_i32_0 = arith.constant 0 : i32
    %c0_i32_1 = arith.constant 0 : i32
    return %c0_i32, %c0_i32_0 : i32, i32
  }
  func.func @transform_2(%arg0: i32) -> (i32, i32) {
    %c0_i32 = arith.constant 0 : i32
    %c0_i32_0 = arith.constant 0 : i32
    %c0_i32_1 = arith.constant 0 : i32
    return %c0_i32, %c0_i32_0 : i32, i32
  }
  func.func @transform_3(%arg0: i32) -> (i32, i32) {
    %c0_i32 = arith.constant 0 : i32
    %c0_i32_0 = arith.constant 0 : i32
    return %arg0, %c0_i32 : i32, i32
  }
}

module attributes {stable_mosaic.version = 11 : i64} {
  func.func @_dw_pool_kernel(%arg0: i32, %arg1: memref<9x16x128xbf16, #tpu.memory_space<vmem>>, %arg2: memref<9x1x128xf32, #tpu.memory_space<vmem>>, %arg3: memref<1x128xf32, #tpu.memory_space<vmem>>, %arg4: memref<16x128xbf16, #tpu.memory_space<vmem>>, %arg5: memref<16x128xbf16, #tpu.memory_space<vmem>>) attributes {dimension_semantics = [#tpu.dimension_semantics<parallel>], iteration_bounds = array<i64: 1>, scalar_prefetch = 0 : i64, scratch_operands = 0 : i64, tpu.core_type = #tpu.core_type<tc>, window_params = [{transform_indices = @transform_0, window_bounds = array<i64: 9, 16, 128>}, {pipeline_mode = #tpu.pipeline_mode<synchronous>, transform_indices = @transform_1, window_bounds = array<i64: 9, 1, 128>}, {pipeline_mode = #tpu.pipeline_mode<synchronous>, transform_indices = @transform_2, window_bounds = array<i64: 1, 128>}, {transform_indices = @transform_3, window_bounds = array<i64: 16, 128>}, {transform_indices = @transform_4, window_bounds = array<i64: 16, 128>}]} {
    %c0 = arith.constant 0 : index
    %c0_0 = arith.constant 0 : index
    %c0_1 = arith.constant 0 : index
    %0 = vector.load %arg1[%c0, %c0_0, %c0_1] : memref<9x16x128xbf16, #tpu.memory_space<vmem>>, vector<1x16x128xbf16>
    %1 = vector.shape_cast %0 : vector<1x16x128xbf16> to vector<16x128xbf16>
    %2 = arith.extf %1 : vector<16x128xbf16> to vector<16x128xf32>
    %c0_2 = arith.constant 0 : index
    %c0_3 = arith.constant 0 : index
    %c0_4 = arith.constant 0 : index
    %3 = vector.load %arg2[%c0_2, %c0_3, %c0_4] : memref<9x1x128xf32, #tpu.memory_space<vmem>>, vector<1x1x128xf32>
    %4 = vector.shape_cast %3 : vector<1x1x128xf32> to vector<1x128xf32>
    %5 = vector.broadcast %4 : vector<1x128xf32> to vector<16x128xf32>
    %6 = arith.mulf %2, %5 : vector<16x128xf32>
    %c1 = arith.constant 1 : index
    %c0_5 = arith.constant 0 : index
    %c0_6 = arith.constant 0 : index
    %7 = vector.load %arg1[%c1, %c0_5, %c0_6] : memref<9x16x128xbf16, #tpu.memory_space<vmem>>, vector<1x16x128xbf16>
    %8 = vector.shape_cast %7 : vector<1x16x128xbf16> to vector<16x128xbf16>
    %9 = arith.extf %8 : vector<16x128xbf16> to vector<16x128xf32>
    %c1_7 = arith.constant 1 : index
    %c0_8 = arith.constant 0 : index
    %c0_9 = arith.constant 0 : index
    %10 = vector.load %arg2[%c1_7, %c0_8, %c0_9] : memref<9x1x128xf32, #tpu.memory_space<vmem>>, vector<1x1x128xf32>
    %11 = vector.shape_cast %10 : vector<1x1x128xf32> to vector<1x128xf32>
    %12 = vector.broadcast %11 : vector<1x128xf32> to vector<16x128xf32>
    %13 = arith.mulf %9, %12 : vector<16x128xf32>
    %14 = arith.addf %6, %13 : vector<16x128xf32>
    %15 = arith.addf %2, %9 : vector<16x128xf32>
    %c2 = arith.constant 2 : index
    %c0_10 = arith.constant 0 : index
    %c0_11 = arith.constant 0 : index
    %16 = vector.load %arg1[%c2, %c0_10, %c0_11] : memref<9x16x128xbf16, #tpu.memory_space<vmem>>, vector<1x16x128xbf16>
    %17 = vector.shape_cast %16 : vector<1x16x128xbf16> to vector<16x128xbf16>
    %18 = arith.extf %17 : vector<16x128xbf16> to vector<16x128xf32>
    %c2_12 = arith.constant 2 : index
    %c0_13 = arith.constant 0 : index
    %c0_14 = arith.constant 0 : index
    %19 = vector.load %arg2[%c2_12, %c0_13, %c0_14] : memref<9x1x128xf32, #tpu.memory_space<vmem>>, vector<1x1x128xf32>
    %20 = vector.shape_cast %19 : vector<1x1x128xf32> to vector<1x128xf32>
    %21 = vector.broadcast %20 : vector<1x128xf32> to vector<16x128xf32>
    %22 = arith.mulf %18, %21 : vector<16x128xf32>
    %23 = arith.addf %14, %22 : vector<16x128xf32>
    %24 = arith.addf %15, %18 : vector<16x128xf32>
    %c3 = arith.constant 3 : index
    %c0_15 = arith.constant 0 : index
    %c0_16 = arith.constant 0 : index
    %25 = vector.load %arg1[%c3, %c0_15, %c0_16] : memref<9x16x128xbf16, #tpu.memory_space<vmem>>, vector<1x16x128xbf16>
    %26 = vector.shape_cast %25 : vector<1x16x128xbf16> to vector<16x128xbf16>
    %27 = arith.extf %26 : vector<16x128xbf16> to vector<16x128xf32>
    %c3_17 = arith.constant 3 : index
    %c0_18 = arith.constant 0 : index
    %c0_19 = arith.constant 0 : index
    %28 = vector.load %arg2[%c3_17, %c0_18, %c0_19] : memref<9x1x128xf32, #tpu.memory_space<vmem>>, vector<1x1x128xf32>
    %29 = vector.shape_cast %28 : vector<1x1x128xf32> to vector<1x128xf32>
    %30 = vector.broadcast %29 : vector<1x128xf32> to vector<16x128xf32>
    %31 = arith.mulf %27, %30 : vector<16x128xf32>
    %32 = arith.addf %23, %31 : vector<16x128xf32>
    %33 = arith.addf %24, %27 : vector<16x128xf32>
    %c4 = arith.constant 4 : index
    %c0_20 = arith.constant 0 : index
    %c0_21 = arith.constant 0 : index
    %34 = vector.load %arg1[%c4, %c0_20, %c0_21] : memref<9x16x128xbf16, #tpu.memory_space<vmem>>, vector<1x16x128xbf16>
    %35 = vector.shape_cast %34 : vector<1x16x128xbf16> to vector<16x128xbf16>
    %36 = arith.extf %35 : vector<16x128xbf16> to vector<16x128xf32>
    %c4_22 = arith.constant 4 : index
    %c0_23 = arith.constant 0 : index
    %c0_24 = arith.constant 0 : index
    %37 = vector.load %arg2[%c4_22, %c0_23, %c0_24] : memref<9x1x128xf32, #tpu.memory_space<vmem>>, vector<1x1x128xf32>
    %38 = vector.shape_cast %37 : vector<1x1x128xf32> to vector<1x128xf32>
    %39 = vector.broadcast %38 : vector<1x128xf32> to vector<16x128xf32>
    %40 = arith.mulf %36, %39 : vector<16x128xf32>
    %41 = arith.addf %32, %40 : vector<16x128xf32>
    %42 = arith.addf %33, %36 : vector<16x128xf32>
    %c5 = arith.constant 5 : index
    %c0_25 = arith.constant 0 : index
    %c0_26 = arith.constant 0 : index
    %43 = vector.load %arg1[%c5, %c0_25, %c0_26] : memref<9x16x128xbf16, #tpu.memory_space<vmem>>, vector<1x16x128xbf16>
    %44 = vector.shape_cast %43 : vector<1x16x128xbf16> to vector<16x128xbf16>
    %45 = arith.extf %44 : vector<16x128xbf16> to vector<16x128xf32>
    %c5_27 = arith.constant 5 : index
    %c0_28 = arith.constant 0 : index
    %c0_29 = arith.constant 0 : index
    %46 = vector.load %arg2[%c5_27, %c0_28, %c0_29] : memref<9x1x128xf32, #tpu.memory_space<vmem>>, vector<1x1x128xf32>
    %47 = vector.shape_cast %46 : vector<1x1x128xf32> to vector<1x128xf32>
    %48 = vector.broadcast %47 : vector<1x128xf32> to vector<16x128xf32>
    %49 = arith.mulf %45, %48 : vector<16x128xf32>
    %50 = arith.addf %41, %49 : vector<16x128xf32>
    %51 = arith.addf %42, %45 : vector<16x128xf32>
    %c6 = arith.constant 6 : index
    %c0_30 = arith.constant 0 : index
    %c0_31 = arith.constant 0 : index
    %52 = vector.load %arg1[%c6, %c0_30, %c0_31] : memref<9x16x128xbf16, #tpu.memory_space<vmem>>, vector<1x16x128xbf16>
    %53 = vector.shape_cast %52 : vector<1x16x128xbf16> to vector<16x128xbf16>
    %54 = arith.extf %53 : vector<16x128xbf16> to vector<16x128xf32>
    %c6_32 = arith.constant 6 : index
    %c0_33 = arith.constant 0 : index
    %c0_34 = arith.constant 0 : index
    %55 = vector.load %arg2[%c6_32, %c0_33, %c0_34] : memref<9x1x128xf32, #tpu.memory_space<vmem>>, vector<1x1x128xf32>
    %56 = vector.shape_cast %55 : vector<1x1x128xf32> to vector<1x128xf32>
    %57 = vector.broadcast %56 : vector<1x128xf32> to vector<16x128xf32>
    %58 = arith.mulf %54, %57 : vector<16x128xf32>
    %59 = arith.addf %50, %58 : vector<16x128xf32>
    %60 = arith.addf %51, %54 : vector<16x128xf32>
    %c7 = arith.constant 7 : index
    %c0_35 = arith.constant 0 : index
    %c0_36 = arith.constant 0 : index
    %61 = vector.load %arg1[%c7, %c0_35, %c0_36] : memref<9x16x128xbf16, #tpu.memory_space<vmem>>, vector<1x16x128xbf16>
    %62 = vector.shape_cast %61 : vector<1x16x128xbf16> to vector<16x128xbf16>
    %63 = arith.extf %62 : vector<16x128xbf16> to vector<16x128xf32>
    %c7_37 = arith.constant 7 : index
    %c0_38 = arith.constant 0 : index
    %c0_39 = arith.constant 0 : index
    %64 = vector.load %arg2[%c7_37, %c0_38, %c0_39] : memref<9x1x128xf32, #tpu.memory_space<vmem>>, vector<1x1x128xf32>
    %65 = vector.shape_cast %64 : vector<1x1x128xf32> to vector<1x128xf32>
    %66 = vector.broadcast %65 : vector<1x128xf32> to vector<16x128xf32>
    %67 = arith.mulf %63, %66 : vector<16x128xf32>
    %68 = arith.addf %59, %67 : vector<16x128xf32>
    %69 = arith.addf %60, %63 : vector<16x128xf32>
    %c8 = arith.constant 8 : index
    %c0_40 = arith.constant 0 : index
    %c0_41 = arith.constant 0 : index
    %70 = vector.load %arg1[%c8, %c0_40, %c0_41] : memref<9x16x128xbf16, #tpu.memory_space<vmem>>, vector<1x16x128xbf16>
    %71 = vector.shape_cast %70 : vector<1x16x128xbf16> to vector<16x128xbf16>
    %72 = arith.extf %71 : vector<16x128xbf16> to vector<16x128xf32>
    %c8_42 = arith.constant 8 : index
    %c0_43 = arith.constant 0 : index
    %c0_44 = arith.constant 0 : index
    %73 = vector.load %arg2[%c8_42, %c0_43, %c0_44] : memref<9x1x128xf32, #tpu.memory_space<vmem>>, vector<1x1x128xf32>
    %74 = vector.shape_cast %73 : vector<1x1x128xf32> to vector<1x128xf32>
    %75 = vector.broadcast %74 : vector<1x128xf32> to vector<16x128xf32>
    %76 = arith.mulf %72, %75 : vector<16x128xf32>
    %77 = arith.addf %68, %76 : vector<16x128xf32>
    %78 = arith.addf %69, %72 : vector<16x128xf32>
    %c0_45 = arith.constant 0 : index
    %c0_46 = arith.constant 0 : index
    %79 = vector.load %arg3[%c0_45, %c0_46] : memref<1x128xf32, #tpu.memory_space<vmem>>, vector<1x128xf32>
    %80 = vector.broadcast %79 : vector<1x128xf32> to vector<16x128xf32>
    %81 = arith.addf %77, %80 : vector<16x128xf32>
    %82 = arith.truncf %81 : vector<16x128xf32> to vector<16x128xbf16>
    %c0_47 = arith.constant 0 : index
    %c0_48 = arith.constant 0 : index
    %83 = vector.load %arg4[%c0_47, %c0_48] : memref<16x128xbf16, #tpu.memory_space<vmem>>, vector<16x128xbf16>
    tpu.vector_store %arg4[%c0_47, %c0_48], %82 {strides = array<i32>} : memref<16x128xbf16, #tpu.memory_space<vmem>>, vector<16x128xbf16>,
    %cst = arith.constant 0.111111112 : f32
    %84 = vector.broadcast %cst : f32 to vector<16x128xf32>
    %85 = arith.mulf %78, %84 : vector<16x128xf32>
    %86 = arith.truncf %85 : vector<16x128xf32> to vector<16x128xbf16>
    %c0_49 = arith.constant 0 : index
    %c0_50 = arith.constant 0 : index
    %87 = vector.load %arg5[%c0_49, %c0_50] : memref<16x128xbf16, #tpu.memory_space<vmem>>, vector<16x128xbf16>
    tpu.vector_store %arg5[%c0_49, %c0_50], %86 {strides = array<i32>} : memref<16x128xbf16, #tpu.memory_space<vmem>>, vector<16x128xbf16>,
    return
  }
  func.func @transform_0(%arg0: i32) -> (i32, i32, i32) {
    %c0_i32 = arith.constant 0 : i32
    %c0_i32_0 = arith.constant 0 : i32
    %c0_i32_1 = arith.constant 0 : i32
    return %c0_i32, %arg0, %c0_i32_0 : i32, i32, i32
  }
  func.func @transform_1(%arg0: i32) -> (i32, i32, i32) {
    %c0_i32 = arith.constant 0 : i32
    %c0_i32_0 = arith.constant 0 : i32
    %c0_i32_1 = arith.constant 0 : i32
    %c0_i32_2 = arith.constant 0 : i32
    return %c0_i32, %c0_i32_0, %c0_i32_1 : i32, i32, i32
  }
  func.func @transform_2(%arg0: i32) -> (i32, i32) {
    %c0_i32 = arith.constant 0 : i32
    %c0_i32_0 = arith.constant 0 : i32
    %c0_i32_1 = arith.constant 0 : i32
    return %c0_i32, %c0_i32_0 : i32, i32
  }
  func.func @transform_3(%arg0: i32) -> (i32, i32) {
    %c0_i32 = arith.constant 0 : i32
    %c0_i32_0 = arith.constant 0 : i32
    return %arg0, %c0_i32 : i32, i32
  }
  func.func @transform_4(%arg0: i32) -> (i32, i32) {
    %c0_i32 = arith.constant 0 : i32
    %c0_i32_0 = arith.constant 0 : i32
    return %arg0, %c0_i32 : i32, i32
  }
}

module attributes {stable_mosaic.version = 11 : i64} {
  func.func @_mm_bias_act_kernel(%arg0: i32, %arg1: memref<16x1152xbf16, #tpu.memory_space<vmem>>, %arg2: memref<1152x128xbf16, #tpu.memory_space<vmem>>, %arg3: memref<1x128xf32, #tpu.memory_space<vmem>>, %arg4: memref<16x128xbf16, #tpu.memory_space<vmem>>) attributes {dimension_semantics = [#tpu.dimension_semantics<parallel>], iteration_bounds = array<i64: 1>, scalar_prefetch = 0 : i64, scratch_operands = 0 : i64, tpu.core_type = #tpu.core_type<tc>, window_params = [{transform_indices = @transform_0, window_bounds = array<i64: 16, 1152>}, {pipeline_mode = #tpu.pipeline_mode<synchronous>, transform_indices = @transform_1, window_bounds = array<i64: 1152, 128>}, {pipeline_mode = #tpu.pipeline_mode<synchronous>, transform_indices = @transform_2, window_bounds = array<i64: 1, 128>}, {transform_indices = @transform_3, window_bounds = array<i64: 16, 128>}]} {
    %c0 = arith.constant 0 : index
    %c0_0 = arith.constant 0 : index
    %0 = vector.load %arg1[%c0, %c0_0] : memref<16x1152xbf16, #tpu.memory_space<vmem>>, vector<16x1152xbf16>
    %c0_1 = arith.constant 0 : index
    %c0_2 = arith.constant 0 : index
    %1 = vector.load %arg2[%c0_1, %c0_2] : memref<1152x128xbf16, #tpu.memory_space<vmem>>, vector<1152x128xbf16>
    %cst = arith.constant dense<0.000000e+00> : vector<16x128xf32>
    %2 = tpu.matmul %0, %1, %cst {dimension_numbers = #tpu.dot_dimension_numbers<[1], [0], [0], [1], [0, 0, 1, 1], [], []>} : vector<16x1152xbf16>, vector<1152x128xbf16>, vector<16x128xf32> -> vector<16x128xf32>
    %c0_3 = arith.constant 0 : index
    %c0_4 = arith.constant 0 : index
    %3 = vector.load %arg3[%c0_3, %c0_4] : memref<1x128xf32, #tpu.memory_space<vmem>>, vector<1x128xf32>
    %4 = vector.broadcast %3 : vector<1x128xf32> to vector<16x128xf32>
    %5 = arith.addf %2, %4 : vector<16x128xf32>
    %cst_5 = arith.constant 0.000000e+00 : f32
    %6 = vector.broadcast %cst_5 : f32 to vector<16x128xf32>
    %7 = arith.maximumf %5, %6 : vector<16x128xf32>
    %8 = arith.truncf %7 : vector<16x128xf32> to vector<16x128xbf16>
    %c0_6 = arith.constant 0 : index
    %c0_7 = arith.constant 0 : index
    %9 = vector.load %arg4[%c0_6, %c0_7] : memref<16x128xbf16, #tpu.memory_space<vmem>>, vector<16x128xbf16>
    tpu.vector_store %arg4[%c0_6, %c0_7], %8 {strides = array<i32>} : memref<16x128xbf16, #tpu.memory_space<vmem>>, vector<16x128xbf16>,
    return
  }
  func.func @transform_0(%arg0: i32) -> (i32, i32) {
    %c0_i32 = arith.constant 0 : i32
    %c0_i32_0 = arith.constant 0 : i32
    return %arg0, %c0_i32 : i32, i32
  }
  func.func @transform_1(%arg0: i32) -> (i32, i32) {
    %c0_i32 = arith.constant 0 : i32
    %c0_i32_0 = arith.constant 0 : i32
    %c0_i32_1 = arith.constant 0 : i32
    return %c0_i32, %c0_i32_0 : i32, i32
  }
  func.func @transform_2(%arg0: i32) -> (i32, i32) {
    %c0_i32 = arith.constant 0 : i32
    %c0_i32_0 = arith.constant 0 : i32
    %c0_i32_1 = arith.constant 0 : i32
    return %c0_i32, %c0_i32_0 : i32, i32
  }
  func.func @transform_3(%arg0: i32) -> (i32, i32) {
    %c0_i32 = arith.constant 0 : i32
    %c0_i32_0 = arith.constant 0 : i32
    return %arg0, %c0_i32 : i32, i32
  }
}

module attributes {stable_mosaic.version = 11 : i64} {
  func.func @_mm_bias_act_kernel(%arg0: i32, %arg1: memref<16x576xbf16, #tpu.memory_space<vmem>>, %arg2: memref<576x128xbf16, #tpu.memory_space<vmem>>, %arg3: memref<1x128xf32, #tpu.memory_space<vmem>>, %arg4: memref<16x128xbf16, #tpu.memory_space<vmem>>) attributes {dimension_semantics = [#tpu.dimension_semantics<parallel>], iteration_bounds = array<i64: 1>, scalar_prefetch = 0 : i64, scratch_operands = 0 : i64, tpu.core_type = #tpu.core_type<tc>, window_params = [{transform_indices = @transform_0, window_bounds = array<i64: 16, 576>}, {pipeline_mode = #tpu.pipeline_mode<synchronous>, transform_indices = @transform_1, window_bounds = array<i64: 576, 128>}, {pipeline_mode = #tpu.pipeline_mode<synchronous>, transform_indices = @transform_2, window_bounds = array<i64: 1, 128>}, {transform_indices = @transform_3, window_bounds = array<i64: 16, 128>}]} {
    %c0 = arith.constant 0 : index
    %c0_0 = arith.constant 0 : index
    %0 = vector.load %arg1[%c0, %c0_0] : memref<16x576xbf16, #tpu.memory_space<vmem>>, vector<16x576xbf16>
    %c0_1 = arith.constant 0 : index
    %c0_2 = arith.constant 0 : index
    %1 = vector.load %arg2[%c0_1, %c0_2] : memref<576x128xbf16, #tpu.memory_space<vmem>>, vector<576x128xbf16>
    %cst = arith.constant dense<0.000000e+00> : vector<16x128xf32>
    %2 = tpu.matmul %0, %1, %cst {dimension_numbers = #tpu.dot_dimension_numbers<[1], [0], [0], [1], [0, 0, 1, 1], [], []>} : vector<16x576xbf16>, vector<576x128xbf16>, vector<16x128xf32> -> vector<16x128xf32>
    %c0_3 = arith.constant 0 : index
    %c0_4 = arith.constant 0 : index
    %3 = vector.load %arg3[%c0_3, %c0_4] : memref<1x128xf32, #tpu.memory_space<vmem>>, vector<1x128xf32>
    %4 = vector.broadcast %3 : vector<1x128xf32> to vector<16x128xf32>
    %5 = arith.addf %2, %4 : vector<16x128xf32>
    %cst_5 = arith.constant 0.000000e+00 : f32
    %6 = vector.broadcast %cst_5 : f32 to vector<16x128xf32>
    %7 = arith.maximumf %5, %6 : vector<16x128xf32>
    %8 = arith.truncf %7 : vector<16x128xf32> to vector<16x128xbf16>
    %c0_6 = arith.constant 0 : index
    %c0_7 = arith.constant 0 : index
    %9 = vector.load %arg4[%c0_6, %c0_7] : memref<16x128xbf16, #tpu.memory_space<vmem>>, vector<16x128xbf16>
    tpu.vector_store %arg4[%c0_6, %c0_7], %8 {strides = array<i32>} : memref<16x128xbf16, #tpu.memory_space<vmem>>, vector<16x128xbf16>,
    return
  }
  func.func @transform_0(%arg0: i32) -> (i32, i32) {
    %c0_i32 = arith.constant 0 : i32
    %c0_i32_0 = arith.constant 0 : i32
    return %arg0, %c0_i32 : i32, i32
  }
  func.func @transform_1(%arg0: i32) -> (i32, i32) {
    %c0_i32 = arith.constant 0 : i32
    %c0_i32_0 = arith.constant 0 : i32
    %c0_i32_1 = arith.constant 0 : i32
    return %c0_i32, %c0_i32_0 : i32, i32
  }
  func.func @transform_2(%arg0: i32) -> (i32, i32) {
    %c0_i32 = arith.constant 0 : i32
    %c0_i32_0 = arith.constant 0 : i32
    %c0_i32_1 = arith.constant 0 : i32
    return %c0_i32, %c0_i32_0 : i32, i32
  }
  func.func @transform_3(%arg0: i32) -> (i32, i32) {
    %c0_i32 = arith.constant 0 : i32
    %c0_i32_0 = arith.constant 0 : i32
    return %arg0, %c0_i32 : i32, i32
  }
}

module attributes {stable_mosaic.version = 11 : i64} {
  func.func @_mm_bias_act_kernel(%arg0: i32, %arg1: memref<16x256xbf16, #tpu.memory_space<vmem>>, %arg2: memref<256x128xbf16, #tpu.memory_space<vmem>>, %arg3: memref<1x128xf32, #tpu.memory_space<vmem>>, %arg4: memref<16x128xbf16, #tpu.memory_space<vmem>>) attributes {dimension_semantics = [#tpu.dimension_semantics<parallel>], iteration_bounds = array<i64: 1>, scalar_prefetch = 0 : i64, scratch_operands = 0 : i64, tpu.core_type = #tpu.core_type<tc>, window_params = [{transform_indices = @transform_0, window_bounds = array<i64: 16, 256>}, {pipeline_mode = #tpu.pipeline_mode<synchronous>, transform_indices = @transform_1, window_bounds = array<i64: 256, 128>}, {pipeline_mode = #tpu.pipeline_mode<synchronous>, transform_indices = @transform_2, window_bounds = array<i64: 1, 128>}, {transform_indices = @transform_3, window_bounds = array<i64: 16, 128>}]} {
    %c0 = arith.constant 0 : index
    %c0_0 = arith.constant 0 : index
    %0 = vector.load %arg1[%c0, %c0_0] : memref<16x256xbf16, #tpu.memory_space<vmem>>, vector<16x256xbf16>
    %c0_1 = arith.constant 0 : index
    %c0_2 = arith.constant 0 : index
    %1 = vector.load %arg2[%c0_1, %c0_2] : memref<256x128xbf16, #tpu.memory_space<vmem>>, vector<256x128xbf16>
    %cst = arith.constant dense<0.000000e+00> : vector<16x128xf32>
    %2 = tpu.matmul %0, %1, %cst {dimension_numbers = #tpu.dot_dimension_numbers<[1], [0], [0], [1], [0, 0, 1, 1], [], []>} : vector<16x256xbf16>, vector<256x128xbf16>, vector<16x128xf32> -> vector<16x128xf32>
    %c0_3 = arith.constant 0 : index
    %c0_4 = arith.constant 0 : index
    %3 = vector.load %arg3[%c0_3, %c0_4] : memref<1x128xf32, #tpu.memory_space<vmem>>, vector<1x128xf32>
    %4 = vector.broadcast %3 : vector<1x128xf32> to vector<16x128xf32>
    %5 = arith.addf %2, %4 : vector<16x128xf32>
    %cst_5 = arith.constant 0.000000e+00 : f32
    %6 = vector.broadcast %cst_5 : f32 to vector<16x128xf32>
    %7 = arith.maximumf %5, %6 : vector<16x128xf32>
    %8 = arith.truncf %7 : vector<16x128xf32> to vector<16x128xbf16>
    %c0_6 = arith.constant 0 : index
    %c0_7 = arith.constant 0 : index
    %9 = vector.load %arg4[%c0_6, %c0_7] : memref<16x128xbf16, #tpu.memory_space<vmem>>, vector<16x128xbf16>
    tpu.vector_store %arg4[%c0_6, %c0_7], %8 {strides = array<i32>} : memref<16x128xbf16, #tpu.memory_space<vmem>>, vector<16x128xbf16>,
    return
  }
  func.func @transform_0(%arg0: i32) -> (i32, i32) {
    %c0_i32 = arith.constant 0 : i32
    %c0_i32_0 = arith.constant 0 : i32
    return %arg0, %c0_i32 : i32, i32
  }
  func.func @transform_1(%arg0: i32) -> (i32, i32) {
    %c0_i32 = arith.constant 0 : i32
    %c0_i32_0 = arith.constant 0 : i32
    %c0_i32_1 = arith.constant 0 : i32
    return %c0_i32, %c0_i32_0 : i32, i32
  }
  func.func @transform_2(%arg0: i32) -> (i32, i32) {
    %c0_i32 = arith.constant 0 : i32
    %c0_i32_0 = arith.constant 0 : i32
    %c0_i32_1 = arith.constant 0 : i32
    return %c0_i32, %c0_i32_0 : i32, i32
  }
  func.func @transform_3(%arg0: i32) -> (i32, i32) {
    %c0_i32 = arith.constant 0 : i32
    %c0_i32_0 = arith.constant 0 : i32
    return %arg0, %c0_i32 : i32, i32
  }
}

module attributes {stable_mosaic.version = 11 : i64} {
  func.func @_mm_bias_act_kernel(%arg0: i32, %arg1: memref<16x288xbf16, #tpu.memory_space<vmem>>, %arg2: memref<288x128xbf16, #tpu.memory_space<vmem>>, %arg3: memref<1x128xf32, #tpu.memory_space<vmem>>, %arg4: memref<16x128xbf16, #tpu.memory_space<vmem>>) attributes {dimension_semantics = [#tpu.dimension_semantics<parallel>], iteration_bounds = array<i64: 1>, scalar_prefetch = 0 : i64, scratch_operands = 0 : i64, tpu.core_type = #tpu.core_type<tc>, window_params = [{transform_indices = @transform_0, window_bounds = array<i64: 16, 288>}, {pipeline_mode = #tpu.pipeline_mode<synchronous>, transform_indices = @transform_1, window_bounds = array<i64: 288, 128>}, {pipeline_mode = #tpu.pipeline_mode<synchronous>, transform_indices = @transform_2, window_bounds = array<i64: 1, 128>}, {transform_indices = @transform_3, window_bounds = array<i64: 16, 128>}]} {
    %c0 = arith.constant 0 : index
    %c0_0 = arith.constant 0 : index
    %0 = vector.load %arg1[%c0, %c0_0] : memref<16x288xbf16, #tpu.memory_space<vmem>>, vector<16x288xbf16>
    %c0_1 = arith.constant 0 : index
    %c0_2 = arith.constant 0 : index
    %1 = vector.load %arg2[%c0_1, %c0_2] : memref<288x128xbf16, #tpu.memory_space<vmem>>, vector<288x128xbf16>
    %cst = arith.constant dense<0.000000e+00> : vector<16x128xf32>
    %2 = tpu.matmul %0, %1, %cst {dimension_numbers = #tpu.dot_dimension_numbers<[1], [0], [0], [1], [0, 0, 1, 1], [], []>} : vector<16x288xbf16>, vector<288x128xbf16>, vector<16x128xf32> -> vector<16x128xf32>
    %c0_3 = arith.constant 0 : index
    %c0_4 = arith.constant 0 : index
    %3 = vector.load %arg3[%c0_3, %c0_4] : memref<1x128xf32, #tpu.memory_space<vmem>>, vector<1x128xf32>
    %4 = vector.broadcast %3 : vector<1x128xf32> to vector<16x128xf32>
    %5 = arith.addf %2, %4 : vector<16x128xf32>
    %cst_5 = arith.constant 0.000000e+00 : f32
    %6 = vector.broadcast %cst_5 : f32 to vector<16x128xf32>
    %7 = arith.maximumf %5, %6 : vector<16x128xf32>
    %8 = arith.truncf %7 : vector<16x128xf32> to vector<16x128xbf16>
    %c0_6 = arith.constant 0 : index
    %c0_7 = arith.constant 0 : index
    %9 = vector.load %arg4[%c0_6, %c0_7] : memref<16x128xbf16, #tpu.memory_space<vmem>>, vector<16x128xbf16>
    tpu.vector_store %arg4[%c0_6, %c0_7], %8 {strides = array<i32>} : memref<16x128xbf16, #tpu.memory_space<vmem>>, vector<16x128xbf16>,
    return
  }
  func.func @transform_0(%arg0: i32) -> (i32, i32) {
    %c0_i32 = arith.constant 0 : i32
    %c0_i32_0 = arith.constant 0 : i32
    return %arg0, %c0_i32 : i32, i32
  }
  func.func @transform_1(%arg0: i32) -> (i32, i32) {
    %c0_i32 = arith.constant 0 : i32
    %c0_i32_0 = arith.constant 0 : i32
    %c0_i32_1 = arith.constant 0 : i32
    return %c0_i32, %c0_i32_0 : i32, i32
  }
  func.func @transform_2(%arg0: i32) -> (i32, i32) {
    %c0_i32 = arith.constant 0 : i32
    %c0_i32_0 = arith.constant 0 : i32
    %c0_i32_1 = arith.constant 0 : i32
    return %c0_i32, %c0_i32_0 : i32, i32
  }
  func.func @transform_3(%arg0: i32) -> (i32, i32) {
    %c0_i32 = arith.constant 0 : i32
    %c0_i32_0 = arith.constant 0 : i32
    return %arg0, %c0_i32 : i32, i32
  }
}

</mosaic_0001>

<llo_original>
// kernel: _lambda_.29
$region0: #{_lambda_.29}
  #allocation0 [shape = 'u32[]', space=smem, size = 0x4, offset = 0x4, fixed_abs, tag = 'smem constant byte address 0x4 - core index']
  #allocation1 [shape = 'u32[144,128]{1,0:T(1,128)}', space=vmem, size = 0x12000, scoped, tag = 'internal scratch']
  %s0 = inlined_call_operand.vmem [shape: bf16[2048,27], index: 0, kind: input, shape index: {}]
  %s1 = inlined_call_operand.vmem [shape: bf16[27,128], index: 1, kind: input, shape index: {}]
  %s2 = inlined_call_operand.vmem [shape: f32[1,128], index: 2, kind: input, shape index: {}]
  %s3 = inlined_call_operand.vmem [shape: bf16[2048,128], index: 3, kind: output, shape index: {}]
  %s4 = sld [smem:[#allocation0]]
  $region45: #{_lambda_.29} parent=0
    _
  %s6 = ssub.s32 1, %s4
  %s7 = scalar_select 0, %s6, %s4
  loop: start=0, step=1, limit=10
  $region2: #{_lambda_.29} parent=0 // loop_pre_header
    _
  $region3: #{_lambda_.29} parent=0 // loop_header
    %s9 = sphi 0, %s13
    %p10 = scmp.ge.s32.totalorder %s9, 10
    %s19 = sphi 0, %s21
    %s22 = sphi 0, %s19
    %s23 = sphi 0, %s22
    %s39 = sphi 0, %s23
    %s43 = sphi 0, %s43
    %s45 = sphi 0, %s43
    %s46 = sphi 0, %s45
    %s60 = sphi 0, %s46
    %s64 = sphi 0, %s64
    %s66 = sphi 0, %s64
    %s67 = sphi 0, %s66
    %s81 = sphi 0, %s67
    %s87 = sphi 0, %s89
    %s90 = sphi 0, %s87
    %s91 = sphi 0, %s90
    %s107 = sphi 0, %s91
  $region4: #{_lambda_.29} parent=0 // loop_header_branch
    %12 = sbr.rel (%p10) target = $region8
  $region5: #{_lambda_.29} parent=0 // loop_body
    %s14 = ssub.s32 %s9, 1
    %s15 = ssub.s32 %s9, 2
    %s16 = sadd.s32 %s9, 1
    %s17 = ssub.s32 %s9, %s16
    %p18 = scmp.eq.s32.totalorder %s17, 0
    %s20 = sadd.s32 %s19, 1
    %s21 = scalar_select %p18, %s19, %s20
    %p24 = pneg %p18
    %p25 = scmp.eq.s32.totalorder %s9, 7
    %p26 = por %p24, %p25
    %p27 = scmp.ne.s32.totalorder %s19, %s22
    %p28 = scmp.eq.s32.totalorder %s9, 0
    %p29 = por %p27, %p28
    %p30 = scmp.ne.s32.totalorder %s19, %s22
    %p31 = scmp.eq.s32.totalorder %s14, 7
    %p32 = por %p30, %p31
    %p33 = scmp.ne.s32.totalorder %s22, %s23
    %p34 = scmp.eq.s32.totalorder %s14, 0
    %p35 = por %p33, %p34
    %p36 = scmp.ne.s32.totalorder %s22, %s23
    %p37 = scmp.eq.s32.totalorder %s15, 7
    %p38 = por %p36, %p37
    %p40 = scmp.ne.s32.totalorder %s23, %s39
    %p41 = scmp.eq.s32.totalorder %s15, 0
    %p42 = por %p40, %p41
    %s44 = sadd.s32 %s43, 1
    %p47 = scmp.eq.s32.totalorder %s9, 7
    %p48 = scmp.ne.s32.totalorder %s43, %s45
    %p49 = scmp.eq.s32.totalorder %s9, 0
    %p50 = por %p48, %p49
    %p51 = scmp.ne.s32.totalorder %s43, %s45
    %p52 = scmp.eq.s32.totalorder %s14, 7
    %p53 = por %p51, %p52
    %p54 = scmp.ne.s32.totalorder %s45, %s46
    %p55 = scmp.eq.s32.totalorder %s14, 0
    %p56 = por %p54, %p55
    %p57 = scmp.ne.s32.totalorder %s45, %s46
    %p58 = scmp.eq.s32.totalorder %s15, 7
    %p59 = por %p57, %p58
    %p61 = scmp.ne.s32.totalorder %s46, %s60
    %p62 = scmp.eq.s32.totalorder %s15, 0
    %p63 = por %p61, %p62
    %s65 = sadd.s32 %s64, 1
    %p68 = scmp.eq.s32.totalorder %s9, 7
    %p69 = scmp.ne.s32.totalorder %s64, %s66
    %p70 = scmp.eq.s32.totalorder %s9, 0
    %p71 = por %p69, %p70
    %p72 = scmp.ne.s32.totalorder %s64, %s66
    %p73 = scmp.eq.s32.totalorder %s14, 7
    %p74 = por %p72, %p73
    %p75 = scmp.ne.s32.totalorder %s66, %s67
    %p76 = scmp.eq.s32.totalorder %s14, 0
    %p77 = por %p75, %p76
    %p78 = scmp.ne.s32.totalorder %s66, %s67
    %p79 = scmp.eq.s32.totalorder %s15, 7
    %p80 = por %p78, %p79
    %p82 = scmp.ne.s32.totalorder %s67, %s81
    %p83 = scmp.eq.s32.totalorder %s15, 0
    %p84 = por %p82, %p83
    %s85 = ssub.s32 %s9, %s16
    %p86 = scmp.eq.s32.totalorder %s85, 0
    %s88 = sadd.s32 %s87, 1
    %s89 = scalar_select %p86, %s87, %s88
    %p92 = pneg %p86
    %p93 = scmp.eq.s32.totalorder %s9, 7
    %p94 = por %p92, %p93
    %p95 = scmp.ne.s32.totalorder %s87, %s90
    %p96 = scmp.eq.s32.totalorder %s9, 0
    %p97 = por %p95, %p96
    %p98 = scmp.ne.s32.totalorder %s87, %s90
    %p99 = scmp.eq.s32.totalorder %s14, 7
    %p100 = por %p98, %p99
    %p101 = scmp.ne.s32.totalorder %s90, %s91
    %p102 = scmp.eq.s32.totalorder %s14, 0
    %p103 = por %p101, %p102
    %p104 = scmp.ne.s32.totalorder %s90, %s91
    %p105 = scmp.eq.s32.totalorder %s15, 7
    %p106 = por %p104, %p105
    %p108 = scmp.ne.s32.totalorder %s91, %s107
    %p109 = scmp.eq.s32.totalorder %s15, 0
    %p110 = por %p108, %p109
    %p111 = scmp.le.s32.totalorder 1, %s9
    %p112 = scmp.lt.s32.totalorder %s9, 9
    %p113 = pnand %p111, %p112
    %p114 = pneg %p113
    // Predicated region
    $region9: #{_lambda_.29} parent=5 // pred_check
      _
    $region10: #{_lambda_.29} parent=5 // pred_check_branch
      %116 = sbr.rel (%p113) target = $region12
    $region11: #{_lambda_.29} parent=5 // pred_region
      %s117 = ssub.s32 %s9, 1
      // Predicated region
      $region13: #{_lambda_.29} parent=11 // pred_check
        %p118 = pneg %p56
      $region14: #{_lambda_.29} parent=11 // pred_check_branch
        %120 = sbr.rel (%p118) target = $region16
      $region15: #{_lambda_.29} parent=11 // pred_region
        _
      $region16: #{_lambda_.29} parent=11 // pred_fallthru
        _
      // Predicated region
      $region17: #{_lambda_.29} parent=11 // pred_check
        %p121 = pneg %p77
      $region18: #{_lambda_.29} parent=11 // pred_check_branch
        %123 = sbr.rel (%p121) target = $region20
      $region19: #{_lambda_.29} parent=11 // pred_region
        _
      $region20: #{_lambda_.29} parent=11 // pred_fallthru
        _
    $region12: #{_lambda_.29} parent=5 // pred_fallthru
      _
    %p124 = scmp.lt.s32.totalorder %s9, 8
    // Predicated region
    $region21: #{_lambda_.29} parent=5 // pred_check
      %p125 = pneg %p124
    $region22: #{_lambda_.29} parent=5 // pred_check_branch
      %127 = sbr.rel (%p125) target = $region24
    $region23: #{_lambda_.29} parent=5 // pred_region
      // Predicated region
      $region25: #{_lambda_.29} parent=23 // pred_check
        %p128 = pneg %p29
      $region26: #{_lambda_.29} parent=23 // pred_check_branch
        %130 = sbr.rel (%p128) target = $region28
      $region27: #{_lambda_.29} parent=23 // pred_region
        %s131 = smul.u32 32, %s9
        %p132 = scmp.lt.s32.totalorder %s131, 255
        %s133 = scalar_select %p132, %s131, 255
        %s134 = smul.addr %s133, 4
        %s135 = scalar_lea.vmem %s0, %s134
        %s136 = smul.u32 32, %s9
      $region28: #{_lambda_.29} parent=23 // pred_fallthru
        _
    $region24: #{_lambda_.29} parent=5 // pred_fallthru
      _
    %p137 = scmp.le.s32.totalorder 1, %s9
    %p138 = scmp.lt.s32.totalorder %s9, 9
    %p139 = pnand %p137, %p138
    %p140 = pneg %p139
    // Predicated region
    $region29: #{_lambda_.29} parent=5 // pred_check
      _
    $region30: #{_lambda_.29} parent=5 // pred_check_branch
      %142 = sbr.rel (%p139) target = $region32
    $region31: #{_lambda_.29} parent=5 // pred_region
      %s143 = ssub.s32 %s9, 1
      %s144 = smul.u32 32, %s14
      %p145 = scmp.lt.s32.totalorder %s144, 255
      %s146 = scalar_select %p145, %s144, 255
      %s147 = smul.addr %s146, 4
      %s148 = scalar_lea.vmem %s0, %s147
      %p149 = pneg %p35
      %p150 = pneg %p32
      %p151 = pneg %p56
      %p152 = pneg %p53
      %p153 = pneg %p77
      %p154 = pneg %p74
      %p155 = pneg %p103
      %p156 = pneg %p100
      %s157 = smul.u32 32, %s14
      %p158 = scmp.lt.s32.totalorder %s157, 255
      %s159 = scalar_select %p158, %s157, 255
      %s160 = smul.addr %s159, 4
      %s161 = scalar_lea.vmem %s3, %s160
      %s162 = smul.u32 32, %s14
      %p163 = scmp.lt.s32.totalorder %s162, 255
      %s164 = scalar_select %p163, %s162, 255
      %s165 = smul.addr %s164, 4
      %s166 = scalar_lea.vmem %s0, %s165
      %s167 = smul.u32 32, %s14
      %s168 = smul.u32 32, %s14
      %p169 = scmp.lt.s32.totalorder %s168, 255
      %s170 = scalar_select %p169, %s168, 255
      %s171 = smul.addr %s170, 4
      %s172 = scalar_lea.vmem %s3, %s171
      %s173 = smul.u32 32, %s14
      %v175 = vld [vmem:[%s166] sm:$0xf]
      %v176 = vld [vmem:[%s166 + $0x4] sm:$0xf]
      %v177 = vld [vmem:[%s166 + $0x8] sm:$0xf]
      %v178 = vld [vmem:[%s166 + $0xc] sm:$0xf]
      %v179 = vld [vmem:[%s166 + $0x10] sm:$0xf]
      %v180 = vld [vmem:[%s166 + $0x14] sm:$0xf]
      %v181 = vld [vmem:[%s166 + $0x18] sm:$0xf]
      %v182 = vld [vmem:[%s166 + $0x1c] sm:$0xf]
      %v183 = vld [vmem:[%s166 + $0x20] sm:$0xf]
      %v184 = vld [vmem:[%s166 + $0x24] sm:$0xf]
      %v185 = vld [vmem:[%s166 + $0x28] sm:$0xf]
      %v186 = vld [vmem:[%s166 + $0x2c] sm:$0xf]
      %v187 = vld [vmem:[%s166 + $0x30] sm:$0xf]
      %v188 = vld [vmem:[%s166 + $0x34] sm:$0xf]
      %v189 = vld [vmem:[%s166 + $0x38] sm:$0xf]
      %v190 = vld [vmem:[%s166 + $0x3c] sm:$0xf]
      %v191 = vld [vmem:[%s166 + $0x40] sm:$0xf]
      %v192 = vld [vmem:[%s166 + $0x44] sm:$0xf]
      %v193 = vld [vmem:[%s166 + $0x48] sm:$0xf]
      %v194 = vld [vmem:[%s166 + $0x4c] sm:$0xf]
      %v195 = vld [vmem:[%s166 + $0x50] sm:$0xf]
      %v196 = vld [vmem:[%s166 + $0x54] sm:$0xf]
      %v197 = vld [vmem:[%s166 + $0x58] sm:$0xf]
      %v198 = vld [vmem:[%s166 + $0x5c] sm:$0xf]
      %v199 = vld [vmem:[%s166 + $0x60] sm:$0xf]
      %v200 = vld [vmem:[%s166 + $0x64] sm:$0xf]
      %v201 = vld [vmem:[%s166 + $0x68] sm:$0xf]
      %v202 = vld [vmem:[%s166 + $0x6c] sm:$0xf]
      %v203 = vld [vmem:[%s166 + $0x70] sm:$0xf]
      %v204 = vld [vmem:[%s166 + $0x74] sm:$0xf]
      %v205 = vld [vmem:[%s166 + $0x78] sm:$0xf]
      %v206 = vld [vmem:[%s166 + $0x7c] sm:$0xf]
      %v207 = vld [vmem:[%s1] sm:$0xf]
      %v208 = vld [vmem:[%s1 + $0x4] sm:$0xf]
      %v209 = vld [vmem:[%s1 + $0x8] sm:$0xf]
      %v210 = vld [vmem:[%s1 + $0xc] sm:$0x3]
      %v211 = vld [vmem:[%s2] sm:$0x1]
      %v213 = vlaneseq
      %v214 = vshrl.u32 %v213, 7
      %v215 = vsub.s32 0, %v214
      %v216 = vrot.slane %v211, %v215
      %v250 = vunpack.c.l.b16 %v175
      %v251 = vunpack.c.l.b16 %v176
      %v252 = vunpack.c.l.b16 %v177
      %v253 = vunpack.c.l.b16 %v178
      %v254 = vunpack.c.l.b16 %v179
      %v255 = vunpack.c.l.b16 %v180
      %v256 = vunpack.c.l.b16 %v181
      %v257 = vunpack.c.l.b16 %v182
      %v258 = vunpack.c.l.b16 %v183
      %v259 = vunpack.c.l.b16 %v184
      %v260 = vunpack.c.l.b16 %v185
      %v261 = vunpack.c.l.b16 %v186
      %v262 = vunpack.c.l.b16 %v187
      %v263 = vunpack.c.l.b16 %v188
      %v264 = vunpack.c.l.b16 %v189
      %v265 = vunpack.c.l.b16 %v190
      %v266 = vunpack.c.l.b16 %v191
      %v267 = vunpack.c.l.b16 %v192
      %v268 = vunpack.c.l.b16 %v193
      %v269 = vunpack.c.l.b16 %v194
      %v270 = vunpack.c.l.b16 %v195
      %v271 = vunpack.c.l.b16 %v196
      %v272 = vunpack.c.l.b16 %v197
      %v273 = vunpack.c.l.b16 %v198
      %v274 = vunpack.c.l.b16 %v199
      %v275 = vunpack.c.l.b16 %v200
      %v276 = vunpack.c.l.b16 %v201
      %v277 = vunpack.c.l.b16 %v202
      %v278 = vunpack.c.l.b16 %v203
      %v279 = vunpack.c.l.b16 %v204
      %v280 = vunpack.c.l.b16 %v205
      %v281 = vunpack.c.l.b16 %v206
      %v282 = vpack.c.b16 %v251, %v250
      %v283 = vpack.c.b16 %v253, %v252
      %v284 = vpack.c.b16 %v255, %v254
      %v285 = vpack.c.b16 %v257, %v256
      %v286 = vpack.c.b16 %v259, %v258
      %v287 = vpack.c.b16 %v261, %v260
      %v288 = vpack.c.b16 %v263, %v262
      %v289 = vpack.c.b16 %v265, %v264
      %v290 = vpack.c.b16 %v267, %v266
      %v291 = vpack.c.b16 %v269, %v268
      %v292 = vpack.c.b16 %v271, %v270
      %v293 = vpack.c.b16 %v273, %v272
      %v294 = vpack.c.b16 %v275, %v274
      %v295 = vpack.c.b16 %v277, %v276
      %v296 = vpack.c.b16 %v279, %v278
      %v297 = vpack.c.b16 %v281, %v280
      %v302 = vunpack.c.l.b16 %v207
      %v303 = vunpack.c.l.b16 %v208
      %v304 = vunpack.c.l.b16 %v209
      %v305 = vunpack.c.l.b16 %v210
      %v306 = vpack.c.b16 %v303, %v302
      %v307 = vpack.c.b16 %v305, %v304
      %vm309 = vcmask 220160
      %v311 = vsel %vm309, %v282, 0
      %v314 = vsel %vm309, %v283, 0
      %v317 = vsel %vm309, %v284, 0
      %v320 = vsel %vm309, %v285, 0
      %v323 = vsel %vm309, %v286, 0
      %v326 = vsel %vm309, %v287, 0
      %v329 = vsel %vm309, %v288, 0
      %v332 = vsel %vm309, %v289, 0
      %v335 = vsel %vm309, %v290, 0
      %v338 = vsel %vm309, %v291, 0
      %v341 = vsel %vm309, %v292, 0
      %v344 = vsel %vm309, %v293, 0
      %v347 = vsel %vm309, %v294, 0
      %v350 = vsel %vm309, %v295, 0
      %v353 = vsel %vm309, %v296, 0
      %v356 = vsel %vm309, %v297, 0
      %vm358 = vcmask 1044480
      %vm359 = vcmask 1045504
      %v360 = vsel %vm358, 4294967295, 65535
      %v361 = vsel %vm359, %v360, 0
      %v363 = vand.u32 %v307, %v361
      %365 = vmatprep.subr.bf16.mxu0 0
      %366 = vmatpush1.bf16.msra.mxu0 0
      %367 = vmatprep.subr.bf16.mxu0 0
      %368 = vmatpush1.bf16.msra.mxu0 0
      %369 = vmatprep.subr.bf16.mxu0 0
      %370 = vmatpush1.bf16.msra.mxu0 0
      %371 = vmatprep.subr.bf16.mxu0 0
      %372 = vmatpush1.bf16.msra.mxu0 0
      %373 = vmatprep.subr.bf16.mxu0 0
      %374 = vmatpush1.bf16.msra.mxu0 0
      %375 = vmatprep.subr.bf16.mxu0 0
      %376 = vmatpush1.bf16.msra.mxu0 0
      %377 = vmatprep.subr.bf16.mxu0 0
      %378 = vmatpush1.bf16.msra.mxu0 %v363
      %379 = vmatprep.subr.bf16.mxu0 0
      %380 = vmatpush1.bf16.msra.mxu0 %v306
      %381 = vmatprep.subr.bf16.mxu0 0
      %382 = vmatpush2.bf16.msra.mxu0 0
      %383 = vmatprep.subr.bf16.mxu0 0
      %384 = vmatpush2.bf16.msra.mxu0 0
      %385 = vmatprep.subr.bf16.mxu0 0
      %386 = vmatpush2.bf16.msra.mxu0 0
      %387 = vmatprep.subr.bf16.mxu0 0
      %388 = vmatpush2.bf16.msra.mxu0 0
      %389 = vmatprep.subr.bf16.mxu0 0
      %390 = vmatpush2.bf16.msra.mxu0 0
      %391 = vmatprep.subr.bf16.mxu0 0
      %392 = vmatpush2.bf16.msra.mxu0 0
      %393 = vmatprep.subr.bf16.mxu0 0
      %394 = vmatpush2.bf16.msra.mxu0 0
      %395 = vmatprep.subr.bf16.mxu0 0
      %396 = vmatpush2.bf16.msra.mxu0 0
      %397 = vmatprep.mubr.bf16.mxu0 0
      %398 = vmatmul.mubr.bf16.gmra.mxu0 %v311
      %v399 = vpop.f32.mrf.mxu0
      %v400 = vadd.f32 %v216, %v399
      %v401 = vpop.f32.mrf.mxu0
      %v402 = vpop.f32.mrf.mxu0
      %v403 = vadd.f32 %v216, %v402
      %v404 = vpop.f32.mrf.mxu0
      %405 = vmatprep.mubr.bf16.mxu0 0
      %406 = vmatmul.mubr.bf16.gmra.mxu0 %v314
      %v407 = vpop.f32.mrf.mxu0
      %v408 = vadd.f32 %v216, %v407
      %v409 = vpop.f32.mrf.mxu0
      %v410 = vpop.f32.mrf.mxu0
      %v411 = vadd.f32 %v216, %v410
      %v412 = vpop.f32.mrf.mxu0
      %413 = vmatprep.mubr.bf16.mxu0 0
      %414 = vmatmul.mubr.bf16.gmra.mxu0 %v317
      %v415 = vpop.f32.mrf.mxu0
      %v416 = vadd.f32 %v216, %v415
      %v417 = vpop.f32.mrf.mxu0
      %v418 = vpop.f32.mrf.mxu0
      %v419 = vadd.f32 %v216, %v418
      %v420 = vpop.f32.mrf.mxu0
      %421 = vmatprep.mubr.bf16.mxu0 0
      %422 = vmatmul.mubr.bf16.gmra.mxu0 %v320
      %v423 = vpop.f32.mrf.mxu0
      %v424 = vadd.f32 %v216, %v423
      %v425 = vpop.f32.mrf.mxu0
      %v426 = vpop.f32.mrf.mxu0
      %v427 = vadd.f32 %v216, %v426
      %v428 = vpop.f32.mrf.mxu0
      %429 = vmatprep.mubr.bf16.mxu0 0
      %430 = vmatmul.mubr.bf16.gmra.mxu0 %v323
      %v431 = vpop.f32.mrf.mxu0
      %v432 = vadd.f32 %v216, %v431
      %v433 = vpop.f32.mrf.mxu0
      %v434 = vpop.f32.mrf.mxu0
      %v435 = vadd.f32 %v216, %v434
      %v436 = vpop.f32.mrf.mxu0
      %437 = vmatprep.mubr.bf16.mxu0 0
      %438 = vmatmul.mubr.bf16.gmra.mxu0 %v326
      %v439 = vpop.f32.mrf.mxu0
      %v440 = vadd.f32 %v216, %v439
      %v441 = vpop.f32.mrf.mxu0
      %v442 = vpop.f32.mrf.mxu0
      %v443 = vadd.f32 %v216, %v442
      %v444 = vpop.f32.mrf.mxu0
      %445 = vmatprep.mubr.bf16.mxu0 0
      %446 = vmatmul.mubr.bf16.gmra.mxu0 %v329
      %v447 = vpop.f32.mrf.mxu0
      %v448 = vadd.f32 %v216, %v447
      %v449 = vpop.f32.mrf.mxu0
      %v450 = vpop.f32.mrf.mxu0
      %v451 = vadd.f32 %v216, %v450
      %v452 = vpop.f32.mrf.mxu0
      %453 = vmatprep.mubr.bf16.mxu0 0
      %454 = vmatmul.mubr.bf16.gmra.mxu0 %v332
      %v455 = vpop.f32.mrf.mxu0
      %v456 = vadd.f32 %v216, %v455
      %v457 = vpop.f32.mrf.mxu0
      %v458 = vpop.f32.mrf.mxu0
      %v459 = vadd.f32 %v216, %v458
      %v460 = vpop.f32.mrf.mxu0
      %461 = vmatprep.mubr.bf16.mxu0 0
      %462 = vmatmul.mubr.bf16.gmra.mxu0 %v335
      %v463 = vpop.f32.mrf.mxu0
      %v464 = vadd.f32 %v216, %v463
      %v465 = vpop.f32.mrf.mxu0
      %v466 = vpop.f32.mrf.mxu0
      %v467 = vadd.f32 %v216, %v466
      %v468 = vpop.f32.mrf.mxu0
      %469 = vmatprep.mubr.bf16.mxu0 0
      %470 = vmatmul.mubr.bf16.gmra.mxu0 %v338
      %v471 = vpop.f32.mrf.mxu0
      %v472 = vadd.f32 %v216, %v471
      %v473 = vpop.f32.mrf.mxu0
      %v474 = vpop.f32.mrf.mxu0
      %v475 = vadd.f32 %v216, %v474
      %v476 = vpop.f32.mrf.mxu0
      %477 = vmatprep.mubr.bf16.mxu0 0
      %478 = vmatmul.mubr.bf16.gmra.mxu0 %v341
      %v479 = vpop.f32.mrf.mxu0
      %v480 = vadd.f32 %v216, %v479
      %v481 = vpop.f32.mrf.mxu0
      %v482 = vpop.f32.mrf.mxu0
      %v483 = vadd.f32 %v216, %v482
      %v484 = vpop.f32.mrf.mxu0
      %485 = vmatprep.mubr.bf16.mxu0 0
      %486 = vmatmul.mubr.bf16.gmra.mxu0 %v344
      %v487 = vpop.f32.mrf.mxu0
      %v488 = vadd.f32 %v216, %v487
      %v489 = vpop.f32.mrf.mxu0
      %v490 = vpop.f32.mrf.mxu0
      %v491 = vadd.f32 %v216, %v490
      %v492 = vpop.f32.mrf.mxu0
      %493 = vmatprep.mubr.bf16.mxu0 0
      %494 = vmatmul.mubr.bf16.gmra.mxu0 %v347
      %v495 = vpop.f32.mrf.mxu0
      %v496 = vadd.f32 %v216, %v495
      %v497 = vpop.f32.mrf.mxu0
      %v498 = vpop.f32.mrf.mxu0
      %v499 = vadd.f32 %v216, %v498
      %v500 = vpop.f32.mrf.mxu0
      %501 = vmatprep.mubr.bf16.mxu0 0
      %502 = vmatmul.mubr.bf16.gmra.mxu0 %v350
      %v503 = vpop.f32.mrf.mxu0
      %v504 = vadd.f32 %v216, %v503
      %v505 = vpop.f32.mrf.mxu0
      %v506 = vpop.f32.mrf.mxu0
      %v507 = vadd.f32 %v216, %v506
      %v508 = vpop.f32.mrf.mxu0
      %509 = vmatprep.mubr.bf16.mxu0 0
      %510 = vmatmul.mubr.bf16.gmra.mxu0 %v353
      %v511 = vpop.f32.mrf.mxu0
      %v512 = vadd.f32 %v216, %v511
      %v513 = vpop.f32.mrf.mxu0
      %v514 = vpop.f32.mrf.mxu0
      %v515 = vadd.f32 %v216, %v514
      %v516 = vpop.f32.mrf.mxu0
      %517 = vmatprep.mubr.bf16.mxu0 0
      %518 = vmatmul.mubr.bf16.gmra.mxu0 %v356
      %v519 = vpop.f32.mrf.mxu0
      %v520 = vadd.f32 %v216, %v519
      %v521 = vpop.f32.mrf.mxu0
      %v522 = vpop.f32.mrf.mxu0
      %v523 = vadd.f32 %v216, %v522
      %v524 = vpop.f32.mrf.mxu0
      %525 = vdwg.mxu0
      %v526 = vmax.f32 %v400, 0.0
      %v527 = vmax.f32 %v403, 0.0
      %v528 = vmax.f32 %v408, 0.0
      %v529 = vmax.f32 %v411, 0.0
      %v530 = vmax.f32 %v416, 0.0
      %v531 = vmax.f32 %v419, 0.0
      %v532 = vmax.f32 %v424, 0.0
      %v533 = vmax.f32 %v427, 0.0
      %v534 = vmax.f32 %v432, 0.0
      %v535 = vmax.f32 %v435, 0.0
      %v536 = vmax.f32 %v440, 0.0
      %v537 = vmax.f32 %v443, 0.0
      %v538 = vmax.f32 %v448, 0.0
      %v539 = vmax.f32 %v451, 0.0
      %v540 = vmax.f32 %v456, 0.0
      %v541 = vmax.f32 %v459, 0.0
      %v542 = vmax.f32 %v464, 0.0
      %v543 = vmax.f32 %v467, 0.0
      %v544 = vmax.f32 %v472, 0.0
      %v545 = vmax.f32 %v475, 0.0
      %v546 = vmax.f32 %v480, 0.0
      %v547 = vmax.f32 %v483, 0.0
      %v548 = vmax.f32 %v488, 0.0
      %v549 = vmax.f32 %v491, 0.0
      %v550 = vmax.f32 %v496, 0.0
      %v551 = vmax.f32 %v499, 0.0
      %v552 = vmax.f32 %v504, 0.0
      %v553 = vmax.f32 %v507, 0.0
      %v554 = vmax.f32 %v512, 0.0
      %v555 = vmax.f32 %v515, 0.0
      %v556 = vmax.f32 %v520, 0.0
      %v557 = vmax.f32 %v523, 0.0
      %v558 = vpack.c.bf16 %v527, %v526
      %v559 = vpack.c.bf16 %v529, %v528
      %v560 = vpack.c.bf16 %v531, %v530
      %v561 = vpack.c.bf16 %v533, %v532
      %v562 = vpack.c.bf16 %v535, %v534
      %v563 = vpack.c.bf16 %v537, %v536
      %v564 = vpack.c.bf16 %v539, %v538
      %v565 = vpack.c.bf16 %v541, %v540
      %v566 = vpack.c.bf16 %v543, %v542
      %v567 = vpack.c.bf16 %v545, %v544
      %v568 = vpack.c.bf16 %v547, %v546
      %v569 = vpack.c.bf16 %v549, %v548
      %v570 = vpack.c.bf16 %v551, %v550
      %v571 = vpack.c.bf16 %v553, %v552
      %v572 = vpack.c.bf16 %v555, %v554
      %v573 = vpack.c.bf16 %v557, %v556
      %v590 = vunpack.c.l.b16 %v558
      %v591 = vunpack.c.h.b16 %v558
      %v592 = vunpack.c.l.b16 %v559
      %v593 = vunpack.c.h.b16 %v559
      %v594 = vunpack.c.l.b16 %v560
      %v595 = vunpack.c.h.b16 %v560
      %v596 = vunpack.c.l.b16 %v561
      %v597 = vunpack.c.h.b16 %v561
      %v598 = vunpack.c.l.b16 %v562
      %v599 = vunpack.c.h.b16 %v562
      %v600 = vunpack.c.l.b16 %v563
      %v601 = vunpack.c.h.b16 %v563
      %v602 = vunpack.c.l.b16 %v564
      %v603 = vunpack.c.h.b16 %v564
      %v604 = vunpack.c.l.b16 %v565
      %v605 = vunpack.c.h.b16 %v565
      %v606 = vunpack.c.l.b16 %v566
      %v607 = vunpack.c.h.b16 %v566
      %v608 = vunpack.c.l.b16 %v567
      %v609 = vunpack.c.h.b16 %v567
      %v610 = vunpack.c.l.b16 %v568
      %v611 = vunpack.c.h.b16 %v568
      %v612 = vunpack.c.l.b16 %v569
      %v613 = vunpack.c.h.b16 %v569
      %v614 = vunpack.c.l.b16 %v570
      %v615 = vunpack.c.h.b16 %v570
      %v616 = vunpack.c.l.b16 %v571
      %v617 = vunpack.c.h.b16 %v571
      %v618 = vunpack.c.l.b16 %v572
      %v619 = vunpack.c.h.b16 %v572
      %v620 = vunpack.c.l.b16 %v573
      %v621 = vunpack.c.h.b16 %v573
      %v622 = vpack.c.b16 %v590, %v590
      %v623 = vpack.c.b16 %v591, %v591
      %v624 = vpack.c.b16 %v592, %v592
      %v625 = vpack.c.b16 %v593, %v593
      %v626 = vpack.c.b16 %v594, %v594
      %v627 = vpack.c.b16 %v595, %v595
      %v628 = vpack.c.b16 %v596, %v596
      %v629 = vpack.c.b16 %v597, %v597
      %v630 = vpack.c.b16 %v598, %v598
      %v631 = vpack.c.b16 %v599, %v599
      %v632 = vpack.c.b16 %v600, %v600
      %v633 = vpack.c.b16 %v601, %v601
      %v634 = vpack.c.b16 %v602, %v602
      %v635 = vpack.c.b16 %v603, %v603
      %v636 = vpack.c.b16 %v604, %v604
      %v637 = vpack.c.b16 %v605, %v605
      %v638 = vpack.c.b16 %v606, %v606
      %v639 = vpack.c.b16 %v607, %v607
      %v640 = vpack.c.b16 %v608, %v608
      %v641 = vpack.c.b16 %v609, %v609
      %v642 = vpack.c.b16 %v610, %v610
      %v643 = vpack.c.b16 %v611, %v611
      %v644 = vpack.c.b16 %v612, %v612
      %v645 = vpack.c.b16 %v613, %v613
      %v646 = vpack.c.b16 %v614, %v614
      %v647 = vpack.c.b16 %v615, %v615
      %v648 = vpack.c.b16 %v616, %v616
      %v649 = vpack.c.b16 %v617, %v617
      %v650 = vpack.c.b16 %v618, %v618
      %v651 = vpack.c.b16 %v619, %v619
      %v652 = vpack.c.b16 %v620, %v620
      %v653 = vpack.c.b16 %v621, %v621
      %686 = vst [vmem:[%s172] sm:$0xf] %v622
      %687 = vst [vmem:[%s172 + $0x4] sm:$0xf] %v623
      %688 = vst [vmem:[%s172 + $0x8] sm:$0xf] %v624
      %689 = vst [vmem:[%s172 + $0xc] sm:$0xf] %v625
      %690 = vst [vmem:[%s172 + $0x10] sm:$0xf] %v626
      %691 = vst [vmem:[%s172 + $0x14] sm:$0xf] %v627
      %692 = vst [vmem:[%s172 + $0x18] sm:$0xf] %v628
      %693 = vst [vmem:[%s172 + $0x1c] sm:$0xf] %v629
      %694 = vst [vmem:[%s172 + $0x20] sm:$0xf] %v630
      %695 = vst [vmem:[%s172 + $0x24] sm:$0xf] %v631
      %696 = vst [vmem:[%s172 + $0x28] sm:$0xf] %v632
      %697 = vst [vmem:[%s172 + $0x2c] sm:$0xf] %v633
      %698 = vst [vmem:[%s172 + $0x30] sm:$0xf] %v634
      %699 = vst [vmem:[%s172 + $0x34] sm:$0xf] %v635
      %700 = vst [vmem:[%s172 + $0x38] sm:$0xf] %v636
      %701 = vst [vmem:[%s172 + $0x3c] sm:$0xf] %v637
      %702 = vst [vmem:[%s172 + $0x40] sm:$0xf] %v638
      %703 = vst [vmem:[%s172 + $0x44] sm:$0xf] %v639
      %704 = vst [vmem:[%s172 + $0x48] sm:$0xf] %v640
      %705 = vst [vmem:[%s172 + $0x4c] sm:$0xf] %v641
      %706 = vst [vmem:[%s172 + $0x50] sm:$0xf] %v642
      %707 = vst [vmem:[%s172 + $0x54] sm:$0xf] %v643
      %708 = vst [vmem:[%s172 + $0x58] sm:$0xf] %v644
      %709 = vst [vmem:[%s172 + $0x5c] sm:$0xf] %v645
      %710 = vst [vmem:[%s172 + $0x60] sm:$0xf] %v646
      %711 = vst [vmem:[%s172 + $0x64] sm:$0xf] %v647
      %712 = vst [vmem:[%s172 + $0x68] sm:$0xf] %v648
      %713 = vst [vmem:[%s172 + $0x6c] sm:$0xf] %v649
      %714 = vst [vmem:[%s172 + $0x70] sm:$0xf] %v650
      %715 = vst [vmem:[%s172 + $0x74] sm:$0xf] %v651
      %716 = vst [vmem:[%s172 + $0x78] sm:$0xf] %v652
      %717 = vst [vmem:[%s172 + $0x7c] sm:$0xf] %v653
      %s718 = smul.u32 32, %s14
      %p719 = scmp.lt.s32.totalorder %s718, 255
      %s720 = scalar_select %p719, %s718, 255
      %s721 = smul.addr %s720, 4
      %s722 = scalar_lea.vmem %s3, %s721
      // Predicated region
      $region33: #{_lambda_.29} parent=31 // pred_check
        %p723 = pneg %p100
      $region34: #{_lambda_.29} parent=31 // pred_check_branch
        %725 = sbr.rel (%p723) target = $region36
      $region35: #{_lambda_.29} parent=31 // pred_region
        %s726 = smul.u32 32, %s14
      $region36: #{_lambda_.29} parent=31 // pred_fallthru
        _
    $region32: #{_lambda_.29} parent=5 // pred_fallthru
      _
    %p727 = scmp.le.s32.totalorder 2, %s9
    // Predicated region
    $region37: #{_lambda_.29} parent=5 // pred_check
      %p728 = pneg %p727
    $region38: #{_lambda_.29} parent=5 // pred_check_branch
      %730 = sbr.rel (%p728) target = $region40
    $region39: #{_lambda_.29} parent=5 // pred_region
      %s731 = ssub.s32 %s9, 2
      // Predicated region
      $region41: #{_lambda_.29} parent=39 // pred_check
        %p732 = pneg %p106
      $region42: #{_lambda_.29} parent=39 // pred_check_branch
        %734 = sbr.rel (%p732) target = $region44
      $region43: #{_lambda_.29} parent=39 // pred_region
        %s735 = smul.u32 32, %s15
        %p736 = scmp.lt.s32.totalorder %s735, 255
        %s737 = scalar_select %p736, %s735, 255
        %s738 = smul.addr %s737, 4
        %s739 = scalar_lea.vmem %s3, %s738
      $region44: #{_lambda_.29} parent=39 // pred_fallthru
        _
    $region40: #{_lambda_.29} parent=5 // pred_fallthru
      _
  $region6: #{_lambda_.29} parent=0 // loop_footer
    %s13 = sadd.s32 1, %s9
  $region7: #{_lambda_.29} parent=0 // loop_footer_branch
    %8 = sbr.rel target = $region3
  $region8: #{_lambda_.29} parent=0 // loop_exit
    _

// kernel: _lambda_.30
$region0: #{_lambda_.30}
  #allocation0 [shape = 'u32[]', space=smem, size = 0x4, offset = 0x4, fixed_abs, tag = 'smem constant byte address 0x4 - core index']
  #allocation1 [shape = 'u32[144,128]{1,0:T(1,128)}', space=vmem, size = 0x12000, scoped, tag = 'internal scratch']
  %s0 = inlined_call_operand.vmem [shape: bf16[512,72], index: 0, kind: input, shape index: {}]
  %s1 = inlined_call_operand.vmem [shape: bf16[72,128], index: 1, kind: input, shape index: {}]
  %s2 = inlined_call_operand.vmem [shape: f32[1,128], index: 2, kind: input, shape index: {}]
  %s3 = inlined_call_operand.vmem [shape: bf16[512,128], index: 3, kind: output, shape index: {}]
  %s4 = sld [smem:[#allocation0]]
  $region45: #{_lambda_.30} parent=0
    _
  %s6 = ssub.s32 1, %s4
  %s7 = scalar_select 0, %s6, %s4
  loop: start=0, step=1, limit=4
  $region2: #{_lambda_.30} parent=0 // loop_pre_header
    _
  $region3: #{_lambda_.30} parent=0 // loop_header
    %s9 = sphi 0, %s13
    %p10 = scmp.ge.s32.totalorder %s9, 4
    %s19 = sphi 0, %s21
    %s22 = sphi 0, %s19
    %s23 = sphi 0, %s22
    %s39 = sphi 0, %s23
    %s43 = sphi 0, %s43
    %s45 = sphi 0, %s43
    %s46 = sphi 0, %s45
    %s60 = sphi 0, %s46
    %s64 = sphi 0, %s64
    %s66 = sphi 0, %s64
    %s67 = sphi 0, %s66
    %s81 = sphi 0, %s67
    %s87 = sphi 0, %s89
    %s90 = sphi 0, %s87
    %s91 = sphi 0, %s90
    %s107 = sphi 0, %s91
  $region4: #{_lambda_.30} parent=0 // loop_header_branch
    %12 = sbr.rel (%p10) target = $region8
  $region5: #{_lambda_.30} parent=0 // loop_body
    %s14 = ssub.s32 %s9, 1
    %s15 = ssub.s32 %s9, 2
    %s16 = sadd.s32 %s9, 1
    %s17 = ssub.s32 %s9, %s16
    %p18 = scmp.eq.s32.totalorder %s17, 0
    %s20 = sadd.s32 %s19, 1
    %s21 = scalar_select %p18, %s19, %s20
    %p24 = pneg %p18
    %p25 = scmp.eq.s32.totalorder %s9, 1
    %p26 = por %p24, %p25
    %p27 = scmp.ne.s32.totalorder %s19, %s22
    %p28 = scmp.eq.s32.totalorder %s9, 0
    %p29 = por %p27, %p28
    %p30 = scmp.ne.s32.totalorder %s19, %s22
    %p31 = scmp.eq.s32.totalorder %s14, 1
    %p32 = por %p30, %p31
    %p33 = scmp.ne.s32.totalorder %s22, %s23
    %p34 = scmp.eq.s32.totalorder %s14, 0
    %p35 = por %p33, %p34
    %p36 = scmp.ne.s32.totalorder %s22, %s23
    %p37 = scmp.eq.s32.totalorder %s15, 1
    %p38 = por %p36, %p37
    %p40 = scmp.ne.s32.totalorder %s23, %s39
    %p41 = scmp.eq.s32.totalorder %s15, 0
    %p42 = por %p40, %p41
    %s44 = sadd.s32 %s43, 1
    %p47 = scmp.eq.s32.totalorder %s9, 1
    %p48 = scmp.ne.s32.totalorder %s43, %s45
    %p49 = scmp.eq.s32.totalorder %s9, 0
    %p50 = por %p48, %p49
    %p51 = scmp.ne.s32.totalorder %s43, %s45
    %p52 = scmp.eq.s32.totalorder %s14, 1
    %p53 = por %p51, %p52
    %p54 = scmp.ne.s32.totalorder %s45, %s46
    %p55 = scmp.eq.s32.totalorder %s14, 0
    %p56 = por %p54, %p55
    %p57 = scmp.ne.s32.totalorder %s45, %s46
    %p58 = scmp.eq.s32.totalorder %s15, 1
    %p59 = por %p57, %p58
    %p61 = scmp.ne.s32.totalorder %s46, %s60
    %p62 = scmp.eq.s32.totalorder %s15, 0
    %p63 = por %p61, %p62
    %s65 = sadd.s32 %s64, 1
    %p68 = scmp.eq.s32.totalorder %s9, 1
    %p69 = scmp.ne.s32.totalorder %s64, %s66
    %p70 = scmp.eq.s32.totalorder %s9, 0
    %p71 = por %p69, %p70
    %p72 = scmp.ne.s32.totalorder %s64, %s66
    %p73 = scmp.eq.s32.totalorder %s14, 1
    %p74 = por %p72, %p73
    %p75 = scmp.ne.s32.totalorder %s66, %s67
    %p76 = scmp.eq.s32.totalorder %s14, 0
    %p77 = por %p75, %p76
    %p78 = scmp.ne.s32.totalorder %s66, %s67
    %p79 = scmp.eq.s32.totalorder %s15, 1
    %p80 = por %p78, %p79
    %p82 = scmp.ne.s32.totalorder %s67, %s81
    %p83 = scmp.eq.s32.totalorder %s15, 0
    %p84 = por %p82, %p83
    %s85 = ssub.s32 %s9, %s16
    %p86 = scmp.eq.s32.totalorder %s85, 0
    %s88 = sadd.s32 %s87, 1
    %s89 = scalar_select %p86, %s87, %s88
    %p92 = pneg %p86
    %p93 = scmp.eq.s32.totalorder %s9, 1
    %p94 = por %p92, %p93
    %p95 = scmp.ne.s32.totalorder %s87, %s90
    %p96 = scmp.eq.s32.totalorder %s9, 0
    %p97 = por %p95, %p96
    %p98 = scmp.ne.s32.totalorder %s87, %s90
    %p99 = scmp.eq.s32.totalorder %s14, 1
    %p100 = por %p98, %p99
    %p101 = scmp.ne.s32.totalorder %s90, %s91
    %p102 = scmp.eq.s32.totalorder %s14, 0
    %p103 = por %p101, %p102
    %p104 = scmp.ne.s32.totalorder %s90, %s91
    %p105 = scmp.eq.s32.totalorder %s15, 1
    %p106 = por %p104, %p105
    %p108 = scmp.ne.s32.totalorder %s91, %s107
    %p109 = scmp.eq.s32.totalorder %s15, 0
    %p110 = por %p108, %p109
    %p111 = scmp.le.s32.totalorder 1, %s9
    %p112 = scmp.lt.s32.totalorder %s9, 3
    %p113 = pnand %p111, %p112
    %p114 = pneg %p113
    // Predicated region
    $region9: #{_lambda_.30} parent=5 // pred_check
      _
    $region10: #{_lambda_.30} parent=5 // pred_check_branch
      %116 = sbr.rel (%p113) target = $region12
    $region11: #{_lambda_.30} parent=5 // pred_region
      %s117 = ssub.s32 %s9, 1
      // Predicated region
      $region13: #{_lambda_.30} parent=11 // pred_check
        %p118 = pneg %p56
      $region14: #{_lambda_.30} parent=11 // pred_check_branch
        %120 = sbr.rel (%p118) target = $region16
      $region15: #{_lambda_.30} parent=11 // pred_region
        _
      $region16: #{_lambda_.30} parent=11 // pred_fallthru
        _
      // Predicated region
      $region17: #{_lambda_.30} parent=11 // pred_check
        %p121 = pneg %p77
      $region18: #{_lambda_.30} parent=11 // pred_check_branch
        %123 = sbr.rel (%p121) target = $region20
      $region19: #{_lambda_.30} parent=11 // pred_region
        _
      $region20: #{_lambda_.30} parent=11 // pred_fallthru
        _
    $region12: #{_lambda_.30} parent=5 // pred_fallthru
      _
    %p124 = scmp.lt.s32.totalorder %s9, 2
    // Predicated region
    $region21: #{_lambda_.30} parent=5 // pred_check
      %p125 = pneg %p124
    $region22: #{_lambda_.30} parent=5 // pred_check_branch
      %127 = sbr.rel (%p125) target = $region24
    $region23: #{_lambda_.30} parent=5 // pred_region
      // Predicated region
      $region25: #{_lambda_.30} parent=23 // pred_check
        %p128 = pneg %p29
      $region26: #{_lambda_.30} parent=23 // pred_check_branch
        %130 = sbr.rel (%p128) target = $region28
      $region27: #{_lambda_.30} parent=23 // pred_region
        %s131 = smul.u32 32, %s9
        %p132 = scmp.lt.s32.totalorder %s131, 63
        %s133 = scalar_select %p132, %s131, 63
        %s134 = smul.addr %s133, 4
        %s135 = scalar_lea.vmem %s0, %s134
        %s136 = smul.u32 32, %s9
      $region28: #{_lambda_.30} parent=23 // pred_fallthru
        _
    $region24: #{_lambda_.30} parent=5 // pred_fallthru
      _
    %p137 = scmp.le.s32.totalorder 1, %s9
    %p138 = scmp.lt.s32.totalorder %s9, 3
    %p139 = pnand %p137, %p138
    %p140 = pneg %p139
    // Predicated region
    $region29: #{_lambda_.30} parent=5 // pred_check
      _
    $region30: #{_lambda_.30} parent=5 // pred_check_branch
      %142 = sbr.rel (%p139) target = $region32
    $region31: #{_lambda_.30} parent=5 // pred_region
      %s143 = ssub.s32 %s9, 1
      %s144 = smul.u32 32, %s14
      %p145 = scmp.lt.s32.totalorder %s144, 63
      %s146 = scalar_select %p145, %s144, 63
      %s147 = smul.addr %s146, 4
      %s148 = scalar_lea.vmem %s0, %s147
      %p149 = pneg %p35
      %p150 = pneg %p32
      %p151 = pneg %p56
      %p152 = pneg %p53
      %p153 = pneg %p77
      %p154 = pneg %p74
      %p155 = pneg %p103
      %p156 = pneg %p100
      %s157 = smul.u32 32, %s14
      %p158 = scmp.lt.s32.totalorder %s157, 63
      %s159 = scalar_select %p158, %s157, 63
      %s160 = smul.addr %s159, 4
      %s161 = scalar_lea.vmem %s3, %s160
      %s162 = smul.u32 32, %s14
      %p163 = scmp.lt.s32.totalorder %s162, 63
      %s164 = scalar_select %p163, %s162, 63
      %s165 = smul.addr %s164, 4
      %s166 = scalar_lea.vmem %s0, %s165
      %s167 = smul.u32 32, %s14
      %s168 = smul.u32 32, %s14
      %p169 = scmp.lt.s32.totalorder %s168, 63
      %s170 = scalar_select %p169, %s168, 63
      %s171 = smul.addr %s170, 4
      %s172 = scalar_lea.vmem %s3, %s171
      %s173 = smul.u32 32, %s14
      %v175 = vld [vmem:[%s166] sm:$0xf]
      %v176 = vld [vmem:[%s166 + $0x4] sm:$0xf]
      %v177 = vld [vmem:[%s166 + $0x8] sm:$0xf]
      %v178 = vld [vmem:[%s166 + $0xc] sm:$0xf]
      %v179 = vld [vmem:[%s166 + $0x10] sm:$0xf]
      %v180 = vld [vmem:[%s166 + $0x14] sm:$0xf]
      %v181 = vld [vmem:[%s166 + $0x18] sm:$0xf]
      %v182 = vld [vmem:[%s166 + $0x1c] sm:$0xf]
      %v183 = vld [vmem:[%s166 + $0x20] sm:$0xf]
      %v184 = vld [vmem:[%s166 + $0x24] sm:$0xf]
      %v185 = vld [vmem:[%s166 + $0x28] sm:$0xf]
      %v186 = vld [vmem:[%s166 + $0x2c] sm:$0xf]
      %v187 = vld [vmem:[%s166 + $0x30] sm:$0xf]
      %v188 = vld [vmem:[%s166 + $0x34] sm:$0xf]
      %v189 = vld [vmem:[%s166 + $0x38] sm:$0xf]
      %v190 = vld [vmem:[%s166 + $0x3c] sm:$0xf]
      %v191 = vld [vmem:[%s166 + $0x40] sm:$0xf]
      %v192 = vld [vmem:[%s166 + $0x44] sm:$0xf]
      %v193 = vld [vmem:[%s166 + $0x48] sm:$0xf]
      %v194 = vld [vmem:[%s166 + $0x4c] sm:$0xf]
      %v195 = vld [vmem:[%s166 + $0x50] sm:$0xf]
      %v196 = vld [vmem:[%s166 + $0x54] sm:$0xf]
      %v197 = vld [vmem:[%s166 + $0x58] sm:$0xf]
      %v198 = vld [vmem:[%s166 + $0x5c] sm:$0xf]
      %v199 = vld [vmem:[%s166 + $0x60] sm:$0xf]
      %v200 = vld [vmem:[%s166 + $0x64] sm:$0xf]
      %v201 = vld [vmem:[%s166 + $0x68] sm:$0xf]
      %v202 = vld [vmem:[%s166 + $0x6c] sm:$0xf]
      %v203 = vld [vmem:[%s166 + $0x70] sm:$0xf]
      %v204 = vld [vmem:[%s166 + $0x74] sm:$0xf]
      %v205 = vld [vmem:[%s166 + $0x78] sm:$0xf]
      %v206 = vld [vmem:[%s166 + $0x7c] sm:$0xf]
      %v207 = vld [vmem:[%s1] sm:$0xf]
      %v208 = vld [vmem:[%s1 + $0x4] sm:$0xf]
      %v209 = vld [vmem:[%s1 + $0x8] sm:$0xf]
      %v210 = vld [vmem:[%s1 + $0xc] sm:$0xf]
      %v211 = vld [vmem:[%s1 + $0x10] sm:$0xf]
      %v212 = vld [vmem:[%s1 + $0x14] sm:$0xf]
      %v213 = vld [vmem:[%s1 + $0x18] sm:$0xf]
      %v214 = vld [vmem:[%s1 + $0x1c] sm:$0xf]
      %v215 = vld [vmem:[%s1 + $0x20] sm:$0xf]
      %v216 = vld [vmem:[%s2] sm:$0x1]
      %v218 = vlaneseq
      %v219 = vshrl.u32 %v218, 7
      %v220 = vsub.s32 0, %v219
      %v221 = vrot.slane %v216, %v220
      %v255 = vunpack.c.l.b16 %v175
      %v256 = vunpack.c.l.b16 %v176
      %v257 = vunpack.c.l.b16 %v177
      %v258 = vunpack.c.l.b16 %v178
      %v259 = vunpack.c.l.b16 %v179
      %v260 = vunpack.c.l.b16 %v180
      %v261 = vunpack.c.l.b16 %v181
      %v262 = vunpack.c.l.b16 %v182
      %v263 = vunpack.c.l.b16 %v183
      %v264 = vunpack.c.l.b16 %v184
      %v265 = vunpack.c.l.b16 %v185
      %v266 = vunpack.c.l.b16 %v186
      %v267 = vunpack.c.l.b16 %v187
      %v268 = vunpack.c.l.b16 %v188
      %v269 = vunpack.c.l.b16 %v189
      %v270 = vunpack.c.l.b16 %v190
      %v271 = vunpack.c.l.b16 %v191
      %v272 = vunpack.c.l.b16 %v192
      %v273 = vunpack.c.l.b16 %v193
      %v274 = vunpack.c.l.b16 %v194
      %v275 = vunpack.c.l.b16 %v195
      %v276 = vunpack.c.l.b16 %v196
      %v277 = vunpack.c.l.b16 %v197
      %v278 = vunpack.c.l.b16 %v198
      %v279 = vunpack.c.l.b16 %v199
      %v280 = vunpack.c.l.b16 %v200
      %v281 = vunpack.c.l.b16 %v201
      %v282 = vunpack.c.l.b16 %v202
      %v283 = vunpack.c.l.b16 %v203
      %v284 = vunpack.c.l.b16 %v204
      %v285 = vunpack.c.l.b16 %v205
      %v286 = vunpack.c.l.b16 %v206
      %v287 = vpack.c.b16 %v256, %v255
      %v288 = vpack.c.b16 %v258, %v257
      %v289 = vpack.c.b16 %v260, %v259
      %v290 = vpack.c.b16 %v262, %v261
      %v291 = vpack.c.b16 %v264, %v263
      %v292 = vpack.c.b16 %v266, %v265
      %v293 = vpack.c.b16 %v268, %v267
      %v294 = vpack.c.b16 %v270, %v269
      %v295 = vpack.c.b16 %v272, %v271
      %v296 = vpack.c.b16 %v274, %v273
      %v297 = vpack.c.b16 %v276, %v275
      %v298 = vpack.c.b16 %v278, %v277
      %v299 = vpack.c.b16 %v280, %v279
      %v300 = vpack.c.b16 %v282, %v281
      %v301 = vpack.c.b16 %v284, %v283
      %v302 = vpack.c.b16 %v286, %v285
      %v312 = vunpack.c.l.b16 %v207
      %v313 = vunpack.c.l.b16 %v208
      %v314 = vunpack.c.l.b16 %v209
      %v315 = vunpack.c.l.b16 %v210
      %v316 = vunpack.c.l.b16 %v211
      %v317 = vunpack.c.l.b16 %v212
      %v318 = vunpack.c.l.b16 %v213
      %v319 = vunpack.c.l.b16 %v214
      %v320 = vunpack.c.l.b16 %v215
      %v321 = vpack.c.b16 %v313, %v312
      %v322 = vpack.c.b16 %v315, %v314
      %v323 = vpack.c.b16 %v317, %v316
      %v324 = vpack.c.b16 %v319, %v318
      %v325 = vpack.c.b16 %v320, %v320
      %vm330 = vcmask 588800
      %v332 = vsel %vm330, %v287, 0
      %v335 = vsel %vm330, %v288, 0
      %v338 = vsel %vm330, %v289, 0
      %v341 = vsel %vm330, %v290, 0
      %v344 = vsel %vm330, %v291, 0
      %v347 = vsel %vm330, %v292, 0
      %v350 = vsel %vm330, %v293, 0
      %v353 = vsel %vm330, %v294, 0
      %v356 = vsel %vm330, %v295, 0
      %v359 = vsel %vm330, %v296, 0
      %v362 = vsel %vm330, %v297, 0
      %v365 = vsel %vm330, %v298, 0
      %v368 = vsel %vm330, %v299, 0
      %v371 = vsel %vm330, %v300, 0
      %v374 = vsel %vm330, %v301, 0
      %v377 = vsel %vm330, %v302, 0
      %vm379 = vcmask 1043456
      %v381 = vsel %vm379, %v325, 0
      %383 = vmatprep.subr.bf16.mxu0 0
      %384 = vmatpush1.bf16.msra.mxu0 0
      %385 = vmatprep.subr.bf16.mxu0 0
      %386 = vmatpush1.bf16.msra.mxu0 0
      %387 = vmatprep.subr.bf16.mxu0 0
      %388 = vmatpush1.bf16.msra.mxu0 0
      %389 = vmatprep.subr.bf16.mxu0 0
      %390 = vmatpush1.bf16.msra.mxu0 %v381
      %391 = vmatprep.subr.bf16.mxu0 0
      %392 = vmatpush1.bf16.msra.mxu0 %v324
      %393 = vmatprep.subr.bf16.mxu0 0
      %394 = vmatpush1.bf16.msra.mxu0 %v323
      %395 = vmatprep.subr.bf16.mxu0 0
      %396 = vmatpush1.bf16.msra.mxu0 %v322
      %397 = vmatprep.subr.bf16.mxu0 0
      %398 = vmatpush1.bf16.msra.mxu0 %v321
      %399 = vmatprep.subr.bf16.mxu0 0
      %400 = vmatpush2.bf16.msra.mxu0 0
      %401 = vmatprep.subr.bf16.mxu0 0
      %402 = vmatpush2.bf16.msra.mxu0 0
      %403 = vmatprep.subr.bf16.mxu0 0
      %404 = vmatpush2.bf16.msra.mxu0 0
      %405 = vmatprep.subr.bf16.mxu0 0
      %406 = vmatpush2.bf16.msra.mxu0 0
      %407 = vmatprep.subr.bf16.mxu0 0
      %408 = vmatpush2.bf16.msra.mxu0 0
      %409 = vmatprep.subr.bf16.mxu0 0
      %410 = vmatpush2.bf16.msra.mxu0 0
      %411 = vmatprep.subr.bf16.mxu0 0
      %412 = vmatpush2.bf16.msra.mxu0 0
      %413 = vmatprep.subr.bf16.mxu0 0
      %414 = vmatpush2.bf16.msra.mxu0 0
      %415 = vmatprep.mubr.bf16.mxu0 0
      %416 = vmatmul.mubr.bf16.gmra.mxu0 %v332
      %v417 = vpop.f32.mrf.mxu0
      %v418 = vadd.f32 %v221, %v417
      %v419 = vpop.f32.mrf.mxu0
      %v420 = vpop.f32.mrf.mxu0
      %v421 = vadd.f32 %v221, %v420
      %v422 = vpop.f32.mrf.mxu0
      %423 = vmatprep.mubr.bf16.mxu0 0
      %424 = vmatmul.mubr.bf16.gmra.mxu0 %v335
      %v425 = vpop.f32.mrf.mxu0
      %v426 = vadd.f32 %v221, %v425
      %v427 = vpop.f32.mrf.mxu0
      %v428 = vpop.f32.mrf.mxu0
      %v429 = vadd.f32 %v221, %v428
      %v430 = vpop.f32.mrf.mxu0
      %431 = vmatprep.mubr.bf16.mxu0 0
      %432 = vmatmul.mubr.bf16.gmra.mxu0 %v338
      %v433 = vpop.f32.mrf.mxu0
      %v434 = vadd.f32 %v221, %v433
      %v435 = vpop.f32.mrf.mxu0
      %v436 = vpop.f32.mrf.mxu0
      %v437 = vadd.f32 %v221, %v436
      %v438 = vpop.f32.mrf.mxu0
      %439 = vmatprep.mubr.bf16.mxu0 0
      %440 = vmatmul.mubr.bf16.gmra.mxu0 %v341
      %v441 = vpop.f32.mrf.mxu0
      %v442 = vadd.f32 %v221, %v441
      %v443 = vpop.f32.mrf.mxu0
      %v444 = vpop.f32.mrf.mxu0
      %v445 = vadd.f32 %v221, %v444
      %v446 = vpop.f32.mrf.mxu0
      %447 = vmatprep.mubr.bf16.mxu0 0
      %448 = vmatmul.mubr.bf16.gmra.mxu0 %v344
      %v449 = vpop.f32.mrf.mxu0
      %v450 = vadd.f32 %v221, %v449
      %v451 = vpop.f32.mrf.mxu0
      %v452 = vpop.f32.mrf.mxu0
      %v453 = vadd.f32 %v221, %v452
      %v454 = vpop.f32.mrf.mxu0
      %455 = vmatprep.mubr.bf16.mxu0 0
      %456 = vmatmul.mubr.bf16.gmra.mxu0 %v347
      %v457 = vpop.f32.mrf.mxu0
      %v458 = vadd.f32 %v221, %v457
      %v459 = vpop.f32.mrf.mxu0
      %v460 = vpop.f32.mrf.mxu0
      %v461 = vadd.f32 %v221, %v460
      %v462 = vpop.f32.mrf.mxu0
      %463 = vmatprep.mubr.bf16.mxu0 0
      %464 = vmatmul.mubr.bf16.gmra.mxu0 %v350
      %v465 = vpop.f32.mrf.mxu0
      %v466 = vadd.f32 %v221, %v465
      %v467 = vpop.f32.mrf.mxu0
      %v468 = vpop.f32.mrf.mxu0
      %v469 = vadd.f32 %v221, %v468
      %v470 = vpop.f32.mrf.mxu0
      %471 = vmatprep.mubr.bf16.mxu0 0
      %472 = vmatmul.mubr.bf16.gmra.mxu0 %v353
      %v473 = vpop.f32.mrf.mxu0
      %v474 = vadd.f32 %v221, %v473
      %v475 = vpop.f32.mrf.mxu0
      %v476 = vpop.f32.mrf.mxu0
      %v477 = vadd.f32 %v221, %v476
      %v478 = vpop.f32.mrf.mxu0
      %479 = vmatprep.mubr.bf16.mxu0 0
      %480 = vmatmul.mubr.bf16.gmra.mxu0 %v356
      %v481 = vpop.f32.mrf.mxu0
      %v482 = vadd.f32 %v221, %v481
      %v483 = vpop.f32.mrf.mxu0
      %v484 = vpop.f32.mrf.mxu0
      %v485 = vadd.f32 %v221, %v484
      %v486 = vpop.f32.mrf.mxu0
      %487 = vmatprep.mubr.bf16.mxu0 0
      %488 = vmatmul.mubr.bf16.gmra.mxu0 %v359
      %v489 = vpop.f32.mrf.mxu0
      %v490 = vadd.f32 %v221, %v489
      %v491 = vpop.f32.mrf.mxu0
      %v492 = vpop.f32.mrf.mxu0
      %v493 = vadd.f32 %v221, %v492
      %v494 = vpop.f32.mrf.mxu0
      %495 = vmatprep.mubr.bf16.mxu0 0
      %496 = vmatmul.mubr.bf16.gmra.mxu0 %v362
      %v497 = vpop.f32.mrf.mxu0
      %v498 = vadd.f32 %v221, %v497
      %v499 = vpop.f32.mrf.mxu0
      %v500 = vpop.f32.mrf.mxu0
      %v501 = vadd.f32 %v221, %v500
      %v502 = vpop.f32.mrf.mxu0
      %503 = vmatprep.mubr.bf16.mxu0 0
      %504 = vmatmul.mubr.bf16.gmra.mxu0 %v365
      %v505 = vpop.f32.mrf.mxu0
      %v506 = vadd.f32 %v221, %v505
      %v507 = vpop.f32.mrf.mxu0
      %v508 = vpop.f32.mrf.mxu0
      %v509 = vadd.f32 %v221, %v508
      %v510 = vpop.f32.mrf.mxu0
      %511 = vmatprep.mubr.bf16.mxu0 0
      %512 = vmatmul.mubr.bf16.gmra.mxu0 %v368
      %v513 = vpop.f32.mrf.mxu0
      %v514 = vadd.f32 %v221, %v513
      %v515 = vpop.f32.mrf.mxu0
      %v516 = vpop.f32.mrf.mxu0
      %v517 = vadd.f32 %v221, %v516
      %v518 = vpop.f32.mrf.mxu0
      %519 = vmatprep.mubr.bf16.mxu0 0
      %520 = vmatmul.mubr.bf16.gmra.mxu0 %v371
      %v521 = vpop.f32.mrf.mxu0
      %v522 = vadd.f32 %v221, %v521
      %v523 = vpop.f32.mrf.mxu0
      %v524 = vpop.f32.mrf.mxu0
      %v525 = vadd.f32 %v221, %v524
      %v526 = vpop.f32.mrf.mxu0
      %527 = vmatprep.mubr.bf16.mxu0 0
      %528 = vmatmul.mubr.bf16.gmra.mxu0 %v374
      %v529 = vpop.f32.mrf.mxu0
      %v530 = vadd.f32 %v221, %v529
      %v531 = vpop.f32.mrf.mxu0
      %v532 = vpop.f32.mrf.mxu0
      %v533 = vadd.f32 %v221, %v532
      %v534 = vpop.f32.mrf.mxu0
      %535 = vmatprep.mubr.bf16.mxu0 0
      %536 = vmatmul.mubr.bf16.gmra.mxu0 %v377
      %v537 = vpop.f32.mrf.mxu0
      %v538 = vadd.f32 %v221, %v537
      %v539 = vpop.f32.mrf.mxu0
      %v540 = vpop.f32.mrf.mxu0
      %v541 = vadd.f32 %v221, %v540
      %v542 = vpop.f32.mrf.mxu0
      %543 = vdwg.mxu0
      %v544 = vmax.f32 %v418, 0.0
      %v545 = vmax.f32 %v421, 0.0
      %v546 = vmax.f32 %v426, 0.0
      %v547 = vmax.f32 %v429, 0.0
      %v548 = vmax.f32 %v434, 0.0
      %v549 = vmax.f32 %v437, 0.0
      %v550 = vmax.f32 %v442, 0.0
      %v551 = vmax.f32 %v445, 0.0
      %v552 = vmax.f32 %v450, 0.0
      %v553 = vmax.f32 %v453, 0.0
      %v554 = vmax.f32 %v458, 0.0
      %v555 = vmax.f32 %v461, 0.0
      %v556 = vmax.f32 %v466, 0.0
      %v557 = vmax.f32 %v469, 0.0
      %v558 = vmax.f32 %v474, 0.0
      %v559 = vmax.f32 %v477, 0.0
      %v560 = vmax.f32 %v482, 0.0
      %v561 = vmax.f32 %v485, 0.0
      %v562 = vmax.f32 %v490, 0.0
      %v563 = vmax.f32 %v493, 0.0
      %v564 = vmax.f32 %v498, 0.0
      %v565 = vmax.f32 %v501, 0.0
      %v566 = vmax.f32 %v506, 0.0
      %v567 = vmax.f32 %v509, 0.0
      %v568 = vmax.f32 %v514, 0.0
      %v569 = vmax.f32 %v517, 0.0
      %v570 = vmax.f32 %v522, 0.0
      %v571 = vmax.f32 %v525, 0.0
      %v572 = vmax.f32 %v530, 0.0
      %v573 = vmax.f32 %v533, 0.0
      %v574 = vmax.f32 %v538, 0.0
      %v575 = vmax.f32 %v541, 0.0
      %v576 = vpack.c.bf16 %v545, %v544
      %v577 = vpack.c.bf16 %v547, %v546
      %v578 = vpack.c.bf16 %v549, %v548
      %v579 = vpack.c.bf16 %v551, %v550
      %v580 = vpack.c.bf16 %v553, %v552
      %v581 = vpack.c.bf16 %v555, %v554
      %v582 = vpack.c.bf16 %v557, %v556
      %v583 = vpack.c.bf16 %v559, %v558
      %v584 = vpack.c.bf16 %v561, %v560
      %v585 = vpack.c.bf16 %v563, %v562
      %v586 = vpack.c.bf16 %v565, %v564
      %v587 = vpack.c.bf16 %v567, %v566
      %v588 = vpack.c.bf16 %v569, %v568
      %v589 = vpack.c.bf16 %v571, %v570
      %v590 = vpack.c.bf16 %v573, %v572
      %v591 = vpack.c.bf16 %v575, %v574
      %v608 = vunpack.c.l.b16 %v576
      %v609 = vunpack.c.h.b16 %v576
      %v610 = vunpack.c.l.b16 %v577
      %v611 = vunpack.c.h.b16 %v577
      %v612 = vunpack.c.l.b16 %v578
      %v613 = vunpack.c.h.b16 %v578
      %v614 = vunpack.c.l.b16 %v579
      %v615 = vunpack.c.h.b16 %v579
      %v616 = vunpack.c.l.b16 %v580
      %v617 = vunpack.c.h.b16 %v580
      %v618 = vunpack.c.l.b16 %v581
      %v619 = vunpack.c.h.b16 %v581
      %v620 = vunpack.c.l.b16 %v582
      %v621 = vunpack.c.h.b16 %v582
      %v622 = vunpack.c.l.b16 %v583
      %v623 = vunpack.c.h.b16 %v583
      %v624 = vunpack.c.l.b16 %v584
      %v625 = vunpack.c.h.b16 %v584
      %v626 = vunpack.c.l.b16 %v585
      %v627 = vunpack.c.h.b16 %v585
      %v628 = vunpack.c.l.b16 %v586
      %v629 = vunpack.c.h.b16 %v586
      %v630 = vunpack.c.l.b16 %v587
      %v631 = vunpack.c.h.b16 %v587
      %v632 = vunpack.c.l.b16 %v588
      %v633 = vunpack.c.h.b16 %v588
      %v634 = vunpack.c.l.b16 %v589
      %v635 = vunpack.c.h.b16 %v589
      %v636 = vunpack.c.l.b16 %v590
      %v637 = vunpack.c.h.b16 %v590
      %v638 = vunpack.c.l.b16 %v591
      %v639 = vunpack.c.h.b16 %v591
      %v640 = vpack.c.b16 %v608, %v608
      %v641 = vpack.c.b16 %v609, %v609
      %v642 = vpack.c.b16 %v610, %v610
      %v643 = vpack.c.b16 %v611, %v611
      %v644 = vpack.c.b16 %v612, %v612
      %v645 = vpack.c.b16 %v613, %v613
      %v646 = vpack.c.b16 %v614, %v614
      %v647 = vpack.c.b16 %v615, %v615
      %v648 = vpack.c.b16 %v616, %v616
      %v649 = vpack.c.b16 %v617, %v617
      %v650 = vpack.c.b16 %v618, %v618
      %v651 = vpack.c.b16 %v619, %v619
      %v652 = vpack.c.b16 %v620, %v620
      %v653 = vpack.c.b16 %v621, %v621
      %v654 = vpack.c.b16 %v622, %v622
      %v655 = vpack.c.b16 %v623, %v623
      %v656 = vpack.c.b16 %v624, %v624
      %v657 = vpack.c.b16 %v625, %v625
      %v658 = vpack.c.b16 %v626, %v626
      %v659 = vpack.c.b16 %v627, %v627
      %v660 = vpack.c.b16 %v628, %v628
      %v661 = vpack.c.b16 %v629, %v629
      %v662 = vpack.c.b16 %v630, %v630
      %v663 = vpack.c.b16 %v631, %v631
      %v664 = vpack.c.b16 %v632, %v632
      %v665 = vpack.c.b16 %v633, %v633
      %v666 = vpack.c.b16 %v634, %v634
      %v667 = vpack.c.b16 %v635, %v635
      %v668 = vpack.c.b16 %v636, %v636
      %v669 = vpack.c.b16 %v637, %v637
      %v670 = vpack.c.b16 %v638, %v638
      %v671 = vpack.c.b16 %v639, %v639
      %704 = vst [vmem:[%s172] sm:$0xf] %v640
      %705 = vst [vmem:[%s172 + $0x4] sm:$0xf] %v641
      %706 = vst [vmem:[%s172 + $0x8] sm:$0xf] %v642
      %707 = vst [vmem:[%s172 + $0xc] sm:$0xf] %v643
      %708 = vst [vmem:[%s172 + $0x10] sm:$0xf] %v644
      %709 = vst [vmem:[%s172 + $0x14] sm:$0xf] %v645
      %710 = vst [vmem:[%s172 + $0x18] sm:$0xf] %v646
      %711 = vst [vmem:[%s172 + $0x1c] sm:$0xf] %v647
      %712 = vst [vmem:[%s172 + $0x20] sm:$0xf] %v648
      %713 = vst [vmem:[%s172 + $0x24] sm:$0xf] %v649
      %714 = vst [vmem:[%s172 + $0x28] sm:$0xf] %v650
      %715 = vst [vmem:[%s172 + $0x2c] sm:$0xf] %v651
      %716 = vst [vmem:[%s172 + $0x30] sm:$0xf] %v652
      %717 = vst [vmem:[%s172 + $0x34] sm:$0xf] %v653
      %718 = vst [vmem:[%s172 + $0x38] sm:$0xf] %v654
      %719 = vst [vmem:[%s172 + $0x3c] sm:$0xf] %v655
      %720 = vst [vmem:[%s172 + $0x40] sm:$0xf] %v656
      %721 = vst [vmem:[%s172 + $0x44] sm:$0xf] %v657
      %722 = vst [vmem:[%s172 + $0x48] sm:$0xf] %v658
      %723 = vst [vmem:[%s172 + $0x4c] sm:$0xf] %v659
      %724 = vst [vmem:[%s172 + $0x50] sm:$0xf] %v660
      %725 = vst [vmem:[%s172 + $0x54] sm:$0xf] %v661
      %726 = vst [vmem:[%s172 + $0x58] sm:$0xf] %v662
      %727 = vst [vmem:[%s172 + $0x5c] sm:$0xf] %v663
      %728 = vst [vmem:[%s172 + $0x60] sm:$0xf] %v664
      %729 = vst [vmem:[%s172 + $0x64] sm:$0xf] %v665
      %730 = vst [vmem:[%s172 + $0x68] sm:$0xf] %v666
      %731 = vst [vmem:[%s172 + $0x6c] sm:$0xf] %v667
      %732 = vst [vmem:[%s172 + $0x70] sm:$0xf] %v668
      %733 = vst [vmem:[%s172 + $0x74] sm:$0xf] %v669
      %734 = vst [vmem:[%s172 + $0x78] sm:$0xf] %v670
      %735 = vst [vmem:[%s172 + $0x7c] sm:$0xf] %v671
      %s736 = smul.u32 32, %s14
      %p737 = scmp.lt.s32.totalorder %s736, 63
      %s738 = scalar_select %p737, %s736, 63
      %s739 = smul.addr %s738, 4
      %s740 = scalar_lea.vmem %s3, %s739
      // Predicated region
      $region33: #{_lambda_.30} parent=31 // pred_check
        %p741 = pneg %p100
      $region34: #{_lambda_.30} parent=31 // pred_check_branch
        %743 = sbr.rel (%p741) target = $region36
      $region35: #{_lambda_.30} parent=31 // pred_region
        %s744 = smul.u32 32, %s14
      $region36: #{_lambda_.30} parent=31 // pred_fallthru
        _
    $region32: #{_lambda_.30} parent=5 // pred_fallthru
      _
    %p745 = scmp.le.s32.totalorder 2, %s9
    // Predicated region
    $region37: #{_lambda_.30} parent=5 // pred_check
      %p746 = pneg %p745
    $region38: #{_lambda_.30} parent=5 // pred_check_branch
      %748 = sbr.rel (%p746) target = $region40
    $region39: #{_lambda_.30} parent=5 // pred_region
      %s749 = ssub.s32 %s9, 2
      // Predicated region
      $region41: #{_lambda_.30} parent=39 // pred_check
        %p750 = pneg %p106
      $region42: #{_lambda_.30} parent=39 // pred_check_branch
        %752 = sbr.rel (%p750) target = $region44
      $region43: #{_lambda_.30} parent=39 // pred_region
        %s753 = smul.u32 32, %s15
        %p754 = scmp.lt.s32.totalorder %s753, 63
        %s755 = scalar_select %p754, %s753, 63
        %s756 = smul.addr %s755, 4
        %s757 = scalar_lea.vmem %s3, %s756
      $region44: #{_lambda_.30} parent=39 // pred_fallthru
        _
    $region40: #{_lambda_.30} parent=5 // pred_fallthru
      _
  $region6: #{_lambda_.30} parent=0 // loop_footer
    %s13 = sadd.s32 1, %s9
  $region7: #{_lambda_.30} parent=0 // loop_footer_branch
    %8 = sbr.rel target = $region3
  $region8: #{_lambda_.30} parent=0 // loop_exit
    _

// kernel: _lambda_.31
$region0: #{_lambda_.31}
  #allocation0 [shape = 'u32[]', space=smem, size = 0x4, offset = 0x4, fixed_abs, tag = 'smem constant byte address 0x4 - core index']
  #allocation1 [shape = 'u32[144,128]{1,0:T(1,128)}', space=vmem, size = 0x12000, scoped, tag = 'internal scratch']
  %s0 = inlined_call_operand.vmem [shape: bf16[512,16], index: 0, kind: input, shape index: {}]
  %s1 = inlined_call_operand.vmem [shape: bf16[16,128], index: 1, kind: input, shape index: {}]
  %s2 = inlined_call_operand.vmem [shape: f32[1,128], index: 2, kind: input, shape index: {}]
  %s3 = inlined_call_operand.vmem [shape: bf16[512,128], index: 3, kind: output, shape index: {}]
  %s4 = sld [smem:[#allocation0]]
  $region45: #{_lambda_.31} parent=0
    _
  %s6 = ssub.s32 1, %s4
  %s7 = scalar_select 0, %s6, %s4
  loop: start=0, step=1, limit=4
  $region2: #{_lambda_.31} parent=0 // loop_pre_header
    _
  $region3: #{_lambda_.31} parent=0 // loop_header
    %s9 = sphi 0, %s13
    %p10 = scmp.ge.s32.totalorder %s9, 4
    %s19 = sphi 0, %s21
    %s22 = sphi 0, %s19
    %s23 = sphi 0, %s22
    %s39 = sphi 0, %s23
    %s43 = sphi 0, %s43
    %s45 = sphi 0, %s43
    %s46 = sphi 0, %s45
    %s60 = sphi 0, %s46
    %s64 = sphi 0, %s64
    %s66 = sphi 0, %s64
    %s67 = sphi 0, %s66
    %s81 = sphi 0, %s67
    %s87 = sphi 0, %s89
    %s90 = sphi 0, %s87
    %s91 = sphi 0, %s90
    %s107 = sphi 0, %s91
  $region4: #{_lambda_.31} parent=0 // loop_header_branch
    %12 = sbr.rel (%p10) target = $region8
  $region5: #{_lambda_.31} parent=0 // loop_body
    %s14 = ssub.s32 %s9, 1
    %s15 = ssub.s32 %s9, 2
    %s16 = sadd.s32 %s9, 1
    %s17 = ssub.s32 %s9, %s16
    %p18 = scmp.eq.s32.totalorder %s17, 0
    %s20 = sadd.s32 %s19, 1
    %s21 = scalar_select %p18, %s19, %s20
    %p24 = pneg %p18
    %p25 = scmp.eq.s32.totalorder %s9, 1
    %p26 = por %p24, %p25
    %p27 = scmp.ne.s32.totalorder %s19, %s22
    %p28 = scmp.eq.s32.totalorder %s9, 0
    %p29 = por %p27, %p28
    %p30 = scmp.ne.s32.totalorder %s19, %s22
    %p31 = scmp.eq.s32.totalorder %s14, 1
    %p32 = por %p30, %p31
    %p33 = scmp.ne.s32.totalorder %s22, %s23
    %p34 = scmp.eq.s32.totalorder %s14, 0
    %p35 = por %p33, %p34
    %p36 = scmp.ne.s32.totalorder %s22, %s23
    %p37 = scmp.eq.s32.totalorder %s15, 1
    %p38 = por %p36, %p37
    %p40 = scmp.ne.s32.totalorder %s23, %s39
    %p41 = scmp.eq.s32.totalorder %s15, 0
    %p42 = por %p40, %p41
    %s44 = sadd.s32 %s43, 1
    %p47 = scmp.eq.s32.totalorder %s9, 1
    %p48 = scmp.ne.s32.totalorder %s43, %s45
    %p49 = scmp.eq.s32.totalorder %s9, 0
    %p50 = por %p48, %p49
    %p51 = scmp.ne.s32.totalorder %s43, %s45
    %p52 = scmp.eq.s32.totalorder %s14, 1
    %p53 = por %p51, %p52
    %p54 = scmp.ne.s32.totalorder %s45, %s46
    %p55 = scmp.eq.s32.totalorder %s14, 0
    %p56 = por %p54, %p55
    %p57 = scmp.ne.s32.totalorder %s45, %s46
    %p58 = scmp.eq.s32.totalorder %s15, 1
    %p59 = por %p57, %p58
    %p61 = scmp.ne.s32.totalorder %s46, %s60
    %p62 = scmp.eq.s32.totalorder %s15, 0
    %p63 = por %p61, %p62
    %s65 = sadd.s32 %s64, 1
    %p68 = scmp.eq.s32.totalorder %s9, 1
    %p69 = scmp.ne.s32.totalorder %s64, %s66
    %p70 = scmp.eq.s32.totalorder %s9, 0
    %p71 = por %p69, %p70
    %p72 = scmp.ne.s32.totalorder %s64, %s66
    %p73 = scmp.eq.s32.totalorder %s14, 1
    %p74 = por %p72, %p73
    %p75 = scmp.ne.s32.totalorder %s66, %s67
    %p76 = scmp.eq.s32.totalorder %s14, 0
    %p77 = por %p75, %p76
    %p78 = scmp.ne.s32.totalorder %s66, %s67
    %p79 = scmp.eq.s32.totalorder %s15, 1
    %p80 = por %p78, %p79
    %p82 = scmp.ne.s32.totalorder %s67, %s81
    %p83 = scmp.eq.s32.totalorder %s15, 0
    %p84 = por %p82, %p83
    %s85 = ssub.s32 %s9, %s16
    %p86 = scmp.eq.s32.totalorder %s85, 0
    %s88 = sadd.s32 %s87, 1
    %s89 = scalar_select %p86, %s87, %s88
    %p92 = pneg %p86
    %p93 = scmp.eq.s32.totalorder %s9, 1
    %p94 = por %p92, %p93
    %p95 = scmp.ne.s32.totalorder %s87, %s90
    %p96 = scmp.eq.s32.totalorder %s9, 0
    %p97 = por %p95, %p96
    %p98 = scmp.ne.s32.totalorder %s87, %s90
    %p99 = scmp.eq.s32.totalorder %s14, 1
    %p100 = por %p98, %p99
    %p101 = scmp.ne.s32.totalorder %s90, %s91
    %p102 = scmp.eq.s32.totalorder %s14, 0
    %p103 = por %p101, %p102
    %p104 = scmp.ne.s32.totalorder %s90, %s91
    %p105 = scmp.eq.s32.totalorder %s15, 1
    %p106 = por %p104, %p105
    %p108 = scmp.ne.s32.totalorder %s91, %s107
    %p109 = scmp.eq.s32.totalorder %s15, 0
    %p110 = por %p108, %p109
    %p111 = scmp.le.s32.totalorder 1, %s9
    %p112 = scmp.lt.s32.totalorder %s9, 3
    %p113 = pnand %p111, %p112
    %p114 = pneg %p113
    // Predicated region
    $region9: #{_lambda_.31} parent=5 // pred_check
      _
    $region10: #{_lambda_.31} parent=5 // pred_check_branch
      %116 = sbr.rel (%p113) target = $region12
    $region11: #{_lambda_.31} parent=5 // pred_region
      %s117 = ssub.s32 %s9, 1
      // Predicated region
      $region13: #{_lambda_.31} parent=11 // pred_check
        %p118 = pneg %p56
      $region14: #{_lambda_.31} parent=11 // pred_check_branch
        %120 = sbr.rel (%p118) target = $region16
      $region15: #{_lambda_.31} parent=11 // pred_region
        _
      $region16: #{_lambda_.31} parent=11 // pred_fallthru
        _
      // Predicated region
      $region17: #{_lambda_.31} parent=11 // pred_check
        %p121 = pneg %p77
      $region18: #{_lambda_.31} parent=11 // pred_check_branch
        %123 = sbr.rel (%p121) target = $region20
      $region19: #{_lambda_.31} parent=11 // pred_region
        _
      $region20: #{_lambda_.31} parent=11 // pred_fallthru
        _
    $region12: #{_lambda_.31} parent=5 // pred_fallthru
      _
    %p124 = scmp.lt.s32.totalorder %s9, 2
    // Predicated region
    $region21: #{_lambda_.31} parent=5 // pred_check
      %p125 = pneg %p124
    $region22: #{_lambda_.31} parent=5 // pred_check_branch
      %127 = sbr.rel (%p125) target = $region24
    $region23: #{_lambda_.31} parent=5 // pred_region
      // Predicated region
      $region25: #{_lambda_.31} parent=23 // pred_check
        %p128 = pneg %p29
      $region26: #{_lambda_.31} parent=23 // pred_check_branch
        %130 = sbr.rel (%p128) target = $region28
      $region27: #{_lambda_.31} parent=23 // pred_region
        %s131 = smul.u32 32, %s9
        %p132 = scmp.lt.s32.totalorder %s131, 63
        %s133 = scalar_select %p132, %s131, 63
        %s134 = smul.addr %s133, 4
        %s135 = scalar_lea.vmem %s0, %s134
        %s136 = smul.u32 32, %s9
      $region28: #{_lambda_.31} parent=23 // pred_fallthru
        _
    $region24: #{_lambda_.31} parent=5 // pred_fallthru
      _
    %p137 = scmp.le.s32.totalorder 1, %s9
    %p138 = scmp.lt.s32.totalorder %s9, 3
    %p139 = pnand %p137, %p138
    %p140 = pneg %p139
    // Predicated region
    $region29: #{_lambda_.31} parent=5 // pred_check
      _
    $region30: #{_lambda_.31} parent=5 // pred_check_branch
      %142 = sbr.rel (%p139) target = $region32
    $region31: #{_lambda_.31} parent=5 // pred_region
      %s143 = ssub.s32 %s9, 1
      %s144 = smul.u32 32, %s14
      %p145 = scmp.lt.s32.totalorder %s144, 63
      %s146 = scalar_select %p145, %s144, 63
      %s147 = smul.addr %s146, 4
      %s148 = scalar_lea.vmem %s0, %s147
      %p149 = pneg %p35
      %p150 = pneg %p32
      %p151 = pneg %p56
      %p152 = pneg %p53
      %p153 = pneg %p77
      %p154 = pneg %p74
      %p155 = pneg %p103
      %p156 = pneg %p100
      %s157 = smul.u32 32, %s14
      %p158 = scmp.lt.s32.totalorder %s157, 63
      %s159 = scalar_select %p158, %s157, 63
      %s160 = smul.addr %s159, 4
      %s161 = scalar_lea.vmem %s3, %s160
      %s162 = smul.u32 32, %s14
      %p163 = scmp.lt.s32.totalorder %s162, 63
      %s164 = scalar_select %p163, %s162, 63
      %s165 = smul.addr %s164, 4
      %s166 = scalar_lea.vmem %s0, %s165
      %s167 = smul.u32 32, %s14
      %s168 = smul.u32 32, %s14
      %p169 = scmp.lt.s32.totalorder %s168, 63
      %s170 = scalar_select %p169, %s168, 63
      %s171 = smul.addr %s170, 4
      %s172 = scalar_lea.vmem %s3, %s171
      %s173 = smul.u32 32, %s14
      %v175 = vld [vmem:[%s166] sm:$0xf]
      %v176 = vld [vmem:[%s166 + $0x4] sm:$0xf]
      %v177 = vld [vmem:[%s166 + $0x8] sm:$0xf]
      %v178 = vld [vmem:[%s166 + $0xc] sm:$0xf]
      %v179 = vld [vmem:[%s166 + $0x10] sm:$0xf]
      %v180 = vld [vmem:[%s166 + $0x14] sm:$0xf]
      %v181 = vld [vmem:[%s166 + $0x18] sm:$0xf]
      %v182 = vld [vmem:[%s166 + $0x1c] sm:$0xf]
      %v183 = vld [vmem:[%s166 + $0x20] sm:$0xf]
      %v184 = vld [vmem:[%s166 + $0x24] sm:$0xf]
      %v185 = vld [vmem:[%s166 + $0x28] sm:$0xf]
      %v186 = vld [vmem:[%s166 + $0x2c] sm:$0xf]
      %v187 = vld [vmem:[%s166 + $0x30] sm:$0xf]
      %v188 = vld [vmem:[%s166 + $0x34] sm:$0xf]
      %v189 = vld [vmem:[%s166 + $0x38] sm:$0xf]
      %v190 = vld [vmem:[%s166 + $0x3c] sm:$0xf]
      %v191 = vld [vmem:[%s166 + $0x40] sm:$0xf]
      %v192 = vld [vmem:[%s166 + $0x44] sm:$0xf]
      %v193 = vld [vmem:[%s166 + $0x48] sm:$0xf]
      %v194 = vld [vmem:[%s166 + $0x4c] sm:$0xf]
      %v195 = vld [vmem:[%s166 + $0x50] sm:$0xf]
      %v196 = vld [vmem:[%s166 + $0x54] sm:$0xf]
      %v197 = vld [vmem:[%s166 + $0x58] sm:$0xf]
      %v198 = vld [vmem:[%s166 + $0x5c] sm:$0xf]
      %v199 = vld [vmem:[%s166 + $0x60] sm:$0xf]
      %v200 = vld [vmem:[%s166 + $0x64] sm:$0xf]
      %v201 = vld [vmem:[%s166 + $0x68] sm:$0xf]
      %v202 = vld [vmem:[%s166 + $0x6c] sm:$0xf]
      %v203 = vld [vmem:[%s166 + $0x70] sm:$0xf]
      %v204 = vld [vmem:[%s166 + $0x74] sm:$0xf]
      %v205 = vld [vmem:[%s166 + $0x78] sm:$0xf]
      %v206 = vld [vmem:[%s166 + $0x7c] sm:$0xf]
      %v207 = vld [vmem:[%s1] sm:$0xf]
      %v208 = vld [vmem:[%s1 + $0x4] sm:$0xf]
      %v209 = vld [vmem:[%s2] sm:$0x1]
      %v211 = vlaneseq
      %v212 = vshrl.u32 %v211, 7
      %v213 = vsub.s32 0, %v212
      %v214 = vrot.slane %v209, %v213
      %v248 = vunpack.c.l.b16 %v175
      %v249 = vunpack.c.l.b16 %v176
      %v250 = vunpack.c.l.b16 %v177
      %v251 = vunpack.c.l.b16 %v178
      %v252 = vunpack.c.l.b16 %v179
      %v253 = vunpack.c.l.b16 %v180
      %v254 = vunpack.c.l.b16 %v181
      %v255 = vunpack.c.l.b16 %v182
      %v256 = vunpack.c.l.b16 %v183
      %v257 = vunpack.c.l.b16 %v184
      %v258 = vunpack.c.l.b16 %v185
      %v259 = vunpack.c.l.b16 %v186
      %v260 = vunpack.c.l.b16 %v187
      %v261 = vunpack.c.l.b16 %v188
      %v262 = vunpack.c.l.b16 %v189
      %v263 = vunpack.c.l.b16 %v190
      %v264 = vunpack.c.l.b16 %v191
      %v265 = vunpack.c.l.b16 %v192
      %v266 = vunpack.c.l.b16 %v193
      %v267 = vunpack.c.l.b16 %v194
      %v268 = vunpack.c.l.b16 %v195
      %v269 = vunpack.c.l.b16 %v196
      %v270 = vunpack.c.l.b16 %v197
      %v271 = vunpack.c.l.b16 %v198
      %v272 = vunpack.c.l.b16 %v199
      %v273 = vunpack.c.l.b16 %v200
      %v274 = vunpack.c.l.b16 %v201
      %v275 = vunpack.c.l.b16 %v202
      %v276 = vunpack.c.l.b16 %v203
      %v277 = vunpack.c.l.b16 %v204
      %v278 = vunpack.c.l.b16 %v205
      %v279 = vunpack.c.l.b16 %v206
      %v280 = vpack.c.b16 %v249, %v248
      %v281 = vpack.c.b16 %v251, %v250
      %v282 = vpack.c.b16 %v253, %v252
      %v283 = vpack.c.b16 %v255, %v254
      %v284 = vpack.c.b16 %v257, %v256
      %v285 = vpack.c.b16 %v259, %v258
      %v286 = vpack.c.b16 %v261, %v260
      %v287 = vpack.c.b16 %v263, %v262
      %v288 = vpack.c.b16 %v265, %v264
      %v289 = vpack.c.b16 %v267, %v266
      %v290 = vpack.c.b16 %v269, %v268
      %v291 = vpack.c.b16 %v271, %v270
      %v292 = vpack.c.b16 %v273, %v272
      %v293 = vpack.c.b16 %v275, %v274
      %v294 = vpack.c.b16 %v277, %v276
      %v295 = vpack.c.b16 %v279, %v278
      %v298 = vunpack.c.l.b16 %v207
      %v299 = vunpack.c.l.b16 %v208
      %v300 = vpack.c.b16 %v299, %v298
      %vm302 = vcmask 130048
      %v304 = vsel %vm302, %v280, 0
      %v307 = vsel %vm302, %v281, 0
      %v310 = vsel %vm302, %v282, 0
      %v313 = vsel %vm302, %v283, 0
      %v316 = vsel %vm302, %v284, 0
      %v319 = vsel %vm302, %v285, 0
      %v322 = vsel %vm302, %v286, 0
      %v325 = vsel %vm302, %v287, 0
      %v328 = vsel %vm302, %v288, 0
      %v331 = vsel %vm302, %v289, 0
      %v334 = vsel %vm302, %v290, 0
      %v337 = vsel %vm302, %v291, 0
      %v340 = vsel %vm302, %v292, 0
      %v343 = vsel %vm302, %v293, 0
      %v346 = vsel %vm302, %v294, 0
      %v349 = vsel %vm302, %v295, 0
      %351 = vmatprep.subr.bf16.mxu0 0
      %352 = vmatpush1.bf16.msra.mxu0 0
      %353 = vmatprep.subr.bf16.mxu0 0
      %354 = vmatpush1.bf16.msra.mxu0 0
      %355 = vmatprep.subr.bf16.mxu0 0
      %356 = vmatpush1.bf16.msra.mxu0 0
      %357 = vmatprep.subr.bf16.mxu0 0
      %358 = vmatpush1.bf16.msra.mxu0 0
      %359 = vmatprep.subr.bf16.mxu0 0
      %360 = vmatpush1.bf16.msra.mxu0 0
      %361 = vmatprep.subr.bf16.mxu0 0
      %362 = vmatpush1.bf16.msra.mxu0 0
      %363 = vmatprep.subr.bf16.mxu0 0
      %364 = vmatpush1.bf16.msra.mxu0 0
      %365 = vmatprep.subr.bf16.mxu0 0
      %366 = vmatpush1.bf16.msra.mxu0 %v300
      %367 = vmatprep.subr.bf16.mxu0 0
      %368 = vmatpush2.bf16.msra.mxu0 0
      %369 = vmatprep.subr.bf16.mxu0 0
      %370 = vmatpush2.bf16.msra.mxu0 0
      %371 = vmatprep.subr.bf16.mxu0 0
      %372 = vmatpush2.bf16.msra.mxu0 0
      %373 = vmatprep.subr.bf16.mxu0 0
      %374 = vmatpush2.bf16.msra.mxu0 0
      %375 = vmatprep.subr.bf16.mxu0 0
      %376 = vmatpush2.bf16.msra.mxu0 0
      %377 = vmatprep.subr.bf16.mxu0 0
      %378 = vmatpush2.bf16.msra.mxu0 0
      %379 = vmatprep.subr.bf16.mxu0 0
      %380 = vmatpush2.bf16.msra.mxu0 0
      %381 = vmatprep.subr.bf16.mxu0 0
      %382 = vmatpush2.bf16.msra.mxu0 0
      %383 = vmatprep.mubr.bf16.mxu0 0
      %384 = vmatmul.mubr.bf16.gmra.mxu0 %v304
      %v385 = vpop.f32.mrf.mxu0
      %v386 = vadd.f32 %v214, %v385
      %v387 = vpop.f32.mrf.mxu0
      %v388 = vpop.f32.mrf.mxu0
      %v389 = vadd.f32 %v214, %v388
      %v390 = vpop.f32.mrf.mxu0
      %391 = vmatprep.mubr.bf16.mxu0 0
      %392 = vmatmul.mubr.bf16.gmra.mxu0 %v307
      %v393 = vpop.f32.mrf.mxu0
      %v394 = vadd.f32 %v214, %v393
      %v395 = vpop.f32.mrf.mxu0
      %v396 = vpop.f32.mrf.mxu0
      %v397 = vadd.f32 %v214, %v396
      %v398 = vpop.f32.mrf.mxu0
      %399 = vmatprep.mubr.bf16.mxu0 0
      %400 = vmatmul.mubr.bf16.gmra.mxu0 %v310
      %v401 = vpop.f32.mrf.mxu0
      %v402 = vadd.f32 %v214, %v401
      %v403 = vpop.f32.mrf.mxu0
      %v404 = vpop.f32.mrf.mxu0
      %v405 = vadd.f32 %v214, %v404
      %v406 = vpop.f32.mrf.mxu0
      %407 = vmatprep.mubr.bf16.mxu0 0
      %408 = vmatmul.mubr.bf16.gmra.mxu0 %v313
      %v409 = vpop.f32.mrf.mxu0
      %v410 = vadd.f32 %v214, %v409
      %v411 = vpop.f32.mrf.mxu0
      %v412 = vpop.f32.mrf.mxu0
      %v413 = vadd.f32 %v214, %v412
      %v414 = vpop.f32.mrf.mxu0
      %415 = vmatprep.mubr.bf16.mxu0 0
      %416 = vmatmul.mubr.bf16.gmra.mxu0 %v316
      %v417 = vpop.f32.mrf.mxu0
      %v418 = vadd.f32 %v214, %v417
      %v419 = vpop.f32.mrf.mxu0
      %v420 = vpop.f32.mrf.mxu0
      %v421 = vadd.f32 %v214, %v420
      %v422 = vpop.f32.mrf.mxu0
      %423 = vmatprep.mubr.bf16.mxu0 0
      %424 = vmatmul.mubr.bf16.gmra.mxu0 %v319
      %v425 = vpop.f32.mrf.mxu0
      %v426 = vadd.f32 %v214, %v425
      %v427 = vpop.f32.mrf.mxu0
      %v428 = vpop.f32.mrf.mxu0
      %v429 = vadd.f32 %v214, %v428
      %v430 = vpop.f32.mrf.mxu0
      %431 = vmatprep.mubr.bf16.mxu0 0
      %432 = vmatmul.mubr.bf16.gmra.mxu0 %v322
      %v433 = vpop.f32.mrf.mxu0
      %v434 = vadd.f32 %v214, %v433
      %v435 = vpop.f32.mrf.mxu0
      %v436 = vpop.f32.mrf.mxu0
      %v437 = vadd.f32 %v214, %v436
      %v438 = vpop.f32.mrf.mxu0
      %439 = vmatprep.mubr.bf16.mxu0 0
      %440 = vmatmul.mubr.bf16.gmra.mxu0 %v325
      %v441 = vpop.f32.mrf.mxu0
      %v442 = vadd.f32 %v214, %v441
      %v443 = vpop.f32.mrf.mxu0
      %v444 = vpop.f32.mrf.mxu0
      %v445 = vadd.f32 %v214, %v444
      %v446 = vpop.f32.mrf.mxu0
      %447 = vmatprep.mubr.bf16.mxu0 0
      %448 = vmatmul.mubr.bf16.gmra.mxu0 %v328
      %v449 = vpop.f32.mrf.mxu0
      %v450 = vadd.f32 %v214, %v449
      %v451 = vpop.f32.mrf.mxu0
      %v452 = vpop.f32.mrf.mxu0
      %v453 = vadd.f32 %v214, %v452
      %v454 = vpop.f32.mrf.mxu0
      %455 = vmatprep.mubr.bf16.mxu0 0
      %456 = vmatmul.mubr.bf16.gmra.mxu0 %v331
      %v457 = vpop.f32.mrf.mxu0
      %v458 = vadd.f32 %v214, %v457
      %v459 = vpop.f32.mrf.mxu0
      %v460 = vpop.f32.mrf.mxu0
      %v461 = vadd.f32 %v214, %v460
      %v462 = vpop.f32.mrf.mxu0
      %463 = vmatprep.mubr.bf16.mxu0 0
      %464 = vmatmul.mubr.bf16.gmra.mxu0 %v334
      %v465 = vpop.f32.mrf.mxu0
      %v466 = vadd.f32 %v214, %v465
      %v467 = vpop.f32.mrf.mxu0
      %v468 = vpop.f32.mrf.mxu0
      %v469 = vadd.f32 %v214, %v468
      %v470 = vpop.f32.mrf.mxu0
      %471 = vmatprep.mubr.bf16.mxu0 0
      %472 = vmatmul.mubr.bf16.gmra.mxu0 %v337
      %v473 = vpop.f32.mrf.mxu0
      %v474 = vadd.f32 %v214, %v473
      %v475 = vpop.f32.mrf.mxu0
      %v476 = vpop.f32.mrf.mxu0
      %v477 = vadd.f32 %v214, %v476
      %v478 = vpop.f32.mrf.mxu0
      %479 = vmatprep.mubr.bf16.mxu0 0
      %480 = vmatmul.mubr.bf16.gmra.mxu0 %v340
      %v481 = vpop.f32.mrf.mxu0
      %v482 = vadd.f32 %v214, %v481
      %v483 = vpop.f32.mrf.mxu0
      %v484 = vpop.f32.mrf.mxu0
      %v485 = vadd.f32 %v214, %v484
      %v486 = vpop.f32.mrf.mxu0
      %487 = vmatprep.mubr.bf16.mxu0 0
      %488 = vmatmul.mubr.bf16.gmra.mxu0 %v343
      %v489 = vpop.f32.mrf.mxu0
      %v490 = vadd.f32 %v214, %v489
      %v491 = vpop.f32.mrf.mxu0
      %v492 = vpop.f32.mrf.mxu0
      %v493 = vadd.f32 %v214, %v492
      %v494 = vpop.f32.mrf.mxu0
      %495 = vmatprep.mubr.bf16.mxu0 0
      %496 = vmatmul.mubr.bf16.gmra.mxu0 %v346
      %v497 = vpop.f32.mrf.mxu0
      %v498 = vadd.f32 %v214, %v497
      %v499 = vpop.f32.mrf.mxu0
      %v500 = vpop.f32.mrf.mxu0
      %v501 = vadd.f32 %v214, %v500
      %v502 = vpop.f32.mrf.mxu0
      %503 = vmatprep.mubr.bf16.mxu0 0
      %504 = vmatmul.mubr.bf16.gmra.mxu0 %v349
      %v505 = vpop.f32.mrf.mxu0
      %v506 = vadd.f32 %v214, %v505
      %v507 = vpop.f32.mrf.mxu0
      %v508 = vpop.f32.mrf.mxu0
      %v509 = vadd.f32 %v214, %v508
      %v510 = vpop.f32.mrf.mxu0
      %511 = vdwg.mxu0
      %v512 = vmax.f32 %v386, 0.0
      %v513 = vmax.f32 %v389, 0.0
      %v514 = vmax.f32 %v394, 0.0
      %v515 = vmax.f32 %v397, 0.0
      %v516 = vmax.f32 %v402, 0.0
      %v517 = vmax.f32 %v405, 0.0
      %v518 = vmax.f32 %v410, 0.0
      %v519 = vmax.f32 %v413, 0.0
      %v520 = vmax.f32 %v418, 0.0
      %v521 = vmax.f32 %v421, 0.0
      %v522 = vmax.f32 %v426, 0.0
      %v523 = vmax.f32 %v429, 0.0
      %v524 = vmax.f32 %v434, 0.0
      %v525 = vmax.f32 %v437, 0.0
      %v526 = vmax.f32 %v442, 0.0
      %v527 = vmax.f32 %v445, 0.0
      %v528 = vmax.f32 %v450, 0.0
      %v529 = vmax.f32 %v453, 0.0
      %v530 = vmax.f32 %v458, 0.0
      %v531 = vmax.f32 %v461, 0.0
      %v532 = vmax.f32 %v466, 0.0
      %v533 = vmax.f32 %v469, 0.0
      %v534 = vmax.f32 %v474, 0.0
      %v535 = vmax.f32 %v477, 0.0
      %v536 = vmax.f32 %v482, 0.0
      %v537 = vmax.f32 %v485, 0.0
      %v538 = vmax.f32 %v490, 0.0
      %v539 = vmax.f32 %v493, 0.0
      %v540 = vmax.f32 %v498, 0.0
      %v541 = vmax.f32 %v501, 0.0
      %v542 = vmax.f32 %v506, 0.0
      %v543 = vmax.f32 %v509, 0.0
      %v544 = vpack.c.bf16 %v513, %v512
      %v545 = vpack.c.bf16 %v515, %v514
      %v546 = vpack.c.bf16 %v517, %v516
      %v547 = vpack.c.bf16 %v519, %v518
      %v548 = vpack.c.bf16 %v521, %v520
      %v549 = vpack.c.bf16 %v523, %v522
      %v550 = vpack.c.bf16 %v525, %v524
      %v551 = vpack.c.bf16 %v527, %v526
      %v552 = vpack.c.bf16 %v529, %v528
      %v553 = vpack.c.bf16 %v531, %v530
      %v554 = vpack.c.bf16 %v533, %v532
      %v555 = vpack.c.bf16 %v535, %v534
      %v556 = vpack.c.bf16 %v537, %v536
      %v557 = vpack.c.bf16 %v539, %v538
      %v558 = vpack.c.bf16 %v541, %v540
      %v559 = vpack.c.bf16 %v543, %v542
      %v576 = vunpack.c.l.b16 %v544
      %v577 = vunpack.c.h.b16 %v544
      %v578 = vunpack.c.l.b16 %v545
      %v579 = vunpack.c.h.b16 %v545
      %v580 = vunpack.c.l.b16 %v546
      %v581 = vunpack.c.h.b16 %v546
      %v582 = vunpack.c.l.b16 %v547
      %v583 = vunpack.c.h.b16 %v547
      %v584 = vunpack.c.l.b16 %v548
      %v585 = vunpack.c.h.b16 %v548
      %v586 = vunpack.c.l.b16 %v549
      %v587 = vunpack.c.h.b16 %v549
      %v588 = vunpack.c.l.b16 %v550
      %v589 = vunpack.c.h.b16 %v550
      %v590 = vunpack.c.l.b16 %v551
      %v591 = vunpack.c.h.b16 %v551
      %v592 = vunpack.c.l.b16 %v552
      %v593 = vunpack.c.h.b16 %v552
      %v594 = vunpack.c.l.b16 %v553
      %v595 = vunpack.c.h.b16 %v553
      %v596 = vunpack.c.l.b16 %v554
      %v597 = vunpack.c.h.b16 %v554
      %v598 = vunpack.c.l.b16 %v555
      %v599 = vunpack.c.h.b16 %v555
      %v600 = vunpack.c.l.b16 %v556
      %v601 = vunpack.c.h.b16 %v556
      %v602 = vunpack.c.l.b16 %v557
      %v603 = vunpack.c.h.b16 %v557
      %v604 = vunpack.c.l.b16 %v558
      %v605 = vunpack.c.h.b16 %v558
      %v606 = vunpack.c.l.b16 %v559
      %v607 = vunpack.c.h.b16 %v559
      %v608 = vpack.c.b16 %v576, %v576
      %v609 = vpack.c.b16 %v577, %v577
      %v610 = vpack.c.b16 %v578, %v578
      %v611 = vpack.c.b16 %v579, %v579
      %v612 = vpack.c.b16 %v580, %v580
      %v613 = vpack.c.b16 %v581, %v581
      %v614 = vpack.c.b16 %v582, %v582
      %v615 = vpack.c.b16 %v583, %v583
      %v616 = vpack.c.b16 %v584, %v584
      %v617 = vpack.c.b16 %v585, %v585
      %v618 = vpack.c.b16 %v586, %v586
      %v619 = vpack.c.b16 %v587, %v587
      %v620 = vpack.c.b16 %v588, %v588
      %v621 = vpack.c.b16 %v589, %v589
      %v622 = vpack.c.b16 %v590, %v590
      %v623 = vpack.c.b16 %v591, %v591
      %v624 = vpack.c.b16 %v592, %v592
      %v625 = vpack.c.b16 %v593, %v593
      %v626 = vpack.c.b16 %v594, %v594
      %v627 = vpack.c.b16 %v595, %v595
      %v628 = vpack.c.b16 %v596, %v596
      %v629 = vpack.c.b16 %v597, %v597
      %v630 = vpack.c.b16 %v598, %v598
      %v631 = vpack.c.b16 %v599, %v599
      %v632 = vpack.c.b16 %v600, %v600
      %v633 = vpack.c.b16 %v601, %v601
      %v634 = vpack.c.b16 %v602, %v602
      %v635 = vpack.c.b16 %v603, %v603
      %v636 = vpack.c.b16 %v604, %v604
      %v637 = vpack.c.b16 %v605, %v605
      %v638 = vpack.c.b16 %v606, %v606
      %v639 = vpack.c.b16 %v607, %v607
      %672 = vst [vmem:[%s172] sm:$0xf] %v608
      %673 = vst [vmem:[%s172 + $0x4] sm:$0xf] %v609
      %674 = vst [vmem:[%s172 + $0x8] sm:$0xf] %v610
      %675 = vst [vmem:[%s172 + $0xc] sm:$0xf] %v611
      %676 = vst [vmem:[%s172 + $0x10] sm:$0xf] %v612
      %677 = vst [vmem:[%s172 + $0x14] sm:$0xf] %v613
      %678 = vst [vmem:[%s172 + $0x18] sm:$0xf] %v614
      %679 = vst [vmem:[%s172 + $0x1c] sm:$0xf] %v615
      %680 = vst [vmem:[%s172 + $0x20] sm:$0xf] %v616
      %681 = vst [vmem:[%s172 + $0x24] sm:$0xf] %v617
      %682 = vst [vmem:[%s172 + $0x28] sm:$0xf] %v618
      %683 = vst [vmem:[%s172 + $0x2c] sm:$0xf] %v619
      %684 = vst [vmem:[%s172 + $0x30] sm:$0xf] %v620
      %685 = vst [vmem:[%s172 + $0x34] sm:$0xf] %v621
      %686 = vst [vmem:[%s172 + $0x38] sm:$0xf] %v622
      %687 = vst [vmem:[%s172 + $0x3c] sm:$0xf] %v623
      %688 = vst [vmem:[%s172 + $0x40] sm:$0xf] %v624
      %689 = vst [vmem:[%s172 + $0x44] sm:$0xf] %v625
      %690 = vst [vmem:[%s172 + $0x48] sm:$0xf] %v626
      %691 = vst [vmem:[%s172 + $0x4c] sm:$0xf] %v627
      %692 = vst [vmem:[%s172 + $0x50] sm:$0xf] %v628
      %693 = vst [vmem:[%s172 + $0x54] sm:$0xf] %v629
      %694 = vst [vmem:[%s172 + $0x58] sm:$0xf] %v630
      %695 = vst [vmem:[%s172 + $0x5c] sm:$0xf] %v631
      %696 = vst [vmem:[%s172 + $0x60] sm:$0xf] %v632
      %697 = vst [vmem:[%s172 + $0x64] sm:$0xf] %v633
      %698 = vst [vmem:[%s172 + $0x68] sm:$0xf] %v634
      %699 = vst [vmem:[%s172 + $0x6c] sm:$0xf] %v635
      %700 = vst [vmem:[%s172 + $0x70] sm:$0xf] %v636
      %701 = vst [vmem:[%s172 + $0x74] sm:$0xf] %v637
      %702 = vst [vmem:[%s172 + $0x78] sm:$0xf] %v638
      %703 = vst [vmem:[%s172 + $0x7c] sm:$0xf] %v639
      %s704 = smul.u32 32, %s14
      %p705 = scmp.lt.s32.totalorder %s704, 63
      %s706 = scalar_select %p705, %s704, 63
      %s707 = smul.addr %s706, 4
      %s708 = scalar_lea.vmem %s3, %s707
      // Predicated region
      $region33: #{_lambda_.31} parent=31 // pred_check
        %p709 = pneg %p100
      $region34: #{_lambda_.31} parent=31 // pred_check_branch
        %711 = sbr.rel (%p709) target = $region36
      $region35: #{_lambda_.31} parent=31 // pred_region
        %s712 = smul.u32 32, %s14
      $region36: #{_lambda_.31} parent=31 // pred_fallthru
        _
    $region32: #{_lambda_.31} parent=5 // pred_fallthru
      _
    %p713 = scmp.le.s32.totalorder 2, %s9
    // Predicated region
    $region37: #{_lambda_.31} parent=5 // pred_check
      %p714 = pneg %p713
    $region38: #{_lambda_.31} parent=5 // pred_check_branch
      %716 = sbr.rel (%p714) target = $region40
    $region39: #{_lambda_.31} parent=5 // pred_region
      %s717 = ssub.s32 %s9, 2
      // Predicated region
      $region41: #{_lambda_.31} parent=39 // pred_check
        %p718 = pneg %p106
      $region42: #{_lambda_.31} parent=39 // pred_check_branch
        %720 = sbr.rel (%p718) target = $region44
      $region43: #{_lambda_.31} parent=39 // pred_region
        %s721 = smul.u32 32, %s15
        %p722 = scmp.lt.s32.totalorder %s721, 63
        %s723 = scalar_select %p722, %s721, 63
        %s724 = smul.addr %s723, 4
        %s725 = scalar_lea.vmem %s3, %s724
      $region44: #{_lambda_.31} parent=39 // pred_fallthru
        _
    $region40: #{_lambda_.31} parent=5 // pred_fallthru
      _
  $region6: #{_lambda_.31} parent=0 // loop_footer
    %s13 = sadd.s32 1, %s9
  $region7: #{_lambda_.31} parent=0 // loop_footer_branch
    %8 = sbr.rel target = $region3
  $region8: #{_lambda_.31} parent=0 // loop_exit
    _

// kernel: _lambda_.32
$region0: #{_lambda_.32}
  #allocation0 [shape = 'u32[]', space=smem, size = 0x4, offset = 0x4, fixed_abs, tag = 'smem constant byte address 0x4 - core index']
  #allocation1 [shape = 'u32[144,128]{1,0:T(1,128)}', space=vmem, size = 0x12000, scoped, tag = 'internal scratch']
  %s0 = inlined_call_operand.vmem [shape: bf16[9,128,128], index: 0, kind: input, shape index: {}]
  %s1 = inlined_call_operand.vmem [shape: f32[9,1,128], index: 1, kind: input, shape index: {}]
  %s2 = inlined_call_operand.vmem [shape: f32[1,128], index: 2, kind: input, shape index: {}]
  %s3 = inlined_call_operand.vmem [shape: bf16[128,128], index: 3, kind: output, shape index: {0}]
  %s4 = inlined_call_operand.vmem [shape: bf16[128,128], index: 4, kind: output, shape index: {1}]
  %5 = xla_tuple %s3, %s4
  %s6 = sld [smem:[#allocation0]]
  $region94: #{_lambda_.32} parent=0
    _
  %s8 = ssub.s32 1, %s6
  %s9 = scalar_select 0, %s8, %s6
  $region1: #{_lambda_.32} parent=0
    #allocation2 [shape = 'u8[294912]{0}', space=vmem, size = 0x48000, scoped, tag = 'input window, operand 0']
    loop: start=0, step=1, limit=4
    $region2: #{_lambda_.32} parent=1 // loop_pre_header
      _
    $region3: #{_lambda_.32} parent=1 // loop_header
      %s11 = sphi 0, %s15
      %p12 = scmp.ge.s32.totalorder %s11, 4
      %s21 = sphi 0, %s23
      %s24 = sphi 0, %s21
      %s25 = sphi 0, %s24
      %s41 = sphi 0, %s25
      %s45 = sphi 0, %s45
      %s47 = sphi 0, %s45
      %s48 = sphi 0, %s47
      %s62 = sphi 0, %s48
      %s66 = sphi 0, %s66
      %s68 = sphi 0, %s66
      %s69 = sphi 0, %s68
      %s83 = sphi 0, %s69
      %s89 = sphi 0, %s91
      %s92 = sphi 0, %s89
      %s93 = sphi 0, %s92
      %s109 = sphi 0, %s93
      %s115 = sphi 0, %s117
      %s118 = sphi 0, %s115
      %s119 = sphi 0, %s118
      %s135 = sphi 0, %s119
    $region4: #{_lambda_.32} parent=1 // loop_header_branch
      %14 = sbr.rel (%p12) target = $region8
    $region5: #{_lambda_.32} parent=1 // loop_body
      %s16 = ssub.s32 %s11, 1
      %s17 = ssub.s32 %s11, 2
      %s18 = sadd.s32 %s11, 1
      %s19 = ssub.s32 %s11, %s18
      %p20 = scmp.eq.s32.totalorder %s19, 0
      %s22 = sadd.s32 %s21, 1
      %s23 = scalar_select %p20, %s21, %s22
      %p26 = pneg %p20
      %p27 = scmp.eq.s32.totalorder %s11, 1
      %p28 = por %p26, %p27
      %p29 = scmp.ne.s32.totalorder %s21, %s24
      %p30 = scmp.eq.s32.totalorder %s11, 0
      %p31 = por %p29, %p30
      %p32 = scmp.ne.s32.totalorder %s21, %s24
      %p33 = scmp.eq.s32.totalorder %s16, 1
      %p34 = por %p32, %p33
      %p35 = scmp.ne.s32.totalorder %s24, %s25
      %p36 = scmp.eq.s32.totalorder %s16, 0
      %p37 = por %p35, %p36
      %p38 = scmp.ne.s32.totalorder %s24, %s25
      %p39 = scmp.eq.s32.totalorder %s17, 1
      %p40 = por %p38, %p39
      %p42 = scmp.ne.s32.totalorder %s25, %s41
      %p43 = scmp.eq.s32.totalorder %s17, 0
      %p44 = por %p42, %p43
      %s46 = sadd.s32 %s45, 1
      %p49 = scmp.eq.s32.totalorder %s11, 1
      %p50 = scmp.ne.s32.totalorder %s45, %s47
      %p51 = scmp.eq.s32.totalorder %s11, 0
      %p52 = por %p50, %p51
      %p53 = scmp.ne.s32.totalorder %s45, %s47
      %p54 = scmp.eq.s32.totalorder %s16, 1
      %p55 = por %p53, %p54
      %p56 = scmp.ne.s32.totalorder %s47, %s48
      %p57 = scmp.eq.s32.totalorder %s16, 0
      %p58 = por %p56, %p57
      %p59 = scmp.ne.s32.totalorder %s47, %s48
      %p60 = scmp.eq.s32.totalorder %s17, 1
      %p61 = por %p59, %p60
      %p63 = scmp.ne.s32.totalorder %s48, %s62
      %p64 = scmp.eq.s32.totalorder %s17, 0
      %p65 = por %p63, %p64
      %s67 = sadd.s32 %s66, 1
      %p70 = scmp.eq.s32.totalorder %s11, 1
      %p71 = scmp.ne.s32.totalorder %s66, %s68
      %p72 = scmp.eq.s32.totalorder %s11, 0
      %p73 = por %p71, %p72
      %p74 = scmp.ne.s32.totalorder %s66, %s68
      %p75 = scmp.eq.s32.totalorder %s16, 1
      %p76 = por %p74, %p75
      %p77 = scmp.ne.s32.totalorder %s68, %s69
      %p78 = scmp.eq.s32.totalorder %s16, 0
      %p79 = por %p77, %p78
      %p80 = scmp.ne.s32.totalorder %s68, %s69
      %p81 = scmp.eq.s32.totalorder %s17, 1
      %p82 = por %p80, %p81
      %p84 = scmp.ne.s32.totalorder %s69, %s83
      %p85 = scmp.eq.s32.totalorder %s17, 0
      %p86 = por %p84, %p85
      %s87 = ssub.s32 %s11, %s18
      %p88 = scmp.eq.s32.totalorder %s87, 0
      %s90 = sadd.s32 %s89, 1
      %s91 = scalar_select %p88, %s89, %s90
      %p94 = pneg %p88
      %p95 = scmp.eq.s32.totalorder %s11, 1
      %p96 = por %p94, %p95
      %p97 = scmp.ne.s32.totalorder %s89, %s92
      %p98 = scmp.eq.s32.totalorder %s11, 0
      %p99 = por %p97, %p98
      %p100 = scmp.ne.s32.totalorder %s89, %s92
      %p101 = scmp.eq.s32.totalorder %s16, 1
      %p102 = por %p100, %p101
      %p103 = scmp.ne.s32.totalorder %s92, %s93
      %p104 = scmp.eq.s32.totalorder %s16, 0
      %p105 = por %p103, %p104
      %p106 = scmp.ne.s32.totalorder %s92, %s93
      %p107 = scmp.eq.s32.totalorder %s17, 1
      %p108 = por %p106, %p107
      %p110 = scmp.ne.s32.totalorder %s93, %s109
      %p111 = scmp.eq.s32.totalorder %s17, 0
      %p112 = por %p110, %p111
      %s113 = ssub.s32 %s11, %s18
      %p114 = scmp.eq.s32.totalorder %s113, 0
      %s116 = sadd.s32 %s115, 1
      %s117 = scalar_select %p114, %s115, %s116
      %p120 = pneg %p114
      %p121 = scmp.eq.s32.totalorder %s11, 1
      %p122 = por %p120, %p121
      %p123 = scmp.ne.s32.totalorder %s115, %s118
      %p124 = scmp.eq.s32.totalorder %s11, 0
      %p125 = por %p123, %p124
      %p126 = scmp.ne.s32.totalorder %s115, %s118
      %p127 = scmp.eq.s32.totalorder %s16, 1
      %p128 = por %p126, %p127
      %p129 = scmp.ne.s32.totalorder %s118, %s119
      %p130 = scmp.eq.s32.totalorder %s16, 0
      %p131 = por %p129, %p130
      %p132 = scmp.ne.s32.totalorder %s118, %s119
      %p133 = scmp.eq.s32.totalorder %s17, 1
      %p134 = por %p132, %p133
      %p136 = scmp.ne.s32.totalorder %s119, %s135
      %p137 = scmp.eq.s32.totalorder %s17, 0
      %p138 = por %p136, %p137
      %p139 = scmp.le.s32.totalorder 1, %s11
      %p140 = scmp.lt.s32.totalorder %s11, 3
      %p141 = pnand %p139, %p140
      %p142 = pneg %p141
      // Predicated region
      $region9: #{_lambda_.32} parent=5 // pred_check
        _
      $region10: #{_lambda_.32} parent=5 // pred_check_branch
        %144 = sbr.rel (%p141) target = $region12
      $region11: #{_lambda_.32} parent=5 // pred_region
        %s145 = ssub.s32 %s11, 1
        // Predicated region
        $region13: #{_lambda_.32} parent=11 // pred_check
          %p146 = pneg %p58
        $region14: #{_lambda_.32} parent=11 // pred_check_branch
          %148 = sbr.rel (%p146) target = $region16
        $region15: #{_lambda_.32} parent=11 // pred_region
          _
        $region16: #{_lambda_.32} parent=11 // pred_fallthru
          _
        // Predicated region
        $region17: #{_lambda_.32} parent=11 // pred_check
          %p149 = pneg %p79
        $region18: #{_lambda_.32} parent=11 // pred_check_branch
          %151 = sbr.rel (%p149) target = $region20
        $region19: #{_lambda_.32} parent=11 // pred_region
          _
        $region20: #{_lambda_.32} parent=11 // pred_fallthru
          _
      $region12: #{_lambda_.32} parent=5 // pred_fallthru
        _
      %p152 = scmp.lt.s32.totalorder %s11, 2
      // Predicated region
      $region21: #{_lambda_.32} parent=5 // pred_check
        %p153 = pneg %p152
      $region22: #{_lambda_.32} parent=5 // pred_check_branch
        %155 = sbr.rel (%p153) target = $region24
      $region23: #{_lambda_.32} parent=5 // pred_region
        // Predicated region
        $region25: #{_lambda_.32} parent=23 // pred_check
          %p156 = pneg %p31
        $region26: #{_lambda_.32} parent=23 // pred_check_branch
          %158 = sbr.rel (%p156) target = $region28
        $region27: #{_lambda_.32} parent=23 // pred_region
          %s159 = sand.u32 %s21, 1
          %s160 = sand.u32 %s21, 1
          %s161 = smul.addr %s160, 288
          %s162 = scalar_lea.vmem [#allocation2], %s161
          %s163 = smul.u32 8, %s11
          %s164 = smul.addr %s163, 4
          %s165 = scalar_lea.vmem %s0, %s164
          // Predicated region
          $region29: #{_lambda_.32} parent=27 // pred_check
            _
          $region30: #{_lambda_.32} parent=27 // pred_check_branch
            %167 = sbr.rel (0) target = $region32
          $region31: #{_lambda_.32} parent=27 // pred_region
            // Predicated region
            $region33: #{_lambda_.32} parent=31 // pred_check
              _
            $region34: #{_lambda_.32} parent=31 // pred_check_branch
              %169 = sbr.rel target = $region36
            $region35: #{_lambda_.32} parent=31 // pred_region
              // Predicated region
              $region48: #{_lambda_.32} parent=35 // pred_check
                _
              $region49: #{_lambda_.32} parent=35 // pred_check_branch
                %327 = sbr.rel (0) target = $region51
              $region50: #{_lambda_.32} parent=35 // pred_region
                loop: start=0, step=1, limit=1
                $region52: #{_lambda_.32} parent=50 // loop_pre_header
                  _
                $region53: #{_lambda_.32} parent=50 // loop_header
                  %s329 = sphi 0, %s333
                  %p330 = scmp.ge.s32.totalorder %s329, 1
                  %s334 = sphi %s165, %s165
                  %s335 = sphi %s162, %s162
                $region54: #{_lambda_.32} parent=50 // loop_header_branch
                  %332 = sbr.rel (%p330) target = $region58
                $region55: #{_lambda_.32} parent=50 // loop_body
                  _
                $region56: #{_lambda_.32} parent=50 // loop_footer
                  %s333 = sadd.s32 1, %s329
                $region57: #{_lambda_.32} parent=50 // loop_footer_branch
                  %328 = sbr.rel target = $region53
                $region58: #{_lambda_.32} parent=50 // loop_exit
                  _
                %s337 = ssub.s32 16, 1
                loop: start=0, step=1, limit=1
                $region59: #{_lambda_.32} parent=50 // loop_pre_header
                  _
                $region60: #{_lambda_.32} parent=50 // loop_header
                  %s339 = sphi 0, %s343
                  %p340 = scmp.ge.s32.totalorder %s339, 1
                  %s344 = sphi %s165, %s165
                  %s345 = sphi %s162, %s162
                $region61: #{_lambda_.32} parent=50 // loop_header_branch
                  %342 = sbr.rel (%p340) target = $region65
                $region62: #{_lambda_.32} parent=50 // loop_body
                  %v346 = vld [vmem:[%s344] sm:%s337]
                  %347 = vst [vmem:[%s345] sm:%s337] %v346
                  %v348 = vld [vmem:[%s344 + $0x4] sm:%s337]
                  %349 = vst [vmem:[%s345 + $0x4] sm:%s337] %v348
                  %v350 = vld [vmem:[%s344 + $0x8] sm:%s337]
                  %351 = vst [vmem:[%s345 + $0x8] sm:%s337] %v350
                  %v352 = vld [vmem:[%s344 + $0xc] sm:%s337]
                  %353 = vst [vmem:[%s345 + $0xc] sm:%s337] %v352
                  %v354 = vld [vmem:[%s344 + $0x10] sm:%s337]
                  %355 = vst [vmem:[%s345 + $0x10] sm:%s337] %v354
                  %v356 = vld [vmem:[%s344 + $0x14] sm:%s337]
                  %357 = vst [vmem:[%s345 + $0x14] sm:%s337] %v356
                  %v358 = vld [vmem:[%s344 + $0x18] sm:%s337]
                  %359 = vst [vmem:[%s345 + $0x18] sm:%s337] %v358
                  %v360 = vld [vmem:[%s344 + $0x1c] sm:%s337]
                  %361 = vst [vmem:[%s345 + $0x1c] sm:%s337] %v360
                  %v362 = vld [vmem:[%s344 + $0x40] sm:%s337]
                  %363 = vst [vmem:[%s345 + $0x20] sm:%s337] %v362
                  %v364 = vld [vmem:[%s344 + $0x44] sm:%s337]
                  %365 = vst [vmem:[%s345 + $0x24] sm:%s337] %v364
                  %v366 = vld [vmem:[%s344 + $0x48] sm:%s337]
                  %367 = vst [vmem:[%s345 + $0x28] sm:%s337] %v366
                  %v368 = vld [vmem:[%s344 + $0x4c] sm:%s337]
                  %369 = vst [vmem:[%s345 + $0x2c] sm:%s337] %v368
                  %v370 = vld [vmem:[%s344 + $0x50] sm:%s337]
                  %371 = vst [vmem:[%s345 + $0x30] sm:%s337] %v370
                  %v372 = vld [vmem:[%s344 + $0x54] sm:%s337]
                  %373 = vst [vmem:[%s345 + $0x34] sm:%s337] %v372
                  %v374 = vld [vmem:[%s344 + $0x58] sm:%s337]
                  %375 = vst [vmem:[%s345 + $0x38] sm:%s337] %v374
                  %v376 = vld [vmem:[%s344 + $0x5c] sm:%s337]
                  %377 = vst [vmem:[%s345 + $0x3c] sm:%s337] %v376
                  %v378 = vld [vmem:[%s344 + $0x80] sm:%s337]
                  %379 = vst [vmem:[%s345 + $0x40] sm:%s337] %v378
                  %v380 = vld [vmem:[%s344 + $0x84] sm:%s337]
                  %381 = vst [vmem:[%s345 + $0x44] sm:%s337] %v380
                  %v382 = vld [vmem:[%s344 + $0x88] sm:%s337]
                  %383 = vst [vmem:[%s345 + $0x48] sm:%s337] %v382
                  %v384 = vld [vmem:[%s344 + $0x8c] sm:%s337]
                  %385 = vst [vmem:[%s345 + $0x4c] sm:%s337] %v384
                  %v386 = vld [vmem:[%s344 + $0x90] sm:%s337]
                  %387 = vst [vmem:[%s345 + $0x50] sm:%s337] %v386
                  %v388 = vld [vmem:[%s344 + $0x94] sm:%s337]
                  %389 = vst [vmem:[%s345 + $0x54] sm:%s337] %v388
                  %v390 = vld [vmem:[%s344 + $0x98] sm:%s337]
                  %391 = vst [vmem:[%s345 + $0x58] sm:%s337] %v390
                  %v392 = vld [vmem:[%s344 + $0x9c] sm:%s337]
                  %393 = vst [vmem:[%s345 + $0x5c] sm:%s337] %v392
                  %v394 = vld [vmem:[%s344 + $0xc0] sm:%s337]
                  %395 = vst [vmem:[%s345 + $0x60] sm:%s337] %v394
                  %v396 = vld [vmem:[%s344 + $0xc4] sm:%s337]
                  %397 = vst [vmem:[%s345 + $0x64] sm:%s337] %v396
                  %v398 = vld [vmem:[%s344 + $0xc8] sm:%s337]
                  %399 = vst [vmem:[%s345 + $0x68] sm:%s337] %v398
                  %v400 = vld [vmem:[%s344 + $0xcc] sm:%s337]
                  %401 = vst [vmem:[%s345 + $0x6c] sm:%s337] %v400
                  %v402 = vld [vmem:[%s344 + $0xd0] sm:%s337]
                  %403 = vst [vmem:[%s345 + $0x70] sm:%s337] %v402
                  %v404 = vld [vmem:[%s344 + $0xd4] sm:%s337]
                  %405 = vst [vmem:[%s345 + $0x74] sm:%s337] %v404
                  %v406 = vld [vmem:[%s344 + $0xd8] sm:%s337]
                  %407 = vst [vmem:[%s345 + $0x78] sm:%s337] %v406
                  %v408 = vld [vmem:[%s344 + $0xdc] sm:%s337]
                  %409 = vst [vmem:[%s345 + $0x7c] sm:%s337] %v408
                  %v410 = vld [vmem:[%s344 + $0x100] sm:%s337]
                  %411 = vst [vmem:[%s345 + $0x80] sm:%s337] %v410
                  %v412 = vld [vmem:[%s344 + $0x104] sm:%s337]
                  %413 = vst [vmem:[%s345 + $0x84] sm:%s337] %v412
                  %v414 = vld [vmem:[%s344 + $0x108] sm:%s337]
                  %415 = vst [vmem:[%s345 + $0x88] sm:%s337] %v414
                  %v416 = vld [vmem:[%s344 + $0x10c] sm:%s337]
                  %417 = vst [vmem:[%s345 + $0x8c] sm:%s337] %v416
                  %v418 = vld [vmem:[%s344 + $0x110] sm:%s337]
                  %419 = vst [vmem:[%s345 + $0x90] sm:%s337] %v418
                  %v420 = vld [vmem:[%s344 + $0x114] sm:%s337]
                  %421 = vst [vmem:[%s345 + $0x94] sm:%s337] %v420
                  %v422 = vld [vmem:[%s344 + $0x118] sm:%s337]
                  %423 = vst [vmem:[%s345 + $0x98] sm:%s337] %v422
                  %v424 = vld [vmem:[%s344 + $0x11c] sm:%s337]
                  %425 = vst [vmem:[%s345 + $0x9c] sm:%s337] %v424
                  %v426 = vld [vmem:[%s344 + $0x140] sm:%s337]
                  %427 = vst [vmem:[%s345 + $0xa0] sm:%s337] %v426
                  %v428 = vld [vmem:[%s344 + $0x144] sm:%s337]
                  %429 = vst [vmem:[%s345 + $0xa4] sm:%s337] %v428
                  %v430 = vld [vmem:[%s344 + $0x148] sm:%s337]
                  %431 = vst [vmem:[%s345 + $0xa8] sm:%s337] %v430
                  %v432 = vld [vmem:[%s344 + $0x14c] sm:%s337]
                  %433 = vst [vmem:[%s345 + $0xac] sm:%s337] %v432
                  %v434 = vld [vmem:[%s344 + $0x150] sm:%s337]
                  %435 = vst [vmem:[%s345 + $0xb0] sm:%s337] %v434
                  %v436 = vld [vmem:[%s344 + $0x154] sm:%s337]
                  %437 = vst [vmem:[%s345 + $0xb4] sm:%s337] %v436
                  %v438 = vld [vmem:[%s344 + $0x158] sm:%s337]
                  %439 = vst [vmem:[%s345 + $0xb8] sm:%s337] %v438
                  %v440 = vld [vmem:[%s344 + $0x15c] sm:%s337]
                  %441 = vst [vmem:[%s345 + $0xbc] sm:%s337] %v440
                  %v442 = vld [vmem:[%s344 + $0x180] sm:%s337]
                  %443 = vst [vmem:[%s345 + $0xc0] sm:%s337] %v442
                  %v444 = vld [vmem:[%s344 + $0x184] sm:%s337]
                  %445 = vst [vmem:[%s345 + $0xc4] sm:%s337] %v444
                  %v446 = vld [vmem:[%s344 + $0x188] sm:%s337]
                  %447 = vst [vmem:[%s345 + $0xc8] sm:%s337] %v446
                  %v448 = vld [vmem:[%s344 + $0x18c] sm:%s337]
                  %449 = vst [vmem:[%s345 + $0xcc] sm:%s337] %v448
                  %v450 = vld [vmem:[%s344 + $0x190] sm:%s337]
                  %451 = vst [vmem:[%s345 + $0xd0] sm:%s337] %v450
                  %v452 = vld [vmem:[%s344 + $0x194] sm:%s337]
                  %453 = vst [vmem:[%s345 + $0xd4] sm:%s337] %v452
                  %v454 = vld [vmem:[%s344 + $0x198] sm:%s337]
                  %455 = vst [vmem:[%s345 + $0xd8] sm:%s337] %v454
                  %v456 = vld [vmem:[%s344 + $0x19c] sm:%s337]
                  %457 = vst [vmem:[%s345 + $0xdc] sm:%s337] %v456
                  %v458 = vld [vmem:[%s344 + $0x1c0] sm:%s337]
                  %459 = vst [vmem:[%s345 + $0xe0] sm:%s337] %v458
                  %v460 = vld [vmem:[%s344 + $0x1c4] sm:%s337]
                  %461 = vst [vmem:[%s345 + $0xe4] sm:%s337] %v460
                  %v462 = vld [vmem:[%s344 + $0x1c8] sm:%s337]
                  %463 = vst [vmem:[%s345 + $0xe8] sm:%s337] %v462
                  %v464 = vld [vmem:[%s344 + $0x1cc] sm:%s337]
                  %465 = vst [vmem:[%s345 + $0xec] sm:%s337] %v464
                  %v466 = vld [vmem:[%s344 + $0x1d0] sm:%s337]
                  %467 = vst [vmem:[%s345 + $0xf0] sm:%s337] %v466
                  %v468 = vld [vmem:[%s344 + $0x1d4] sm:%s337]
                  %469 = vst [vmem:[%s345 + $0xf4] sm:%s337] %v468
                  %v470 = vld [vmem:[%s344 + $0x1d8] sm:%s337]
                  %471 = vst [vmem:[%s345 + $0xf8] sm:%s337] %v470
                  %v472 = vld [vmem:[%s344 + $0x1dc] sm:%s337]
                  %473 = vst [vmem:[%s345 + $0xfc] sm:%s337] %v472
                  %v474 = vld [vmem:[%s344 + $0x200] sm:%s337]
                  %475 = vst [vmem:[%s345 + $0x100] sm:%s337] %v474
                  %v476 = vld [vmem:[%s344 + $0x204] sm:%s337]
                  %477 = vst [vmem:[%s345 + $0x104] sm:%s337] %v476
                  %v478 = vld [vmem:[%s344 + $0x208] sm:%s337]
                  %479 = vst [vmem:[%s345 + $0x108] sm:%s337] %v478
                  %v480 = vld [vmem:[%s344 + $0x20c] sm:%s337]
                  %481 = vst [vmem:[%s345 + $0x10c] sm:%s337] %v480
                  %v482 = vld [vmem:[%s344 + $0x210] sm:%s337]
                  %483 = vst [vmem:[%s345 + $0x110] sm:%s337] %v482
                  %v484 = vld [vmem:[%s344 + $0x214] sm:%s337]
                  %485 = vst [vmem:[%s345 + $0x114] sm:%s337] %v484
                  %v486 = vld [vmem:[%s344 + $0x218] sm:%s337]
                  %487 = vst [vmem:[%s345 + $0x118] sm:%s337] %v486
                  %v488 = vld [vmem:[%s344 + $0x21c] sm:%s337]
                  %489 = vst [vmem:[%s345 + $0x11c] sm:%s337] %v488
                $region63: #{_lambda_.32} parent=50 // loop_footer
                  %s343 = sadd.s32 1, %s339
                $region64: #{_lambda_.32} parent=50 // loop_footer_branch
                  %338 = sbr.rel target = $region60
                $region65: #{_lambda_.32} parent=50 // loop_exit
                  _
              $region51: #{_lambda_.32} parent=35 // pred_fallthru
                _
            $region36: #{_lambda_.32} parent=31 // pred_fallthru
              _
            // Predicated region
            $region37: #{_lambda_.32} parent=31 // pred_check
              _
            $region38: #{_lambda_.32} parent=31 // pred_check_branch
              %171 = sbr.rel (0) target = $region40
            $region39: #{_lambda_.32} parent=31 // pred_region
              %s173 = ssub.s32 16, 1
              loop: start=0, step=1, limit=1
              $region41: #{_lambda_.32} parent=39 // loop_pre_header
                _
              $region42: #{_lambda_.32} parent=39 // loop_header
                %s175 = sphi 0, %s179
                %p176 = scmp.ge.s32.totalorder %s175, 1
                %s180 = sphi %s165, %s165
                %s181 = sphi %s162, %s162
              $region43: #{_lambda_.32} parent=39 // loop_header_branch
                %178 = sbr.rel (%p176) target = $region47
              $region44: #{_lambda_.32} parent=39 // loop_body
                %v182 = vld [vmem:[%s180] sm:%s173]
                %183 = vst [vmem:[%s181] sm:%s173] %v182
                %v184 = vld [vmem:[%s180 + $0x4] sm:%s173]
                %185 = vst [vmem:[%s181 + $0x4] sm:%s173] %v184
                %v186 = vld [vmem:[%s180 + $0x8] sm:%s173]
                %187 = vst [vmem:[%s181 + $0x8] sm:%s173] %v186
                %v188 = vld [vmem:[%s180 + $0xc] sm:%s173]
                %189 = vst [vmem:[%s181 + $0xc] sm:%s173] %v188
                %v190 = vld [vmem:[%s180 + $0x10] sm:%s173]
                %191 = vst [vmem:[%s181 + $0x10] sm:%s173] %v190
                %v192 = vld [vmem:[%s180 + $0x14] sm:%s173]
                %193 = vst [vmem:[%s181 + $0x14] sm:%s173] %v192
                %v194 = vld [vmem:[%s180 + $0x18] sm:%s173]
                %195 = vst [vmem:[%s181 + $0x18] sm:%s173] %v194
                %v196 = vld [vmem:[%s180 + $0x1c] sm:%s173]
                %197 = vst [vmem:[%s181 + $0x1c] sm:%s173] %v196
                %v198 = vld [vmem:[%s180 + $0x40] sm:%s173]
                %199 = vst [vmem:[%s181 + $0x20] sm:%s173] %v198
                %v200 = vld [vmem:[%s180 + $0x44] sm:%s173]
                %201 = vst [vmem:[%s181 + $0x24] sm:%s173] %v200
                %v202 = vld [vmem:[%s180 + $0x48] sm:%s173]
                %203 = vst [vmem:[%s181 + $0x28] sm:%s173] %v202
                %v204 = vld [vmem:[%s180 + $0x4c] sm:%s173]
                %205 = vst [vmem:[%s181 + $0x2c] sm:%s173] %v204
                %v206 = vld [vmem:[%s180 + $0x50] sm:%s173]
                %207 = vst [vmem:[%s181 + $0x30] sm:%s173] %v206
                %v208 = vld [vmem:[%s180 + $0x54] sm:%s173]
                %209 = vst [vmem:[%s181 + $0x34] sm:%s173] %v208
                %v210 = vld [vmem:[%s180 + $0x58] sm:%s173]
                %211 = vst [vmem:[%s181 + $0x38] sm:%s173] %v210
                %v212 = vld [vmem:[%s180 + $0x5c] sm:%s173]
                %213 = vst [vmem:[%s181 + $0x3c] sm:%s173] %v212
                %v214 = vld [vmem:[%s180 + $0x80] sm:%s173]
                %215 = vst [vmem:[%s181 + $0x40] sm:%s173] %v214
                %v216 = vld [vmem:[%s180 + $0x84] sm:%s173]
                %217 = vst [vmem:[%s181 + $0x44] sm:%s173] %v216
                %v218 = vld [vmem:[%s180 + $0x88] sm:%s173]
                %219 = vst [vmem:[%s181 + $0x48] sm:%s173] %v218
                %v220 = vld [vmem:[%s180 + $0x8c] sm:%s173]
                %221 = vst [vmem:[%s181 + $0x4c] sm:%s173] %v220
                %v222 = vld [vmem:[%s180 + $0x90] sm:%s173]
                %223 = vst [vmem:[%s181 + $0x50] sm:%s173] %v222
                %v224 = vld [vmem:[%s180 + $0x94] sm:%s173]
                %225 = vst [vmem:[%s181 + $0x54] sm:%s173] %v224
                %v226 = vld [vmem:[%s180 + $0x98] sm:%s173]
                %227 = vst [vmem:[%s181 + $0x58] sm:%s173] %v226
                %v228 = vld [vmem:[%s180 + $0x9c] sm:%s173]
                %229 = vst [vmem:[%s181 + $0x5c] sm:%s173] %v228
                %v230 = vld [vmem:[%s180 + $0xc0] sm:%s173]
                %231 = vst [vmem:[%s181 + $0x60] sm:%s173] %v230
                %v232 = vld [vmem:[%s180 + $0xc4] sm:%s173]
                %233 = vst [vmem:[%s181 + $0x64] sm:%s173] %v232
                %v234 = vld [vmem:[%s180 + $0xc8] sm:%s173]
                %235 = vst [vmem:[%s181 + $0x68] sm:%s173] %v234
                %v236 = vld [vmem:[%s180 + $0xcc] sm:%s173]
                %237 = vst [vmem:[%s181 + $0x6c] sm:%s173] %v236
                %v238 = vld [vmem:[%s180 + $0xd0] sm:%s173]
                %239 = vst [vmem:[%s181 + $0x70] sm:%s173] %v238
                %v240 = vld [vmem:[%s180 + $0xd4] sm:%s173]
                %241 = vst [vmem:[%s181 + $0x74] sm:%s173] %v240
                %v242 = vld [vmem:[%s180 + $0xd8] sm:%s173]
                %243 = vst [vmem:[%s181 + $0x78] sm:%s173] %v242
                %v244 = vld [vmem:[%s180 + $0xdc] sm:%s173]
                %245 = vst [vmem:[%s181 + $0x7c] sm:%s173] %v244
                %v246 = vld [vmem:[%s180 + $0x100] sm:%s173]
                %247 = vst [vmem:[%s181 + $0x80] sm:%s173] %v246
                %v248 = vld [vmem:[%s180 + $0x104] sm:%s173]
                %249 = vst [vmem:[%s181 + $0x84] sm:%s173] %v248
                %v250 = vld [vmem:[%s180 + $0x108] sm:%s173]
                %251 = vst [vmem:[%s181 + $0x88] sm:%s173] %v250
                %v252 = vld [vmem:[%s180 + $0x10c] sm:%s173]
                %253 = vst [vmem:[%s181 + $0x8c] sm:%s173] %v252
                %v254 = vld [vmem:[%s180 + $0x110] sm:%s173]
                %255 = vst [vmem:[%s181 + $0x90] sm:%s173] %v254
                %v256 = vld [vmem:[%s180 + $0x114] sm:%s173]
                %257 = vst [vmem:[%s181 + $0x94] sm:%s173] %v256
                %v258 = vld [vmem:[%s180 + $0x118] sm:%s173]
                %259 = vst [vmem:[%s181 + $0x98] sm:%s173] %v258
                %v260 = vld [vmem:[%s180 + $0x11c] sm:%s173]
                %261 = vst [vmem:[%s181 + $0x9c] sm:%s173] %v260
                %v262 = vld [vmem:[%s180 + $0x140] sm:%s173]
                %263 = vst [vmem:[%s181 + $0xa0] sm:%s173] %v262
                %v264 = vld [vmem:[%s180 + $0x144] sm:%s173]
                %265 = vst [vmem:[%s181 + $0xa4] sm:%s173] %v264
                %v266 = vld [vmem:[%s180 + $0x148] sm:%s173]
                %267 = vst [vmem:[%s181 + $0xa8] sm:%s173] %v266
                %v268 = vld [vmem:[%s180 + $0x14c] sm:%s173]
                %269 = vst [vmem:[%s181 + $0xac] sm:%s173] %v268
                %v270 = vld [vmem:[%s180 + $0x150] sm:%s173]
                %271 = vst [vmem:[%s181 + $0xb0] sm:%s173] %v270
                %v272 = vld [vmem:[%s180 + $0x154] sm:%s173]
                %273 = vst [vmem:[%s181 + $0xb4] sm:%s173] %v272
                %v274 = vld [vmem:[%s180 + $0x158] sm:%s173]
                %275 = vst [vmem:[%s181 + $0xb8] sm:%s173] %v274
                %v276 = vld [vmem:[%s180 + $0x15c] sm:%s173]
                %277 = vst [vmem:[%s181 + $0xbc] sm:%s173] %v276
                %v278 = vld [vmem:[%s180 + $0x180] sm:%s173]
                %279 = vst [vmem:[%s181 + $0xc0] sm:%s173] %v278
                %v280 = vld [vmem:[%s180 + $0x184] sm:%s173]
                %281 = vst [vmem:[%s181 + $0xc4] sm:%s173] %v280
                %v282 = vld [vmem:[%s180 + $0x188] sm:%s173]
                %283 = vst [vmem:[%s181 + $0xc8] sm:%s173] %v282
                %v284 = vld [vmem:[%s180 + $0x18c] sm:%s173]
                %285 = vst [vmem:[%s181 + $0xcc] sm:%s173] %v284
                %v286 = vld [vmem:[%s180 + $0x190] sm:%s173]
                %287 = vst [vmem:[%s181 + $0xd0] sm:%s173] %v286
                %v288 = vld [vmem:[%s180 + $0x194] sm:%s173]
                %289 = vst [vmem:[%s181 + $0xd4] sm:%s173] %v288
                %v290 = vld [vmem:[%s180 + $0x198] sm:%s173]
                %291 = vst [vmem:[%s181 + $0xd8] sm:%s173] %v290
                %v292 = vld [vmem:[%s180 + $0x19c] sm:%s173]
                %293 = vst [vmem:[%s181 + $0xdc] sm:%s173] %v292
                %v294 = vld [vmem:[%s180 + $0x1c0] sm:%s173]
                %295 = vst [vmem:[%s181 + $0xe0] sm:%s173] %v294
                %v296 = vld [vmem:[%s180 + $0x1c4] sm:%s173]
                %297 = vst [vmem:[%s181 + $0xe4] sm:%s173] %v296
                %v298 = vld [vmem:[%s180 + $0x1c8] sm:%s173]
                %299 = vst [vmem:[%s181 + $0xe8] sm:%s173] %v298
                %v300 = vld [vmem:[%s180 + $0x1cc] sm:%s173]
                %301 = vst [vmem:[%s181 + $0xec] sm:%s173] %v300
                %v302 = vld [vmem:[%s180 + $0x1d0] sm:%s173]
                %303 = vst [vmem:[%s181 + $0xf0] sm:%s173] %v302
                %v304 = vld [vmem:[%s180 + $0x1d4] sm:%s173]
                %305 = vst [vmem:[%s181 + $0xf4] sm:%s173] %v304
                %v306 = vld [vmem:[%s180 + $0x1d8] sm:%s173]
                %307 = vst [vmem:[%s181 + $0xf8] sm:%s173] %v306
                %v308 = vld [vmem:[%s180 + $0x1dc] sm:%s173]
                %309 = vst [vmem:[%s181 + $0xfc] sm:%s173] %v308
                %v310 = vld [vmem:[%s180 + $0x200] sm:%s173]
                %311 = vst [vmem:[%s181 + $0x100] sm:%s173] %v310
                %v312 = vld [vmem:[%s180 + $0x204] sm:%s173]
                %313 = vst [vmem:[%s181 + $0x104] sm:%s173] %v312
                %v314 = vld [vmem:[%s180 + $0x208] sm:%s173]
                %315 = vst [vmem:[%s181 + $0x108] sm:%s173] %v314
                %v316 = vld [vmem:[%s180 + $0x20c] sm:%s173]
                %317 = vst [vmem:[%s181 + $0x10c] sm:%s173] %v316
                %v318 = vld [vmem:[%s180 + $0x210] sm:%s173]
                %319 = vst [vmem:[%s181 + $0x110] sm:%s173] %v318
                %v320 = vld [vmem:[%s180 + $0x214] sm:%s173]
                %321 = vst [vmem:[%s181 + $0x114] sm:%s173] %v320
                %v322 = vld [vmem:[%s180 + $0x218] sm:%s173]
                %323 = vst [vmem:[%s181 + $0x118] sm:%s173] %v322
                %v324 = vld [vmem:[%s180 + $0x21c] sm:%s173]
                %325 = vst [vmem:[%s181 + $0x11c] sm:%s173] %v324
              $region45: #{_lambda_.32} parent=39 // loop_footer
                %s179 = sadd.s32 1, %s175
              $region46: #{_lambda_.32} parent=39 // loop_footer_branch
                %174 = sbr.rel target = $region42
              $region47: #{_lambda_.32} parent=39 // loop_exit
                _
            $region40: #{_lambda_.32} parent=31 // pred_fallthru
              _
          $region32: #{_lambda_.32} parent=27 // pred_fallthru
            _
          %490 = vnop
        $region28: #{_lambda_.32} parent=23 // pred_fallthru
          _
      $region24: #{_lambda_.32} parent=5 // pred_fallthru
        _
      %p491 = scmp.le.s32.totalorder 1, %s11
      %p492 = scmp.lt.s32.totalorder %s11, 3
      %p493 = pnand %p491, %p492
      %p494 = pneg %p493
      // Predicated region
      $region66: #{_lambda_.32} parent=5 // pred_check
        _
      $region67: #{_lambda_.32} parent=5 // pred_check_branch
        %496 = sbr.rel (%p493) target = $region69
      $region68: #{_lambda_.32} parent=5 // pred_region
        %s497 = ssub.s32 %s11, 1
        %s498 = sand.u32 %s24, 1
        %s499 = sand.u32 %s24, 1
        %s500 = smul.addr %s499, 288
        %s501 = scalar_lea.vmem [#allocation2], %s500
        // Predicated region
        $region70: #{_lambda_.32} parent=68 // pred_check
          %p502 = pneg %p37
        $region71: #{_lambda_.32} parent=68 // pred_check_branch
          %504 = sbr.rel (%p502) target = $region73
        $region72: #{_lambda_.32} parent=68 // pred_region
          _
        $region73: #{_lambda_.32} parent=68 // pred_fallthru
          _
        %s505 = sand.u32 %s24, 1
        %s506 = sand.u32 %s24, 1
        %s507 = smul.addr %s506, 288
        %s508 = scalar_lea.vmem [#allocation2], %s507
        %p509 = pneg %p37
        %p510 = pneg %p34
        %p511 = pneg %p58
        %p512 = pneg %p55
        %p513 = pneg %p79
        %p514 = pneg %p76
        %p515 = pneg %p105
        %p516 = pneg %p102
        %s517 = smul.u32 8, %s16
        %p518 = scmp.lt.s32.totalorder %s517, 15
        %s519 = scalar_select %p518, %s517, 15
        %s520 = smul.addr %s519, 4
        %s521 = scalar_lea.vmem %s3, %s520
        %p522 = pneg %p131
        %p523 = pneg %p128
        %s524 = smul.u32 8, %s16
        %p525 = scmp.lt.s32.totalorder %s524, 15
        %s526 = scalar_select %p525, %s524, 15
        %s527 = smul.addr %s526, 4
        %s528 = scalar_lea.vmem %s4, %s527
        %s529 = smul.u32 8, %s16
        %s530 = smul.u32 8, %s16
        %p531 = scmp.lt.s32.totalorder %s530, 15
        %s532 = scalar_select %p531, %s530, 15
        %s533 = smul.addr %s532, 4
        %s534 = scalar_lea.vmem %s3, %s533
        %s535 = smul.u32 8, %s16
        %s536 = smul.u32 8, %s16
        %p537 = scmp.lt.s32.totalorder %s536, 15
        %s538 = scalar_select %p537, %s536, 15
        %s539 = smul.addr %s538, 4
        %s540 = scalar_lea.vmem %s4, %s539
        %s541 = smul.u32 8, %s16
        %v542 = vld [vmem:[%s501] sm:$0xf]
        %v543 = vld [vmem:[%s501 + $0x4] sm:$0xf]
        %v544 = vld [vmem:[%s501 + $0x8] sm:$0xf]
        %v545 = vld [vmem:[%s501 + $0xc] sm:$0xf]
        %v546 = vld [vmem:[%s501 + $0x10] sm:$0xf]
        %v547 = vld [vmem:[%s501 + $0x14] sm:$0xf]
        %v548 = vld [vmem:[%s501 + $0x18] sm:$0xf]
        %v549 = vld [vmem:[%s501 + $0x1c] sm:$0xf]
        %v550 = vunpack.c.l.bf16 %v542
        %v551 = vunpack.c.l.bf16 %v543
        %v552 = vunpack.c.l.bf16 %v544
        %v553 = vunpack.c.l.bf16 %v545
        %v554 = vunpack.c.l.bf16 %v546
        %v555 = vunpack.c.l.bf16 %v547
        %v556 = vunpack.c.l.bf16 %v548
        %v557 = vunpack.c.l.bf16 %v549
        %v558 = vld [vmem:[%s1] sm:$0x1]
        %v560 = vlaneseq
        %v561 = vshrl.u32 %v560, 7
        %v562 = vsub.s32 0, %v561
        %v563 = vrot.slane %v558, %v562
        %v565 = vmul.f32 %v550, %v563
        %v566 = vmul.f32 %v551, %v563
        %v567 = vmul.f32 %v552, %v563
        %v568 = vmul.f32 %v553, %v563
        %v569 = vmul.f32 %v554, %v563
        %v570 = vmul.f32 %v555, %v563
        %v571 = vmul.f32 %v556, %v563
        %v572 = vmul.f32 %v557, %v563
        %s573 = scalar_lea.vmem %s501, 32 [#allocation2]
        %v574 = vld [vmem:[%s573] sm:$0xf]
        %v575 = vld [vmem:[%s573 + $0x4] sm:$0xf]
        %v576 = vld [vmem:[%s573 + $0x8] sm:$0xf]
        %v577 = vld [vmem:[%s573 + $0xc] sm:$0xf]
        %v578 = vld [vmem:[%s573 + $0x10] sm:$0xf]
        %v579 = vld [vmem:[%s573 + $0x14] sm:$0xf]
        %v580 = vld [vmem:[%s573 + $0x18] sm:$0xf]
        %v581 = vld [vmem:[%s573 + $0x1c] sm:$0xf]
        %v582 = vunpack.c.l.bf16 %v574
        %v583 = vunpack.c.l.bf16 %v575
        %v584 = vunpack.c.l.bf16 %v576
        %v585 = vunpack.c.l.bf16 %v577
        %v586 = vunpack.c.l.bf16 %v578
        %v587 = vunpack.c.l.bf16 %v579
        %v588 = vunpack.c.l.bf16 %v580
        %v589 = vunpack.c.l.bf16 %v581
        %s590 = scalar_lea.vmem %s1, 1
        %v591 = vld [vmem:[%s590] sm:$0x1]
        %v593 = vlaneseq
        %v594 = vshrl.u32 %v593, 7
        %v595 = vsub.s32 0, %v594
        %v596 = vrot.slane %v591, %v595
        %v598 = vmul.f32 %v582, %v596
        %v599 = vmul.f32 %v583, %v596
        %v600 = vmul.f32 %v584, %v596
        %v601 = vmul.f32 %v585, %v596
        %v602 = vmul.f32 %v586, %v596
        %v603 = vmul.f32 %v587, %v596
        %v604 = vmul.f32 %v588, %v596
        %v605 = vmul.f32 %v589, %v596
        %v606 = vadd.f32 %v565, %v598
        %v607 = vadd.f32 %v566, %v599
        %v608 = vadd.f32 %v567, %v600
        %v609 = vadd.f32 %v568, %v601
        %v610 = vadd.f32 %v569, %v602
        %v611 = vadd.f32 %v570, %v603
        %v612 = vadd.f32 %v571, %v604
        %v613 = vadd.f32 %v572, %v605
        %v614 = vadd.f32 %v550, %v582
        %v615 = vadd.f32 %v551, %v583
        %v616 = vadd.f32 %v552, %v584
        %v617 = vadd.f32 %v553, %v585
        %v618 = vadd.f32 %v554, %v586
        %v619 = vadd.f32 %v555, %v587
        %v620 = vadd.f32 %v556, %v588
        %v621 = vadd.f32 %v557, %v589
        %s622 = scalar_lea.vmem %s501, 64 [#allocation2]
        %v623 = vld [vmem:[%s622] sm:$0xf]
        %v624 = vld [vmem:[%s622 + $0x4] sm:$0xf]
        %v625 = vld [vmem:[%s622 + $0x8] sm:$0xf]
        %v626 = vld [vmem:[%s622 + $0xc] sm:$0xf]
        %v627 = vld [vmem:[%s622 + $0x10] sm:$0xf]
        %v628 = vld [vmem:[%s622 + $0x14] sm:$0xf]
        %v629 = vld [vmem:[%s622 + $0x18] sm:$0xf]
        %v630 = vld [vmem:[%s622 + $0x1c] sm:$0xf]
        %v631 = vunpack.c.l.bf16 %v623
        %v632 = vunpack.c.l.bf16 %v624
        %v633 = vunpack.c.l.bf16 %v625
        %v634 = vunpack.c.l.bf16 %v626
        %v635 = vunpack.c.l.bf16 %v627
        %v636 = vunpack.c.l.bf16 %v628
        %v637 = vunpack.c.l.bf16 %v629
        %v638 = vunpack.c.l.bf16 %v630
        %s639 = scalar_lea.vmem %s1, 2
        %v640 = vld [vmem:[%s639] sm:$0x1]
        %v642 = vlaneseq
        %v643 = vshrl.u32 %v642, 7
        %v644 = vsub.s32 0, %v643
        %v645 = vrot.slane %v640, %v644
        %v647 = vmul.f32 %v631, %v645
        %v648 = vmul.f32 %v632, %v645
        %v649 = vmul.f32 %v633, %v645
        %v650 = vmul.f32 %v634, %v645
        %v651 = vmul.f32 %v635, %v645
        %v652 = vmul.f32 %v636, %v645
        %v653 = vmul.f32 %v637, %v645
        %v654 = vmul.f32 %v638, %v645
        %v655 = vadd.f32 %v606, %v647
        %v656 = vadd.f32 %v607, %v648
        %v657 = vadd.f32 %v608, %v649
        %v658 = vadd.f32 %v609, %v650
        %v659 = vadd.f32 %v610, %v651
        %v660 = vadd.f32 %v611, %v652
        %v661 = vadd.f32 %v612, %v653
        %v662 = vadd.f32 %v613, %v654
        %v663 = vadd.f32 %v614, %v631
        %v664 = vadd.f32 %v615, %v632
        %v665 = vadd.f32 %v616, %v633
        %v666 = vadd.f32 %v617, %v634
        %v667 = vadd.f32 %v618, %v635
        %v668 = vadd.f32 %v619, %v636
        %v669 = vadd.f32 %v620, %v637
        %v670 = vadd.f32 %v621, %v638
        %s671 = scalar_lea.vmem %s501, 96 [#allocation2]
        %v672 = vld [vmem:[%s671] sm:$0xf]
        %v673 = vld [vmem:[%s671 + $0x4] sm:$0xf]
        %v674 = vld [vmem:[%s671 + $0x8] sm:$0xf]
        %v675 = vld [vmem:[%s671 + $0xc] sm:$0xf]
        %v676 = vld [vmem:[%s671 + $0x10] sm:$0xf]
        %v677 = vld [vmem:[%s671 + $0x14] sm:$0xf]
        %v678 = vld [vmem:[%s671 + $0x18] sm:$0xf]
        %v679 = vld [vmem:[%s671 + $0x1c] sm:$0xf]
        %v680 = vunpack.c.l.bf16 %v672
        %v681 = vunpack.c.l.bf16 %v673
        %v682 = vunpack.c.l.bf16 %v674
        %v683 = vunpack.c.l.bf16 %v675
        %v684 = vunpack.c.l.bf16 %v676
        %v685 = vunpack.c.l.bf16 %v677
        %v686 = vunpack.c.l.bf16 %v678
        %v687 = vunpack.c.l.bf16 %v679
        %s688 = scalar_lea.vmem %s1, 3
        %v689 = vld [vmem:[%s688] sm:$0x1]
        %v691 = vlaneseq
        %v692 = vshrl.u32 %v691, 7
        %v693 = vsub.s32 0, %v692
        %v694 = vrot.slane %v689, %v693
        %v696 = vmul.f32 %v680, %v694
        %v697 = vmul.f32 %v681, %v694
        %v698 = vmul.f32 %v682, %v694
        %v699 = vmul.f32 %v683, %v694
        %v700 = vmul.f32 %v684, %v694
        %v701 = vmul.f32 %v685, %v694
        %v702 = vmul.f32 %v686, %v694
        %v703 = vmul.f32 %v687, %v694
        %v704 = vadd.f32 %v655, %v696
        %v705 = vadd.f32 %v656, %v697
        %v706 = vadd.f32 %v657, %v698
        %v707 = vadd.f32 %v658, %v699
        %v708 = vadd.f32 %v659, %v700
        %v709 = vadd.f32 %v660, %v701
        %v710 = vadd.f32 %v661, %v702
        %v711 = vadd.f32 %v662, %v703
        %v712 = vadd.f32 %v663, %v680
        %v713 = vadd.f32 %v664, %v681
        %v714 = vadd.f32 %v665, %v682
        %v715 = vadd.f32 %v666, %v683
        %v716 = vadd.f32 %v667, %v684
        %v717 = vadd.f32 %v668, %v685
        %v718 = vadd.f32 %v669, %v686
        %v719 = vadd.f32 %v670, %v687
        %s720 = scalar_lea.vmem %s501, 128 [#allocation2]
        %v721 = vld [vmem:[%s720] sm:$0xf]
        %v722 = vld [vmem:[%s720 + $0x4] sm:$0xf]
        %v723 = vld [vmem:[%s720 + $0x8] sm:$0xf]
        %v724 = vld [vmem:[%s720 + $0xc] sm:$0xf]
        %v725 = vld [vmem:[%s720 + $0x10] sm:$0xf]
        %v726 = vld [vmem:[%s720 + $0x14] sm:$0xf]
        %v727 = vld [vmem:[%s720 + $0x18] sm:$0xf]
        %v728 = vld [vmem:[%s720 + $0x1c] sm:$0xf]
        %v729 = vunpack.c.l.bf16 %v721
        %v730 = vunpack.c.l.bf16 %v722
        %v731 = vunpack.c.l.bf16 %v723
        %v732 = vunpack.c.l.bf16 %v724
        %v733 = vunpack.c.l.bf16 %v725
        %v734 = vunpack.c.l.bf16 %v726
        %v735 = vunpack.c.l.bf16 %v727
        %v736 = vunpack.c.l.bf16 %v728
        %s737 = scalar_lea.vmem %s1, 4
        %v738 = vld [vmem:[%s737] sm:$0x1]
        %v740 = vlaneseq
        %v741 = vshrl.u32 %v740, 7
        %v742 = vsub.s32 0, %v741
        %v743 = vrot.slane %v738, %v742
        %v745 = vmul.f32 %v729, %v743
        %v746 = vmul.f32 %v730, %v743
        %v747 = vmul.f32 %v731, %v743
        %v748 = vmul.f32 %v732, %v743
        %v749 = vmul.f32 %v733, %v743
        %v750 = vmul.f32 %v734, %v743
        %v751 = vmul.f32 %v735, %v743
        %v752 = vmul.f32 %v736, %v743
        %v753 = vadd.f32 %v704, %v745
        %v754 = vadd.f32 %v705, %v746
        %v755 = vadd.f32 %v706, %v747
        %v756 = vadd.f32 %v707, %v748
        %v757 = vadd.f32 %v708, %v749
        %v758 = vadd.f32 %v709, %v750
        %v759 = vadd.f32 %v710, %v751
        %v760 = vadd.f32 %v711, %v752
        %v761 = vadd.f32 %v712, %v729
        %v762 = vadd.f32 %v713, %v730
        %v763 = vadd.f32 %v714, %v731
        %v764 = vadd.f32 %v715, %v732
        %v765 = vadd.f32 %v716, %v733
        %v766 = vadd.f32 %v717, %v734
        %v767 = vadd.f32 %v718, %v735
        %v768 = vadd.f32 %v719, %v736
        %s769 = scalar_lea.vmem %s501, 160 [#allocation2]
        %v770 = vld [vmem:[%s769] sm:$0xf]
        %v771 = vld [vmem:[%s769 + $0x4] sm:$0xf]
        %v772 = vld [vmem:[%s769 + $0x8] sm:$0xf]
        %v773 = vld [vmem:[%s769 + $0xc] sm:$0xf]
        %v774 = vld [vmem:[%s769 + $0x10] sm:$0xf]
        %v775 = vld [vmem:[%s769 + $0x14] sm:$0xf]
        %v776 = vld [vmem:[%s769 + $0x18] sm:$0xf]
        %v777 = vld [vmem:[%s769 + $0x1c] sm:$0xf]
        %v778 = vunpack.c.l.bf16 %v770
        %v779 = vunpack.c.l.bf16 %v771
        %v780 = vunpack.c.l.bf16 %v772
        %v781 = vunpack.c.l.bf16 %v773
        %v782 = vunpack.c.l.bf16 %v774
        %v783 = vunpack.c.l.bf16 %v775
        %v784 = vunpack.c.l.bf16 %v776
        %v785 = vunpack.c.l.bf16 %v777
        %s786 = scalar_lea.vmem %s1, 5
        %v787 = vld [vmem:[%s786] sm:$0x1]
        %v789 = vlaneseq
        %v790 = vshrl.u32 %v789, 7
        %v791 = vsub.s32 0, %v790
        %v792 = vrot.slane %v787, %v791
        %v794 = vmul.f32 %v778, %v792
        %v795 = vmul.f32 %v779, %v792
        %v796 = vmul.f32 %v780, %v792
        %v797 = vmul.f32 %v781, %v792
        %v798 = vmul.f32 %v782, %v792
        %v799 = vmul.f32 %v783, %v792
        %v800 = vmul.f32 %v784, %v792
        %v801 = vmul.f32 %v785, %v792
        %v802 = vadd.f32 %v753, %v794
        %v803 = vadd.f32 %v754, %v795
        %v804 = vadd.f32 %v755, %v796
        %v805 = vadd.f32 %v756, %v797
        %v806 = vadd.f32 %v757, %v798
        %v807 = vadd.f32 %v758, %v799
        %v808 = vadd.f32 %v759, %v800
        %v809 = vadd.f32 %v760, %v801
        %v810 = vadd.f32 %v761, %v778
        %v811 = vadd.f32 %v762, %v779
        %v812 = vadd.f32 %v763, %v780
        %v813 = vadd.f32 %v764, %v781
        %v814 = vadd.f32 %v765, %v782
        %v815 = vadd.f32 %v766, %v783
        %v816 = vadd.f32 %v767, %v784
        %v817 = vadd.f32 %v768, %v785
        %s818 = scalar_lea.vmem %s501, 192 [#allocation2]
        %v819 = vld [vmem:[%s818] sm:$0xf]
        %v820 = vld [vmem:[%s818 + $0x4] sm:$0xf]
        %v821 = vld [vmem:[%s818 + $0x8] sm:$0xf]
        %v822 = vld [vmem:[%s818 + $0xc] sm:$0xf]
        %v823 = vld [vmem:[%s818 + $0x10] sm:$0xf]
        %v824 = vld [vmem:[%s818 + $0x14] sm:$0xf]
        %v825 = vld [vmem:[%s818 + $0x18] sm:$0xf]
        %v826 = vld [vmem:[%s818 + $0x1c] sm:$0xf]
        %v827 = vunpack.c.l.bf16 %v819
        %v828 = vunpack.c.l.bf16 %v820
        %v829 = vunpack.c.l.bf16 %v821
        %v830 = vunpack.c.l.bf16 %v822
        %v831 = vunpack.c.l.bf16 %v823
        %v832 = vunpack.c.l.bf16 %v824
        %v833 = vunpack.c.l.bf16 %v825
        %v834 = vunpack.c.l.bf16 %v826
        %s835 = scalar_lea.vmem %s1, 6
        %v836 = vld [vmem:[%s835] sm:$0x1]
        %v838 = vlaneseq
        %v839 = vshrl.u32 %v838, 7
        %v840 = vsub.s32 0, %v839
        %v841 = vrot.slane %v836, %v840
        %v843 = vmul.f32 %v827, %v841
        %v844 = vmul.f32 %v828, %v841
        %v845 = vmul.f32 %v829, %v841
        %v846 = vmul.f32 %v830, %v841
        %v847 = vmul.f32 %v831, %v841
        %v848 = vmul.f32 %v832, %v841
        %v849 = vmul.f32 %v833, %v841
        %v850 = vmul.f32 %v834, %v841
        %v851 = vadd.f32 %v802, %v843
        %v852 = vadd.f32 %v803, %v844
        %v853 = vadd.f32 %v804, %v845
        %v854 = vadd.f32 %v805, %v846
        %v855 = vadd.f32 %v806, %v847
        %v856 = vadd.f32 %v807, %v848
        %v857 = vadd.f32 %v808, %v849
        %v858 = vadd.f32 %v809, %v850
        %v859 = vadd.f32 %v810, %v827
        %v860 = vadd.f32 %v811, %v828
        %v861 = vadd.f32 %v812, %v829
        %v862 = vadd.f32 %v813, %v830
        %v863 = vadd.f32 %v814, %v831
        %v864 = vadd.f32 %v815, %v832
        %v865 = vadd.f32 %v816, %v833
        %v866 = vadd.f32 %v817, %v834
        %s867 = scalar_lea.vmem %s501, 224 [#allocation2]
        %v868 = vld [vmem:[%s867] sm:$0xf]
        %v869 = vld [vmem:[%s867 + $0x4] sm:$0xf]
        %v870 = vld [vmem:[%s867 + $0x8] sm:$0xf]
        %v871 = vld [vmem:[%s867 + $0xc] sm:$0xf]
        %v872 = vld [vmem:[%s867 + $0x10] sm:$0xf]
        %v873 = vld [vmem:[%s867 + $0x14] sm:$0xf]
        %v874 = vld [vmem:[%s867 + $0x18] sm:$0xf]
        %v875 = vld [vmem:[%s867 + $0x1c] sm:$0xf]
        %v876 = vunpack.c.l.bf16 %v868
        %v877 = vunpack.c.l.bf16 %v869
        %v878 = vunpack.c.l.bf16 %v870
        %v879 = vunpack.c.l.bf16 %v871
        %v880 = vunpack.c.l.bf16 %v872
        %v881 = vunpack.c.l.bf16 %v873
        %v882 = vunpack.c.l.bf16 %v874
        %v883 = vunpack.c.l.bf16 %v875
        %s884 = scalar_lea.vmem %s1, 7
        %v885 = vld [vmem:[%s884] sm:$0x1]
        %v887 = vlaneseq
        %v888 = vshrl.u32 %v887, 7
        %v889 = vsub.s32 0, %v888
        %v890 = vrot.slane %v885, %v889
        %v892 = vmul.f32 %v876, %v890
        %v893 = vmul.f32 %v877, %v890
        %v894 = vmul.f32 %v878, %v890
        %v895 = vmul.f32 %v879, %v890
        %v896 = vmul.f32 %v880, %v890
        %v897 = vmul.f32 %v881, %v890
        %v898 = vmul.f32 %v882, %v890
        %v899 = vmul.f32 %v883, %v890
        %v900 = vadd.f32 %v851, %v892
        %v901 = vadd.f32 %v852, %v893
        %v902 = vadd.f32 %v853, %v894
        %v903 = vadd.f32 %v854, %v895
        %v904 = vadd.f32 %v855, %v896
        %v905 = vadd.f32 %v856, %v897
        %v906 = vadd.f32 %v857, %v898
        %v907 = vadd.f32 %v858, %v899
        %v908 = vadd.f32 %v859, %v876
        %v909 = vadd.f32 %v860, %v877
        %v910 = vadd.f32 %v861, %v878
        %v911 = vadd.f32 %v862, %v879
        %v912 = vadd.f32 %v863, %v880
        %v913 = vadd.f32 %v864, %v881
        %v914 = vadd.f32 %v865, %v882
        %v915 = vadd.f32 %v866, %v883
        %s916 = scalar_lea.vmem %s501, 256 [#allocation2]
        %v917 = vld [vmem:[%s916] sm:$0xf]
        %v918 = vld [vmem:[%s916 + $0x4] sm:$0xf]
        %v919 = vld [vmem:[%s916 + $0x8] sm:$0xf]
        %v920 = vld [vmem:[%s916 + $0xc] sm:$0xf]
        %v921 = vld [vmem:[%s916 + $0x10] sm:$0xf]
        %v922 = vld [vmem:[%s916 + $0x14] sm:$0xf]
        %v923 = vld [vmem:[%s916 + $0x18] sm:$0xf]
        %v924 = vld [vmem:[%s916 + $0x1c] sm:$0xf]
        %v925 = vunpack.c.l.bf16 %v917
        %v926 = vunpack.c.l.bf16 %v918
        %v927 = vunpack.c.l.bf16 %v919
        %v928 = vunpack.c.l.bf16 %v920
        %v929 = vunpack.c.l.bf16 %v921
        %v930 = vunpack.c.l.bf16 %v922
        %v931 = vunpack.c.l.bf16 %v923
        %v932 = vunpack.c.l.bf16 %v924
        %s933 = scalar_lea.vmem %s1, 8
        %v934 = vld [vmem:[%s933] sm:$0x1]
        %v936 = vlaneseq
        %v937 = vshrl.u32 %v936, 7
        %v938 = vsub.s32 0, %v937
        %v939 = vrot.slane %v934, %v938
        %v941 = vmul.f32 %v925, %v939
        %v942 = vmul.f32 %v926, %v939
        %v943 = vmul.f32 %v927, %v939
        %v944 = vmul.f32 %v928, %v939
        %v945 = vmul.f32 %v929, %v939
        %v946 = vmul.f32 %v930, %v939
        %v947 = vmul.f32 %v931, %v939
        %v948 = vmul.f32 %v932, %v939
        %v949 = vadd.f32 %v900, %v941
        %v950 = vadd.f32 %v901, %v942
        %v951 = vadd.f32 %v902, %v943
        %v952 = vadd.f32 %v903, %v944
        %v953 = vadd.f32 %v904, %v945
        %v954 = vadd.f32 %v905, %v946
        %v955 = vadd.f32 %v906, %v947
        %v956 = vadd.f32 %v907, %v948
        %v957 = vadd.f32 %v908, %v925
        %v958 = vadd.f32 %v909, %v926
        %v959 = vadd.f32 %v910, %v927
        %v960 = vadd.f32 %v911, %v928
        %v961 = vadd.f32 %v912, %v929
        %v962 = vadd.f32 %v913, %v930
        %v963 = vadd.f32 %v914, %v931
        %v964 = vadd.f32 %v915, %v932
        %v965 = vld [vmem:[%s2] sm:$0x1]
        %v967 = vlaneseq
        %v968 = vshrl.u32 %v967, 7
        %v969 = vsub.s32 0, %v968
        %v970 = vrot.slane %v965, %v969
        %v972 = vadd.f32 %v949, %v970
        %v973 = vadd.f32 %v950, %v970
        %v974 = vadd.f32 %v951, %v970
        %v975 = vadd.f32 %v952, %v970
        %v976 = vadd.f32 %v953, %v970
        %v977 = vadd.f32 %v954, %v970
        %v978 = vadd.f32 %v955, %v970
        %v979 = vadd.f32 %v956, %v970
        %v980 = vpack.c.bf16 %v973, %v972
        %v981 = vpack.c.bf16 %v975, %v974
        %v982 = vpack.c.bf16 %v977, %v976
        %v983 = vpack.c.bf16 %v979, %v978
        %v988 = vunpack.c.l.b16 %v980
        %v989 = vunpack.c.h.b16 %v980
        %v990 = vunpack.c.l.b16 %v981
        %v991 = vunpack.c.h.b16 %v981
        %v992 = vunpack.c.l.b16 %v982
        %v993 = vunpack.c.h.b16 %v982
        %v994 = vunpack.c.l.b16 %v983
        %v995 = vunpack.c.h.b16 %v983
        %v996 = vpack.c.b16 %v988, %v988
        %v997 = vpack.c.b16 %v989, %v989
        %v998 = vpack.c.b16 %v990, %v990
        %v999 = vpack.c.b16 %v991, %v991
        %v1000 = vpack.c.b16 %v992, %v992
        %v1001 = vpack.c.b16 %v993, %v993
        %v1002 = vpack.c.b16 %v994, %v994
        %v1003 = vpack.c.b16 %v995, %v995
        %1012 = vst [vmem:[%s534] sm:$0xf] %v996
        %1013 = vst [vmem:[%s534 + $0x4] sm:$0xf] %v997
        %1014 = vst [vmem:[%s534 + $0x8] sm:$0xf] %v998
        %1015 = vst [vmem:[%s534 + $0xc] sm:$0xf] %v999
        %1016 = vst [vmem:[%s534 + $0x10] sm:$0xf] %v1000
        %1017 = vst [vmem:[%s534 + $0x14] sm:$0xf] %v1001
        %1018 = vst [vmem:[%s534 + $0x18] sm:$0xf] %v1002
        %1019 = vst [vmem:[%s534 + $0x1c] sm:$0xf] %v1003
        %v1020 = vmul.f32 %v957, 0.11111111
        %v1021 = vmul.f32 %v958, 0.11111111
        %v1022 = vmul.f32 %v959, 0.11111111
        %v1023 = vmul.f32 %v960, 0.11111111
        %v1024 = vmul.f32 %v961, 0.11111111
        %v1025 = vmul.f32 %v962, 0.11111111
        %v1026 = vmul.f32 %v963, 0.11111111
        %v1027 = vmul.f32 %v964, 0.11111111
        %v1028 = vpack.c.bf16 %v1021, %v1020
        %v1029 = vpack.c.bf16 %v1023, %v1022
        %v1030 = vpack.c.bf16 %v1025, %v1024
        %v1031 = vpack.c.bf16 %v1027, %v1026
        %v1036 = vunpack.c.l.b16 %v1028
        %v1037 = vunpack.c.h.b16 %v1028
        %v1038 = vunpack.c.l.b16 %v1029
        %v1039 = vunpack.c.h.b16 %v1029
        %v1040 = vunpack.c.l.b16 %v1030
        %v1041 = vunpack.c.h.b16 %v1030
        %v1042 = vunpack.c.l.b16 %v1031
        %v1043 = vunpack.c.h.b16 %v1031
        %v1044 = vpack.c.b16 %v1036, %v1036
        %v1045 = vpack.c.b16 %v1037, %v1037
        %v1046 = vpack.c.b16 %v1038, %v1038
        %v1047 = vpack.c.b16 %v1039, %v1039
        %v1048 = vpack.c.b16 %v1040, %v1040
        %v1049 = vpack.c.b16 %v1041, %v1041
        %v1050 = vpack.c.b16 %v1042, %v1042
        %v1051 = vpack.c.b16 %v1043, %v1043
        %1060 = vst [vmem:[%s540] sm:$0xf] %v1044
        %1061 = vst [vmem:[%s540 + $0x4] sm:$0xf] %v1045
        %1062 = vst [vmem:[%s540 + $0x8] sm:$0xf] %v1046
        %1063 = vst [vmem:[%s540 + $0xc] sm:$0xf] %v1047
        %1064 = vst [vmem:[%s540 + $0x10] sm:$0xf] %v1048
        %1065 = vst [vmem:[%s540 + $0x14] sm:$0xf] %v1049
        %1066 = vst [vmem:[%s540 + $0x18] sm:$0xf] %v1050
        %1067 = vst [vmem:[%s540 + $0x1c] sm:$0xf] %v1051
        %s1068 = smul.u32 8, %s16
        %p1069 = scmp.lt.s32.totalorder %s1068, 15
        %s1070 = scalar_select %p1069, %s1068, 15
        %s1071 = smul.addr %s1070, 4
        %s1072 = scalar_lea.vmem %s3, %s1071
        %s1073 = smul.u32 8, %s16
        %p1074 = scmp.lt.s32.totalorder %s1073, 15
        %s1075 = scalar_select %p1074, %s1073, 15
        %s1076 = smul.addr %s1075, 4
        %s1077 = scalar_lea.vmem %s4, %s1076
        // Predicated region
        $region74: #{_lambda_.32} parent=68 // pred_check
          %p1078 = pneg %p102
        $region75: #{_lambda_.32} parent=68 // pred_check_branch
          %1080 = sbr.rel (%p1078) target = $region77
        $region76: #{_lambda_.32} parent=68 // pred_region
          %s1081 = smul.u32 8, %s16
        $region77: #{_lambda_.32} parent=68 // pred_fallthru
          _
        // Predicated region
        $region78: #{_lambda_.32} parent=68 // pred_check
          %p1082 = pneg %p128
        $region79: #{_lambda_.32} parent=68 // pred_check_branch
          %1084 = sbr.rel (%p1082) target = $region81
        $region80: #{_lambda_.32} parent=68 // pred_region
          %s1085 = smul.u32 8, %s16
        $region81: #{_lambda_.32} parent=68 // pred_fallthru
          _
      $region69: #{_lambda_.32} parent=5 // pred_fallthru
        _
      %p1086 = scmp.le.s32.totalorder 2, %s11
      // Predicated region
      $region82: #{_lambda_.32} parent=5 // pred_check
        %p1087 = pneg %p1086
      $region83: #{_lambda_.32} parent=5 // pred_check_branch
        %1089 = sbr.rel (%p1087) target = $region85
      $region84: #{_lambda_.32} parent=5 // pred_region
        %s1090 = ssub.s32 %s11, 2
        // Predicated region
        $region86: #{_lambda_.32} parent=84 // pred_check
          %p1091 = pneg %p108
        $region87: #{_lambda_.32} parent=84 // pred_check_branch
          %1093 = sbr.rel (%p1091) target = $region89
        $region88: #{_lambda_.32} parent=84 // pred_region
          %s1094 = smul.u32 8, %s17
          %p1095 = scmp.lt.s32.totalorder %s1094, 15
          %s1096 = scalar_select %p1095, %s1094, 15
          %s1097 = smul.addr %s1096, 4
          %s1098 = scalar_lea.vmem %s3, %s1097
        $region89: #{_lambda_.32} parent=84 // pred_fallthru
          _
        // Predicated region
        $region90: #{_lambda_.32} parent=84 // pred_check
          %p1099 = pneg %p134
        $region91: #{_lambda_.32} parent=84 // pred_check_branch
          %1101 = sbr.rel (%p1099) target = $region93
        $region92: #{_lambda_.32} parent=84 // pred_region
          %s1102 = smul.u32 8, %s17
          %p1103 = scmp.lt.s32.totalorder %s1102, 15
          %s1104 = scalar_select %p1103, %s1102, 15
          %s1105 = smul.addr %s1104, 4
          %s1106 = scalar_lea.vmem %s4, %s1105
        $region93: #{_lambda_.32} parent=84 // pred_fallthru
          _
      $region85: #{_lambda_.32} parent=5 // pred_fallthru
        _
    $region6: #{_lambda_.32} parent=1 // loop_footer
      %s15 = sadd.s32 1, %s11
    $region7: #{_lambda_.32} parent=1 // loop_footer_branch
      %10 = sbr.rel target = $region3
    $region8: #{_lambda_.32} parent=1 // loop_exit
      _

// kernel: _lambda_.33
$region0: #{_lambda_.33}
  #allocation0 [shape = 'u32[]', space=smem, size = 0x4, offset = 0x4, fixed_abs, tag = 'smem constant byte address 0x4 - core index']
  #allocation1 [shape = 'u32[144,128]{1,0:T(1,128)}', space=vmem, size = 0x12000, scoped, tag = 'internal scratch']
  %s0 = inlined_call_operand.vmem [shape: bf16[128,288], index: 0, kind: input, shape index: {}]
  %s1 = inlined_call_operand.vmem [shape: bf16[288,128], index: 1, kind: input, shape index: {}]
  %s2 = inlined_call_operand.vmem [shape: f32[1,128], index: 2, kind: input, shape index: {}]
  %s3 = inlined_call_operand.vmem [shape: bf16[128,128], index: 3, kind: output, shape index: {}]
  %s4 = sld [smem:[#allocation0]]
  $region45: #{_lambda_.33} parent=0
    _
  %s6 = ssub.s32 1, %s4
  %s7 = scalar_select 0, %s6, %s4
  loop: start=0, step=1, limit=4
  $region2: #{_lambda_.33} parent=0 // loop_pre_header
    _
  $region3: #{_lambda_.33} parent=0 // loop_header
    %s9 = sphi 0, %s13
    %p10 = scmp.ge.s32.totalorder %s9, 4
    %s19 = sphi 0, %s21
    %s22 = sphi 0, %s19
    %s23 = sphi 0, %s22
    %s39 = sphi 0, %s23
    %s43 = sphi 0, %s43
    %s45 = sphi 0, %s43
    %s46 = sphi 0, %s45
    %s60 = sphi 0, %s46
    %s64 = sphi 0, %s64
    %s66 = sphi 0, %s64
    %s67 = sphi 0, %s66
    %s81 = sphi 0, %s67
    %s87 = sphi 0, %s89
    %s90 = sphi 0, %s87
    %s91 = sphi 0, %s90
    %s107 = sphi 0, %s91
  $region4: #{_lambda_.33} parent=0 // loop_header_branch
    %12 = sbr.rel (%p10) target = $region8
  $region5: #{_lambda_.33} parent=0 // loop_body
    %s14 = ssub.s32 %s9, 1
    %s15 = ssub.s32 %s9, 2
    %s16 = sadd.s32 %s9, 1
    %s17 = ssub.s32 %s9, %s16
    %p18 = scmp.eq.s32.totalorder %s17, 0
    %s20 = sadd.s32 %s19, 1
    %s21 = scalar_select %p18, %s19, %s20
    %p24 = pneg %p18
    %p25 = scmp.eq.s32.totalorder %s9, 1
    %p26 = por %p24, %p25
    %p27 = scmp.ne.s32.totalorder %s19, %s22
    %p28 = scmp.eq.s32.totalorder %s9, 0
    %p29 = por %p27, %p28
    %p30 = scmp.ne.s32.totalorder %s19, %s22
    %p31 = scmp.eq.s32.totalorder %s14, 1
    %p32 = por %p30, %p31
    %p33 = scmp.ne.s32.totalorder %s22, %s23
    %p34 = scmp.eq.s32.totalorder %s14, 0
    %p35 = por %p33, %p34
    %p36 = scmp.ne.s32.totalorder %s22, %s23
    %p37 = scmp.eq.s32.totalorder %s15, 1
    %p38 = por %p36, %p37
    %p40 = scmp.ne.s32.totalorder %s23, %s39
    %p41 = scmp.eq.s32.totalorder %s15, 0
    %p42 = por %p40, %p41
    %s44 = sadd.s32 %s43, 1
    %p47 = scmp.eq.s32.totalorder %s9, 1
    %p48 = scmp.ne.s32.totalorder %s43, %s45
    %p49 = scmp.eq.s32.totalorder %s9, 0
    %p50 = por %p48, %p49
    %p51 = scmp.ne.s32.totalorder %s43, %s45
    %p52 = scmp.eq.s32.totalorder %s14, 1
    %p53 = por %p51, %p52
    %p54 = scmp.ne.s32.totalorder %s45, %s46
    %p55 = scmp.eq.s32.totalorder %s14, 0
    %p56 = por %p54, %p55
    %p57 = scmp.ne.s32.totalorder %s45, %s46
    %p58 = scmp.eq.s32.totalorder %s15, 1
    %p59 = por %p57, %p58
    %p61 = scmp.ne.s32.totalorder %s46, %s60
    %p62 = scmp.eq.s32.totalorder %s15, 0
    %p63 = por %p61, %p62
    %s65 = sadd.s32 %s64, 1
    %p68 = scmp.eq.s32.totalorder %s9, 1
    %p69 = scmp.ne.s32.totalorder %s64, %s66
    %p70 = scmp.eq.s32.totalorder %s9, 0
    %p71 = por %p69, %p70
    %p72 = scmp.ne.s32.totalorder %s64, %s66
    %p73 = scmp.eq.s32.totalorder %s14, 1
    %p74 = por %p72, %p73
    %p75 = scmp.ne.s32.totalorder %s66, %s67
    %p76 = scmp.eq.s32.totalorder %s14, 0
    %p77 = por %p75, %p76
    %p78 = scmp.ne.s32.totalorder %s66, %s67
    %p79 = scmp.eq.s32.totalorder %s15, 1
    %p80 = por %p78, %p79
    %p82 = scmp.ne.s32.totalorder %s67, %s81
    %p83 = scmp.eq.s32.totalorder %s15, 0
    %p84 = por %p82, %p83
    %s85 = ssub.s32 %s9, %s16
    %p86 = scmp.eq.s32.totalorder %s85, 0
    %s88 = sadd.s32 %s87, 1
    %s89 = scalar_select %p86, %s87, %s88
    %p92 = pneg %p86
    %p93 = scmp.eq.s32.totalorder %s9, 1
    %p94 = por %p92, %p93
    %p95 = scmp.ne.s32.totalorder %s87, %s90
    %p96 = scmp.eq.s32.totalorder %s9, 0
    %p97 = por %p95, %p96
    %p98 = scmp.ne.s32.totalorder %s87, %s90
    %p99 = scmp.eq.s32.totalorder %s14, 1
    %p100 = por %p98, %p99
    %p101 = scmp.ne.s32.totalorder %s90, %s91
    %p102 = scmp.eq.s32.totalorder %s14, 0
    %p103 = por %p101, %p102
    %p104 = scmp.ne.s32.totalorder %s90, %s91
    %p105 = scmp.eq.s32.totalorder %s15, 1
    %p106 = por %p104, %p105
    %p108 = scmp.ne.s32.totalorder %s91, %s107
    %p109 = scmp.eq.s32.totalorder %s15, 0
    %p110 = por %p108, %p109
    %p111 = scmp.le.s32.totalorder 1, %s9
    %p112 = scmp.lt.s32.totalorder %s9, 3
    %p113 = pnand %p111, %p112
    %p114 = pneg %p113
    // Predicated region
    $region9: #{_lambda_.33} parent=5 // pred_check
      _
    $region10: #{_lambda_.33} parent=5 // pred_check_branch
      %116 = sbr.rel (%p113) target = $region12
    $region11: #{_lambda_.33} parent=5 // pred_region
      %s117 = ssub.s32 %s9, 1
      // Predicated region
      $region13: #{_lambda_.33} parent=11 // pred_check
        %p118 = pneg %p56
      $region14: #{_lambda_.33} parent=11 // pred_check_branch
        %120 = sbr.rel (%p118) target = $region16
      $region15: #{_lambda_.33} parent=11 // pred_region
        _
      $region16: #{_lambda_.33} parent=11 // pred_fallthru
        _
      // Predicated region
      $region17: #{_lambda_.33} parent=11 // pred_check
        %p121 = pneg %p77
      $region18: #{_lambda_.33} parent=11 // pred_check_branch
        %123 = sbr.rel (%p121) target = $region20
      $region19: #{_lambda_.33} parent=11 // pred_region
        _
      $region20: #{_lambda_.33} parent=11 // pred_fallthru
        _
    $region12: #{_lambda_.33} parent=5 // pred_fallthru
      _
    %p124 = scmp.lt.s32.totalorder %s9, 2
    // Predicated region
    $region21: #{_lambda_.33} parent=5 // pred_check
      %p125 = pneg %p124
    $region22: #{_lambda_.33} parent=5 // pred_check_branch
      %127 = sbr.rel (%p125) target = $region24
    $region23: #{_lambda_.33} parent=5 // pred_region
      // Predicated region
      $region25: #{_lambda_.33} parent=23 // pred_check
        %p128 = pneg %p29
      $region26: #{_lambda_.33} parent=23 // pred_check_branch
        %130 = sbr.rel (%p128) target = $region28
      $region27: #{_lambda_.33} parent=23 // pred_region
        %s131 = smul.u32 8, %s9
        %p132 = scmp.lt.s32.totalorder %s131, 15
        %s133 = scalar_select %p132, %s131, 15
        %s134 = smul.addr %s133, 3
        %s135 = smul.addr %s134, 4
        %s136 = scalar_lea.vmem %s0, %s135
        %s137 = smul.u32 8, %s9
      $region28: #{_lambda_.33} parent=23 // pred_fallthru
        _
    $region24: #{_lambda_.33} parent=5 // pred_fallthru
      _
    %p138 = scmp.le.s32.totalorder 1, %s9
    %p139 = scmp.lt.s32.totalorder %s9, 3
    %p140 = pnand %p138, %p139
    %p141 = pneg %p140
    // Predicated region
    $region29: #{_lambda_.33} parent=5 // pred_check
      _
    $region30: #{_lambda_.33} parent=5 // pred_check_branch
      %143 = sbr.rel (%p140) target = $region32
    $region31: #{_lambda_.33} parent=5 // pred_region
      %s144 = ssub.s32 %s9, 1
      %s145 = smul.u32 8, %s14
      %p146 = scmp.lt.s32.totalorder %s145, 15
      %s147 = scalar_select %p146, %s145, 15
      %s148 = smul.addr %s147, 3
      %s149 = smul.addr %s148, 4
      %s150 = scalar_lea.vmem %s0, %s149
      %p151 = pneg %p35
      %p152 = pneg %p32
      %p153 = pneg %p56
      %p154 = pneg %p53
      %p155 = pneg %p77
      %p156 = pneg %p74
      %p157 = pneg %p103
      %p158 = pneg %p100
      %s159 = smul.u32 8, %s14
      %p160 = scmp.lt.s32.totalorder %s159, 15
      %s161 = scalar_select %p160, %s159, 15
      %s162 = smul.addr %s161, 4
      %s163 = scalar_lea.vmem %s3, %s162
      %s164 = smul.u32 8, %s14
      %p165 = scmp.lt.s32.totalorder %s164, 15
      %s166 = scalar_select %p165, %s164, 15
      %s167 = smul.addr %s166, 3
      %s168 = smul.addr %s167, 4
      %s169 = scalar_lea.vmem %s0, %s168
      %s170 = smul.u32 8, %s14
      %s171 = smul.u32 8, %s14
      %p172 = scmp.lt.s32.totalorder %s171, 15
      %s173 = scalar_select %p172, %s171, 15
      %s174 = smul.addr %s173, 4
      %s175 = scalar_lea.vmem %s3, %s174
      %s176 = smul.u32 8, %s14
      %v178 = vld [vmem:[%s169] sm:$0xff]
      %v179 = vld [vmem:[%s169 + $0x8] sm:$0xf]
      %v180 = vld [vmem:[%s169 + $0xc] sm:$0xff]
      %v181 = vld [vmem:[%s169 + $0x14] sm:$0xf]
      %v182 = vld [vmem:[%s169 + $0x18] sm:$0xff]
      %v183 = vld [vmem:[%s169 + $0x20] sm:$0xf]
      %v184 = vld [vmem:[%s169 + $0x24] sm:$0xff]
      %v185 = vld [vmem:[%s169 + $0x2c] sm:$0xf]
      %v186 = vld [vmem:[%s169 + $0x30] sm:$0xff]
      %v187 = vld [vmem:[%s169 + $0x38] sm:$0xf]
      %v188 = vld [vmem:[%s169 + $0x3c] sm:$0xff]
      %v189 = vld [vmem:[%s169 + $0x44] sm:$0xf]
      %v190 = vld [vmem:[%s169 + $0x48] sm:$0xff]
      %v191 = vld [vmem:[%s169 + $0x50] sm:$0xf]
      %v192 = vld [vmem:[%s169 + $0x54] sm:$0xff]
      %v193 = vld [vmem:[%s169 + $0x5c] sm:$0xf]
      %v194 = vld [vmem:[%s1] sm:$0xf]
      %v195 = vld [vmem:[%s1 + $0x4] sm:$0xf]
      %v196 = vld [vmem:[%s1 + $0x8] sm:$0xf]
      %v197 = vld [vmem:[%s1 + $0xc] sm:$0xf]
      %v198 = vld [vmem:[%s1 + $0x10] sm:$0xf]
      %v199 = vld [vmem:[%s1 + $0x14] sm:$0xf]
      %v200 = vld [vmem:[%s1 + $0x18] sm:$0xf]
      %v201 = vld [vmem:[%s1 + $0x1c] sm:$0xf]
      %v202 = vld [vmem:[%s1 + $0x20] sm:$0xf]
      %v203 = vld [vmem:[%s1 + $0x24] sm:$0xf]
      %v204 = vld [vmem:[%s1 + $0x28] sm:$0xf]
      %v205 = vld [vmem:[%s1 + $0x2c] sm:$0xf]
      %v206 = vld [vmem:[%s1 + $0x30] sm:$0xf]
      %v207 = vld [vmem:[%s1 + $0x34] sm:$0xf]
      %v208 = vld [vmem:[%s1 + $0x38] sm:$0xf]
      %v209 = vld [vmem:[%s1 + $0x3c] sm:$0xf]
      %v210 = vld [vmem:[%s1 + $0x40] sm:$0xf]
      %v211 = vld [vmem:[%s1 + $0x44] sm:$0xf]
      %v212 = vld [vmem:[%s1 + $0x48] sm:$0xf]
      %v213 = vld [vmem:[%s1 + $0x4c] sm:$0xf]
      %v214 = vld [vmem:[%s1 + $0x50] sm:$0xf]
      %v215 = vld [vmem:[%s1 + $0x54] sm:$0xf]
      %v216 = vld [vmem:[%s1 + $0x58] sm:$0xf]
      %v217 = vld [vmem:[%s1 + $0x5c] sm:$0xf]
      %v218 = vld [vmem:[%s1 + $0x60] sm:$0xf]
      %v219 = vld [vmem:[%s1 + $0x64] sm:$0xf]
      %v220 = vld [vmem:[%s1 + $0x68] sm:$0xf]
      %v221 = vld [vmem:[%s1 + $0x6c] sm:$0xf]
      %v222 = vld [vmem:[%s1 + $0x70] sm:$0xf]
      %v223 = vld [vmem:[%s1 + $0x74] sm:$0xf]
      %v224 = vld [vmem:[%s1 + $0x78] sm:$0xf]
      %v225 = vld [vmem:[%s1 + $0x7c] sm:$0xf]
      %v226 = vld [vmem:[%s1 + $0x80] sm:$0xf]
      %v227 = vld [vmem:[%s1 + $0x84] sm:$0xf]
      %v228 = vld [vmem:[%s1 + $0x88] sm:$0xf]
      %v229 = vld [vmem:[%s1 + $0x8c] sm:$0xf]
      %v230 = vld [vmem:[%s2] sm:$0x1]
      %v232 = vlaneseq
      %v233 = vshrl.u32 %v232, 7
      %v234 = vsub.s32 0, %v233
      %v235 = vrot.slane %v230, %v234
      %v253 = vunpack.c.l.b16 %v178
      %v254 = vunpack.c.h.b16 %v178
      %v255 = vunpack.c.l.b16 %v179
      %v256 = vunpack.c.l.b16 %v180
      %v257 = vunpack.c.h.b16 %v180
      %v258 = vunpack.c.l.b16 %v181
      %v259 = vunpack.c.l.b16 %v182
      %v260 = vunpack.c.h.b16 %v182
      %v261 = vunpack.c.l.b16 %v183
      %v262 = vunpack.c.l.b16 %v184
      %v263 = vunpack.c.h.b16 %v184
      %v264 = vunpack.c.l.b16 %v185
      %v265 = vunpack.c.l.b16 %v186
      %v266 = vunpack.c.h.b16 %v186
      %v267 = vunpack.c.l.b16 %v187
      %v268 = vunpack.c.l.b16 %v188
      %v269 = vunpack.c.h.b16 %v188
      %v270 = vunpack.c.l.b16 %v189
      %v271 = vunpack.c.l.b16 %v190
      %v272 = vunpack.c.h.b16 %v190
      %v273 = vunpack.c.l.b16 %v191
      %v274 = vunpack.c.l.b16 %v192
      %v275 = vunpack.c.h.b16 %v192
      %v276 = vunpack.c.l.b16 %v193
      %v277 = vpack.c.b16 %v256, %v253
      %v278 = vpack.c.b16 %v257, %v254
      %v279 = vpack.c.b16 %v258, %v255
      %v280 = vpack.c.b16 %v262, %v259
      %v281 = vpack.c.b16 %v263, %v260
      %v282 = vpack.c.b16 %v264, %v261
      %v283 = vpack.c.b16 %v268, %v265
      %v284 = vpack.c.b16 %v269, %v266
      %v285 = vpack.c.b16 %v270, %v267
      %v286 = vpack.c.b16 %v274, %v271
      %v287 = vpack.c.b16 %v275, %v272
      %v288 = vpack.c.b16 %v276, %v273
      %v333 = vunpack.c.l.b16 %v194
      %v334 = vunpack.c.l.b16 %v195
      %v335 = vunpack.c.l.b16 %v196
      %v336 = vunpack.c.l.b16 %v197
      %v337 = vunpack.c.l.b16 %v198
      %v338 = vunpack.c.l.b16 %v199
      %v339 = vunpack.c.l.b16 %v200
      %v340 = vunpack.c.l.b16 %v201
      %v341 = vunpack.c.l.b16 %v202
      %v342 = vunpack.c.l.b16 %v203
      %v343 = vunpack.c.l.b16 %v204
      %v344 = vunpack.c.l.b16 %v205
      %v345 = vunpack.c.l.b16 %v206
      %v346 = vunpack.c.l.b16 %v207
      %v347 = vunpack.c.l.b16 %v208
      %v348 = vunpack.c.l.b16 %v209
      %v349 = vunpack.c.l.b16 %v210
      %v350 = vunpack.c.l.b16 %v211
      %v351 = vunpack.c.l.b16 %v212
      %v352 = vunpack.c.l.b16 %v213
      %v353 = vunpack.c.l.b16 %v214
      %v354 = vunpack.c.l.b16 %v215
      %v355 = vunpack.c.l.b16 %v216
      %v356 = vunpack.c.l.b16 %v217
      %v357 = vunpack.c.l.b16 %v218
      %v358 = vunpack.c.l.b16 %v219
      %v359 = vunpack.c.l.b16 %v220
      %v360 = vunpack.c.l.b16 %v221
      %v361 = vunpack.c.l.b16 %v222
      %v362 = vunpack.c.l.b16 %v223
      %v363 = vunpack.c.l.b16 %v224
      %v364 = vunpack.c.l.b16 %v225
      %v365 = vunpack.c.l.b16 %v226
      %v366 = vunpack.c.l.b16 %v227
      %v367 = vunpack.c.l.b16 %v228
      %v368 = vunpack.c.l.b16 %v229
      %v369 = vpack.c.b16 %v334, %v333
      %v370 = vpack.c.b16 %v336, %v335
      %v371 = vpack.c.b16 %v338, %v337
      %v372 = vpack.c.b16 %v340, %v339
      %v373 = vpack.c.b16 %v342, %v341
      %v374 = vpack.c.b16 %v344, %v343
      %v375 = vpack.c.b16 %v346, %v345
      %v376 = vpack.c.b16 %v348, %v347
      %v377 = vpack.c.b16 %v350, %v349
      %v378 = vpack.c.b16 %v352, %v351
      %v379 = vpack.c.b16 %v354, %v353
      %v380 = vpack.c.b16 %v356, %v355
      %v381 = vpack.c.b16 %v358, %v357
      %v382 = vpack.c.b16 %v360, %v359
      %v383 = vpack.c.b16 %v362, %v361
      %v384 = vpack.c.b16 %v364, %v363
      %v385 = vpack.c.b16 %v366, %v365
      %v386 = vpack.c.b16 %v368, %v367
      %vm405 = vcmask 261120
      %v407 = vsel %vm405, %v279, 0
      %v410 = vsel %vm405, %v282, 0
      %v413 = vsel %vm405, %v285, 0
      %v416 = vsel %vm405, %v288, 0
      %418 = vmatprep.subr.bf16.mxu0 0
      %419 = vmatpush1.bf16.msra.mxu0 %v376
      %420 = vmatprep.subr.bf16.mxu0 0
      %421 = vmatpush1.bf16.msra.mxu0 %v375
      %422 = vmatprep.subr.bf16.mxu0 0
      %423 = vmatpush1.bf16.msra.mxu0 %v374
      %424 = vmatprep.subr.bf16.mxu0 0
      %425 = vmatpush1.bf16.msra.mxu0 %v373
      %426 = vmatprep.subr.bf16.mxu0 0
      %427 = vmatpush1.bf16.msra.mxu0 %v372
      %428 = vmatprep.subr.bf16.mxu0 0
      %429 = vmatpush1.bf16.msra.mxu0 %v371
      %430 = vmatprep.subr.bf16.mxu0 0
      %431 = vmatpush1.bf16.msra.mxu0 %v370
      %432 = vmatprep.subr.bf16.mxu0 0
      %433 = vmatpush1.bf16.msra.mxu0 %v369
      %434 = vmatprep.subr.bf16.mxu0 0
      %435 = vmatpush2.bf16.msra.mxu0 %v384
      %436 = vmatprep.subr.bf16.mxu0 0
      %437 = vmatpush2.bf16.msra.mxu0 %v383
      %438 = vmatprep.subr.bf16.mxu0 0
      %439 = vmatpush2.bf16.msra.mxu0 %v382
      %440 = vmatprep.subr.bf16.mxu0 0
      %441 = vmatpush2.bf16.msra.mxu0 %v381
      %442 = vmatprep.subr.bf16.mxu0 0
      %443 = vmatpush2.bf16.msra.mxu0 %v380
      %444 = vmatprep.subr.bf16.mxu0 0
      %445 = vmatpush2.bf16.msra.mxu0 %v379
      %446 = vmatprep.subr.bf16.mxu0 0
      %447 = vmatpush2.bf16.msra.mxu0 %v378
      %448 = vmatprep.subr.bf16.mxu0 0
      %449 = vmatpush2.bf16.msra.mxu0 %v377
      %450 = vmatprep.mubr.bf16.mxu0 %v278
      %451 = vmatmul.mubr.bf16.gmra.mxu0 %v277
      %v452 = vpop.f32.mrf.mxu0
      %v453 = vadd.f32 %v235, %v452
      %v454 = vpop.f32.mrf.mxu0
      %v455 = vpop.f32.mrf.mxu0
      %v456 = vadd.f32 %v235, %v455
      %v457 = vpop.f32.mrf.mxu0
      %458 = vmatprep.mubr.bf16.mxu0 %v281
      %459 = vmatmul.mubr.bf16.gmra.mxu0 %v280
      %v460 = vpop.f32.mrf.mxu0
      %v461 = vadd.f32 %v235, %v460
      %v462 = vpop.f32.mrf.mxu0
      %v463 = vpop.f32.mrf.mxu0
      %v464 = vadd.f32 %v235, %v463
      %v465 = vpop.f32.mrf.mxu0
      %466 = vmatprep.mubr.bf16.mxu0 %v284
      %467 = vmatmul.mubr.bf16.gmra.mxu0 %v283
      %v468 = vpop.f32.mrf.mxu0
      %v469 = vadd.f32 %v235, %v468
      %v470 = vpop.f32.mrf.mxu0
      %v471 = vpop.f32.mrf.mxu0
      %v472 = vadd.f32 %v235, %v471
      %v473 = vpop.f32.mrf.mxu0
      %474 = vmatprep.mubr.bf16.mxu0 %v287
      %475 = vmatmul.mubr.bf16.gmra.mxu0 %v286
      %v476 = vpop.f32.mrf.mxu0
      %v477 = vadd.f32 %v235, %v476
      %v478 = vpop.f32.mrf.mxu0
      %v479 = vpop.f32.mrf.mxu0
      %v480 = vadd.f32 %v235, %v479
      %v481 = vpop.f32.mrf.mxu0
      %482 = vdwg.mxu0
      %483 = vmatprep.subr.bf16.mxu0 0
      %484 = vmatpush1.bf16.msra.mxu0 0
      %485 = vmatprep.subr.bf16.mxu0 0
      %486 = vmatpush1.bf16.msra.mxu0 0
      %487 = vmatprep.subr.bf16.mxu0 0
      %488 = vmatpush1.bf16.msra.mxu0 0
      %489 = vmatprep.subr.bf16.mxu0 0
      %490 = vmatpush1.bf16.msra.mxu0 0
      %491 = vmatprep.subr.bf16.mxu0 0
      %492 = vmatpush1.bf16.msra.mxu0 0
      %493 = vmatprep.subr.bf16.mxu0 0
      %494 = vmatpush1.bf16.msra.mxu0 0
      %495 = vmatprep.subr.bf16.mxu0 0
      %496 = vmatpush1.bf16.msra.mxu0 %v386
      %497 = vmatprep.subr.bf16.mxu0 0
      %498 = vmatpush1.bf16.msra.mxu0 %v385
      %499 = vmatprep.subr.bf16.mxu0 0
      %500 = vmatpush2.bf16.msra.mxu0 0
      %501 = vmatprep.subr.bf16.mxu0 0
      %502 = vmatpush2.bf16.msra.mxu0 0
      %503 = vmatprep.subr.bf16.mxu0 0
      %504 = vmatpush2.bf16.msra.mxu0 0
      %505 = vmatprep.subr.bf16.mxu0 0
      %506 = vmatpush2.bf16.msra.mxu0 0
      %507 = vmatprep.subr.bf16.mxu0 0
      %508 = vmatpush2.bf16.msra.mxu0 0
      %509 = vmatprep.subr.bf16.mxu0 0
      %510 = vmatpush2.bf16.msra.mxu0 0
      %511 = vmatprep.subr.bf16.mxu0 0
      %512 = vmatpush2.bf16.msra.mxu0 0
      %513 = vmatprep.subr.bf16.mxu0 0
      %514 = vmatpush2.bf16.msra.mxu0 0
      %515 = vmatprep.mubr.bf16.mxu0 0
      %516 = vmatmul.mubr.bf16.gmra.mxu0 %v407
      %v517 = vpop.f32.mrf.mxu0
      %v518 = vadd.f32 %v453, %v517
      %v519 = vpop.f32.mrf.mxu0
      %v520 = vpop.f32.mrf.mxu0
      %v521 = vadd.f32 %v456, %v520
      %v522 = vpop.f32.mrf.mxu0
      %523 = vmatprep.mubr.bf16.mxu0 0
      %524 = vmatmul.mubr.bf16.gmra.mxu0 %v410
      %v525 = vpop.f32.mrf.mxu0
      %v526 = vadd.f32 %v461, %v525
      %v527 = vpop.f32.mrf.mxu0
      %v528 = vpop.f32.mrf.mxu0
      %v529 = vadd.f32 %v464, %v528
      %v530 = vpop.f32.mrf.mxu0
      %531 = vmatprep.mubr.bf16.mxu0 0
      %532 = vmatmul.mubr.bf16.gmra.mxu0 %v413
      %v533 = vpop.f32.mrf.mxu0
      %v534 = vadd.f32 %v469, %v533
      %v535 = vpop.f32.mrf.mxu0
      %v536 = vpop.f32.mrf.mxu0
      %v537 = vadd.f32 %v472, %v536
      %v538 = vpop.f32.mrf.mxu0
      %539 = vmatprep.mubr.bf16.mxu0 0
      %540 = vmatmul.mubr.bf16.gmra.mxu0 %v416
      %v541 = vpop.f32.mrf.mxu0
      %v542 = vadd.f32 %v477, %v541
      %v543 = vpop.f32.mrf.mxu0
      %v544 = vpop.f32.mrf.mxu0
      %v545 = vadd.f32 %v480, %v544
      %v546 = vpop.f32.mrf.mxu0
      %547 = vdwg.mxu0
      %v548 = vmax.f32 %v518, 0.0
      %v549 = vmax.f32 %v521, 0.0
      %v550 = vmax.f32 %v526, 0.0
      %v551 = vmax.f32 %v529, 0.0
      %v552 = vmax.f32 %v534, 0.0
      %v553 = vmax.f32 %v537, 0.0
      %v554 = vmax.f32 %v542, 0.0
      %v555 = vmax.f32 %v545, 0.0
      %v556 = vpack.c.bf16 %v549, %v548
      %v557 = vpack.c.bf16 %v551, %v550
      %v558 = vpack.c.bf16 %v553, %v552
      %v559 = vpack.c.bf16 %v555, %v554
      %v564 = vunpack.c.l.b16 %v556
      %v565 = vunpack.c.h.b16 %v556
      %v566 = vunpack.c.l.b16 %v557
      %v567 = vunpack.c.h.b16 %v557
      %v568 = vunpack.c.l.b16 %v558
      %v569 = vunpack.c.h.b16 %v558
      %v570 = vunpack.c.l.b16 %v559
      %v571 = vunpack.c.h.b16 %v559
      %v572 = vpack.c.b16 %v564, %v564
      %v573 = vpack.c.b16 %v565, %v565
      %v574 = vpack.c.b16 %v566, %v566
      %v575 = vpack.c.b16 %v567, %v567
      %v576 = vpack.c.b16 %v568, %v568
      %v577 = vpack.c.b16 %v569, %v569
      %v578 = vpack.c.b16 %v570, %v570
      %v579 = vpack.c.b16 %v571, %v571
      %588 = vst [vmem:[%s175] sm:$0xf] %v572
      %589 = vst [vmem:[%s175 + $0x4] sm:$0xf] %v573
      %590 = vst [vmem:[%s175 + $0x8] sm:$0xf] %v574
      %591 = vst [vmem:[%s175 + $0xc] sm:$0xf] %v575
      %592 = vst [vmem:[%s175 + $0x10] sm:$0xf] %v576
      %593 = vst [vmem:[%s175 + $0x14] sm:$0xf] %v577
      %594 = vst [vmem:[%s175 + $0x18] sm:$0xf] %v578
      %595 = vst [vmem:[%s175 + $0x1c] sm:$0xf] %v579
      %s596 = smul.u32 8, %s14
      %p597 = scmp.lt.s32.totalorder %s596, 15
      %s598 = scalar_select %p597, %s596, 15
      %s599 = smul.addr %s598, 4
      %s600 = scalar_lea.vmem %s3, %s599
      // Predicated region
      $region33: #{_lambda_.33} parent=31 // pred_check
        %p601 = pneg %p100
      $region34: #{_lambda_.33} parent=31 // pred_check_branch
        %603 = sbr.rel (%p601) target = $region36
      $region35: #{_lambda_.33} parent=31 // pred_region
        %s604 = smul.u32 8, %s14
      $region36: #{_lambda_.33} parent=31 // pred_fallthru
        _
    $region32: #{_lambda_.33} parent=5 // pred_fallthru
      _
    %p605 = scmp.le.s32.totalorder 2, %s9
    // Predicated region
    $region37: #{_lambda_.33} parent=5 // pred_check
      %p606 = pneg %p605
    $region38: #{_lambda_.33} parent=5 // pred_check_branch
      %608 = sbr.rel (%p606) target = $region40
    $region39: #{_lambda_.33} parent=5 // pred_region
      %s609 = ssub.s32 %s9, 2
      // Predicated region
      $region41: #{_lambda_.33} parent=39 // pred_check
        %p610 = pneg %p106
      $region42: #{_lambda_.33} parent=39 // pred_check_branch
        %612 = sbr.rel (%p610) target = $region44
      $region43: #{_lambda_.33} parent=39 // pred_region
        %s613 = smul.u32 8, %s15
        %p614 = scmp.lt.s32.totalorder %s613, 15
        %s615 = scalar_select %p614, %s613, 15
        %s616 = smul.addr %s615, 4
        %s617 = scalar_lea.vmem %s3, %s616
      $region44: #{_lambda_.33} parent=39 // pred_fallthru
        _
    $region40: #{_lambda_.33} parent=5 // pred_fallthru
      _
  $region6: #{_lambda_.33} parent=0 // loop_footer
    %s13 = sadd.s32 1, %s9
  $region7: #{_lambda_.33} parent=0 // loop_footer_branch
    %8 = sbr.rel target = $region3
  $region8: #{_lambda_.33} parent=0 // loop_exit
    _

// kernel: _lambda_.34
$region0: #{_lambda_.34}
  #allocation0 [shape = 'u32[]', space=smem, size = 0x4, offset = 0x4, fixed_abs, tag = 'smem constant byte address 0x4 - core index']
  #allocation1 [shape = 'u32[144,128]{1,0:T(1,128)}', space=vmem, size = 0x12000, scoped, tag = 'internal scratch']
  %s0 = inlined_call_operand.vmem [shape: bf16[128,144], index: 0, kind: input, shape index: {}]
  %s1 = inlined_call_operand.vmem [shape: bf16[144,128], index: 1, kind: input, shape index: {}]
  %s2 = inlined_call_operand.vmem [shape: f32[1,128], index: 2, kind: input, shape index: {}]
  %s3 = inlined_call_operand.vmem [shape: bf16[128,128], index: 3, kind: output, shape index: {}]
  %s4 = sld [smem:[#allocation0]]
  $region45: #{_lambda_.34} parent=0
    _
  %s6 = ssub.s32 1, %s4
  %s7 = scalar_select 0, %s6, %s4
  loop: start=0, step=1, limit=4
  $region2: #{_lambda_.34} parent=0 // loop_pre_header
    _
  $region3: #{_lambda_.34} parent=0 // loop_header
    %s9 = sphi 0, %s13
    %p10 = scmp.ge.s32.totalorder %s9, 4
    %s19 = sphi 0, %s21
    %s22 = sphi 0, %s19
    %s23 = sphi 0, %s22
    %s39 = sphi 0, %s23
    %s43 = sphi 0, %s43
    %s45 = sphi 0, %s43
    %s46 = sphi 0, %s45
    %s60 = sphi 0, %s46
    %s64 = sphi 0, %s64
    %s66 = sphi 0, %s64
    %s67 = sphi 0, %s66
    %s81 = sphi 0, %s67
    %s87 = sphi 0, %s89
    %s90 = sphi 0, %s87
    %s91 = sphi 0, %s90
    %s107 = sphi 0, %s91
  $region4: #{_lambda_.34} parent=0 // loop_header_branch
    %12 = sbr.rel (%p10) target = $region8
  $region5: #{_lambda_.34} parent=0 // loop_body
    %s14 = ssub.s32 %s9, 1
    %s15 = ssub.s32 %s9, 2
    %s16 = sadd.s32 %s9, 1
    %s17 = ssub.s32 %s9, %s16
    %p18 = scmp.eq.s32.totalorder %s17, 0
    %s20 = sadd.s32 %s19, 1
    %s21 = scalar_select %p18, %s19, %s20
    %p24 = pneg %p18
    %p25 = scmp.eq.s32.totalorder %s9, 1
    %p26 = por %p24, %p25
    %p27 = scmp.ne.s32.totalorder %s19, %s22
    %p28 = scmp.eq.s32.totalorder %s9, 0
    %p29 = por %p27, %p28
    %p30 = scmp.ne.s32.totalorder %s19, %s22
    %p31 = scmp.eq.s32.totalorder %s14, 1
    %p32 = por %p30, %p31
    %p33 = scmp.ne.s32.totalorder %s22, %s23
    %p34 = scmp.eq.s32.totalorder %s14, 0
    %p35 = por %p33, %p34
    %p36 = scmp.ne.s32.totalorder %s22, %s23
    %p37 = scmp.eq.s32.totalorder %s15, 1
    %p38 = por %p36, %p37
    %p40 = scmp.ne.s32.totalorder %s23, %s39
    %p41 = scmp.eq.s32.totalorder %s15, 0
    %p42 = por %p40, %p41
    %s44 = sadd.s32 %s43, 1
    %p47 = scmp.eq.s32.totalorder %s9, 1
    %p48 = scmp.ne.s32.totalorder %s43, %s45
    %p49 = scmp.eq.s32.totalorder %s9, 0
    %p50 = por %p48, %p49
    %p51 = scmp.ne.s32.totalorder %s43, %s45
    %p52 = scmp.eq.s32.totalorder %s14, 1
    %p53 = por %p51, %p52
    %p54 = scmp.ne.s32.totalorder %s45, %s46
    %p55 = scmp.eq.s32.totalorder %s14, 0
    %p56 = por %p54, %p55
    %p57 = scmp.ne.s32.totalorder %s45, %s46
    %p58 = scmp.eq.s32.totalorder %s15, 1
    %p59 = por %p57, %p58
    %p61 = scmp.ne.s32.totalorder %s46, %s60
    %p62 = scmp.eq.s32.totalorder %s15, 0
    %p63 = por %p61, %p62
    %s65 = sadd.s32 %s64, 1
    %p68 = scmp.eq.s32.totalorder %s9, 1
    %p69 = scmp.ne.s32.totalorder %s64, %s66
    %p70 = scmp.eq.s32.totalorder %s9, 0
    %p71 = por %p69, %p70
    %p72 = scmp.ne.s32.totalorder %s64, %s66
    %p73 = scmp.eq.s32.totalorder %s14, 1
    %p74 = por %p72, %p73
    %p75 = scmp.ne.s32.totalorder %s66, %s67
    %p76 = scmp.eq.s32.totalorder %s14, 0
    %p77 = por %p75, %p76
    %p78 = scmp.ne.s32.totalorder %s66, %s67
    %p79 = scmp.eq.s32.totalorder %s15, 1
    %p80 = por %p78, %p79
    %p82 = scmp.ne.s32.totalorder %s67, %s81
    %p83 = scmp.eq.s32.totalorder %s15, 0
    %p84 = por %p82, %p83
    %s85 = ssub.s32 %s9, %s16
    %p86 = scmp.eq.s32.totalorder %s85, 0
    %s88 = sadd.s32 %s87, 1
    %s89 = scalar_select %p86, %s87, %s88
    %p92 = pneg %p86
    %p93 = scmp.eq.s32.totalorder %s9, 1
    %p94 = por %p92, %p93
    %p95 = scmp.ne.s32.totalorder %s87, %s90
    %p96 = scmp.eq.s32.totalorder %s9, 0
    %p97 = por %p95, %p96
    %p98 = scmp.ne.s32.totalorder %s87, %s90
    %p99 = scmp.eq.s32.totalorder %s14, 1
    %p100 = por %p98, %p99
    %p101 = scmp.ne.s32.totalorder %s90, %s91
    %p102 = scmp.eq.s32.totalorder %s14, 0
    %p103 = por %p101, %p102
    %p104 = scmp.ne.s32.totalorder %s90, %s91
    %p105 = scmp.eq.s32.totalorder %s15, 1
    %p106 = por %p104, %p105
    %p108 = scmp.ne.s32.totalorder %s91, %s107
    %p109 = scmp.eq.s32.totalorder %s15, 0
    %p110 = por %p108, %p109
    %p111 = scmp.le.s32.totalorder 1, %s9
    %p112 = scmp.lt.s32.totalorder %s9, 3
    %p113 = pnand %p111, %p112
    %p114 = pneg %p113
    // Predicated region
    $region9: #{_lambda_.34} parent=5 // pred_check
      _
    $region10: #{_lambda_.34} parent=5 // pred_check_branch
      %116 = sbr.rel (%p113) target = $region12
    $region11: #{_lambda_.34} parent=5 // pred_region
      %s117 = ssub.s32 %s9, 1
      // Predicated region
      $region13: #{_lambda_.34} parent=11 // pred_check
        %p118 = pneg %p56
      $region14: #{_lambda_.34} parent=11 // pred_check_branch
        %120 = sbr.rel (%p118) target = $region16
      $region15: #{_lambda_.34} parent=11 // pred_region
        _
      $region16: #{_lambda_.34} parent=11 // pred_fallthru
        _
      // Predicated region
      $region17: #{_lambda_.34} parent=11 // pred_check
        %p121 = pneg %p77
      $region18: #{_lambda_.34} parent=11 // pred_check_branch
        %123 = sbr.rel (%p121) target = $region20
      $region19: #{_lambda_.34} parent=11 // pred_region
        _
      $region20: #{_lambda_.34} parent=11 // pred_fallthru
        _
    $region12: #{_lambda_.34} parent=5 // pred_fallthru
      _
    %p124 = scmp.lt.s32.totalorder %s9, 2
    // Predicated region
    $region21: #{_lambda_.34} parent=5 // pred_check
      %p125 = pneg %p124
    $region22: #{_lambda_.34} parent=5 // pred_check_branch
      %127 = sbr.rel (%p125) target = $region24
    $region23: #{_lambda_.34} parent=5 // pred_region
      // Predicated region
      $region25: #{_lambda_.34} parent=23 // pred_check
        %p128 = pneg %p29
      $region26: #{_lambda_.34} parent=23 // pred_check_branch
        %130 = sbr.rel (%p128) target = $region28
      $region27: #{_lambda_.34} parent=23 // pred_region
        %s131 = smul.u32 8, %s9
        %p132 = scmp.lt.s32.totalorder %s131, 15
        %s133 = scalar_select %p132, %s131, 15
        %s134 = smul.addr %s133, 2
        %s135 = smul.addr %s134, 4
        %s136 = scalar_lea.vmem %s0, %s135
        %s137 = smul.u32 8, %s9
      $region28: #{_lambda_.34} parent=23 // pred_fallthru
        _
    $region24: #{_lambda_.34} parent=5 // pred_fallthru
      _
    %p138 = scmp.le.s32.totalorder 1, %s9
    %p139 = scmp.lt.s32.totalorder %s9, 3
    %p140 = pnand %p138, %p139
    %p141 = pneg %p140
    // Predicated region
    $region29: #{_lambda_.34} parent=5 // pred_check
      _
    $region30: #{_lambda_.34} parent=5 // pred_check_branch
      %143 = sbr.rel (%p140) target = $region32
    $region31: #{_lambda_.34} parent=5 // pred_region
      %s144 = ssub.s32 %s9, 1
      %s145 = smul.u32 8, %s14
      %p146 = scmp.lt.s32.totalorder %s145, 15
      %s147 = scalar_select %p146, %s145, 15
      %s148 = smul.addr %s147, 2
      %s149 = smul.addr %s148, 4
      %s150 = scalar_lea.vmem %s0, %s149
      %p151 = pneg %p35
      %p152 = pneg %p32
      %p153 = pneg %p56
      %p154 = pneg %p53
      %p155 = pneg %p77
      %p156 = pneg %p74
      %p157 = pneg %p103
      %p158 = pneg %p100
      %s159 = smul.u32 8, %s14
      %p160 = scmp.lt.s32.totalorder %s159, 15
      %s161 = scalar_select %p160, %s159, 15
      %s162 = smul.addr %s161, 4
      %s163 = scalar_lea.vmem %s3, %s162
      %s164 = smul.u32 8, %s14
      %p165 = scmp.lt.s32.totalorder %s164, 15
      %s166 = scalar_select %p165, %s164, 15
      %s167 = smul.addr %s166, 2
      %s168 = smul.addr %s167, 4
      %s169 = scalar_lea.vmem %s0, %s168
      %s170 = smul.u32 8, %s14
      %s171 = smul.u32 8, %s14
      %p172 = scmp.lt.s32.totalorder %s171, 15
      %s173 = scalar_select %p172, %s171, 15
      %s174 = smul.addr %s173, 4
      %s175 = scalar_lea.vmem %s3, %s174
      %s176 = smul.u32 8, %s14
      %v178 = vld [vmem:[%s169] sm:$0xff]
      %v179 = vld [vmem:[%s169 + $0x8] sm:$0xff]
      %v180 = vld [vmem:[%s169 + $0x10] sm:$0xff]
      %v181 = vld [vmem:[%s169 + $0x18] sm:$0xff]
      %v182 = vld [vmem:[%s169 + $0x20] sm:$0xff]
      %v183 = vld [vmem:[%s169 + $0x28] sm:$0xff]
      %v184 = vld [vmem:[%s169 + $0x30] sm:$0xff]
      %v185 = vld [vmem:[%s169 + $0x38] sm:$0xff]
      %v186 = vld [vmem:[%s1] sm:$0xf]
      %v187 = vld [vmem:[%s1 + $0x4] sm:$0xf]
      %v188 = vld [vmem:[%s1 + $0x8] sm:$0xf]
      %v189 = vld [vmem:[%s1 + $0xc] sm:$0xf]
      %v190 = vld [vmem:[%s1 + $0x10] sm:$0xf]
      %v191 = vld [vmem:[%s1 + $0x14] sm:$0xf]
      %v192 = vld [vmem:[%s1 + $0x18] sm:$0xf]
      %v193 = vld [vmem:[%s1 + $0x1c] sm:$0xf]
      %v194 = vld [vmem:[%s1 + $0x20] sm:$0xf]
      %v195 = vld [vmem:[%s1 + $0x24] sm:$0xf]
      %v196 = vld [vmem:[%s1 + $0x28] sm:$0xf]
      %v197 = vld [vmem:[%s1 + $0x2c] sm:$0xf]
      %v198 = vld [vmem:[%s1 + $0x30] sm:$0xf]
      %v199 = vld [vmem:[%s1 + $0x34] sm:$0xf]
      %v200 = vld [vmem:[%s1 + $0x38] sm:$0xf]
      %v201 = vld [vmem:[%s1 + $0x3c] sm:$0xf]
      %v202 = vld [vmem:[%s1 + $0x40] sm:$0xf]
      %v203 = vld [vmem:[%s1 + $0x44] sm:$0xf]
      %v204 = vld [vmem:[%s2] sm:$0x1]
      %v206 = vlaneseq
      %v207 = vshrl.u32 %v206, 7
      %v208 = vsub.s32 0, %v207
      %v209 = vrot.slane %v204, %v208
      %v219 = vunpack.c.l.b16 %v178
      %v220 = vunpack.c.h.b16 %v178
      %v221 = vunpack.c.l.b16 %v179
      %v222 = vunpack.c.h.b16 %v179
      %v223 = vunpack.c.l.b16 %v180
      %v224 = vunpack.c.h.b16 %v180
      %v225 = vunpack.c.l.b16 %v181
      %v226 = vunpack.c.h.b16 %v181
      %v227 = vunpack.c.l.b16 %v182
      %v228 = vunpack.c.h.b16 %v182
      %v229 = vunpack.c.l.b16 %v183
      %v230 = vunpack.c.h.b16 %v183
      %v231 = vunpack.c.l.b16 %v184
      %v232 = vunpack.c.h.b16 %v184
      %v233 = vunpack.c.l.b16 %v185
      %v234 = vunpack.c.h.b16 %v185
      %v235 = vpack.c.b16 %v221, %v219
      %v236 = vpack.c.b16 %v222, %v220
      %v237 = vpack.c.b16 %v225, %v223
      %v238 = vpack.c.b16 %v226, %v224
      %v239 = vpack.c.b16 %v229, %v227
      %v240 = vpack.c.b16 %v230, %v228
      %v241 = vpack.c.b16 %v233, %v231
      %v242 = vpack.c.b16 %v234, %v232
      %v265 = vunpack.c.l.b16 %v186
      %v266 = vunpack.c.l.b16 %v187
      %v267 = vunpack.c.l.b16 %v188
      %v268 = vunpack.c.l.b16 %v189
      %v269 = vunpack.c.l.b16 %v190
      %v270 = vunpack.c.l.b16 %v191
      %v271 = vunpack.c.l.b16 %v192
      %v272 = vunpack.c.l.b16 %v193
      %v273 = vunpack.c.l.b16 %v194
      %v274 = vunpack.c.l.b16 %v195
      %v275 = vunpack.c.l.b16 %v196
      %v276 = vunpack.c.l.b16 %v197
      %v277 = vunpack.c.l.b16 %v198
      %v278 = vunpack.c.l.b16 %v199
      %v279 = vunpack.c.l.b16 %v200
      %v280 = vunpack.c.l.b16 %v201
      %v281 = vunpack.c.l.b16 %v202
      %v282 = vunpack.c.l.b16 %v203
      %v283 = vpack.c.b16 %v266, %v265
      %v284 = vpack.c.b16 %v268, %v267
      %v285 = vpack.c.b16 %v270, %v269
      %v286 = vpack.c.b16 %v272, %v271
      %v287 = vpack.c.b16 %v274, %v273
      %v288 = vpack.c.b16 %v276, %v275
      %v289 = vpack.c.b16 %v278, %v277
      %v290 = vpack.c.b16 %v280, %v279
      %v291 = vpack.c.b16 %v282, %v281
      %vm301 = vcmask 130048
      %v303 = vsel %vm301, %v236, 0
      %v306 = vsel %vm301, %v238, 0
      %v309 = vsel %vm301, %v240, 0
      %v312 = vsel %vm301, %v242, 0
      %314 = vmatprep.subr.bf16.mxu0 0
      %315 = vmatpush1.bf16.msra.mxu0 %v290
      %316 = vmatprep.subr.bf16.mxu0 0
      %317 = vmatpush1.bf16.msra.mxu0 %v289
      %318 = vmatprep.subr.bf16.mxu0 0
      %319 = vmatpush1.bf16.msra.mxu0 %v288
      %320 = vmatprep.subr.bf16.mxu0 0
      %321 = vmatpush1.bf16.msra.mxu0 %v287
      %322 = vmatprep.subr.bf16.mxu0 0
      %323 = vmatpush1.bf16.msra.mxu0 %v286
      %324 = vmatprep.subr.bf16.mxu0 0
      %325 = vmatpush1.bf16.msra.mxu0 %v285
      %326 = vmatprep.subr.bf16.mxu0 0
      %327 = vmatpush1.bf16.msra.mxu0 %v284
      %328 = vmatprep.subr.bf16.mxu0 0
      %329 = vmatpush1.bf16.msra.mxu0 %v283
      %330 = vmatprep.subr.bf16.mxu0 0
      %331 = vmatpush2.bf16.msra.mxu0 0
      %332 = vmatprep.subr.bf16.mxu0 0
      %333 = vmatpush2.bf16.msra.mxu0 0
      %334 = vmatprep.subr.bf16.mxu0 0
      %335 = vmatpush2.bf16.msra.mxu0 0
      %336 = vmatprep.subr.bf16.mxu0 0
      %337 = vmatpush2.bf16.msra.mxu0 0
      %338 = vmatprep.subr.bf16.mxu0 0
      %339 = vmatpush2.bf16.msra.mxu0 0
      %340 = vmatprep.subr.bf16.mxu0 0
      %341 = vmatpush2.bf16.msra.mxu0 0
      %342 = vmatprep.subr.bf16.mxu0 0
      %343 = vmatpush2.bf16.msra.mxu0 0
      %344 = vmatprep.subr.bf16.mxu0 0
      %345 = vmatpush2.bf16.msra.mxu0 %v291
      %346 = vmatprep.mubr.bf16.mxu0 %v303
      %347 = vmatmul.mubr.bf16.gmra.mxu0 %v235
      %v348 = vpop.f32.mrf.mxu0
      %v349 = vadd.f32 %v209, %v348
      %v350 = vpop.f32.mrf.mxu0
      %v351 = vpop.f32.mrf.mxu0
      %v352 = vadd.f32 %v209, %v351
      %v353 = vpop.f32.mrf.mxu0
      %354 = vmatprep.mubr.bf16.mxu0 %v306
      %355 = vmatmul.mubr.bf16.gmra.mxu0 %v237
      %v356 = vpop.f32.mrf.mxu0
      %v357 = vadd.f32 %v209, %v356
      %v358 = vpop.f32.mrf.mxu0
      %v359 = vpop.f32.mrf.mxu0
      %v360 = vadd.f32 %v209, %v359
      %v361 = vpop.f32.mrf.mxu0
      %362 = vmatprep.mubr.bf16.mxu0 %v309
      %363 = vmatmul.mubr.bf16.gmra.mxu0 %v239
      %v364 = vpop.f32.mrf.mxu0
      %v365 = vadd.f32 %v209, %v364
      %v366 = vpop.f32.mrf.mxu0
      %v367 = vpop.f32.mrf.mxu0
      %v368 = vadd.f32 %v209, %v367
      %v369 = vpop.f32.mrf.mxu0
      %370 = vmatprep.mubr.bf16.mxu0 %v312
      %371 = vmatmul.mubr.bf16.gmra.mxu0 %v241
      %v372 = vpop.f32.mrf.mxu0
      %v373 = vadd.f32 %v209, %v372
      %v374 = vpop.f32.mrf.mxu0
      %v375 = vpop.f32.mrf.mxu0
      %v376 = vadd.f32 %v209, %v375
      %v377 = vpop.f32.mrf.mxu0
      %378 = vdwg.mxu0
      %v379 = vmax.f32 %v349, 0.0
      %v380 = vmax.f32 %v352, 0.0
      %v381 = vmax.f32 %v357, 0.0
      %v382 = vmax.f32 %v360, 0.0
      %v383 = vmax.f32 %v365, 0.0
      %v384 = vmax.f32 %v368, 0.0
      %v385 = vmax.f32 %v373, 0.0
      %v386 = vmax.f32 %v376, 0.0
      %v387 = vpack.c.bf16 %v380, %v379
      %v388 = vpack.c.bf16 %v382, %v381
      %v389 = vpack.c.bf16 %v384, %v383
      %v390 = vpack.c.bf16 %v386, %v385
      %v395 = vunpack.c.l.b16 %v387
      %v396 = vunpack.c.h.b16 %v387
      %v397 = vunpack.c.l.b16 %v388
      %v398 = vunpack.c.h.b16 %v388
      %v399 = vunpack.c.l.b16 %v389
      %v400 = vunpack.c.h.b16 %v389
      %v401 = vunpack.c.l.b16 %v390
      %v402 = vunpack.c.h.b16 %v390
      %v403 = vpack.c.b16 %v395, %v395
      %v404 = vpack.c.b16 %v396, %v396
      %v405 = vpack.c.b16 %v397, %v397
      %v406 = vpack.c.b16 %v398, %v398
      %v407 = vpack.c.b16 %v399, %v399
      %v408 = vpack.c.b16 %v400, %v400
      %v409 = vpack.c.b16 %v401, %v401
      %v410 = vpack.c.b16 %v402, %v402
      %419 = vst [vmem:[%s175] sm:$0xf] %v403
      %420 = vst [vmem:[%s175 + $0x4] sm:$0xf] %v404
      %421 = vst [vmem:[%s175 + $0x8] sm:$0xf] %v405
      %422 = vst [vmem:[%s175 + $0xc] sm:$0xf] %v406
      %423 = vst [vmem:[%s175 + $0x10] sm:$0xf] %v407
      %424 = vst [vmem:[%s175 + $0x14] sm:$0xf] %v408
      %425 = vst [vmem:[%s175 + $0x18] sm:$0xf] %v409
      %426 = vst [vmem:[%s175 + $0x1c] sm:$0xf] %v410
      %s427 = smul.u32 8, %s14
      %p428 = scmp.lt.s32.totalorder %s427, 15
      %s429 = scalar_select %p428, %s427, 15
      %s430 = smul.addr %s429, 4
      %s431 = scalar_lea.vmem %s3, %s430
      // Predicated region
      $region33: #{_lambda_.34} parent=31 // pred_check
        %p432 = pneg %p100
      $region34: #{_lambda_.34} parent=31 // pred_check_branch
        %434 = sbr.rel (%p432) target = $region36
      $region35: #{_lambda_.34} parent=31 // pred_region
        %s435 = smul.u32 8, %s14
      $region36: #{_lambda_.34} parent=31 // pred_fallthru
        _
    $region32: #{_lambda_.34} parent=5 // pred_fallthru
      _
    %p436 = scmp.le.s32.totalorder 2, %s9
    // Predicated region
    $region37: #{_lambda_.34} parent=5 // pred_check
      %p437 = pneg %p436
    $region38: #{_lambda_.34} parent=5 // pred_check_branch
      %439 = sbr.rel (%p437) target = $region40
    $region39: #{_lambda_.34} parent=5 // pred_region
      %s440 = ssub.s32 %s9, 2
      // Predicated region
      $region41: #{_lambda_.34} parent=39 // pred_check
        %p441 = pneg %p106
      $region42: #{_lambda_.34} parent=39 // pred_check_branch
        %443 = sbr.rel (%p441) target = $region44
      $region43: #{_lambda_.34} parent=39 // pred_region
        %s444 = smul.u32 8, %s15
        %p445 = scmp.lt.s32.totalorder %s444, 15
        %s446 = scalar_select %p445, %s444, 15
        %s447 = smul.addr %s446, 4
        %s448 = scalar_lea.vmem %s3, %s447
      $region44: #{_lambda_.34} parent=39 // pred_fallthru
        _
    $region40: #{_lambda_.34} parent=5 // pred_fallthru
      _
  $region6: #{_lambda_.34} parent=0 // loop_footer
    %s13 = sadd.s32 1, %s9
  $region7: #{_lambda_.34} parent=0 // loop_footer_branch
    %8 = sbr.rel target = $region3
  $region8: #{_lambda_.34} parent=0 // loop_exit
    _

// kernel: _lambda_.35
$region0: #{_lambda_.35}
  #allocation0 [shape = 'u32[]', space=smem, size = 0x4, offset = 0x4, fixed_abs, tag = 'smem constant byte address 0x4 - core index']
  #allocation1 [shape = 'u32[144,128]{1,0:T(1,128)}', space=vmem, size = 0x12000, scoped, tag = 'internal scratch']
  %s0 = inlined_call_operand.vmem [shape: bf16[128,72], index: 0, kind: input, shape index: {}]
  %s1 = inlined_call_operand.vmem [shape: bf16[72,128], index: 1, kind: input, shape index: {}]
  %s2 = inlined_call_operand.vmem [shape: f32[1,128], index: 2, kind: input, shape index: {}]
  %s3 = inlined_call_operand.vmem [shape: bf16[128,128], index: 3, kind: output, shape index: {}]
  %s4 = sld [smem:[#allocation0]]
  $region45: #{_lambda_.35} parent=0
    _
  %s6 = ssub.s32 1, %s4
  %s7 = scalar_select 0, %s6, %s4
  loop: start=0, step=1, limit=4
  $region2: #{_lambda_.35} parent=0 // loop_pre_header
    _
  $region3: #{_lambda_.35} parent=0 // loop_header
    %s9 = sphi 0, %s13
    %p10 = scmp.ge.s32.totalorder %s9, 4
    %s19 = sphi 0, %s21
    %s22 = sphi 0, %s19
    %s23 = sphi 0, %s22
    %s39 = sphi 0, %s23
    %s43 = sphi 0, %s43
    %s45 = sphi 0, %s43
    %s46 = sphi 0, %s45
    %s60 = sphi 0, %s46
    %s64 = sphi 0, %s64
    %s66 = sphi 0, %s64
    %s67 = sphi 0, %s66
    %s81 = sphi 0, %s67
    %s87 = sphi 0, %s89
    %s90 = sphi 0, %s87
    %s91 = sphi 0, %s90
    %s107 = sphi 0, %s91
  $region4: #{_lambda_.35} parent=0 // loop_header_branch
    %12 = sbr.rel (%p10) target = $region8
  $region5: #{_lambda_.35} parent=0 // loop_body
    %s14 = ssub.s32 %s9, 1
    %s15 = ssub.s32 %s9, 2
    %s16 = sadd.s32 %s9, 1
    %s17 = ssub.s32 %s9, %s16
    %p18 = scmp.eq.s32.totalorder %s17, 0
    %s20 = sadd.s32 %s19, 1
    %s21 = scalar_select %p18, %s19, %s20
    %p24 = pneg %p18
    %p25 = scmp.eq.s32.totalorder %s9, 1
    %p26 = por %p24, %p25
    %p27 = scmp.ne.s32.totalorder %s19, %s22
    %p28 = scmp.eq.s32.totalorder %s9, 0
    %p29 = por %p27, %p28
    %p30 = scmp.ne.s32.totalorder %s19, %s22
    %p31 = scmp.eq.s32.totalorder %s14, 1
    %p32 = por %p30, %p31
    %p33 = scmp.ne.s32.totalorder %s22, %s23
    %p34 = scmp.eq.s32.totalorder %s14, 0
    %p35 = por %p33, %p34
    %p36 = scmp.ne.s32.totalorder %s22, %s23
    %p37 = scmp.eq.s32.totalorder %s15, 1
    %p38 = por %p36, %p37
    %p40 = scmp.ne.s32.totalorder %s23, %s39
    %p41 = scmp.eq.s32.totalorder %s15, 0
    %p42 = por %p40, %p41
    %s44 = sadd.s32 %s43, 1
    %p47 = scmp.eq.s32.totalorder %s9, 1
    %p48 = scmp.ne.s32.totalorder %s43, %s45
    %p49 = scmp.eq.s32.totalorder %s9, 0
    %p50 = por %p48, %p49
    %p51 = scmp.ne.s32.totalorder %s43, %s45
    %p52 = scmp.eq.s32.totalorder %s14, 1
    %p53 = por %p51, %p52
    %p54 = scmp.ne.s32.totalorder %s45, %s46
    %p55 = scmp.eq.s32.totalorder %s14, 0
    %p56 = por %p54, %p55
    %p57 = scmp.ne.s32.totalorder %s45, %s46
    %p58 = scmp.eq.s32.totalorder %s15, 1
    %p59 = por %p57, %p58
    %p61 = scmp.ne.s32.totalorder %s46, %s60
    %p62 = scmp.eq.s32.totalorder %s15, 0
    %p63 = por %p61, %p62
    %s65 = sadd.s32 %s64, 1
    %p68 = scmp.eq.s32.totalorder %s9, 1
    %p69 = scmp.ne.s32.totalorder %s64, %s66
    %p70 = scmp.eq.s32.totalorder %s9, 0
    %p71 = por %p69, %p70
    %p72 = scmp.ne.s32.totalorder %s64, %s66
    %p73 = scmp.eq.s32.totalorder %s14, 1
    %p74 = por %p72, %p73
    %p75 = scmp.ne.s32.totalorder %s66, %s67
    %p76 = scmp.eq.s32.totalorder %s14, 0
    %p77 = por %p75, %p76
    %p78 = scmp.ne.s32.totalorder %s66, %s67
    %p79 = scmp.eq.s32.totalorder %s15, 1
    %p80 = por %p78, %p79
    %p82 = scmp.ne.s32.totalorder %s67, %s81
    %p83 = scmp.eq.s32.totalorder %s15, 0
    %p84 = por %p82, %p83
    %s85 = ssub.s32 %s9, %s16
    %p86 = scmp.eq.s32.totalorder %s85, 0
    %s88 = sadd.s32 %s87, 1
    %s89 = scalar_select %p86, %s87, %s88
    %p92 = pneg %p86
    %p93 = scmp.eq.s32.totalorder %s9, 1
    %p94 = por %p92, %p93
    %p95 = scmp.ne.s32.totalorder %s87, %s90
    %p96 = scmp.eq.s32.totalorder %s9, 0
    %p97 = por %p95, %p96
    %p98 = scmp.ne.s32.totalorder %s87, %s90
    %p99 = scmp.eq.s32.totalorder %s14, 1
    %p100 = por %p98, %p99
    %p101 = scmp.ne.s32.totalorder %s90, %s91
    %p102 = scmp.eq.s32.totalorder %s14, 0
    %p103 = por %p101, %p102
    %p104 = scmp.ne.s32.totalorder %s90, %s91
    %p105 = scmp.eq.s32.totalorder %s15, 1
    %p106 = por %p104, %p105
    %p108 = scmp.ne.s32.totalorder %s91, %s107
    %p109 = scmp.eq.s32.totalorder %s15, 0
    %p110 = por %p108, %p109
    %p111 = scmp.le.s32.totalorder 1, %s9
    %p112 = scmp.lt.s32.totalorder %s9, 3
    %p113 = pnand %p111, %p112
    %p114 = pneg %p113
    // Predicated region
    $region9: #{_lambda_.35} parent=5 // pred_check
      _
    $region10: #{_lambda_.35} parent=5 // pred_check_branch
      %116 = sbr.rel (%p113) target = $region12
    $region11: #{_lambda_.35} parent=5 // pred_region
      %s117 = ssub.s32 %s9, 1
      // Predicated region
      $region13: #{_lambda_.35} parent=11 // pred_check
        %p118 = pneg %p56
      $region14: #{_lambda_.35} parent=11 // pred_check_branch
        %120 = sbr.rel (%p118) target = $region16
      $region15: #{_lambda_.35} parent=11 // pred_region
        _
      $region16: #{_lambda_.35} parent=11 // pred_fallthru
        _
      // Predicated region
      $region17: #{_lambda_.35} parent=11 // pred_check
        %p121 = pneg %p77
      $region18: #{_lambda_.35} parent=11 // pred_check_branch
        %123 = sbr.rel (%p121) target = $region20
      $region19: #{_lambda_.35} parent=11 // pred_region
        _
      $region20: #{_lambda_.35} parent=11 // pred_fallthru
        _
    $region12: #{_lambda_.35} parent=5 // pred_fallthru
      _
    %p124 = scmp.lt.s32.totalorder %s9, 2
    // Predicated region
    $region21: #{_lambda_.35} parent=5 // pred_check
      %p125 = pneg %p124
    $region22: #{_lambda_.35} parent=5 // pred_check_branch
      %127 = sbr.rel (%p125) target = $region24
    $region23: #{_lambda_.35} parent=5 // pred_region
      // Predicated region
      $region25: #{_lambda_.35} parent=23 // pred_check
        %p128 = pneg %p29
      $region26: #{_lambda_.35} parent=23 // pred_check_branch
        %130 = sbr.rel (%p128) target = $region28
      $region27: #{_lambda_.35} parent=23 // pred_region
        %s131 = smul.u32 8, %s9
        %p132 = scmp.lt.s32.totalorder %s131, 15
        %s133 = scalar_select %p132, %s131, 15
        %s134 = smul.addr %s133, 4
        %s135 = scalar_lea.vmem %s0, %s134
        %s136 = smul.u32 8, %s9
      $region28: #{_lambda_.35} parent=23 // pred_fallthru
        _
    $region24: #{_lambda_.35} parent=5 // pred_fallthru
      _
    %p137 = scmp.le.s32.totalorder 1, %s9
    %p138 = scmp.lt.s32.totalorder %s9, 3
    %p139 = pnand %p137, %p138
    %p140 = pneg %p139
    // Predicated region
    $region29: #{_lambda_.35} parent=5 // pred_check
      _
    $region30: #{_lambda_.35} parent=5 // pred_check_branch
      %142 = sbr.rel (%p139) target = $region32
    $region31: #{_lambda_.35} parent=5 // pred_region
      %s143 = ssub.s32 %s9, 1
      %s144 = smul.u32 8, %s14
      %p145 = scmp.lt.s32.totalorder %s144, 15
      %s146 = scalar_select %p145, %s144, 15
      %s147 = smul.addr %s146, 4
      %s148 = scalar_lea.vmem %s0, %s147
      %p149 = pneg %p35
      %p150 = pneg %p32
      %p151 = pneg %p56
      %p152 = pneg %p53
      %p153 = pneg %p77
      %p154 = pneg %p74
      %p155 = pneg %p103
      %p156 = pneg %p100
      %s157 = smul.u32 8, %s14
      %p158 = scmp.lt.s32.totalorder %s157, 15
      %s159 = scalar_select %p158, %s157, 15
      %s160 = smul.addr %s159, 4
      %s161 = scalar_lea.vmem %s3, %s160
      %s162 = smul.u32 8, %s14
      %p163 = scmp.lt.s32.totalorder %s162, 15
      %s164 = scalar_select %p163, %s162, 15
      %s165 = smul.addr %s164, 4
      %s166 = scalar_lea.vmem %s0, %s165
      %s167 = smul.u32 8, %s14
      %s168 = smul.u32 8, %s14
      %p169 = scmp.lt.s32.totalorder %s168, 15
      %s170 = scalar_select %p169, %s168, 15
      %s171 = smul.addr %s170, 4
      %s172 = scalar_lea.vmem %s3, %s171
      %s173 = smul.u32 8, %s14
      %v175 = vld [vmem:[%s166] sm:$0xf]
      %v176 = vld [vmem:[%s166 + $0x4] sm:$0xf]
      %v177 = vld [vmem:[%s166 + $0x8] sm:$0xf]
      %v178 = vld [vmem:[%s166 + $0xc] sm:$0xf]
      %v179 = vld [vmem:[%s166 + $0x10] sm:$0xf]
      %v180 = vld [vmem:[%s166 + $0x14] sm:$0xf]
      %v181 = vld [vmem:[%s166 + $0x18] sm:$0xf]
      %v182 = vld [vmem:[%s166 + $0x1c] sm:$0xf]
      %v183 = vld [vmem:[%s1] sm:$0xf]
      %v184 = vld [vmem:[%s1 + $0x4] sm:$0xf]
      %v185 = vld [vmem:[%s1 + $0x8] sm:$0xf]
      %v186 = vld [vmem:[%s1 + $0xc] sm:$0xf]
      %v187 = vld [vmem:[%s1 + $0x10] sm:$0xf]
      %v188 = vld [vmem:[%s1 + $0x14] sm:$0xf]
      %v189 = vld [vmem:[%s1 + $0x18] sm:$0xf]
      %v190 = vld [vmem:[%s1 + $0x1c] sm:$0xf]
      %v191 = vld [vmem:[%s1 + $0x20] sm:$0xf]
      %v192 = vld [vmem:[%s2] sm:$0x1]
      %v194 = vlaneseq
      %v195 = vshrl.u32 %v194, 7
      %v196 = vsub.s32 0, %v195
      %v197 = vrot.slane %v192, %v196
      %v207 = vunpack.c.l.b16 %v175
      %v208 = vunpack.c.l.b16 %v176
      %v209 = vunpack.c.l.b16 %v177
      %v210 = vunpack.c.l.b16 %v178
      %v211 = vunpack.c.l.b16 %v179
      %v212 = vunpack.c.l.b16 %v180
      %v213 = vunpack.c.l.b16 %v181
      %v214 = vunpack.c.l.b16 %v182
      %v215 = vpack.c.b16 %v208, %v207
      %v216 = vpack.c.b16 %v210, %v209
      %v217 = vpack.c.b16 %v212, %v211
      %v218 = vpack.c.b16 %v214, %v213
      %v228 = vunpack.c.l.b16 %v183
      %v229 = vunpack.c.l.b16 %v184
      %v230 = vunpack.c.l.b16 %v185
      %v231 = vunpack.c.l.b16 %v186
      %v232 = vunpack.c.l.b16 %v187
      %v233 = vunpack.c.l.b16 %v188
      %v234 = vunpack.c.l.b16 %v189
      %v235 = vunpack.c.l.b16 %v190
      %v236 = vunpack.c.l.b16 %v191
      %v237 = vpack.c.b16 %v229, %v228
      %v238 = vpack.c.b16 %v231, %v230
      %v239 = vpack.c.b16 %v233, %v232
      %v240 = vpack.c.b16 %v235, %v234
      %v241 = vpack.c.b16 %v236, %v236
      %vm246 = vcmask 588800
      %v248 = vsel %vm246, %v215, 0
      %v251 = vsel %vm246, %v216, 0
      %v254 = vsel %vm246, %v217, 0
      %v257 = vsel %vm246, %v218, 0
      %vm259 = vcmask 1043456
      %v261 = vsel %vm259, %v241, 0
      %263 = vmatprep.subr.bf16.mxu0 0
      %264 = vmatpush1.bf16.msra.mxu0 0
      %265 = vmatprep.subr.bf16.mxu0 0
      %266 = vmatpush1.bf16.msra.mxu0 0
      %267 = vmatprep.subr.bf16.mxu0 0
      %268 = vmatpush1.bf16.msra.mxu0 0
      %269 = vmatprep.subr.bf16.mxu0 0
      %270 = vmatpush1.bf16.msra.mxu0 %v261
      %271 = vmatprep.subr.bf16.mxu0 0
      %272 = vmatpush1.bf16.msra.mxu0 %v240
      %273 = vmatprep.subr.bf16.mxu0 0
      %274 = vmatpush1.bf16.msra.mxu0 %v239
      %275 = vmatprep.subr.bf16.mxu0 0
      %276 = vmatpush1.bf16.msra.mxu0 %v238
      %277 = vmatprep.subr.bf16.mxu0 0
      %278 = vmatpush1.bf16.msra.mxu0 %v237
      %279 = vmatprep.subr.bf16.mxu0 0
      %280 = vmatpush2.bf16.msra.mxu0 0
      %281 = vmatprep.subr.bf16.mxu0 0
      %282 = vmatpush2.bf16.msra.mxu0 0
      %283 = vmatprep.subr.bf16.mxu0 0
      %284 = vmatpush2.bf16.msra.mxu0 0
      %285 = vmatprep.subr.bf16.mxu0 0
      %286 = vmatpush2.bf16.msra.mxu0 0
      %287 = vmatprep.subr.bf16.mxu0 0
      %288 = vmatpush2.bf16.msra.mxu0 0
      %289 = vmatprep.subr.bf16.mxu0 0
      %290 = vmatpush2.bf16.msra.mxu0 0
      %291 = vmatprep.subr.bf16.mxu0 0
      %292 = vmatpush2.bf16.msra.mxu0 0
      %293 = vmatprep.subr.bf16.mxu0 0
      %294 = vmatpush2.bf16.msra.mxu0 0
      %295 = vmatprep.mubr.bf16.mxu0 0
      %296 = vmatmul.mubr.bf16.gmra.mxu0 %v248
      %v297 = vpop.f32.mrf.mxu0
      %v298 = vadd.f32 %v197, %v297
      %v299 = vpop.f32.mrf.mxu0
      %v300 = vpop.f32.mrf.mxu0
      %v301 = vadd.f32 %v197, %v300
      %v302 = vpop.f32.mrf.mxu0
      %303 = vmatprep.mubr.bf16.mxu0 0
      %304 = vmatmul.mubr.bf16.gmra.mxu0 %v251
      %v305 = vpop.f32.mrf.mxu0
      %v306 = vadd.f32 %v197, %v305
      %v307 = vpop.f32.mrf.mxu0
      %v308 = vpop.f32.mrf.mxu0
      %v309 = vadd.f32 %v197, %v308
      %v310 = vpop.f32.mrf.mxu0
      %311 = vmatprep.mubr.bf16.mxu0 0
      %312 = vmatmul.mubr.bf16.gmra.mxu0 %v254
      %v313 = vpop.f32.mrf.mxu0
      %v314 = vadd.f32 %v197, %v313
      %v315 = vpop.f32.mrf.mxu0
      %v316 = vpop.f32.mrf.mxu0
      %v317 = vadd.f32 %v197, %v316
      %v318 = vpop.f32.mrf.mxu0
      %319 = vmatprep.mubr.bf16.mxu0 0
      %320 = vmatmul.mubr.bf16.gmra.mxu0 %v257
      %v321 = vpop.f32.mrf.mxu0
      %v322 = vadd.f32 %v197, %v321
      %v323 = vpop.f32.mrf.mxu0
      %v324 = vpop.f32.mrf.mxu0
      %v325 = vadd.f32 %v197, %v324
      %v326 = vpop.f32.mrf.mxu0
      %327 = vdwg.mxu0
      %v328 = vmax.f32 %v298, 0.0
      %v329 = vmax.f32 %v301, 0.0
      %v330 = vmax.f32 %v306, 0.0
      %v331 = vmax.f32 %v309, 0.0
      %v332 = vmax.f32 %v314, 0.0
      %v333 = vmax.f32 %v317, 0.0
      %v334 = vmax.f32 %v322, 0.0
      %v335 = vmax.f32 %v325, 0.0
      %v336 = vpack.c.bf16 %v329, %v328
      %v337 = vpack.c.bf16 %v331, %v330
      %v338 = vpack.c.bf16 %v333, %v332
      %v339 = vpack.c.bf16 %v335, %v334
      %v344 = vunpack.c.l.b16 %v336
      %v345 = vunpack.c.h.b16 %v336
      %v346 = vunpack.c.l.b16 %v337
      %v347 = vunpack.c.h.b16 %v337
      %v348 = vunpack.c.l.b16 %v338
      %v349 = vunpack.c.h.b16 %v338
      %v350 = vunpack.c.l.b16 %v339
      %v351 = vunpack.c.h.b16 %v339
      %v352 = vpack.c.b16 %v344, %v344
      %v353 = vpack.c.b16 %v345, %v345
      %v354 = vpack.c.b16 %v346, %v346
      %v355 = vpack.c.b16 %v347, %v347
      %v356 = vpack.c.b16 %v348, %v348
      %v357 = vpack.c.b16 %v349, %v349
      %v358 = vpack.c.b16 %v350, %v350
      %v359 = vpack.c.b16 %v351, %v351
      %368 = vst [vmem:[%s172] sm:$0xf] %v352
      %369 = vst [vmem:[%s172 + $0x4] sm:$0xf] %v353
      %370 = vst [vmem:[%s172 + $0x8] sm:$0xf] %v354
      %371 = vst [vmem:[%s172 + $0xc] sm:$0xf] %v355
      %372 = vst [vmem:[%s172 + $0x10] sm:$0xf] %v356
      %373 = vst [vmem:[%s172 + $0x14] sm:$0xf] %v357
      %374 = vst [vmem:[%s172 + $0x18] sm:$0xf] %v358
      %375 = vst [vmem:[%s172 + $0x1c] sm:$0xf] %v359
      %s376 = smul.u32 8, %s14
      %p377 = scmp.lt.s32.totalorder %s376, 15
      %s378 = scalar_select %p377, %s376, 15
      %s379 = smul.addr %s378, 4
      %s380 = scalar_lea.vmem %s3, %s379
      // Predicated region
      $region33: #{_lambda_.35} parent=31 // pred_check
        %p381 = pneg %p100
      $region34: #{_lambda_.35} parent=31 // pred_check_branch
        %383 = sbr.rel (%p381) target = $region36
      $region35: #{_lambda_.35} parent=31 // pred_region
        %s384 = smul.u32 8, %s14
      $region36: #{_lambda_.35} parent=31 // pred_fallthru
        _
    $region32: #{_lambda_.35} parent=5 // pred_fallthru
      _
    %p385 = scmp.le.s32.totalorder 2, %s9
    // Predicated region
    $region37: #{_lambda_.35} parent=5 // pred_check
      %p386 = pneg %p385
    $region38: #{_lambda_.35} parent=5 // pred_check_branch
      %388 = sbr.rel (%p386) target = $region40
    $region39: #{_lambda_.35} parent=5 // pred_region
      %s389 = ssub.s32 %s9, 2
      // Predicated region
      $region41: #{_lambda_.35} parent=39 // pred_check
        %p390 = pneg %p106
      $region42: #{_lambda_.35} parent=39 // pred_check_branch
        %392 = sbr.rel (%p390) target = $region44
      $region43: #{_lambda_.35} parent=39 // pred_region
        %s393 = smul.u32 8, %s15
        %p394 = scmp.lt.s32.totalorder %s393, 15
        %s395 = scalar_select %p394, %s393, 15
        %s396 = smul.addr %s395, 4
        %s397 = scalar_lea.vmem %s3, %s396
      $region44: #{_lambda_.35} parent=39 // pred_fallthru
        _
    $region40: #{_lambda_.35} parent=5 // pred_fallthru
      _
  $region6: #{_lambda_.35} parent=0 // loop_footer
    %s13 = sadd.s32 1, %s9
  $region7: #{_lambda_.35} parent=0 // loop_footer_branch
    %8 = sbr.rel target = $region3
  $region8: #{_lambda_.35} parent=0 // loop_exit
    _

// kernel: _lambda_.36
$region0: #{_lambda_.36}
  #allocation0 [shape = 'u32[]', space=smem, size = 0x4, offset = 0x4, fixed_abs, tag = 'smem constant byte address 0x4 - core index']
  #allocation1 [shape = 'u32[144,128]{1,0:T(1,128)}', space=vmem, size = 0x12000, scoped, tag = 'internal scratch']
  %s0 = inlined_call_operand.vmem [shape: bf16[128,64], index: 0, kind: input, shape index: {}]
  %s1 = inlined_call_operand.vmem [shape: bf16[64,128], index: 1, kind: input, shape index: {}]
  %s2 = inlined_call_operand.vmem [shape: f32[1,128], index: 2, kind: input, shape index: {}]
  %s3 = inlined_call_operand.vmem [shape: bf16[128,128], index: 3, kind: output, shape index: {}]
  %s4 = sld [smem:[#allocation0]]
  $region45: #{_lambda_.36} parent=0
    _
  %s6 = ssub.s32 1, %s4
  %s7 = scalar_select 0, %s6, %s4
  loop: start=0, step=1, limit=4
  $region2: #{_lambda_.36} parent=0 // loop_pre_header
    _
  $region3: #{_lambda_.36} parent=0 // loop_header
    %s9 = sphi 0, %s13
    %p10 = scmp.ge.s32.totalorder %s9, 4
    %s19 = sphi 0, %s21
    %s22 = sphi 0, %s19
    %s23 = sphi 0, %s22
    %s39 = sphi 0, %s23
    %s43 = sphi 0, %s43
    %s45 = sphi 0, %s43
    %s46 = sphi 0, %s45
    %s60 = sphi 0, %s46
    %s64 = sphi 0, %s64
    %s66 = sphi 0, %s64
    %s67 = sphi 0, %s66
    %s81 = sphi 0, %s67
    %s87 = sphi 0, %s89
    %s90 = sphi 0, %s87
    %s91 = sphi 0, %s90
    %s107 = sphi 0, %s91
  $region4: #{_lambda_.36} parent=0 // loop_header_branch
    %12 = sbr.rel (%p10) target = $region8
  $region5: #{_lambda_.36} parent=0 // loop_body
    %s14 = ssub.s32 %s9, 1
    %s15 = ssub.s32 %s9, 2
    %s16 = sadd.s32 %s9, 1
    %s17 = ssub.s32 %s9, %s16
    %p18 = scmp.eq.s32.totalorder %s17, 0
    %s20 = sadd.s32 %s19, 1
    %s21 = scalar_select %p18, %s19, %s20
    %p24 = pneg %p18
    %p25 = scmp.eq.s32.totalorder %s9, 1
    %p26 = por %p24, %p25
    %p27 = scmp.ne.s32.totalorder %s19, %s22
    %p28 = scmp.eq.s32.totalorder %s9, 0
    %p29 = por %p27, %p28
    %p30 = scmp.ne.s32.totalorder %s19, %s22
    %p31 = scmp.eq.s32.totalorder %s14, 1
    %p32 = por %p30, %p31
    %p33 = scmp.ne.s32.totalorder %s22, %s23
    %p34 = scmp.eq.s32.totalorder %s14, 0
    %p35 = por %p33, %p34
    %p36 = scmp.ne.s32.totalorder %s22, %s23
    %p37 = scmp.eq.s32.totalorder %s15, 1
    %p38 = por %p36, %p37
    %p40 = scmp.ne.s32.totalorder %s23, %s39
    %p41 = scmp.eq.s32.totalorder %s15, 0
    %p42 = por %p40, %p41
    %s44 = sadd.s32 %s43, 1
    %p47 = scmp.eq.s32.totalorder %s9, 1
    %p48 = scmp.ne.s32.totalorder %s43, %s45
    %p49 = scmp.eq.s32.totalorder %s9, 0
    %p50 = por %p48, %p49
    %p51 = scmp.ne.s32.totalorder %s43, %s45
    %p52 = scmp.eq.s32.totalorder %s14, 1
    %p53 = por %p51, %p52
    %p54 = scmp.ne.s32.totalorder %s45, %s46
    %p55 = scmp.eq.s32.totalorder %s14, 0
    %p56 = por %p54, %p55
    %p57 = scmp.ne.s32.totalorder %s45, %s46
    %p58 = scmp.eq.s32.totalorder %s15, 1
    %p59 = por %p57, %p58
    %p61 = scmp.ne.s32.totalorder %s46, %s60
    %p62 = scmp.eq.s32.totalorder %s15, 0
    %p63 = por %p61, %p62
    %s65 = sadd.s32 %s64, 1
    %p68 = scmp.eq.s32.totalorder %s9, 1
    %p69 = scmp.ne.s32.totalorder %s64, %s66
    %p70 = scmp.eq.s32.totalorder %s9, 0
    %p71 = por %p69, %p70
    %p72 = scmp.ne.s32.totalorder %s64, %s66
    %p73 = scmp.eq.s32.totalorder %s14, 1
    %p74 = por %p72, %p73
    %p75 = scmp.ne.s32.totalorder %s66, %s67
    %p76 = scmp.eq.s32.totalorder %s14, 0
    %p77 = por %p75, %p76
    %p78 = scmp.ne.s32.totalorder %s66, %s67
    %p79 = scmp.eq.s32.totalorder %s15, 1
    %p80 = por %p78, %p79
    %p82 = scmp.ne.s32.totalorder %s67, %s81
    %p83 = scmp.eq.s32.totalorder %s15, 0
    %p84 = por %p82, %p83
    %s85 = ssub.s32 %s9, %s16
    %p86 = scmp.eq.s32.totalorder %s85, 0
    %s88 = sadd.s32 %s87, 1
    %s89 = scalar_select %p86, %s87, %s88
    %p92 = pneg %p86
    %p93 = scmp.eq.s32.totalorder %s9, 1
    %p94 = por %p92, %p93
    %p95 = scmp.ne.s32.totalorder %s87, %s90
    %p96 = scmp.eq.s32.totalorder %s9, 0
    %p97 = por %p95, %p96
    %p98 = scmp.ne.s32.totalorder %s87, %s90
    %p99 = scmp.eq.s32.totalorder %s14, 1
    %p100 = por %p98, %p99
    %p101 = scmp.ne.s32.totalorder %s90, %s91
    %p102 = scmp.eq.s32.totalorder %s14, 0
    %p103 = por %p101, %p102
    %p104 = scmp.ne.s32.totalorder %s90, %s91
    %p105 = scmp.eq.s32.totalorder %s15, 1
    %p106 = por %p104, %p105
    %p108 = scmp.ne.s32.totalorder %s91, %s107
    %p109 = scmp.eq.s32.totalorder %s15, 0
    %p110 = por %p108, %p109
    %p111 = scmp.le.s32.totalorder 1, %s9
    %p112 = scmp.lt.s32.totalorder %s9, 3
    %p113 = pnand %p111, %p112
    %p114 = pneg %p113
    // Predicated region
    $region9: #{_lambda_.36} parent=5 // pred_check
      _
    $region10: #{_lambda_.36} parent=5 // pred_check_branch
      %116 = sbr.rel (%p113) target = $region12
    $region11: #{_lambda_.36} parent=5 // pred_region
      %s117 = ssub.s32 %s9, 1
      // Predicated region
      $region13: #{_lambda_.36} parent=11 // pred_check
        %p118 = pneg %p56
      $region14: #{_lambda_.36} parent=11 // pred_check_branch
        %120 = sbr.rel (%p118) target = $region16
      $region15: #{_lambda_.36} parent=11 // pred_region
        _
      $region16: #{_lambda_.36} parent=11 // pred_fallthru
        _
      // Predicated region
      $region17: #{_lambda_.36} parent=11 // pred_check
        %p121 = pneg %p77
      $region18: #{_lambda_.36} parent=11 // pred_check_branch
        %123 = sbr.rel (%p121) target = $region20
      $region19: #{_lambda_.36} parent=11 // pred_region
        _
      $region20: #{_lambda_.36} parent=11 // pred_fallthru
        _
    $region12: #{_lambda_.36} parent=5 // pred_fallthru
      _
    %p124 = scmp.lt.s32.totalorder %s9, 2
    // Predicated region
    $region21: #{_lambda_.36} parent=5 // pred_check
      %p125 = pneg %p124
    $region22: #{_lambda_.36} parent=5 // pred_check_branch
      %127 = sbr.rel (%p125) target = $region24
    $region23: #{_lambda_.36} parent=5 // pred_region
      // Predicated region
      $region25: #{_lambda_.36} parent=23 // pred_check
        %p128 = pneg %p29
      $region26: #{_lambda_.36} parent=23 // pred_check_branch
        %130 = sbr.rel (%p128) target = $region28
      $region27: #{_lambda_.36} parent=23 // pred_region
        %s131 = smul.u32 8, %s9
        %p132 = scmp.lt.s32.totalorder %s131, 15
        %s133 = scalar_select %p132, %s131, 15
        %s134 = smul.addr %s133, 4
        %s135 = scalar_lea.vmem %s0, %s134
        %s136 = smul.u32 8, %s9
      $region28: #{_lambda_.36} parent=23 // pred_fallthru
        _
    $region24: #{_lambda_.36} parent=5 // pred_fallthru
      _
    %p137 = scmp.le.s32.totalorder 1, %s9
    %p138 = scmp.lt.s32.totalorder %s9, 3
    %p139 = pnand %p137, %p138
    %p140 = pneg %p139
    // Predicated region
    $region29: #{_lambda_.36} parent=5 // pred_check
      _
    $region30: #{_lambda_.36} parent=5 // pred_check_branch
      %142 = sbr.rel (%p139) target = $region32
    $region31: #{_lambda_.36} parent=5 // pred_region
      %s143 = ssub.s32 %s9, 1
      %s144 = smul.u32 8, %s14
      %p145 = scmp.lt.s32.totalorder %s144, 15
      %s146 = scalar_select %p145, %s144, 15
      %s147 = smul.addr %s146, 4
      %s148 = scalar_lea.vmem %s0, %s147
      %p149 = pneg %p35
      %p150 = pneg %p32
      %p151 = pneg %p56
      %p152 = pneg %p53
      %p153 = pneg %p77
      %p154 = pneg %p74
      %p155 = pneg %p103
      %p156 = pneg %p100
      %s157 = smul.u32 8, %s14
      %p158 = scmp.lt.s32.totalorder %s157, 15
      %s159 = scalar_select %p158, %s157, 15
      %s160 = smul.addr %s159, 4
      %s161 = scalar_lea.vmem %s3, %s160
      %s162 = smul.u32 8, %s14
      %p163 = scmp.lt.s32.totalorder %s162, 15
      %s164 = scalar_select %p163, %s162, 15
      %s165 = smul.addr %s164, 4
      %s166 = scalar_lea.vmem %s0, %s165
      %s167 = smul.u32 8, %s14
      %s168 = smul.u32 8, %s14
      %p169 = scmp.lt.s32.totalorder %s168, 15
      %s170 = scalar_select %p169, %s168, 15
      %s171 = smul.addr %s170, 4
      %s172 = scalar_lea.vmem %s3, %s171
      %s173 = smul.u32 8, %s14
      %v175 = vld [vmem:[%s166] sm:$0xf]
      %v176 = vld [vmem:[%s166 + $0x4] sm:$0xf]
      %v177 = vld [vmem:[%s166 + $0x8] sm:$0xf]
      %v178 = vld [vmem:[%s166 + $0xc] sm:$0xf]
      %v179 = vld [vmem:[%s166 + $0x10] sm:$0xf]
      %v180 = vld [vmem:[%s166 + $0x14] sm:$0xf]
      %v181 = vld [vmem:[%s166 + $0x18] sm:$0xf]
      %v182 = vld [vmem:[%s166 + $0x1c] sm:$0xf]
      %v183 = vld [vmem:[%s1] sm:$0xf]
      %v184 = vld [vmem:[%s1 + $0x4] sm:$0xf]
      %v185 = vld [vmem:[%s1 + $0x8] sm:$0xf]
      %v186 = vld [vmem:[%s1 + $0xc] sm:$0xf]
      %v187 = vld [vmem:[%s1 + $0x10] sm:$0xf]
      %v188 = vld [vmem:[%s1 + $0x14] sm:$0xf]
      %v189 = vld [vmem:[%s1 + $0x18] sm:$0xf]
      %v190 = vld [vmem:[%s1 + $0x1c] sm:$0xf]
      %v191 = vld [vmem:[%s2] sm:$0x1]
      %v193 = vlaneseq
      %v194 = vshrl.u32 %v193, 7
      %v195 = vsub.s32 0, %v194
      %v196 = vrot.slane %v191, %v195
      %v206 = vunpack.c.l.b16 %v175
      %v207 = vunpack.c.l.b16 %v176
      %v208 = vunpack.c.l.b16 %v177
      %v209 = vunpack.c.l.b16 %v178
      %v210 = vunpack.c.l.b16 %v179
      %v211 = vunpack.c.l.b16 %v180
      %v212 = vunpack.c.l.b16 %v181
      %v213 = vunpack.c.l.b16 %v182
      %v214 = vpack.c.b16 %v207, %v206
      %v215 = vpack.c.b16 %v209, %v208
      %v216 = vpack.c.b16 %v211, %v210
      %v217 = vpack.c.b16 %v213, %v212
      %v226 = vunpack.c.l.b16 %v183
      %v227 = vunpack.c.l.b16 %v184
      %v228 = vunpack.c.l.b16 %v185
      %v229 = vunpack.c.l.b16 %v186
      %v230 = vunpack.c.l.b16 %v187
      %v231 = vunpack.c.l.b16 %v188
      %v232 = vunpack.c.l.b16 %v189
      %v233 = vunpack.c.l.b16 %v190
      %v234 = vpack.c.b16 %v227, %v226
      %v235 = vpack.c.b16 %v229, %v228
      %v236 = vpack.c.b16 %v231, %v230
      %v237 = vpack.c.b16 %v233, %v232
      %vm242 = vcmask 523264
      %v244 = vsel %vm242, %v214, 0
      %v247 = vsel %vm242, %v215, 0
      %v250 = vsel %vm242, %v216, 0
      %v253 = vsel %vm242, %v217, 0
      %255 = vmatprep.subr.bf16.mxu0 0
      %256 = vmatpush1.bf16.msra.mxu0 0
      %257 = vmatprep.subr.bf16.mxu0 0
      %258 = vmatpush1.bf16.msra.mxu0 0
      %259 = vmatprep.subr.bf16.mxu0 0
      %260 = vmatpush1.bf16.msra.mxu0 0
      %261 = vmatprep.subr.bf16.mxu0 0
      %262 = vmatpush1.bf16.msra.mxu0 0
      %263 = vmatprep.subr.bf16.mxu0 0
      %264 = vmatpush1.bf16.msra.mxu0 %v237
      %265 = vmatprep.subr.bf16.mxu0 0
      %266 = vmatpush1.bf16.msra.mxu0 %v236
      %267 = vmatprep.subr.bf16.mxu0 0
      %268 = vmatpush1.bf16.msra.mxu0 %v235
      %269 = vmatprep.subr.bf16.mxu0 0
      %270 = vmatpush1.bf16.msra.mxu0 %v234
      %271 = vmatprep.subr.bf16.mxu0 0
      %272 = vmatpush2.bf16.msra.mxu0 0
      %273 = vmatprep.subr.bf16.mxu0 0
      %274 = vmatpush2.bf16.msra.mxu0 0
      %275 = vmatprep.subr.bf16.mxu0 0
      %276 = vmatpush2.bf16.msra.mxu0 0
      %277 = vmatprep.subr.bf16.mxu0 0
      %278 = vmatpush2.bf16.msra.mxu0 0
      %279 = vmatprep.subr.bf16.mxu0 0
      %280 = vmatpush2.bf16.msra.mxu0 0
      %281 = vmatprep.subr.bf16.mxu0 0
      %282 = vmatpush2.bf16.msra.mxu0 0
      %283 = vmatprep.subr.bf16.mxu0 0
      %284 = vmatpush2.bf16.msra.mxu0 0
      %285 = vmatprep.subr.bf16.mxu0 0
      %286 = vmatpush2.bf16.msra.mxu0 0
      %287 = vmatprep.mubr.bf16.mxu0 0
      %288 = vmatmul.mubr.bf16.gmra.mxu0 %v244
      %v289 = vpop.f32.mrf.mxu0
      %v290 = vadd.f32 %v196, %v289
      %v291 = vpop.f32.mrf.mxu0
      %v292 = vpop.f32.mrf.mxu0
      %v293 = vadd.f32 %v196, %v292
      %v294 = vpop.f32.mrf.mxu0
      %295 = vmatprep.mubr.bf16.mxu0 0
      %296 = vmatmul.mubr.bf16.gmra.mxu0 %v247
      %v297 = vpop.f32.mrf.mxu0
      %v298 = vadd.f32 %v196, %v297
      %v299 = vpop.f32.mrf.mxu0
      %v300 = vpop.f32.mrf.mxu0
      %v301 = vadd.f32 %v196, %v300
      %v302 = vpop.f32.mrf.mxu0
      %303 = vmatprep.mubr.bf16.mxu0 0
      %304 = vmatmul.mubr.bf16.gmra.mxu0 %v250
      %v305 = vpop.f32.mrf.mxu0
      %v306 = vadd.f32 %v196, %v305
      %v307 = vpop.f32.mrf.mxu0
      %v308 = vpop.f32.mrf.mxu0
      %v309 = vadd.f32 %v196, %v308
      %v310 = vpop.f32.mrf.mxu0
      %311 = vmatprep.mubr.bf16.mxu0 0
      %312 = vmatmul.mubr.bf16.gmra.mxu0 %v253
      %v313 = vpop.f32.mrf.mxu0
      %v314 = vadd.f32 %v196, %v313
      %v315 = vpop.f32.mrf.mxu0
      %v316 = vpop.f32.mrf.mxu0
      %v317 = vadd.f32 %v196, %v316
      %v318 = vpop.f32.mrf.mxu0
      %319 = vdwg.mxu0
      %v320 = vmax.f32 %v290, 0.0
      %v321 = vmax.f32 %v293, 0.0
      %v322 = vmax.f32 %v298, 0.0
      %v323 = vmax.f32 %v301, 0.0
      %v324 = vmax.f32 %v306, 0.0
      %v325 = vmax.f32 %v309, 0.0
      %v326 = vmax.f32 %v314, 0.0
      %v327 = vmax.f32 %v317, 0.0
      %v328 = vpack.c.bf16 %v321, %v320
      %v329 = vpack.c.bf16 %v323, %v322
      %v330 = vpack.c.bf16 %v325, %v324
      %v331 = vpack.c.bf16 %v327, %v326
      %v336 = vunpack.c.l.b16 %v328
      %v337 = vunpack.c.h.b16 %v328
      %v338 = vunpack.c.l.b16 %v329
      %v339 = vunpack.c.h.b16 %v329
      %v340 = vunpack.c.l.b16 %v330
      %v341 = vunpack.c.h.b16 %v330
      %v342 = vunpack.c.l.b16 %v331
      %v343 = vunpack.c.h.b16 %v331
      %v344 = vpack.c.b16 %v336, %v336
      %v345 = vpack.c.b16 %v337, %v337
      %v346 = vpack.c.b16 %v338, %v338
      %v347 = vpack.c.b16 %v339, %v339
      %v348 = vpack.c.b16 %v340, %v340
      %v349 = vpack.c.b16 %v341, %v341
      %v350 = vpack.c.b16 %v342, %v342
      %v351 = vpack.c.b16 %v343, %v343
      %360 = vst [vmem:[%s172] sm:$0xf] %v344
      %361 = vst [vmem:[%s172 + $0x4] sm:$0xf] %v345
      %362 = vst [vmem:[%s172 + $0x8] sm:$0xf] %v346
      %363 = vst [vmem:[%s172 + $0xc] sm:$0xf] %v347
      %364 = vst [vmem:[%s172 + $0x10] sm:$0xf] %v348
      %365 = vst [vmem:[%s172 + $0x14] sm:$0xf] %v349
      %366 = vst [vmem:[%s172 + $0x18] sm:$0xf] %v350
      %367 = vst [vmem:[%s172 + $0x1c] sm:$0xf] %v351
      %s368 = smul.u32 8, %s14
      %p369 = scmp.lt.s32.totalorder %s368, 15
      %s370 = scalar_select %p369, %s368, 15
      %s371 = smul.addr %s370, 4
      %s372 = scalar_lea.vmem %s3, %s371
      // Predicated region
      $region33: #{_lambda_.36} parent=31 // pred_check
        %p373 = pneg %p100
      $region34: #{_lambda_.36} parent=31 // pred_check_branch
        %375 = sbr.rel (%p373) target = $region36
      $region35: #{_lambda_.36} parent=31 // pred_region
        %s376 = smul.u32 8, %s14
      $region36: #{_lambda_.36} parent=31 // pred_fallthru
        _
    $region32: #{_lambda_.36} parent=5 // pred_fallthru
      _
    %p377 = scmp.le.s32.totalorder 2, %s9
    // Predicated region
    $region37: #{_lambda_.36} parent=5 // pred_check
      %p378 = pneg %p377
    $region38: #{_lambda_.36} parent=5 // pred_check_branch
      %380 = sbr.rel (%p378) target = $region40
    $region39: #{_lambda_.36} parent=5 // pred_region
      %s381 = ssub.s32 %s9, 2
      // Predicated region
      $region41: #{_lambda_.36} parent=39 // pred_check
        %p382 = pneg %p106
      $region42: #{_lambda_.36} parent=39 // pred_check_branch
        %384 = sbr.rel (%p382) target = $region44
      $region43: #{_lambda_.36} parent=39 // pred_region
        %s385 = smul.u32 8, %s15
        %p386 = scmp.lt.s32.totalorder %s385, 15
        %s387 = scalar_select %p386, %s385, 15
        %s388 = smul.addr %s387, 4
        %s389 = scalar_lea.vmem %s3, %s388
      $region44: #{_lambda_.36} parent=39 // pred_fallthru
        _
    $region40: #{_lambda_.36} parent=5 // pred_fallthru
      _
  $region6: #{_lambda_.36} parent=0 // loop_footer
    %s13 = sadd.s32 1, %s9
  $region7: #{_lambda_.36} parent=0 // loop_footer_branch
    %8 = sbr.rel target = $region3
  $region8: #{_lambda_.36} parent=0 // loop_exit
    _

// kernel: _lambda_.41
$region0: #{_lambda_.41}
  #allocation0 [shape = 'u32[]', space=smem, size = 0x4, offset = 0x4, fixed_abs, tag = 'smem constant byte address 0x4 - core index']
  #allocation1 [shape = 'u32[144,128]{1,0:T(1,128)}', space=vmem, size = 0x12000, scoped, tag = 'internal scratch']
  %s0 = inlined_call_operand.vmem [shape: bf16[9,32,128], index: 0, kind: input, shape index: {}]
  %s1 = inlined_call_operand.vmem [shape: f32[9,1,128], index: 1, kind: input, shape index: {}]
  %s2 = inlined_call_operand.vmem [shape: f32[1,128], index: 2, kind: input, shape index: {}]
  %s3 = inlined_call_operand.vmem [shape: bf16[32,128], index: 3, kind: output, shape index: {0}]
  %s4 = inlined_call_operand.vmem [shape: bf16[32,128], index: 4, kind: output, shape index: {1}]
  %5 = xla_tuple %s3, %s4
  %s6 = sld [smem:[#allocation0]]
  $region94: #{_lambda_.41} parent=0
    _
  %s8 = ssub.s32 1, %s6
  %s9 = scalar_select 0, %s8, %s6
  $region1: #{_lambda_.41} parent=0
    #allocation2 [shape = 'u8[73728]{0}', space=vmem, size = 0x12000, scoped, tag = 'input window, operand 0']
    loop: start=0, step=1, limit=4
    $region2: #{_lambda_.41} parent=1 // loop_pre_header
      _
    $region3: #{_lambda_.41} parent=1 // loop_header
      %s11 = sphi 0, %s15
      %p12 = scmp.ge.s32.totalorder %s11, 4
      %s21 = sphi 0, %s23
      %s24 = sphi 0, %s21
      %s25 = sphi 0, %s24
      %s41 = sphi 0, %s25
      %s45 = sphi 0, %s45
      %s47 = sphi 0, %s45
      %s48 = sphi 0, %s47
      %s62 = sphi 0, %s48
      %s66 = sphi 0, %s66
      %s68 = sphi 0, %s66
      %s69 = sphi 0, %s68
      %s83 = sphi 0, %s69
      %s89 = sphi 0, %s91
      %s92 = sphi 0, %s89
      %s93 = sphi 0, %s92
      %s109 = sphi 0, %s93
      %s115 = sphi 0, %s117
      %s118 = sphi 0, %s115
      %s119 = sphi 0, %s118
      %s135 = sphi 0, %s119
    $region4: #{_lambda_.41} parent=1 // loop_header_branch
      %14 = sbr.rel (%p12) target = $region8
    $region5: #{_lambda_.41} parent=1 // loop_body
      %s16 = ssub.s32 %s11, 1
      %s17 = ssub.s32 %s11, 2
      %s18 = sadd.s32 %s11, 1
      %s19 = ssub.s32 %s11, %s18
      %p20 = scmp.eq.s32.totalorder %s19, 0
      %s22 = sadd.s32 %s21, 1
      %s23 = scalar_select %p20, %s21, %s22
      %p26 = pneg %p20
      %p27 = scmp.eq.s32.totalorder %s11, 1
      %p28 = por %p26, %p27
      %p29 = scmp.ne.s32.totalorder %s21, %s24
      %p30 = scmp.eq.s32.totalorder %s11, 0
      %p31 = por %p29, %p30
      %p32 = scmp.ne.s32.totalorder %s21, %s24
      %p33 = scmp.eq.s32.totalorder %s16, 1
      %p34 = por %p32, %p33
      %p35 = scmp.ne.s32.totalorder %s24, %s25
      %p36 = scmp.eq.s32.totalorder %s16, 0
      %p37 = por %p35, %p36
      %p38 = scmp.ne.s32.totalorder %s24, %s25
      %p39 = scmp.eq.s32.totalorder %s17, 1
      %p40 = por %p38, %p39
      %p42 = scmp.ne.s32.totalorder %s25, %s41
      %p43 = scmp.eq.s32.totalorder %s17, 0
      %p44 = por %p42, %p43
      %s46 = sadd.s32 %s45, 1
      %p49 = scmp.eq.s32.totalorder %s11, 1
      %p50 = scmp.ne.s32.totalorder %s45, %s47
      %p51 = scmp.eq.s32.totalorder %s11, 0
      %p52 = por %p50, %p51
      %p53 = scmp.ne.s32.totalorder %s45, %s47
      %p54 = scmp.eq.s32.totalorder %s16, 1
      %p55 = por %p53, %p54
      %p56 = scmp.ne.s32.totalorder %s47, %s48
      %p57 = scmp.eq.s32.totalorder %s16, 0
      %p58 = por %p56, %p57
      %p59 = scmp.ne.s32.totalorder %s47, %s48
      %p60 = scmp.eq.s32.totalorder %s17, 1
      %p61 = por %p59, %p60
      %p63 = scmp.ne.s32.totalorder %s48, %s62
      %p64 = scmp.eq.s32.totalorder %s17, 0
      %p65 = por %p63, %p64
      %s67 = sadd.s32 %s66, 1
      %p70 = scmp.eq.s32.totalorder %s11, 1
      %p71 = scmp.ne.s32.totalorder %s66, %s68
      %p72 = scmp.eq.s32.totalorder %s11, 0
      %p73 = por %p71, %p72
      %p74 = scmp.ne.s32.totalorder %s66, %s68
      %p75 = scmp.eq.s32.totalorder %s16, 1
      %p76 = por %p74, %p75
      %p77 = scmp.ne.s32.totalorder %s68, %s69
      %p78 = scmp.eq.s32.totalorder %s16, 0
      %p79 = por %p77, %p78
      %p80 = scmp.ne.s32.totalorder %s68, %s69
      %p81 = scmp.eq.s32.totalorder %s17, 1
      %p82 = por %p80, %p81
      %p84 = scmp.ne.s32.totalorder %s69, %s83
      %p85 = scmp.eq.s32.totalorder %s17, 0
      %p86 = por %p84, %p85
      %s87 = ssub.s32 %s11, %s18
      %p88 = scmp.eq.s32.totalorder %s87, 0
      %s90 = sadd.s32 %s89, 1
      %s91 = scalar_select %p88, %s89, %s90
      %p94 = pneg %p88
      %p95 = scmp.eq.s32.totalorder %s11, 1
      %p96 = por %p94, %p95
      %p97 = scmp.ne.s32.totalorder %s89, %s92
      %p98 = scmp.eq.s32.totalorder %s11, 0
      %p99 = por %p97, %p98
      %p100 = scmp.ne.s32.totalorder %s89, %s92
      %p101 = scmp.eq.s32.totalorder %s16, 1
      %p102 = por %p100, %p101
      %p103 = scmp.ne.s32.totalorder %s92, %s93
      %p104 = scmp.eq.s32.totalorder %s16, 0
      %p105 = por %p103, %p104
      %p106 = scmp.ne.s32.totalorder %s92, %s93
      %p107 = scmp.eq.s32.totalorder %s17, 1
      %p108 = por %p106, %p107
      %p110 = scmp.ne.s32.totalorder %s93, %s109
      %p111 = scmp.eq.s32.totalorder %s17, 0
      %p112 = por %p110, %p111
      %s113 = ssub.s32 %s11, %s18
      %p114 = scmp.eq.s32.totalorder %s113, 0
      %s116 = sadd.s32 %s115, 1
      %s117 = scalar_select %p114, %s115, %s116
      %p120 = pneg %p114
      %p121 = scmp.eq.s32.totalorder %s11, 1
      %p122 = por %p120, %p121
      %p123 = scmp.ne.s32.totalorder %s115, %s118
      %p124 = scmp.eq.s32.totalorder %s11, 0
      %p125 = por %p123, %p124
      %p126 = scmp.ne.s32.totalorder %s115, %s118
      %p127 = scmp.eq.s32.totalorder %s16, 1
      %p128 = por %p126, %p127
      %p129 = scmp.ne.s32.totalorder %s118, %s119
      %p130 = scmp.eq.s32.totalorder %s16, 0
      %p131 = por %p129, %p130
      %p132 = scmp.ne.s32.totalorder %s118, %s119
      %p133 = scmp.eq.s32.totalorder %s17, 1
      %p134 = por %p132, %p133
      %p136 = scmp.ne.s32.totalorder %s119, %s135
      %p137 = scmp.eq.s32.totalorder %s17, 0
      %p138 = por %p136, %p137
      %p139 = scmp.le.s32.totalorder 1, %s11
      %p140 = scmp.lt.s32.totalorder %s11, 3
      %p141 = pnand %p139, %p140
      %p142 = pneg %p141
      // Predicated region
      $region9: #{_lambda_.41} parent=5 // pred_check
        _
      $region10: #{_lambda_.41} parent=5 // pred_check_branch
        %144 = sbr.rel (%p141) target = $region12
      $region11: #{_lambda_.41} parent=5 // pred_region
        %s145 = ssub.s32 %s11, 1
        // Predicated region
        $region13: #{_lambda_.41} parent=11 // pred_check
          %p146 = pneg %p58
        $region14: #{_lambda_.41} parent=11 // pred_check_branch
          %148 = sbr.rel (%p146) target = $region16
        $region15: #{_lambda_.41} parent=11 // pred_region
          _
        $region16: #{_lambda_.41} parent=11 // pred_fallthru
          _
        // Predicated region
        $region17: #{_lambda_.41} parent=11 // pred_check
          %p149 = pneg %p79
        $region18: #{_lambda_.41} parent=11 // pred_check_branch
          %151 = sbr.rel (%p149) target = $region20
        $region19: #{_lambda_.41} parent=11 // pred_region
          _
        $region20: #{_lambda_.41} parent=11 // pred_fallthru
          _
      $region12: #{_lambda_.41} parent=5 // pred_fallthru
        _
      %p152 = scmp.lt.s32.totalorder %s11, 2
      // Predicated region
      $region21: #{_lambda_.41} parent=5 // pred_check
        %p153 = pneg %p152
      $region22: #{_lambda_.41} parent=5 // pred_check_branch
        %155 = sbr.rel (%p153) target = $region24
      $region23: #{_lambda_.41} parent=5 // pred_region
        // Predicated region
        $region25: #{_lambda_.41} parent=23 // pred_check
          %p156 = pneg %p31
        $region26: #{_lambda_.41} parent=23 // pred_check_branch
          %158 = sbr.rel (%p156) target = $region28
        $region27: #{_lambda_.41} parent=23 // pred_region
          %s159 = sand.u32 %s21, 1
          %s160 = sand.u32 %s21, 1
          %s161 = smul.addr %s160, 72
          %s162 = scalar_lea.vmem [#allocation2], %s161
          %s163 = smul.u32 2, %s11
          %s164 = smul.addr %s163, 4
          %s165 = scalar_lea.vmem %s0, %s164
          // Predicated region
          $region29: #{_lambda_.41} parent=27 // pred_check
            _
          $region30: #{_lambda_.41} parent=27 // pred_check_branch
            %167 = sbr.rel (0) target = $region32
          $region31: #{_lambda_.41} parent=27 // pred_region
            // Predicated region
            $region33: #{_lambda_.41} parent=31 // pred_check
              _
            $region34: #{_lambda_.41} parent=31 // pred_check_branch
              %169 = sbr.rel target = $region36
            $region35: #{_lambda_.41} parent=31 // pred_region
              // Predicated region
              $region48: #{_lambda_.41} parent=35 // pred_check
                _
              $region49: #{_lambda_.41} parent=35 // pred_check_branch
                %219 = sbr.rel (0) target = $region51
              $region50: #{_lambda_.41} parent=35 // pred_region
                loop: start=0, step=1, limit=1
                $region52: #{_lambda_.41} parent=50 // loop_pre_header
                  _
                $region53: #{_lambda_.41} parent=50 // loop_header
                  %s221 = sphi 0, %s225
                  %p222 = scmp.ge.s32.totalorder %s221, 1
                  %s226 = sphi %s165, %s165
                  %s227 = sphi %s162, %s162
                $region54: #{_lambda_.41} parent=50 // loop_header_branch
                  %224 = sbr.rel (%p222) target = $region58
                $region55: #{_lambda_.41} parent=50 // loop_body
                  _
                $region56: #{_lambda_.41} parent=50 // loop_footer
                  %s225 = sadd.s32 1, %s221
                $region57: #{_lambda_.41} parent=50 // loop_footer_branch
                  %220 = sbr.rel target = $region53
                $region58: #{_lambda_.41} parent=50 // loop_exit
                  _
                %s229 = ssub.s32 16, 1
                loop: start=0, step=1, limit=1
                $region59: #{_lambda_.41} parent=50 // loop_pre_header
                  _
                $region60: #{_lambda_.41} parent=50 // loop_header
                  %s231 = sphi 0, %s235
                  %p232 = scmp.ge.s32.totalorder %s231, 1
                  %s236 = sphi %s165, %s165
                  %s237 = sphi %s162, %s162
                $region61: #{_lambda_.41} parent=50 // loop_header_branch
                  %234 = sbr.rel (%p232) target = $region65
                $region62: #{_lambda_.41} parent=50 // loop_body
                  %v238 = vld [vmem:[%s236] sm:%s229]
                  %239 = vst [vmem:[%s237] sm:%s229] %v238
                  %v240 = vld [vmem:[%s236 + $0x4] sm:%s229]
                  %241 = vst [vmem:[%s237 + $0x4] sm:%s229] %v240
                  %v242 = vld [vmem:[%s236 + $0x10] sm:%s229]
                  %243 = vst [vmem:[%s237 + $0x8] sm:%s229] %v242
                  %v244 = vld [vmem:[%s236 + $0x14] sm:%s229]
                  %245 = vst [vmem:[%s237 + $0xc] sm:%s229] %v244
                  %v246 = vld [vmem:[%s236 + $0x20] sm:%s229]
                  %247 = vst [vmem:[%s237 + $0x10] sm:%s229] %v246
                  %v248 = vld [vmem:[%s236 + $0x24] sm:%s229]
                  %249 = vst [vmem:[%s237 + $0x14] sm:%s229] %v248
                  %v250 = vld [vmem:[%s236 + $0x30] sm:%s229]
                  %251 = vst [vmem:[%s237 + $0x18] sm:%s229] %v250
                  %v252 = vld [vmem:[%s236 + $0x34] sm:%s229]
                  %253 = vst [vmem:[%s237 + $0x1c] sm:%s229] %v252
                  %v254 = vld [vmem:[%s236 + $0x40] sm:%s229]
                  %255 = vst [vmem:[%s237 + $0x20] sm:%s229] %v254
                  %v256 = vld [vmem:[%s236 + $0x44] sm:%s229]
                  %257 = vst [vmem:[%s237 + $0x24] sm:%s229] %v256
                  %v258 = vld [vmem:[%s236 + $0x50] sm:%s229]
                  %259 = vst [vmem:[%s237 + $0x28] sm:%s229] %v258
                  %v260 = vld [vmem:[%s236 + $0x54] sm:%s229]
                  %261 = vst [vmem:[%s237 + $0x2c] sm:%s229] %v260
                  %v262 = vld [vmem:[%s236 + $0x60] sm:%s229]
                  %263 = vst [vmem:[%s237 + $0x30] sm:%s229] %v262
                  %v264 = vld [vmem:[%s236 + $0x64] sm:%s229]
                  %265 = vst [vmem:[%s237 + $0x34] sm:%s229] %v264
                  %v266 = vld [vmem:[%s236 + $0x70] sm:%s229]
                  %267 = vst [vmem:[%s237 + $0x38] sm:%s229] %v266
                  %v268 = vld [vmem:[%s236 + $0x74] sm:%s229]
                  %269 = vst [vmem:[%s237 + $0x3c] sm:%s229] %v268
                  %v270 = vld [vmem:[%s236 + $0x80] sm:%s229]
                  %271 = vst [vmem:[%s237 + $0x40] sm:%s229] %v270
                  %v272 = vld [vmem:[%s236 + $0x84] sm:%s229]
                  %273 = vst [vmem:[%s237 + $0x44] sm:%s229] %v272
                $region63: #{_lambda_.41} parent=50 // loop_footer
                  %s235 = sadd.s32 1, %s231
                $region64: #{_lambda_.41} parent=50 // loop_footer_branch
                  %230 = sbr.rel target = $region60
                $region65: #{_lambda_.41} parent=50 // loop_exit
                  _
              $region51: #{_lambda_.41} parent=35 // pred_fallthru
                _
            $region36: #{_lambda_.41} parent=31 // pred_fallthru
              _
            // Predicated region
            $region37: #{_lambda_.41} parent=31 // pred_check
              _
            $region38: #{_lambda_.41} parent=31 // pred_check_branch
              %171 = sbr.rel (0) target = $region40
            $region39: #{_lambda_.41} parent=31 // pred_region
              %s173 = ssub.s32 16, 1
              loop: start=0, step=1, limit=1
              $region41: #{_lambda_.41} parent=39 // loop_pre_header
                _
              $region42: #{_lambda_.41} parent=39 // loop_header
                %s175 = sphi 0, %s179
                %p176 = scmp.ge.s32.totalorder %s175, 1
                %s180 = sphi %s165, %s165
                %s181 = sphi %s162, %s162
              $region43: #{_lambda_.41} parent=39 // loop_header_branch
                %178 = sbr.rel (%p176) target = $region47
              $region44: #{_lambda_.41} parent=39 // loop_body
                %v182 = vld [vmem:[%s180] sm:%s173]
                %183 = vst [vmem:[%s181] sm:%s173] %v182
                %v184 = vld [vmem:[%s180 + $0x4] sm:%s173]
                %185 = vst [vmem:[%s181 + $0x4] sm:%s173] %v184
                %v186 = vld [vmem:[%s180 + $0x10] sm:%s173]
                %187 = vst [vmem:[%s181 + $0x8] sm:%s173] %v186
                %v188 = vld [vmem:[%s180 + $0x14] sm:%s173]
                %189 = vst [vmem:[%s181 + $0xc] sm:%s173] %v188
                %v190 = vld [vmem:[%s180 + $0x20] sm:%s173]
                %191 = vst [vmem:[%s181 + $0x10] sm:%s173] %v190
                %v192 = vld [vmem:[%s180 + $0x24] sm:%s173]
                %193 = vst [vmem:[%s181 + $0x14] sm:%s173] %v192
                %v194 = vld [vmem:[%s180 + $0x30] sm:%s173]
                %195 = vst [vmem:[%s181 + $0x18] sm:%s173] %v194
                %v196 = vld [vmem:[%s180 + $0x34] sm:%s173]
                %197 = vst [vmem:[%s181 + $0x1c] sm:%s173] %v196
                %v198 = vld [vmem:[%s180 + $0x40] sm:%s173]
                %199 = vst [vmem:[%s181 + $0x20] sm:%s173] %v198
                %v200 = vld [vmem:[%s180 + $0x44] sm:%s173]
                %201 = vst [vmem:[%s181 + $0x24] sm:%s173] %v200
                %v202 = vld [vmem:[%s180 + $0x50] sm:%s173]
                %203 = vst [vmem:[%s181 + $0x28] sm:%s173] %v202
                %v204 = vld [vmem:[%s180 + $0x54] sm:%s173]
                %205 = vst [vmem:[%s181 + $0x2c] sm:%s173] %v204
                %v206 = vld [vmem:[%s180 + $0x60] sm:%s173]
                %207 = vst [vmem:[%s181 + $0x30] sm:%s173] %v206
                %v208 = vld [vmem:[%s180 + $0x64] sm:%s173]
                %209 = vst [vmem:[%s181 + $0x34] sm:%s173] %v208
                %v210 = vld [vmem:[%s180 + $0x70] sm:%s173]
                %211 = vst [vmem:[%s181 + $0x38] sm:%s173] %v210
                %v212 = vld [vmem:[%s180 + $0x74] sm:%s173]
                %213 = vst [vmem:[%s181 + $0x3c] sm:%s173] %v212
                %v214 = vld [vmem:[%s180 + $0x80] sm:%s173]
                %215 = vst [vmem:[%s181 + $0x40] sm:%s173] %v214
                %v216 = vld [vmem:[%s180 + $0x84] sm:%s173]
                %217 = vst [vmem:[%s181 + $0x44] sm:%s173] %v216
              $region45: #{_lambda_.41} parent=39 // loop_footer
                %s179 = sadd.s32 1, %s175
              $region46: #{_lambda_.41} parent=39 // loop_footer_branch
                %174 = sbr.rel target = $region42
              $region47: #{_lambda_.41} parent=39 // loop_exit
                _
            $region40: #{_lambda_.41} parent=31 // pred_fallthru
              _
          $region32: #{_lambda_.41} parent=27 // pred_fallthru
            _
          %274 = vnop
        $region28: #{_lambda_.41} parent=23 // pred_fallthru
          _
      $region24: #{_lambda_.41} parent=5 // pred_fallthru
        _
      %p275 = scmp.le.s32.totalorder 1, %s11
      %p276 = scmp.lt.s32.totalorder %s11, 3
      %p277 = pnand %p275, %p276
      %p278 = pneg %p277
      // Predicated region
      $region66: #{_lambda_.41} parent=5 // pred_check
        _
      $region67: #{_lambda_.41} parent=5 // pred_check_branch
        %280 = sbr.rel (%p277) target = $region69
      $region68: #{_lambda_.41} parent=5 // pred_region
        %s281 = ssub.s32 %s11, 1
        %s282 = sand.u32 %s24, 1
        %s283 = sand.u32 %s24, 1
        %s284 = smul.addr %s283, 72
        %s285 = scalar_lea.vmem [#allocation2], %s284
        // Predicated region
        $region70: #{_lambda_.41} parent=68 // pred_check
          %p286 = pneg %p37
        $region71: #{_lambda_.41} parent=68 // pred_check_branch
          %288 = sbr.rel (%p286) target = $region73
        $region72: #{_lambda_.41} parent=68 // pred_region
          _
        $region73: #{_lambda_.41} parent=68 // pred_fallthru
          _
        %s289 = sand.u32 %s24, 1
        %s290 = sand.u32 %s24, 1
        %s291 = smul.addr %s290, 72
        %s292 = scalar_lea.vmem [#allocation2], %s291
        %p293 = pneg %p37
        %p294 = pneg %p34
        %p295 = pneg %p58
        %p296 = pneg %p55
        %p297 = pneg %p79
        %p298 = pneg %p76
        %p299 = pneg %p105
        %p300 = pneg %p102
        %s301 = smul.u32 2, %s16
        %p302 = scmp.lt.s32.totalorder %s301, 3
        %s303 = scalar_select %p302, %s301, 3
        %s304 = smul.addr %s303, 4
        %s305 = scalar_lea.vmem %s3, %s304
        %p306 = pneg %p131
        %p307 = pneg %p128
        %s308 = smul.u32 2, %s16
        %p309 = scmp.lt.s32.totalorder %s308, 3
        %s310 = scalar_select %p309, %s308, 3
        %s311 = smul.addr %s310, 4
        %s312 = scalar_lea.vmem %s4, %s311
        %s313 = smul.u32 2, %s16
        %s314 = smul.u32 2, %s16
        %p315 = scmp.lt.s32.totalorder %s314, 3
        %s316 = scalar_select %p315, %s314, 3
        %s317 = smul.addr %s316, 4
        %s318 = scalar_lea.vmem %s3, %s317
        %s319 = smul.u32 2, %s16
        %s320 = smul.u32 2, %s16
        %p321 = scmp.lt.s32.totalorder %s320, 3
        %s322 = scalar_select %p321, %s320, 3
        %s323 = smul.addr %s322, 4
        %s324 = scalar_lea.vmem %s4, %s323
        %s325 = smul.u32 2, %s16
        %v326 = vld [vmem:[%s285] sm:$0xf]
        %v327 = vld [vmem:[%s285 + $0x4] sm:$0xf]
        %v328 = vunpack.c.l.bf16 %v326
        %v329 = vunpack.c.l.bf16 %v327
        %v330 = vld [vmem:[%s1] sm:$0x1]
        %v332 = vlaneseq
        %v333 = vshrl.u32 %v332, 7
        %v334 = vsub.s32 0, %v333
        %v335 = vrot.slane %v330, %v334
        %v337 = vmul.f32 %v328, %v335
        %v338 = vmul.f32 %v329, %v335
        %s339 = scalar_lea.vmem %s285, 8 [#allocation2]
        %v340 = vld [vmem:[%s339] sm:$0xf]
        %v341 = vld [vmem:[%s339 + $0x4] sm:$0xf]
        %v342 = vunpack.c.l.bf16 %v340
        %v343 = vunpack.c.l.bf16 %v341
        %s344 = scalar_lea.vmem %s1, 1
        %v345 = vld [vmem:[%s344] sm:$0x1]
        %v347 = vlaneseq
        %v348 = vshrl.u32 %v347, 7
        %v349 = vsub.s32 0, %v348
        %v350 = vrot.slane %v345, %v349
        %v352 = vmul.f32 %v342, %v350
        %v353 = vmul.f32 %v343, %v350
        %v354 = vadd.f32 %v337, %v352
        %v355 = vadd.f32 %v338, %v353
        %v356 = vadd.f32 %v328, %v342
        %v357 = vadd.f32 %v329, %v343
        %s358 = scalar_lea.vmem %s285, 16 [#allocation2]
        %v359 = vld [vmem:[%s358] sm:$0xf]
        %v360 = vld [vmem:[%s358 + $0x4] sm:$0xf]
        %v361 = vunpack.c.l.bf16 %v359
        %v362 = vunpack.c.l.bf16 %v360
        %s363 = scalar_lea.vmem %s1, 2
        %v364 = vld [vmem:[%s363] sm:$0x1]
        %v366 = vlaneseq
        %v367 = vshrl.u32 %v366, 7
        %v368 = vsub.s32 0, %v367
        %v369 = vrot.slane %v364, %v368
        %v371 = vmul.f32 %v361, %v369
        %v372 = vmul.f32 %v362, %v369
        %v373 = vadd.f32 %v354, %v371
        %v374 = vadd.f32 %v355, %v372
        %v375 = vadd.f32 %v356, %v361
        %v376 = vadd.f32 %v357, %v362
        %s377 = scalar_lea.vmem %s285, 24 [#allocation2]
        %v378 = vld [vmem:[%s377] sm:$0xf]
        %v379 = vld [vmem:[%s377 + $0x4] sm:$0xf]
        %v380 = vunpack.c.l.bf16 %v378
        %v381 = vunpack.c.l.bf16 %v379
        %s382 = scalar_lea.vmem %s1, 3
        %v383 = vld [vmem:[%s382] sm:$0x1]
        %v385 = vlaneseq
        %v386 = vshrl.u32 %v385, 7
        %v387 = vsub.s32 0, %v386
        %v388 = vrot.slane %v383, %v387
        %v390 = vmul.f32 %v380, %v388
        %v391 = vmul.f32 %v381, %v388
        %v392 = vadd.f32 %v373, %v390
        %v393 = vadd.f32 %v374, %v391
        %v394 = vadd.f32 %v375, %v380
        %v395 = vadd.f32 %v376, %v381
        %s396 = scalar_lea.vmem %s285, 32 [#allocation2]
        %v397 = vld [vmem:[%s396] sm:$0xf]
        %v398 = vld [vmem:[%s396 + $0x4] sm:$0xf]
        %v399 = vunpack.c.l.bf16 %v397
        %v400 = vunpack.c.l.bf16 %v398
        %s401 = scalar_lea.vmem %s1, 4
        %v402 = vld [vmem:[%s401] sm:$0x1]
        %v404 = vlaneseq
        %v405 = vshrl.u32 %v404, 7
        %v406 = vsub.s32 0, %v405
        %v407 = vrot.slane %v402, %v406
        %v409 = vmul.f32 %v399, %v407
        %v410 = vmul.f32 %v400, %v407
        %v411 = vadd.f32 %v392, %v409
        %v412 = vadd.f32 %v393, %v410
        %v413 = vadd.f32 %v394, %v399
        %v414 = vadd.f32 %v395, %v400
        %s415 = scalar_lea.vmem %s285, 40 [#allocation2]
        %v416 = vld [vmem:[%s415] sm:$0xf]
        %v417 = vld [vmem:[%s415 + $0x4] sm:$0xf]
        %v418 = vunpack.c.l.bf16 %v416
        %v419 = vunpack.c.l.bf16 %v417
        %s420 = scalar_lea.vmem %s1, 5
        %v421 = vld [vmem:[%s420] sm:$0x1]
        %v423 = vlaneseq
        %v424 = vshrl.u32 %v423, 7
        %v425 = vsub.s32 0, %v424
        %v426 = vrot.slane %v421, %v425
        %v428 = vmul.f32 %v418, %v426
        %v429 = vmul.f32 %v419, %v426
        %v430 = vadd.f32 %v411, %v428
        %v431 = vadd.f32 %v412, %v429
        %v432 = vadd.f32 %v413, %v418
        %v433 = vadd.f32 %v414, %v419
        %s434 = scalar_lea.vmem %s285, 48 [#allocation2]
        %v435 = vld [vmem:[%s434] sm:$0xf]
        %v436 = vld [vmem:[%s434 + $0x4] sm:$0xf]
        %v437 = vunpack.c.l.bf16 %v435
        %v438 = vunpack.c.l.bf16 %v436
        %s439 = scalar_lea.vmem %s1, 6
        %v440 = vld [vmem:[%s439] sm:$0x1]
        %v442 = vlaneseq
        %v443 = vshrl.u32 %v442, 7
        %v444 = vsub.s32 0, %v443
        %v445 = vrot.slane %v440, %v444
        %v447 = vmul.f32 %v437, %v445
        %v448 = vmul.f32 %v438, %v445
        %v449 = vadd.f32 %v430, %v447
        %v450 = vadd.f32 %v431, %v448
        %v451 = vadd.f32 %v432, %v437
        %v452 = vadd.f32 %v433, %v438
        %s453 = scalar_lea.vmem %s285, 56 [#allocation2]
        %v454 = vld [vmem:[%s453] sm:$0xf]
        %v455 = vld [vmem:[%s453 + $0x4] sm:$0xf]
        %v456 = vunpack.c.l.bf16 %v454
        %v457 = vunpack.c.l.bf16 %v455
        %s458 = scalar_lea.vmem %s1, 7
        %v459 = vld [vmem:[%s458] sm:$0x1]
        %v461 = vlaneseq
        %v462 = vshrl.u32 %v461, 7
        %v463 = vsub.s32 0, %v462
        %v464 = vrot.slane %v459, %v463
        %v466 = vmul.f32 %v456, %v464
        %v467 = vmul.f32 %v457, %v464
        %v468 = vadd.f32 %v449, %v466
        %v469 = vadd.f32 %v450, %v467
        %v470 = vadd.f32 %v451, %v456
        %v471 = vadd.f32 %v452, %v457
        %s472 = scalar_lea.vmem %s285, 64 [#allocation2]
        %v473 = vld [vmem:[%s472] sm:$0xf]
        %v474 = vld [vmem:[%s472 + $0x4] sm:$0xf]
        %v475 = vunpack.c.l.bf16 %v473
        %v476 = vunpack.c.l.bf16 %v474
        %s477 = scalar_lea.vmem %s1, 8
        %v478 = vld [vmem:[%s477] sm:$0x1]
        %v480 = vlaneseq
        %v481 = vshrl.u32 %v480, 7
        %v482 = vsub.s32 0, %v481
        %v483 = vrot.slane %v478, %v482
        %v485 = vmul.f32 %v475, %v483
        %v486 = vmul.f32 %v476, %v483
        %v487 = vadd.f32 %v468, %v485
        %v488 = vadd.f32 %v469, %v486
        %v489 = vadd.f32 %v470, %v475
        %v490 = vadd.f32 %v471, %v476
        %v491 = vld [vmem:[%s2] sm:$0x1]
        %v493 = vlaneseq
        %v494 = vshrl.u32 %v493, 7
        %v495 = vsub.s32 0, %v494
        %v496 = vrot.slane %v491, %v495
        %v498 = vadd.f32 %v487, %v496
        %v499 = vadd.f32 %v488, %v496
        %v500 = vpack.c.bf16 %v499, %v498
        %v502 = vunpack.c.l.b16 %v500
        %v503 = vunpack.c.h.b16 %v500
        %v504 = vpack.c.b16 %v502, %v502
        %v505 = vpack.c.b16 %v503, %v503
        %508 = vst [vmem:[%s318] sm:$0xf] %v504
        %509 = vst [vmem:[%s318 + $0x4] sm:$0xf] %v505
        %v510 = vmul.f32 %v489, 0.11111111
        %v511 = vmul.f32 %v490, 0.11111111
        %v512 = vpack.c.bf16 %v511, %v510
        %v514 = vunpack.c.l.b16 %v512
        %v515 = vunpack.c.h.b16 %v512
        %v516 = vpack.c.b16 %v514, %v514
        %v517 = vpack.c.b16 %v515, %v515
        %520 = vst [vmem:[%s324] sm:$0xf] %v516
        %521 = vst [vmem:[%s324 + $0x4] sm:$0xf] %v517
        %s522 = smul.u32 2, %s16
        %p523 = scmp.lt.s32.totalorder %s522, 3
        %s524 = scalar_select %p523, %s522, 3
        %s525 = smul.addr %s524, 4
        %s526 = scalar_lea.vmem %s3, %s525
        %s527 = smul.u32 2, %s16
        %p528 = scmp.lt.s32.totalorder %s527, 3
        %s529 = scalar_select %p528, %s527, 3
        %s530 = smul.addr %s529, 4
        %s531 = scalar_lea.vmem %s4, %s530
        // Predicated region
        $region74: #{_lambda_.41} parent=68 // pred_check
          %p532 = pneg %p102
        $region75: #{_lambda_.41} parent=68 // pred_check_branch
          %534 = sbr.rel (%p532) target = $region77
        $region76: #{_lambda_.41} parent=68 // pred_region
          %s535 = smul.u32 2, %s16
        $region77: #{_lambda_.41} parent=68 // pred_fallthru
          _
        // Predicated region
        $region78: #{_lambda_.41} parent=68 // pred_check
          %p536 = pneg %p128
        $region79: #{_lambda_.41} parent=68 // pred_check_branch
          %538 = sbr.rel (%p536) target = $region81
        $region80: #{_lambda_.41} parent=68 // pred_region
          %s539 = smul.u32 2, %s16
        $region81: #{_lambda_.41} parent=68 // pred_fallthru
          _
      $region69: #{_lambda_.41} parent=5 // pred_fallthru
        _
      %p540 = scmp.le.s32.totalorder 2, %s11
      // Predicated region
      $region82: #{_lambda_.41} parent=5 // pred_check
        %p541 = pneg %p540
      $region83: #{_lambda_.41} parent=5 // pred_check_branch
        %543 = sbr.rel (%p541) target = $region85
      $region84: #{_lambda_.41} parent=5 // pred_region
        %s544 = ssub.s32 %s11, 2
        // Predicated region
        $region86: #{_lambda_.41} parent=84 // pred_check
          %p545 = pneg %p108
        $region87: #{_lambda_.41} parent=84 // pred_check_branch
          %547 = sbr.rel (%p545) target = $region89
        $region88: #{_lambda_.41} parent=84 // pred_region
          %s548 = smul.u32 2, %s17
          %p549 = scmp.lt.s32.totalorder %s548, 3
          %s550 = scalar_select %p549, %s548, 3
          %s551 = smul.addr %s550, 4
          %s552 = scalar_lea.vmem %s3, %s551
        $region89: #{_lambda_.41} parent=84 // pred_fallthru
          _
        // Predicated region
        $region90: #{_lambda_.41} parent=84 // pred_check
          %p553 = pneg %p134
        $region91: #{_lambda_.41} parent=84 // pred_check_branch
          %555 = sbr.rel (%p553) target = $region93
        $region92: #{_lambda_.41} parent=84 // pred_region
          %s556 = smul.u32 2, %s17
          %p557 = scmp.lt.s32.totalorder %s556, 3
          %s558 = scalar_select %p557, %s556, 3
          %s559 = smul.addr %s558, 4
          %s560 = scalar_lea.vmem %s4, %s559
        $region93: #{_lambda_.41} parent=84 // pred_fallthru
          _
      $region85: #{_lambda_.41} parent=5 // pred_fallthru
        _
    $region6: #{_lambda_.41} parent=1 // loop_footer
      %s15 = sadd.s32 1, %s11
    $region7: #{_lambda_.41} parent=1 // loop_footer_branch
      %10 = sbr.rel target = $region3
    $region8: #{_lambda_.41} parent=1 // loop_exit
      _

// kernel: _lambda_.42
$region0: #{_lambda_.42}
  #allocation0 [shape = 'u32[]', space=smem, size = 0x4, offset = 0x4, fixed_abs, tag = 'smem constant byte address 0x4 - core index']
  #allocation1 [shape = 'u32[144,128]{1,0:T(1,128)}', space=vmem, size = 0x12000, scoped, tag = 'internal scratch']
  %s0 = inlined_call_operand.vmem [shape: bf16[32,576], index: 0, kind: input, shape index: {}]
  %s1 = inlined_call_operand.vmem [shape: bf16[576,128], index: 1, kind: input, shape index: {}]
  %s2 = inlined_call_operand.vmem [shape: f32[1,128], index: 2, kind: input, shape index: {}]
  %s3 = inlined_call_operand.vmem [shape: bf16[32,128], index: 3, kind: output, shape index: {}]
  %s4 = sld [smem:[#allocation0]]
  $region45: #{_lambda_.42} parent=0
    _
  %s6 = ssub.s32 1, %s4
  %s7 = scalar_select 0, %s6, %s4
  loop: start=0, step=1, limit=4
  $region2: #{_lambda_.42} parent=0 // loop_pre_header
    _
  $region3: #{_lambda_.42} parent=0 // loop_header
    %s9 = sphi 0, %s13
    %p10 = scmp.ge.s32.totalorder %s9, 4
    %s19 = sphi 0, %s21
    %s22 = sphi 0, %s19
    %s23 = sphi 0, %s22
    %s39 = sphi 0, %s23
    %s43 = sphi 0, %s43
    %s45 = sphi 0, %s43
    %s46 = sphi 0, %s45
    %s60 = sphi 0, %s46
    %s64 = sphi 0, %s64
    %s66 = sphi 0, %s64
    %s67 = sphi 0, %s66
    %s81 = sphi 0, %s67
    %s87 = sphi 0, %s89
    %s90 = sphi 0, %s87
    %s91 = sphi 0, %s90
    %s107 = sphi 0, %s91
  $region4: #{_lambda_.42} parent=0 // loop_header_branch
    %12 = sbr.rel (%p10) target = $region8
  $region5: #{_lambda_.42} parent=0 // loop_body
    %s14 = ssub.s32 %s9, 1
    %s15 = ssub.s32 %s9, 2
    %s16 = sadd.s32 %s9, 1
    %s17 = ssub.s32 %s9, %s16
    %p18 = scmp.eq.s32.totalorder %s17, 0
    %s20 = sadd.s32 %s19, 1
    %s21 = scalar_select %p18, %s19, %s20
    %p24 = pneg %p18
    %p25 = scmp.eq.s32.totalorder %s9, 1
    %p26 = por %p24, %p25
    %p27 = scmp.ne.s32.totalorder %s19, %s22
    %p28 = scmp.eq.s32.totalorder %s9, 0
    %p29 = por %p27, %p28
    %p30 = scmp.ne.s32.totalorder %s19, %s22
    %p31 = scmp.eq.s32.totalorder %s14, 1
    %p32 = por %p30, %p31
    %p33 = scmp.ne.s32.totalorder %s22, %s23
    %p34 = scmp.eq.s32.totalorder %s14, 0
    %p35 = por %p33, %p34
    %p36 = scmp.ne.s32.totalorder %s22, %s23
    %p37 = scmp.eq.s32.totalorder %s15, 1
    %p38 = por %p36, %p37
    %p40 = scmp.ne.s32.totalorder %s23, %s39
    %p41 = scmp.eq.s32.totalorder %s15, 0
    %p42 = por %p40, %p41
    %s44 = sadd.s32 %s43, 1
    %p47 = scmp.eq.s32.totalorder %s9, 1
    %p48 = scmp.ne.s32.totalorder %s43, %s45
    %p49 = scmp.eq.s32.totalorder %s9, 0
    %p50 = por %p48, %p49
    %p51 = scmp.ne.s32.totalorder %s43, %s45
    %p52 = scmp.eq.s32.totalorder %s14, 1
    %p53 = por %p51, %p52
    %p54 = scmp.ne.s32.totalorder %s45, %s46
    %p55 = scmp.eq.s32.totalorder %s14, 0
    %p56 = por %p54, %p55
    %p57 = scmp.ne.s32.totalorder %s45, %s46
    %p58 = scmp.eq.s32.totalorder %s15, 1
    %p59 = por %p57, %p58
    %p61 = scmp.ne.s32.totalorder %s46, %s60
    %p62 = scmp.eq.s32.totalorder %s15, 0
    %p63 = por %p61, %p62
    %s65 = sadd.s32 %s64, 1
    %p68 = scmp.eq.s32.totalorder %s9, 1
    %p69 = scmp.ne.s32.totalorder %s64, %s66
    %p70 = scmp.eq.s32.totalorder %s9, 0
    %p71 = por %p69, %p70
    %p72 = scmp.ne.s32.totalorder %s64, %s66
    %p73 = scmp.eq.s32.totalorder %s14, 1
    %p74 = por %p72, %p73
    %p75 = scmp.ne.s32.totalorder %s66, %s67
    %p76 = scmp.eq.s32.totalorder %s14, 0
    %p77 = por %p75, %p76
    %p78 = scmp.ne.s32.totalorder %s66, %s67
    %p79 = scmp.eq.s32.totalorder %s15, 1
    %p80 = por %p78, %p79
    %p82 = scmp.ne.s32.totalorder %s67, %s81
    %p83 = scmp.eq.s32.totalorder %s15, 0
    %p84 = por %p82, %p83
    %s85 = ssub.s32 %s9, %s16
    %p86 = scmp.eq.s32.totalorder %s85, 0
    %s88 = sadd.s32 %s87, 1
    %s89 = scalar_select %p86, %s87, %s88
    %p92 = pneg %p86
    %p93 = scmp.eq.s32.totalorder %s9, 1
    %p94 = por %p92, %p93
    %p95 = scmp.ne.s32.totalorder %s87, %s90
    %p96 = scmp.eq.s32.totalorder %s9, 0
    %p97 = por %p95, %p96
    %p98 = scmp.ne.s32.totalorder %s87, %s90
    %p99 = scmp.eq.s32.totalorder %s14, 1
    %p100 = por %p98, %p99
    %p101 = scmp.ne.s32.totalorder %s90, %s91
    %p102 = scmp.eq.s32.totalorder %s14, 0
    %p103 = por %p101, %p102
    %p104 = scmp.ne.s32.totalorder %s90, %s91
    %p105 = scmp.eq.s32.totalorder %s15, 1
    %p106 = por %p104, %p105
    %p108 = scmp.ne.s32.totalorder %s91, %s107
    %p109 = scmp.eq.s32.totalorder %s15, 0
    %p110 = por %p108, %p109
    %p111 = scmp.le.s32.totalorder 1, %s9
    %p112 = scmp.lt.s32.totalorder %s9, 3
    %p113 = pnand %p111, %p112
    %p114 = pneg %p113
    // Predicated region
    $region9: #{_lambda_.42} parent=5 // pred_check
      _
    $region10: #{_lambda_.42} parent=5 // pred_check_branch
      %116 = sbr.rel (%p113) target = $region12
    $region11: #{_lambda_.42} parent=5 // pred_region
      %s117 = ssub.s32 %s9, 1
      // Predicated region
      $region13: #{_lambda_.42} parent=11 // pred_check
        %p118 = pneg %p56
      $region14: #{_lambda_.42} parent=11 // pred_check_branch
        %120 = sbr.rel (%p118) target = $region16
      $region15: #{_lambda_.42} parent=11 // pred_region
        _
      $region16: #{_lambda_.42} parent=11 // pred_fallthru
        _
      // Predicated region
      $region17: #{_lambda_.42} parent=11 // pred_check
        %p121 = pneg %p77
      $region18: #{_lambda_.42} parent=11 // pred_check_branch
        %123 = sbr.rel (%p121) target = $region20
      $region19: #{_lambda_.42} parent=11 // pred_region
        _
      $region20: #{_lambda_.42} parent=11 // pred_fallthru
        _
    $region12: #{_lambda_.42} parent=5 // pred_fallthru
      _
    %p124 = scmp.lt.s32.totalorder %s9, 2
    // Predicated region
    $region21: #{_lambda_.42} parent=5 // pred_check
      %p125 = pneg %p124
    $region22: #{_lambda_.42} parent=5 // pred_check_branch
      %127 = sbr.rel (%p125) target = $region24
    $region23: #{_lambda_.42} parent=5 // pred_region
      // Predicated region
      $region25: #{_lambda_.42} parent=23 // pred_check
        %p128 = pneg %p29
      $region26: #{_lambda_.42} parent=23 // pred_check_branch
        %130 = sbr.rel (%p128) target = $region28
      $region27: #{_lambda_.42} parent=23 // pred_region
        %s131 = smul.u32 2, %s9
        %p132 = scmp.lt.s32.totalorder %s131, 3
        %s133 = scalar_select %p132, %s131, 3
        %s134 = smul.addr %s133, 5
        %s135 = smul.addr %s134, 4
        %s136 = scalar_lea.vmem %s0, %s135
        %s137 = smul.u32 2, %s9
      $region28: #{_lambda_.42} parent=23 // pred_fallthru
        _
    $region24: #{_lambda_.42} parent=5 // pred_fallthru
      _
    %p138 = scmp.le.s32.totalorder 1, %s9
    %p139 = scmp.lt.s32.totalorder %s9, 3
    %p140 = pnand %p138, %p139
    %p141 = pneg %p140
    // Predicated region
    $region29: #{_lambda_.42} parent=5 // pred_check
      _
    $region30: #{_lambda_.42} parent=5 // pred_check_branch
      %143 = sbr.rel (%p140) target = $region32
    $region31: #{_lambda_.42} parent=5 // pred_region
      %s144 = ssub.s32 %s9, 1
      %s145 = smul.u32 2, %s14
      %p146 = scmp.lt.s32.totalorder %s145, 3
      %s147 = scalar_select %p146, %s145, 3
      %s148 = smul.addr %s147, 5
      %s149 = smul.addr %s148, 4
      %s150 = scalar_lea.vmem %s0, %s149
      %p151 = pneg %p35
      %p152 = pneg %p32
      %p153 = pneg %p56
      %p154 = pneg %p53
      %p155 = pneg %p77
      %p156 = pneg %p74
      %p157 = pneg %p103
      %p158 = pneg %p100
      %s159 = smul.u32 2, %s14
      %p160 = scmp.lt.s32.totalorder %s159, 3
      %s161 = scalar_select %p160, %s159, 3
      %s162 = smul.addr %s161, 4
      %s163 = scalar_lea.vmem %s3, %s162
      %s164 = smul.u32 2, %s14
      %p165 = scmp.lt.s32.totalorder %s164, 3
      %s166 = scalar_select %p165, %s164, 3
      %s167 = smul.addr %s166, 5
      %s168 = smul.addr %s167, 4
      %s169 = scalar_lea.vmem %s0, %s168
      %s170 = smul.u32 2, %s14
      %s171 = smul.u32 2, %s14
      %p172 = scmp.lt.s32.totalorder %s171, 3
      %s173 = scalar_select %p172, %s171, 3
      %s174 = smul.addr %s173, 4
      %s175 = scalar_lea.vmem %s3, %s174
      %s176 = smul.u32 2, %s14
      %v178 = vld [vmem:[%s169] sm:$0xff]
      %v179 = vld [vmem:[%s169 + $0x8] sm:$0xff]
      %v180 = vld [vmem:[%s169 + $0x10] sm:$0xf]
      %v181 = vld [vmem:[%s169 + $0x14] sm:$0xff]
      %v182 = vld [vmem:[%s169 + $0x1c] sm:$0xff]
      %v183 = vld [vmem:[%s169 + $0x24] sm:$0xf]
      %v184 = vld [vmem:[%s1] sm:$0xf]
      %v185 = vld [vmem:[%s1 + $0x4] sm:$0xf]
      %v186 = vld [vmem:[%s1 + $0x8] sm:$0xf]
      %v187 = vld [vmem:[%s1 + $0xc] sm:$0xf]
      %v188 = vld [vmem:[%s1 + $0x10] sm:$0xf]
      %v189 = vld [vmem:[%s1 + $0x14] sm:$0xf]
      %v190 = vld [vmem:[%s1 + $0x18] sm:$0xf]
      %v191 = vld [vmem:[%s1 + $0x1c] sm:$0xf]
      %v192 = vld [vmem:[%s1 + $0x20] sm:$0xf]
      %v193 = vld [vmem:[%s1 + $0x24] sm:$0xf]
      %v194 = vld [vmem:[%s1 + $0x28] sm:$0xf]
      %v195 = vld [vmem:[%s1 + $0x2c] sm:$0xf]
      %v196 = vld [vmem:[%s1 + $0x30] sm:$0xf]
      %v197 = vld [vmem:[%s1 + $0x34] sm:$0xf]
      %v198 = vld [vmem:[%s1 + $0x38] sm:$0xf]
      %v199 = vld [vmem:[%s1 + $0x3c] sm:$0xf]
      %v200 = vld [vmem:[%s1 + $0x40] sm:$0xf]
      %v201 = vld [vmem:[%s1 + $0x44] sm:$0xf]
      %v202 = vld [vmem:[%s1 + $0x48] sm:$0xf]
      %v203 = vld [vmem:[%s1 + $0x4c] sm:$0xf]
      %v204 = vld [vmem:[%s1 + $0x50] sm:$0xf]
      %v205 = vld [vmem:[%s1 + $0x54] sm:$0xf]
      %v206 = vld [vmem:[%s1 + $0x58] sm:$0xf]
      %v207 = vld [vmem:[%s1 + $0x5c] sm:$0xf]
      %v208 = vld [vmem:[%s1 + $0x60] sm:$0xf]
      %v209 = vld [vmem:[%s1 + $0x64] sm:$0xf]
      %v210 = vld [vmem:[%s1 + $0x68] sm:$0xf]
      %v211 = vld [vmem:[%s1 + $0x6c] sm:$0xf]
      %v212 = vld [vmem:[%s1 + $0x70] sm:$0xf]
      %v213 = vld [vmem:[%s1 + $0x74] sm:$0xf]
      %v214 = vld [vmem:[%s1 + $0x78] sm:$0xf]
      %v215 = vld [vmem:[%s1 + $0x7c] sm:$0xf]
      %v216 = vld [vmem:[%s1 + $0x80] sm:$0xf]
      %v217 = vld [vmem:[%s1 + $0x84] sm:$0xf]
      %v218 = vld [vmem:[%s1 + $0x88] sm:$0xf]
      %v219 = vld [vmem:[%s1 + $0x8c] sm:$0xf]
      %v220 = vld [vmem:[%s1 + $0x90] sm:$0xf]
      %v221 = vld [vmem:[%s1 + $0x94] sm:$0xf]
      %v222 = vld [vmem:[%s1 + $0x98] sm:$0xf]
      %v223 = vld [vmem:[%s1 + $0x9c] sm:$0xf]
      %v224 = vld [vmem:[%s1 + $0xa0] sm:$0xf]
      %v225 = vld [vmem:[%s1 + $0xa4] sm:$0xf]
      %v226 = vld [vmem:[%s1 + $0xa8] sm:$0xf]
      %v227 = vld [vmem:[%s1 + $0xac] sm:$0xf]
      %v228 = vld [vmem:[%s1 + $0xb0] sm:$0xf]
      %v229 = vld [vmem:[%s1 + $0xb4] sm:$0xf]
      %v230 = vld [vmem:[%s1 + $0xb8] sm:$0xf]
      %v231 = vld [vmem:[%s1 + $0xbc] sm:$0xf]
      %v232 = vld [vmem:[%s1 + $0xc0] sm:$0xf]
      %v233 = vld [vmem:[%s1 + $0xc4] sm:$0xf]
      %v234 = vld [vmem:[%s1 + $0xc8] sm:$0xf]
      %v235 = vld [vmem:[%s1 + $0xcc] sm:$0xf]
      %v236 = vld [vmem:[%s1 + $0xd0] sm:$0xf]
      %v237 = vld [vmem:[%s1 + $0xd4] sm:$0xf]
      %v238 = vld [vmem:[%s1 + $0xd8] sm:$0xf]
      %v239 = vld [vmem:[%s1 + $0xdc] sm:$0xf]
      %v240 = vld [vmem:[%s1 + $0xe0] sm:$0xf]
      %v241 = vld [vmem:[%s1 + $0xe4] sm:$0xf]
      %v242 = vld [vmem:[%s1 + $0xe8] sm:$0xf]
      %v243 = vld [vmem:[%s1 + $0xec] sm:$0xf]
      %v244 = vld [vmem:[%s1 + $0xf0] sm:$0xf]
      %v245 = vld [vmem:[%s1 + $0xf4] sm:$0xf]
      %v246 = vld [vmem:[%s1 + $0xf8] sm:$0xf]
      %v247 = vld [vmem:[%s1 + $0xfc] sm:$0xf]
      %v248 = vld [vmem:[%s1 + $0x100] sm:$0xf]
      %v249 = vld [vmem:[%s1 + $0x104] sm:$0xf]
      %v250 = vld [vmem:[%s1 + $0x108] sm:$0xf]
      %v251 = vld [vmem:[%s1 + $0x10c] sm:$0xf]
      %v252 = vld [vmem:[%s1 + $0x110] sm:$0xf]
      %v253 = vld [vmem:[%s1 + $0x114] sm:$0xf]
      %v254 = vld [vmem:[%s1 + $0x118] sm:$0xf]
      %v255 = vld [vmem:[%s1 + $0x11c] sm:$0xf]
      %v256 = vld [vmem:[%s2] sm:$0x1]
      %v258 = vlaneseq
      %v259 = vshrl.u32 %v258, 7
      %v260 = vsub.s32 0, %v259
      %v261 = vrot.slane %v256, %v260
      %v269 = vunpack.c.l.b16 %v178
      %v270 = vunpack.c.h.b16 %v178
      %v271 = vunpack.c.l.b16 %v179
      %v272 = vunpack.c.h.b16 %v179
      %v273 = vunpack.c.l.b16 %v180
      %v274 = vunpack.c.l.b16 %v181
      %v275 = vunpack.c.h.b16 %v181
      %v276 = vunpack.c.l.b16 %v182
      %v277 = vunpack.c.h.b16 %v182
      %v278 = vunpack.c.l.b16 %v183
      %v279 = vpack.c.b16 %v274, %v269
      %v280 = vpack.c.b16 %v275, %v270
      %v281 = vpack.c.b16 %v276, %v271
      %v282 = vpack.c.b16 %v277, %v272
      %v283 = vpack.c.b16 %v278, %v273
      %v360 = vunpack.c.l.b16 %v184
      %v361 = vunpack.c.l.b16 %v185
      %v362 = vunpack.c.l.b16 %v186
      %v363 = vunpack.c.l.b16 %v187
      %v364 = vunpack.c.l.b16 %v188
      %v365 = vunpack.c.l.b16 %v189
      %v366 = vunpack.c.l.b16 %v190
      %v367 = vunpack.c.l.b16 %v191
      %v368 = vunpack.c.l.b16 %v192
      %v369 = vunpack.c.l.b16 %v193
      %v370 = vunpack.c.l.b16 %v194
      %v371 = vunpack.c.l.b16 %v195
      %v372 = vunpack.c.l.b16 %v196
      %v373 = vunpack.c.l.b16 %v197
      %v374 = vunpack.c.l.b16 %v198
      %v375 = vunpack.c.l.b16 %v199
      %v376 = vunpack.c.l.b16 %v200
      %v377 = vunpack.c.l.b16 %v201
      %v378 = vunpack.c.l.b16 %v202
      %v379 = vunpack.c.l.b16 %v203
      %v380 = vunpack.c.l.b16 %v204
      %v381 = vunpack.c.l.b16 %v205
      %v382 = vunpack.c.l.b16 %v206
      %v383 = vunpack.c.l.b16 %v207
      %v384 = vunpack.c.l.b16 %v208
      %v385 = vunpack.c.l.b16 %v209
      %v386 = vunpack.c.l.b16 %v210
      %v387 = vunpack.c.l.b16 %v211
      %v388 = vunpack.c.l.b16 %v212
      %v389 = vunpack.c.l.b16 %v213
      %v390 = vunpack.c.l.b16 %v214
      %v391 = vunpack.c.l.b16 %v215
      %v392 = vunpack.c.l.b16 %v216
      %v393 = vunpack.c.l.b16 %v217
      %v394 = vunpack.c.l.b16 %v218
      %v395 = vunpack.c.l.b16 %v219
      %v396 = vunpack.c.l.b16 %v220
      %v397 = vunpack.c.l.b16 %v221
      %v398 = vunpack.c.l.b16 %v222
      %v399 = vunpack.c.l.b16 %v223
      %v400 = vunpack.c.l.b16 %v224
      %v401 = vunpack.c.l.b16 %v225
      %v402 = vunpack.c.l.b16 %v226
      %v403 = vunpack.c.l.b16 %v227
      %v404 = vunpack.c.l.b16 %v228
      %v405 = vunpack.c.l.b16 %v229
      %v406 = vunpack.c.l.b16 %v230
      %v407 = vunpack.c.l.b16 %v231
      %v408 = vunpack.c.l.b16 %v232
      %v409 = vunpack.c.l.b16 %v233
      %v410 = vunpack.c.l.b16 %v234
      %v411 = vunpack.c.l.b16 %v235
      %v412 = vunpack.c.l.b16 %v236
      %v413 = vunpack.c.l.b16 %v237
      %v414 = vunpack.c.l.b16 %v238
      %v415 = vunpack.c.l.b16 %v239
      %v416 = vunpack.c.l.b16 %v240
      %v417 = vunpack.c.l.b16 %v241
      %v418 = vunpack.c.l.b16 %v242
      %v419 = vunpack.c.l.b16 %v243
      %v420 = vunpack.c.l.b16 %v244
      %v421 = vunpack.c.l.b16 %v245
      %v422 = vunpack.c.l.b16 %v246
      %v423 = vunpack.c.l.b16 %v247
      %v424 = vunpack.c.l.b16 %v248
      %v425 = vunpack.c.l.b16 %v249
      %v426 = vunpack.c.l.b16 %v250
      %v427 = vunpack.c.l.b16 %v251
      %v428 = vunpack.c.l.b16 %v252
      %v429 = vunpack.c.l.b16 %v253
      %v430 = vunpack.c.l.b16 %v254
      %v431 = vunpack.c.l.b16 %v255
      %v432 = vpack.c.b16 %v361, %v360
      %v433 = vpack.c.b16 %v363, %v362
      %v434 = vpack.c.b16 %v365, %v364
      %v435 = vpack.c.b16 %v367, %v366
      %v436 = vpack.c.b16 %v369, %v368
      %v437 = vpack.c.b16 %v371, %v370
      %v438 = vpack.c.b16 %v373, %v372
      %v439 = vpack.c.b16 %v375, %v374
      %v440 = vpack.c.b16 %v377, %v376
      %v441 = vpack.c.b16 %v379, %v378
      %v442 = vpack.c.b16 %v381, %v380
      %v443 = vpack.c.b16 %v383, %v382
      %v444 = vpack.c.b16 %v385, %v384
      %v445 = vpack.c.b16 %v387, %v386
      %v446 = vpack.c.b16 %v389, %v388
      %v447 = vpack.c.b16 %v391, %v390
      %v448 = vpack.c.b16 %v393, %v392
      %v449 = vpack.c.b16 %v395, %v394
      %v450 = vpack.c.b16 %v397, %v396
      %v451 = vpack.c.b16 %v399, %v398
      %v452 = vpack.c.b16 %v401, %v400
      %v453 = vpack.c.b16 %v403, %v402
      %v454 = vpack.c.b16 %v405, %v404
      %v455 = vpack.c.b16 %v407, %v406
      %v456 = vpack.c.b16 %v409, %v408
      %v457 = vpack.c.b16 %v411, %v410
      %v458 = vpack.c.b16 %v413, %v412
      %v459 = vpack.c.b16 %v415, %v414
      %v460 = vpack.c.b16 %v417, %v416
      %v461 = vpack.c.b16 %v419, %v418
      %v462 = vpack.c.b16 %v421, %v420
      %v463 = vpack.c.b16 %v423, %v422
      %v464 = vpack.c.b16 %v425, %v424
      %v465 = vpack.c.b16 %v427, %v426
      %v466 = vpack.c.b16 %v429, %v428
      %v467 = vpack.c.b16 %v431, %v430
      %vm504 = vcmask 523264
      %v506 = vsel %vm504, %v283, 0
      %508 = vmatprep.subr.bf16.mxu0 0
      %509 = vmatpush1.bf16.msra.mxu0 %v439
      %510 = vmatprep.subr.bf16.mxu0 0
      %511 = vmatpush1.bf16.msra.mxu0 %v438
      %512 = vmatprep.subr.bf16.mxu0 0
      %513 = vmatpush1.bf16.msra.mxu0 %v437
      %514 = vmatprep.subr.bf16.mxu0 0
      %515 = vmatpush1.bf16.msra.mxu0 %v436
      %516 = vmatprep.subr.bf16.mxu0 0
      %517 = vmatpush1.bf16.msra.mxu0 %v435
      %518 = vmatprep.subr.bf16.mxu0 0
      %519 = vmatpush1.bf16.msra.mxu0 %v434
      %520 = vmatprep.subr.bf16.mxu0 0
      %521 = vmatpush1.bf16.msra.mxu0 %v433
      %522 = vmatprep.subr.bf16.mxu0 0
      %523 = vmatpush1.bf16.msra.mxu0 %v432
      %524 = vmatprep.subr.bf16.mxu0 0
      %525 = vmatpush2.bf16.msra.mxu0 %v447
      %526 = vmatprep.subr.bf16.mxu0 0
      %527 = vmatpush2.bf16.msra.mxu0 %v446
      %528 = vmatprep.subr.bf16.mxu0 0
      %529 = vmatpush2.bf16.msra.mxu0 %v445
      %530 = vmatprep.subr.bf16.mxu0 0
      %531 = vmatpush2.bf16.msra.mxu0 %v444
      %532 = vmatprep.subr.bf16.mxu0 0
      %533 = vmatpush2.bf16.msra.mxu0 %v443
      %534 = vmatprep.subr.bf16.mxu0 0
      %535 = vmatpush2.bf16.msra.mxu0 %v442
      %536 = vmatprep.subr.bf16.mxu0 0
      %537 = vmatpush2.bf16.msra.mxu0 %v441
      %538 = vmatprep.subr.bf16.mxu0 0
      %539 = vmatpush2.bf16.msra.mxu0 %v440
      %540 = vmatprep.mubr.bf16.mxu0 %v280
      %541 = vmatmul.mubr.bf16.gmra.mxu0 %v279
      %v542 = vpop.f32.mrf.mxu0
      %v543 = vadd.f32 %v261, %v542
      %v544 = vpop.f32.mrf.mxu0
      %v545 = vpop.f32.mrf.mxu0
      %v546 = vadd.f32 %v261, %v545
      %v547 = vpop.f32.mrf.mxu0
      %548 = vdwg.mxu0
      %549 = vmatprep.subr.bf16.mxu0 0
      %550 = vmatpush1.bf16.msra.mxu0 %v455
      %551 = vmatprep.subr.bf16.mxu0 0
      %552 = vmatpush1.bf16.msra.mxu0 %v454
      %553 = vmatprep.subr.bf16.mxu0 0
      %554 = vmatpush1.bf16.msra.mxu0 %v453
      %555 = vmatprep.subr.bf16.mxu0 0
      %556 = vmatpush1.bf16.msra.mxu0 %v452
      %557 = vmatprep.subr.bf16.mxu0 0
      %558 = vmatpush1.bf16.msra.mxu0 %v451
      %559 = vmatprep.subr.bf16.mxu0 0
      %560 = vmatpush1.bf16.msra.mxu0 %v450
      %561 = vmatprep.subr.bf16.mxu0 0
      %562 = vmatpush1.bf16.msra.mxu0 %v449
      %563 = vmatprep.subr.bf16.mxu0 0
      %564 = vmatpush1.bf16.msra.mxu0 %v448
      %565 = vmatprep.subr.bf16.mxu0 0
      %566 = vmatpush2.bf16.msra.mxu0 %v463
      %567 = vmatprep.subr.bf16.mxu0 0
      %568 = vmatpush2.bf16.msra.mxu0 %v462
      %569 = vmatprep.subr.bf16.mxu0 0
      %570 = vmatpush2.bf16.msra.mxu0 %v461
      %571 = vmatprep.subr.bf16.mxu0 0
      %572 = vmatpush2.bf16.msra.mxu0 %v460
      %573 = vmatprep.subr.bf16.mxu0 0
      %574 = vmatpush2.bf16.msra.mxu0 %v459
      %575 = vmatprep.subr.bf16.mxu0 0
      %576 = vmatpush2.bf16.msra.mxu0 %v458
      %577 = vmatprep.subr.bf16.mxu0 0
      %578 = vmatpush2.bf16.msra.mxu0 %v457
      %579 = vmatprep.subr.bf16.mxu0 0
      %580 = vmatpush2.bf16.msra.mxu0 %v456
      %581 = vmatprep.mubr.bf16.mxu0 %v282
      %582 = vmatmul.mubr.bf16.gmra.mxu0 %v281
      %v583 = vpop.f32.mrf.mxu0
      %v584 = vadd.f32 %v543, %v583
      %v585 = vpop.f32.mrf.mxu0
      %v586 = vpop.f32.mrf.mxu0
      %v587 = vadd.f32 %v546, %v586
      %v588 = vpop.f32.mrf.mxu0
      %589 = vdwg.mxu0
      %590 = vmatprep.subr.bf16.mxu0 0
      %591 = vmatpush1.bf16.msra.mxu0 0
      %592 = vmatprep.subr.bf16.mxu0 0
      %593 = vmatpush1.bf16.msra.mxu0 0
      %594 = vmatprep.subr.bf16.mxu0 0
      %595 = vmatpush1.bf16.msra.mxu0 0
      %596 = vmatprep.subr.bf16.mxu0 0
      %597 = vmatpush1.bf16.msra.mxu0 0
      %598 = vmatprep.subr.bf16.mxu0 0
      %599 = vmatpush1.bf16.msra.mxu0 %v467
      %600 = vmatprep.subr.bf16.mxu0 0
      %601 = vmatpush1.bf16.msra.mxu0 %v466
      %602 = vmatprep.subr.bf16.mxu0 0
      %603 = vmatpush1.bf16.msra.mxu0 %v465
      %604 = vmatprep.subr.bf16.mxu0 0
      %605 = vmatpush1.bf16.msra.mxu0 %v464
      %606 = vmatprep.subr.bf16.mxu0 0
      %607 = vmatpush2.bf16.msra.mxu0 0
      %608 = vmatprep.subr.bf16.mxu0 0
      %609 = vmatpush2.bf16.msra.mxu0 0
      %610 = vmatprep.subr.bf16.mxu0 0
      %611 = vmatpush2.bf16.msra.mxu0 0
      %612 = vmatprep.subr.bf16.mxu0 0
      %613 = vmatpush2.bf16.msra.mxu0 0
      %614 = vmatprep.subr.bf16.mxu0 0
      %615 = vmatpush2.bf16.msra.mxu0 0
      %616 = vmatprep.subr.bf16.mxu0 0
      %617 = vmatpush2.bf16.msra.mxu0 0
      %618 = vmatprep.subr.bf16.mxu0 0
      %619 = vmatpush2.bf16.msra.mxu0 0
      %620 = vmatprep.subr.bf16.mxu0 0
      %621 = vmatpush2.bf16.msra.mxu0 0
      %622 = vmatprep.mubr.bf16.mxu0 0
      %623 = vmatmul.mubr.bf16.gmra.mxu0 %v506
      %v624 = vpop.f32.mrf.mxu0
      %v625 = vadd.f32 %v584, %v624
      %v626 = vpop.f32.mrf.mxu0
      %v627 = vpop.f32.mrf.mxu0
      %v628 = vadd.f32 %v587, %v627
      %v629 = vpop.f32.mrf.mxu0
      %630 = vdwg.mxu0
      %v631 = vmax.f32 %v625, 0.0
      %v632 = vmax.f32 %v628, 0.0
      %v633 = vpack.c.bf16 %v632, %v631
      %v635 = vunpack.c.l.b16 %v633
      %v636 = vunpack.c.h.b16 %v633
      %v637 = vpack.c.b16 %v635, %v635
      %v638 = vpack.c.b16 %v636, %v636
      %641 = vst [vmem:[%s175] sm:$0xf] %v637
      %642 = vst [vmem:[%s175 + $0x4] sm:$0xf] %v638
      %s643 = smul.u32 2, %s14
      %p644 = scmp.lt.s32.totalorder %s643, 3
      %s645 = scalar_select %p644, %s643, 3
      %s646 = smul.addr %s645, 4
      %s647 = scalar_lea.vmem %s3, %s646
      // Predicated region
      $region33: #{_lambda_.42} parent=31 // pred_check
        %p648 = pneg %p100
      $region34: #{_lambda_.42} parent=31 // pred_check_branch
        %650 = sbr.rel (%p648) target = $region36
      $region35: #{_lambda_.42} parent=31 // pred_region
        %s651 = smul.u32 2, %s14
      $region36: #{_lambda_.42} parent=31 // pred_fallthru
        _
    $region32: #{_lambda_.42} parent=5 // pred_fallthru
      _
    %p652 = scmp.le.s32.totalorder 2, %s9
    // Predicated region
    $region37: #{_lambda_.42} parent=5 // pred_check
      %p653 = pneg %p652
    $region38: #{_lambda_.42} parent=5 // pred_check_branch
      %655 = sbr.rel (%p653) target = $region40
    $region39: #{_lambda_.42} parent=5 // pred_region
      %s656 = ssub.s32 %s9, 2
      // Predicated region
      $region41: #{_lambda_.42} parent=39 // pred_check
        %p657 = pneg %p106
      $region42: #{_lambda_.42} parent=39 // pred_check_branch
        %659 = sbr.rel (%p657) target = $region44
      $region43: #{_lambda_.42} parent=39 // pred_region
        %s660 = smul.u32 2, %s15
        %p661 = scmp.lt.s32.totalorder %s660, 3
        %s662 = scalar_select %p661, %s660, 3
        %s663 = smul.addr %s662, 4
        %s664 = scalar_lea.vmem %s3, %s663
      $region44: #{_lambda_.42} parent=39 // pred_fallthru
        _
    $region40: #{_lambda_.42} parent=5 // pred_fallthru
      _
  $region6: #{_lambda_.42} parent=0 // loop_footer
    %s13 = sadd.s32 1, %s9
  $region7: #{_lambda_.42} parent=0 // loop_footer_branch
    %8 = sbr.rel target = $region3
  $region8: #{_lambda_.42} parent=0 // loop_exit
    _

// kernel: _lambda_.43
$region0: #{_lambda_.43}
  #allocation0 [shape = 'u32[]', space=smem, size = 0x4, offset = 0x4, fixed_abs, tag = 'smem constant byte address 0x4 - core index']
  #allocation1 [shape = 'u32[144,128]{1,0:T(1,128)}', space=vmem, size = 0x12000, scoped, tag = 'internal scratch']
  %s0 = inlined_call_operand.vmem [shape: bf16[32,288], index: 0, kind: input, shape index: {}]
  %s1 = inlined_call_operand.vmem [shape: bf16[288,128], index: 1, kind: input, shape index: {}]
  %s2 = inlined_call_operand.vmem [shape: f32[1,128], index: 2, kind: input, shape index: {}]
  %s3 = inlined_call_operand.vmem [shape: bf16[32,128], index: 3, kind: output, shape index: {}]
  %s4 = sld [smem:[#allocation0]]
  $region45: #{_lambda_.43} parent=0
    _
  %s6 = ssub.s32 1, %s4
  %s7 = scalar_select 0, %s6, %s4
  loop: start=0, step=1, limit=4
  $region2: #{_lambda_.43} parent=0 // loop_pre_header
    _
  $region3: #{_lambda_.43} parent=0 // loop_header
    %s9 = sphi 0, %s13
    %p10 = scmp.ge.s32.totalorder %s9, 4
    %s19 = sphi 0, %s21
    %s22 = sphi 0, %s19
    %s23 = sphi 0, %s22
    %s39 = sphi 0, %s23
    %s43 = sphi 0, %s43
    %s45 = sphi 0, %s43
    %s46 = sphi 0, %s45
    %s60 = sphi 0, %s46
    %s64 = sphi 0, %s64
    %s66 = sphi 0, %s64
    %s67 = sphi 0, %s66
    %s81 = sphi 0, %s67
    %s87 = sphi 0, %s89
    %s90 = sphi 0, %s87
    %s91 = sphi 0, %s90
    %s107 = sphi 0, %s91
  $region4: #{_lambda_.43} parent=0 // loop_header_branch
    %12 = sbr.rel (%p10) target = $region8
  $region5: #{_lambda_.43} parent=0 // loop_body
    %s14 = ssub.s32 %s9, 1
    %s15 = ssub.s32 %s9, 2
    %s16 = sadd.s32 %s9, 1
    %s17 = ssub.s32 %s9, %s16
    %p18 = scmp.eq.s32.totalorder %s17, 0
    %s20 = sadd.s32 %s19, 1
    %s21 = scalar_select %p18, %s19, %s20
    %p24 = pneg %p18
    %p25 = scmp.eq.s32.totalorder %s9, 1
    %p26 = por %p24, %p25
    %p27 = scmp.ne.s32.totalorder %s19, %s22
    %p28 = scmp.eq.s32.totalorder %s9, 0
    %p29 = por %p27, %p28
    %p30 = scmp.ne.s32.totalorder %s19, %s22
    %p31 = scmp.eq.s32.totalorder %s14, 1
    %p32 = por %p30, %p31
    %p33 = scmp.ne.s32.totalorder %s22, %s23
    %p34 = scmp.eq.s32.totalorder %s14, 0
    %p35 = por %p33, %p34
    %p36 = scmp.ne.s32.totalorder %s22, %s23
    %p37 = scmp.eq.s32.totalorder %s15, 1
    %p38 = por %p36, %p37
    %p40 = scmp.ne.s32.totalorder %s23, %s39
    %p41 = scmp.eq.s32.totalorder %s15, 0
    %p42 = por %p40, %p41
    %s44 = sadd.s32 %s43, 1
    %p47 = scmp.eq.s32.totalorder %s9, 1
    %p48 = scmp.ne.s32.totalorder %s43, %s45
    %p49 = scmp.eq.s32.totalorder %s9, 0
    %p50 = por %p48, %p49
    %p51 = scmp.ne.s32.totalorder %s43, %s45
    %p52 = scmp.eq.s32.totalorder %s14, 1
    %p53 = por %p51, %p52
    %p54 = scmp.ne.s32.totalorder %s45, %s46
    %p55 = scmp.eq.s32.totalorder %s14, 0
    %p56 = por %p54, %p55
    %p57 = scmp.ne.s32.totalorder %s45, %s46
    %p58 = scmp.eq.s32.totalorder %s15, 1
    %p59 = por %p57, %p58
    %p61 = scmp.ne.s32.totalorder %s46, %s60
    %p62 = scmp.eq.s32.totalorder %s15, 0
    %p63 = por %p61, %p62
    %s65 = sadd.s32 %s64, 1
    %p68 = scmp.eq.s32.totalorder %s9, 1
    %p69 = scmp.ne.s32.totalorder %s64, %s66
    %p70 = scmp.eq.s32.totalorder %s9, 0
    %p71 = por %p69, %p70
    %p72 = scmp.ne.s32.totalorder %s64, %s66
    %p73 = scmp.eq.s32.totalorder %s14, 1
    %p74 = por %p72, %p73
    %p75 = scmp.ne.s32.totalorder %s66, %s67
    %p76 = scmp.eq.s32.totalorder %s14, 0
    %p77 = por %p75, %p76
    %p78 = scmp.ne.s32.totalorder %s66, %s67
    %p79 = scmp.eq.s32.totalorder %s15, 1
    %p80 = por %p78, %p79
    %p82 = scmp.ne.s32.totalorder %s67, %s81
    %p83 = scmp.eq.s32.totalorder %s15, 0
    %p84 = por %p82, %p83
    %s85 = ssub.s32 %s9, %s16
    %p86 = scmp.eq.s32.totalorder %s85, 0
    %s88 = sadd.s32 %s87, 1
    %s89 = scalar_select %p86, %s87, %s88
    %p92 = pneg %p86
    %p93 = scmp.eq.s32.totalorder %s9, 1
    %p94 = por %p92, %p93
    %p95 = scmp.ne.s32.totalorder %s87, %s90
    %p96 = scmp.eq.s32.totalorder %s9, 0
    %p97 = por %p95, %p96
    %p98 = scmp.ne.s32.totalorder %s87, %s90
    %p99 = scmp.eq.s32.totalorder %s14, 1
    %p100 = por %p98, %p99
    %p101 = scmp.ne.s32.totalorder %s90, %s91
    %p102 = scmp.eq.s32.totalorder %s14, 0
    %p103 = por %p101, %p102
    %p104 = scmp.ne.s32.totalorder %s90, %s91
    %p105 = scmp.eq.s32.totalorder %s15, 1
    %p106 = por %p104, %p105
    %p108 = scmp.ne.s32.totalorder %s91, %s107
    %p109 = scmp.eq.s32.totalorder %s15, 0
    %p110 = por %p108, %p109
    %p111 = scmp.le.s32.totalorder 1, %s9
    %p112 = scmp.lt.s32.totalorder %s9, 3
    %p113 = pnand %p111, %p112
    %p114 = pneg %p113
    // Predicated region
    $region9: #{_lambda_.43} parent=5 // pred_check
      _
    $region10: #{_lambda_.43} parent=5 // pred_check_branch
      %116 = sbr.rel (%p113) target = $region12
    $region11: #{_lambda_.43} parent=5 // pred_region
      %s117 = ssub.s32 %s9, 1
      // Predicated region
      $region13: #{_lambda_.43} parent=11 // pred_check
        %p118 = pneg %p56
      $region14: #{_lambda_.43} parent=11 // pred_check_branch
        %120 = sbr.rel (%p118) target = $region16
      $region15: #{_lambda_.43} parent=11 // pred_region
        _
      $region16: #{_lambda_.43} parent=11 // pred_fallthru
        _
      // Predicated region
      $region17: #{_lambda_.43} parent=11 // pred_check
        %p121 = pneg %p77
      $region18: #{_lambda_.43} parent=11 // pred_check_branch
        %123 = sbr.rel (%p121) target = $region20
      $region19: #{_lambda_.43} parent=11 // pred_region
        _
      $region20: #{_lambda_.43} parent=11 // pred_fallthru
        _
    $region12: #{_lambda_.43} parent=5 // pred_fallthru
      _
    %p124 = scmp.lt.s32.totalorder %s9, 2
    // Predicated region
    $region21: #{_lambda_.43} parent=5 // pred_check
      %p125 = pneg %p124
    $region22: #{_lambda_.43} parent=5 // pred_check_branch
      %127 = sbr.rel (%p125) target = $region24
    $region23: #{_lambda_.43} parent=5 // pred_region
      // Predicated region
      $region25: #{_lambda_.43} parent=23 // pred_check
        %p128 = pneg %p29
      $region26: #{_lambda_.43} parent=23 // pred_check_branch
        %130 = sbr.rel (%p128) target = $region28
      $region27: #{_lambda_.43} parent=23 // pred_region
        %s131 = smul.u32 2, %s9
        %p132 = scmp.lt.s32.totalorder %s131, 3
        %s133 = scalar_select %p132, %s131, 3
        %s134 = smul.addr %s133, 3
        %s135 = smul.addr %s134, 4
        %s136 = scalar_lea.vmem %s0, %s135
        %s137 = smul.u32 2, %s9
      $region28: #{_lambda_.43} parent=23 // pred_fallthru
        _
    $region24: #{_lambda_.43} parent=5 // pred_fallthru
      _
    %p138 = scmp.le.s32.totalorder 1, %s9
    %p139 = scmp.lt.s32.totalorder %s9, 3
    %p140 = pnand %p138, %p139
    %p141 = pneg %p140
    // Predicated region
    $region29: #{_lambda_.43} parent=5 // pred_check
      _
    $region30: #{_lambda_.43} parent=5 // pred_check_branch
      %143 = sbr.rel (%p140) target = $region32
    $region31: #{_lambda_.43} parent=5 // pred_region
      %s144 = ssub.s32 %s9, 1
      %s145 = smul.u32 2, %s14
      %p146 = scmp.lt.s32.totalorder %s145, 3
      %s147 = scalar_select %p146, %s145, 3
      %s148 = smul.addr %s147, 3
      %s149 = smul.addr %s148, 4
      %s150 = scalar_lea.vmem %s0, %s149
      %p151 = pneg %p35
      %p152 = pneg %p32
      %p153 = pneg %p56
      %p154 = pneg %p53
      %p155 = pneg %p77
      %p156 = pneg %p74
      %p157 = pneg %p103
      %p158 = pneg %p100
      %s159 = smul.u32 2, %s14
      %p160 = scmp.lt.s32.totalorder %s159, 3
      %s161 = scalar_select %p160, %s159, 3
      %s162 = smul.addr %s161, 4
      %s163 = scalar_lea.vmem %s3, %s162
      %s164 = smul.u32 2, %s14
      %p165 = scmp.lt.s32.totalorder %s164, 3
      %s166 = scalar_select %p165, %s164, 3
      %s167 = smul.addr %s166, 3
      %s168 = smul.addr %s167, 4
      %s169 = scalar_lea.vmem %s0, %s168
      %s170 = smul.u32 2, %s14
      %s171 = smul.u32 2, %s14
      %p172 = scmp.lt.s32.totalorder %s171, 3
      %s173 = scalar_select %p172, %s171, 3
      %s174 = smul.addr %s173, 4
      %s175 = scalar_lea.vmem %s3, %s174
      %s176 = smul.u32 2, %s14
      %v178 = vld [vmem:[%s169] sm:$0xff]
      %v179 = vld [vmem:[%s169 + $0x8] sm:$0xf]
      %v180 = vld [vmem:[%s169 + $0xc] sm:$0xff]
      %v181 = vld [vmem:[%s169 + $0x14] sm:$0xf]
      %v182 = vld [vmem:[%s1] sm:$0xf]
      %v183 = vld [vmem:[%s1 + $0x4] sm:$0xf]
      %v184 = vld [vmem:[%s1 + $0x8] sm:$0xf]
      %v185 = vld [vmem:[%s1 + $0xc] sm:$0xf]
      %v186 = vld [vmem:[%s1 + $0x10] sm:$0xf]
      %v187 = vld [vmem:[%s1 + $0x14] sm:$0xf]
      %v188 = vld [vmem:[%s1 + $0x18] sm:$0xf]
      %v189 = vld [vmem:[%s1 + $0x1c] sm:$0xf]
      %v190 = vld [vmem:[%s1 + $0x20] sm:$0xf]
      %v191 = vld [vmem:[%s1 + $0x24] sm:$0xf]
      %v192 = vld [vmem:[%s1 + $0x28] sm:$0xf]
      %v193 = vld [vmem:[%s1 + $0x2c] sm:$0xf]
      %v194 = vld [vmem:[%s1 + $0x30] sm:$0xf]
      %v195 = vld [vmem:[%s1 + $0x34] sm:$0xf]
      %v196 = vld [vmem:[%s1 + $0x38] sm:$0xf]
      %v197 = vld [vmem:[%s1 + $0x3c] sm:$0xf]
      %v198 = vld [vmem:[%s1 + $0x40] sm:$0xf]
      %v199 = vld [vmem:[%s1 + $0x44] sm:$0xf]
      %v200 = vld [vmem:[%s1 + $0x48] sm:$0xf]
      %v201 = vld [vmem:[%s1 + $0x4c] sm:$0xf]
      %v202 = vld [vmem:[%s1 + $0x50] sm:$0xf]
      %v203 = vld [vmem:[%s1 + $0x54] sm:$0xf]
      %v204 = vld [vmem:[%s1 + $0x58] sm:$0xf]
      %v205 = vld [vmem:[%s1 + $0x5c] sm:$0xf]
      %v206 = vld [vmem:[%s1 + $0x60] sm:$0xf]
      %v207 = vld [vmem:[%s1 + $0x64] sm:$0xf]
      %v208 = vld [vmem:[%s1 + $0x68] sm:$0xf]
      %v209 = vld [vmem:[%s1 + $0x6c] sm:$0xf]
      %v210 = vld [vmem:[%s1 + $0x70] sm:$0xf]
      %v211 = vld [vmem:[%s1 + $0x74] sm:$0xf]
      %v212 = vld [vmem:[%s1 + $0x78] sm:$0xf]
      %v213 = vld [vmem:[%s1 + $0x7c] sm:$0xf]
      %v214 = vld [vmem:[%s1 + $0x80] sm:$0xf]
      %v215 = vld [vmem:[%s1 + $0x84] sm:$0xf]
      %v216 = vld [vmem:[%s1 + $0x88] sm:$0xf]
      %v217 = vld [vmem:[%s1 + $0x8c] sm:$0xf]
      %v218 = vld [vmem:[%s2] sm:$0x1]
      %v220 = vlaneseq
      %v221 = vshrl.u32 %v220, 7
      %v222 = vsub.s32 0, %v221
      %v223 = vrot.slane %v218, %v222
      %v229 = vunpack.c.l.b16 %v178
      %v230 = vunpack.c.h.b16 %v178
      %v231 = vunpack.c.l.b16 %v179
      %v232 = vunpack.c.l.b16 %v180
      %v233 = vunpack.c.h.b16 %v180
      %v234 = vunpack.c.l.b16 %v181
      %v235 = vpack.c.b16 %v232, %v229
      %v236 = vpack.c.b16 %v233, %v230
      %v237 = vpack.c.b16 %v234, %v231
      %v276 = vunpack.c.l.b16 %v182
      %v277 = vunpack.c.l.b16 %v183
      %v278 = vunpack.c.l.b16 %v184
      %v279 = vunpack.c.l.b16 %v185
      %v280 = vunpack.c.l.b16 %v186
      %v281 = vunpack.c.l.b16 %v187
      %v282 = vunpack.c.l.b16 %v188
      %v283 = vunpack.c.l.b16 %v189
      %v284 = vunpack.c.l.b16 %v190
      %v285 = vunpack.c.l.b16 %v191
      %v286 = vunpack.c.l.b16 %v192
      %v287 = vunpack.c.l.b16 %v193
      %v288 = vunpack.c.l.b16 %v194
      %v289 = vunpack.c.l.b16 %v195
      %v290 = vunpack.c.l.b16 %v196
      %v291 = vunpack.c.l.b16 %v197
      %v292 = vunpack.c.l.b16 %v198
      %v293 = vunpack.c.l.b16 %v199
      %v294 = vunpack.c.l.b16 %v200
      %v295 = vunpack.c.l.b16 %v201
      %v296 = vunpack.c.l.b16 %v202
      %v297 = vunpack.c.l.b16 %v203
      %v298 = vunpack.c.l.b16 %v204
      %v299 = vunpack.c.l.b16 %v205
      %v300 = vunpack.c.l.b16 %v206
      %v301 = vunpack.c.l.b16 %v207
      %v302 = vunpack.c.l.b16 %v208
      %v303 = vunpack.c.l.b16 %v209
      %v304 = vunpack.c.l.b16 %v210
      %v305 = vunpack.c.l.b16 %v211
      %v306 = vunpack.c.l.b16 %v212
      %v307 = vunpack.c.l.b16 %v213
      %v308 = vunpack.c.l.b16 %v214
      %v309 = vunpack.c.l.b16 %v215
      %v310 = vunpack.c.l.b16 %v216
      %v311 = vunpack.c.l.b16 %v217
      %v312 = vpack.c.b16 %v277, %v276
      %v313 = vpack.c.b16 %v279, %v278
      %v314 = vpack.c.b16 %v281, %v280
      %v315 = vpack.c.b16 %v283, %v282
      %v316 = vpack.c.b16 %v285, %v284
      %v317 = vpack.c.b16 %v287, %v286
      %v318 = vpack.c.b16 %v289, %v288
      %v319 = vpack.c.b16 %v291, %v290
      %v320 = vpack.c.b16 %v293, %v292
      %v321 = vpack.c.b16 %v295, %v294
      %v322 = vpack.c.b16 %v297, %v296
      %v323 = vpack.c.b16 %v299, %v298
      %v324 = vpack.c.b16 %v301, %v300
      %v325 = vpack.c.b16 %v303, %v302
      %v326 = vpack.c.b16 %v305, %v304
      %v327 = vpack.c.b16 %v307, %v306
      %v328 = vpack.c.b16 %v309, %v308
      %v329 = vpack.c.b16 %v311, %v310
      %vm348 = vcmask 261120
      %v350 = vsel %vm348, %v237, 0
      %352 = vmatprep.subr.bf16.mxu0 0
      %353 = vmatpush1.bf16.msra.mxu0 %v319
      %354 = vmatprep.subr.bf16.mxu0 0
      %355 = vmatpush1.bf16.msra.mxu0 %v318
      %356 = vmatprep.subr.bf16.mxu0 0
      %357 = vmatpush1.bf16.msra.mxu0 %v317
      %358 = vmatprep.subr.bf16.mxu0 0
      %359 = vmatpush1.bf16.msra.mxu0 %v316
      %360 = vmatprep.subr.bf16.mxu0 0
      %361 = vmatpush1.bf16.msra.mxu0 %v315
      %362 = vmatprep.subr.bf16.mxu0 0
      %363 = vmatpush1.bf16.msra.mxu0 %v314
      %364 = vmatprep.subr.bf16.mxu0 0
      %365 = vmatpush1.bf16.msra.mxu0 %v313
      %366 = vmatprep.subr.bf16.mxu0 0
      %367 = vmatpush1.bf16.msra.mxu0 %v312
      %368 = vmatprep.subr.bf16.mxu0 0
      %369 = vmatpush2.bf16.msra.mxu0 %v327
      %370 = vmatprep.subr.bf16.mxu0 0
      %371 = vmatpush2.bf16.msra.mxu0 %v326
      %372 = vmatprep.subr.bf16.mxu0 0
      %373 = vmatpush2.bf16.msra.mxu0 %v325
      %374 = vmatprep.subr.bf16.mxu0 0
      %375 = vmatpush2.bf16.msra.mxu0 %v324
      %376 = vmatprep.subr.bf16.mxu0 0
      %377 = vmatpush2.bf16.msra.mxu0 %v323
      %378 = vmatprep.subr.bf16.mxu0 0
      %379 = vmatpush2.bf16.msra.mxu0 %v322
      %380 = vmatprep.subr.bf16.mxu0 0
      %381 = vmatpush2.bf16.msra.mxu0 %v321
      %382 = vmatprep.subr.bf16.mxu0 0
      %383 = vmatpush2.bf16.msra.mxu0 %v320
      %384 = vmatprep.mubr.bf16.mxu0 %v236
      %385 = vmatmul.mubr.bf16.gmra.mxu0 %v235
      %v386 = vpop.f32.mrf.mxu0
      %v387 = vadd.f32 %v223, %v386
      %v388 = vpop.f32.mrf.mxu0
      %v389 = vpop.f32.mrf.mxu0
      %v390 = vadd.f32 %v223, %v389
      %v391 = vpop.f32.mrf.mxu0
      %392 = vdwg.mxu0
      %393 = vmatprep.subr.bf16.mxu0 0
      %394 = vmatpush1.bf16.msra.mxu0 0
      %395 = vmatprep.subr.bf16.mxu0 0
      %396 = vmatpush1.bf16.msra.mxu0 0
      %397 = vmatprep.subr.bf16.mxu0 0
      %398 = vmatpush1.bf16.msra.mxu0 0
      %399 = vmatprep.subr.bf16.mxu0 0
      %400 = vmatpush1.bf16.msra.mxu0 0
      %401 = vmatprep.subr.bf16.mxu0 0
      %402 = vmatpush1.bf16.msra.mxu0 0
      %403 = vmatprep.subr.bf16.mxu0 0
      %404 = vmatpush1.bf16.msra.mxu0 0
      %405 = vmatprep.subr.bf16.mxu0 0
      %406 = vmatpush1.bf16.msra.mxu0 %v329
      %407 = vmatprep.subr.bf16.mxu0 0
      %408 = vmatpush1.bf16.msra.mxu0 %v328
      %409 = vmatprep.subr.bf16.mxu0 0
      %410 = vmatpush2.bf16.msra.mxu0 0
      %411 = vmatprep.subr.bf16.mxu0 0
      %412 = vmatpush2.bf16.msra.mxu0 0
      %413 = vmatprep.subr.bf16.mxu0 0
      %414 = vmatpush2.bf16.msra.mxu0 0
      %415 = vmatprep.subr.bf16.mxu0 0
      %416 = vmatpush2.bf16.msra.mxu0 0
      %417 = vmatprep.subr.bf16.mxu0 0
      %418 = vmatpush2.bf16.msra.mxu0 0
      %419 = vmatprep.subr.bf16.mxu0 0
      %420 = vmatpush2.bf16.msra.mxu0 0
      %421 = vmatprep.subr.bf16.mxu0 0
      %422 = vmatpush2.bf16.msra.mxu0 0
      %423 = vmatprep.subr.bf16.mxu0 0
      %424 = vmatpush2.bf16.msra.mxu0 0
      %425 = vmatprep.mubr.bf16.mxu0 0
      %426 = vmatmul.mubr.bf16.gmra.mxu0 %v350
      %v427 = vpop.f32.mrf.mxu0
      %v428 = vadd.f32 %v387, %v427
      %v429 = vpop.f32.mrf.mxu0
      %v430 = vpop.f32.mrf.mxu0
      %v431 = vadd.f32 %v390, %v430
      %v432 = vpop.f32.mrf.mxu0
      %433 = vdwg.mxu0
      %v434 = vmax.f32 %v428, 0.0
      %v435 = vmax.f32 %v431, 0.0
      %v436 = vpack.c.bf16 %v435, %v434
      %v438 = vunpack.c.l.b16 %v436
      %v439 = vunpack.c.h.b16 %v436
      %v440 = vpack.c.b16 %v438, %v438
      %v441 = vpack.c.b16 %v439, %v439
      %444 = vst [vmem:[%s175] sm:$0xf] %v440
      %445 = vst [vmem:[%s175 + $0x4] sm:$0xf] %v441
      %s446 = smul.u32 2, %s14
      %p447 = scmp.lt.s32.totalorder %s446, 3
      %s448 = scalar_select %p447, %s446, 3
      %s449 = smul.addr %s448, 4
      %s450 = scalar_lea.vmem %s3, %s449
      // Predicated region
      $region33: #{_lambda_.43} parent=31 // pred_check
        %p451 = pneg %p100
      $region34: #{_lambda_.43} parent=31 // pred_check_branch
        %453 = sbr.rel (%p451) target = $region36
      $region35: #{_lambda_.43} parent=31 // pred_region
        %s454 = smul.u32 2, %s14
      $region36: #{_lambda_.43} parent=31 // pred_fallthru
        _
    $region32: #{_lambda_.43} parent=5 // pred_fallthru
      _
    %p455 = scmp.le.s32.totalorder 2, %s9
    // Predicated region
    $region37: #{_lambda_.43} parent=5 // pred_check
      %p456 = pneg %p455
    $region38: #{_lambda_.43} parent=5 // pred_check_branch
      %458 = sbr.rel (%p456) target = $region40
    $region39: #{_lambda_.43} parent=5 // pred_region
      %s459 = ssub.s32 %s9, 2
      // Predicated region
      $region41: #{_lambda_.43} parent=39 // pred_check
        %p460 = pneg %p106
      $region42: #{_lambda_.43} parent=39 // pred_check_branch
        %462 = sbr.rel (%p460) target = $region44
      $region43: #{_lambda_.43} parent=39 // pred_region
        %s463 = smul.u32 2, %s15
        %p464 = scmp.lt.s32.totalorder %s463, 3
        %s465 = scalar_select %p464, %s463, 3
        %s466 = smul.addr %s465, 4
        %s467 = scalar_lea.vmem %s3, %s466
      $region44: #{_lambda_.43} parent=39 // pred_fallthru
        _
    $region40: #{_lambda_.43} parent=5 // pred_fallthru
      _
  $region6: #{_lambda_.43} parent=0 // loop_footer
    %s13 = sadd.s32 1, %s9
  $region7: #{_lambda_.43} parent=0 // loop_footer_branch
    %8 = sbr.rel target = $region3
  $region8: #{_lambda_.43} parent=0 // loop_exit
    _

// kernel: _lambda_.44
$region0: #{_lambda_.44}
  #allocation0 [shape = 'u32[]', space=smem, size = 0x4, offset = 0x4, fixed_abs, tag = 'smem constant byte address 0x4 - core index']
  #allocation1 [shape = 'u32[144,128]{1,0:T(1,128)}', space=vmem, size = 0x12000, scoped, tag = 'internal scratch']
  %s0 = inlined_call_operand.vmem [shape: bf16[32,144], index: 0, kind: input, shape index: {}]
  %s1 = inlined_call_operand.vmem [shape: bf16[144,128], index: 1, kind: input, shape index: {}]
  %s2 = inlined_call_operand.vmem [shape: f32[1,128], index: 2, kind: input, shape index: {}]
  %s3 = inlined_call_operand.vmem [shape: bf16[32,128], index: 3, kind: output, shape index: {}]
  %s4 = sld [smem:[#allocation0]]
  $region45: #{_lambda_.44} parent=0
    _
  %s6 = ssub.s32 1, %s4
  %s7 = scalar_select 0, %s6, %s4
  loop: start=0, step=1, limit=4
  $region2: #{_lambda_.44} parent=0 // loop_pre_header
    _
  $region3: #{_lambda_.44} parent=0 // loop_header
    %s9 = sphi 0, %s13
    %p10 = scmp.ge.s32.totalorder %s9, 4
    %s19 = sphi 0, %s21
    %s22 = sphi 0, %s19
    %s23 = sphi 0, %s22
    %s39 = sphi 0, %s23
    %s43 = sphi 0, %s43
    %s45 = sphi 0, %s43
    %s46 = sphi 0, %s45
    %s60 = sphi 0, %s46
    %s64 = sphi 0, %s64
    %s66 = sphi 0, %s64
    %s67 = sphi 0, %s66
    %s81 = sphi 0, %s67
    %s87 = sphi 0, %s89
    %s90 = sphi 0, %s87
    %s91 = sphi 0, %s90
    %s107 = sphi 0, %s91
  $region4: #{_lambda_.44} parent=0 // loop_header_branch
    %12 = sbr.rel (%p10) target = $region8
  $region5: #{_lambda_.44} parent=0 // loop_body
    %s14 = ssub.s32 %s9, 1
    %s15 = ssub.s32 %s9, 2
    %s16 = sadd.s32 %s9, 1
    %s17 = ssub.s32 %s9, %s16
    %p18 = scmp.eq.s32.totalorder %s17, 0
    %s20 = sadd.s32 %s19, 1
    %s21 = scalar_select %p18, %s19, %s20
    %p24 = pneg %p18
    %p25 = scmp.eq.s32.totalorder %s9, 1
    %p26 = por %p24, %p25
    %p27 = scmp.ne.s32.totalorder %s19, %s22
    %p28 = scmp.eq.s32.totalorder %s9, 0
    %p29 = por %p27, %p28
    %p30 = scmp.ne.s32.totalorder %s19, %s22
    %p31 = scmp.eq.s32.totalorder %s14, 1
    %p32 = por %p30, %p31
    %p33 = scmp.ne.s32.totalorder %s22, %s23
    %p34 = scmp.eq.s32.totalorder %s14, 0
    %p35 = por %p33, %p34
    %p36 = scmp.ne.s32.totalorder %s22, %s23
    %p37 = scmp.eq.s32.totalorder %s15, 1
    %p38 = por %p36, %p37
    %p40 = scmp.ne.s32.totalorder %s23, %s39
    %p41 = scmp.eq.s32.totalorder %s15, 0
    %p42 = por %p40, %p41
    %s44 = sadd.s32 %s43, 1
    %p47 = scmp.eq.s32.totalorder %s9, 1
    %p48 = scmp.ne.s32.totalorder %s43, %s45
    %p49 = scmp.eq.s32.totalorder %s9, 0
    %p50 = por %p48, %p49
    %p51 = scmp.ne.s32.totalorder %s43, %s45
    %p52 = scmp.eq.s32.totalorder %s14, 1
    %p53 = por %p51, %p52
    %p54 = scmp.ne.s32.totalorder %s45, %s46
    %p55 = scmp.eq.s32.totalorder %s14, 0
    %p56 = por %p54, %p55
    %p57 = scmp.ne.s32.totalorder %s45, %s46
    %p58 = scmp.eq.s32.totalorder %s15, 1
    %p59 = por %p57, %p58
    %p61 = scmp.ne.s32.totalorder %s46, %s60
    %p62 = scmp.eq.s32.totalorder %s15, 0
    %p63 = por %p61, %p62
    %s65 = sadd.s32 %s64, 1
    %p68 = scmp.eq.s32.totalorder %s9, 1
    %p69 = scmp.ne.s32.totalorder %s64, %s66
    %p70 = scmp.eq.s32.totalorder %s9, 0
    %p71 = por %p69, %p70
    %p72 = scmp.ne.s32.totalorder %s64, %s66
    %p73 = scmp.eq.s32.totalorder %s14, 1
    %p74 = por %p72, %p73
    %p75 = scmp.ne.s32.totalorder %s66, %s67
    %p76 = scmp.eq.s32.totalorder %s14, 0
    %p77 = por %p75, %p76
    %p78 = scmp.ne.s32.totalorder %s66, %s67
    %p79 = scmp.eq.s32.totalorder %s15, 1
    %p80 = por %p78, %p79
    %p82 = scmp.ne.s32.totalorder %s67, %s81
    %p83 = scmp.eq.s32.totalorder %s15, 0
    %p84 = por %p82, %p83
    %s85 = ssub.s32 %s9, %s16
    %p86 = scmp.eq.s32.totalorder %s85, 0
    %s88 = sadd.s32 %s87, 1
    %s89 = scalar_select %p86, %s87, %s88
    %p92 = pneg %p86
    %p93 = scmp.eq.s32.totalorder %s9, 1
    %p94 = por %p92, %p93
    %p95 = scmp.ne.s32.totalorder %s87, %s90
    %p96 = scmp.eq.s32.totalorder %s9, 0
    %p97 = por %p95, %p96
    %p98 = scmp.ne.s32.totalorder %s87, %s90
    %p99 = scmp.eq.s32.totalorder %s14, 1
    %p100 = por %p98, %p99
    %p101 = scmp.ne.s32.totalorder %s90, %s91
    %p102 = scmp.eq.s32.totalorder %s14, 0
    %p103 = por %p101, %p102
    %p104 = scmp.ne.s32.totalorder %s90, %s91
    %p105 = scmp.eq.s32.totalorder %s15, 1
    %p106 = por %p104, %p105
    %p108 = scmp.ne.s32.totalorder %s91, %s107
    %p109 = scmp.eq.s32.totalorder %s15, 0
    %p110 = por %p108, %p109
    %p111 = scmp.le.s32.totalorder 1, %s9
    %p112 = scmp.lt.s32.totalorder %s9, 3
    %p113 = pnand %p111, %p112
    %p114 = pneg %p113
    // Predicated region
    $region9: #{_lambda_.44} parent=5 // pred_check
      _
    $region10: #{_lambda_.44} parent=5 // pred_check_branch
      %116 = sbr.rel (%p113) target = $region12
    $region11: #{_lambda_.44} parent=5 // pred_region
      %s117 = ssub.s32 %s9, 1
      // Predicated region
      $region13: #{_lambda_.44} parent=11 // pred_check
        %p118 = pneg %p56
      $region14: #{_lambda_.44} parent=11 // pred_check_branch
        %120 = sbr.rel (%p118) target = $region16
      $region15: #{_lambda_.44} parent=11 // pred_region
        _
      $region16: #{_lambda_.44} parent=11 // pred_fallthru
        _
      // Predicated region
      $region17: #{_lambda_.44} parent=11 // pred_check
        %p121 = pneg %p77
      $region18: #{_lambda_.44} parent=11 // pred_check_branch
        %123 = sbr.rel (%p121) target = $region20
      $region19: #{_lambda_.44} parent=11 // pred_region
        _
      $region20: #{_lambda_.44} parent=11 // pred_fallthru
        _
    $region12: #{_lambda_.44} parent=5 // pred_fallthru
      _
    %p124 = scmp.lt.s32.totalorder %s9, 2
    // Predicated region
    $region21: #{_lambda_.44} parent=5 // pred_check
      %p125 = pneg %p124
    $region22: #{_lambda_.44} parent=5 // pred_check_branch
      %127 = sbr.rel (%p125) target = $region24
    $region23: #{_lambda_.44} parent=5 // pred_region
      // Predicated region
      $region25: #{_lambda_.44} parent=23 // pred_check
        %p128 = pneg %p29
      $region26: #{_lambda_.44} parent=23 // pred_check_branch
        %130 = sbr.rel (%p128) target = $region28
      $region27: #{_lambda_.44} parent=23 // pred_region
        %s131 = smul.u32 2, %s9
        %p132 = scmp.lt.s32.totalorder %s131, 3
        %s133 = scalar_select %p132, %s131, 3
        %s134 = smul.addr %s133, 2
        %s135 = smul.addr %s134, 4
        %s136 = scalar_lea.vmem %s0, %s135
        %s137 = smul.u32 2, %s9
      $region28: #{_lambda_.44} parent=23 // pred_fallthru
        _
    $region24: #{_lambda_.44} parent=5 // pred_fallthru
      _
    %p138 = scmp.le.s32.totalorder 1, %s9
    %p139 = scmp.lt.s32.totalorder %s9, 3
    %p140 = pnand %p138, %p139
    %p141 = pneg %p140
    // Predicated region
    $region29: #{_lambda_.44} parent=5 // pred_check
      _
    $region30: #{_lambda_.44} parent=5 // pred_check_branch
      %143 = sbr.rel (%p140) target = $region32
    $region31: #{_lambda_.44} parent=5 // pred_region
      %s144 = ssub.s32 %s9, 1
      %s145 = smul.u32 2, %s14
      %p146 = scmp.lt.s32.totalorder %s145, 3
      %s147 = scalar_select %p146, %s145, 3
      %s148 = smul.addr %s147, 2
      %s149 = smul.addr %s148, 4
      %s150 = scalar_lea.vmem %s0, %s149
      %p151 = pneg %p35
      %p152 = pneg %p32
      %p153 = pneg %p56
      %p154 = pneg %p53
      %p155 = pneg %p77
      %p156 = pneg %p74
      %p157 = pneg %p103
      %p158 = pneg %p100
      %s159 = smul.u32 2, %s14
      %p160 = scmp.lt.s32.totalorder %s159, 3
      %s161 = scalar_select %p160, %s159, 3
      %s162 = smul.addr %s161, 4
      %s163 = scalar_lea.vmem %s3, %s162
      %s164 = smul.u32 2, %s14
      %p165 = scmp.lt.s32.totalorder %s164, 3
      %s166 = scalar_select %p165, %s164, 3
      %s167 = smul.addr %s166, 2
      %s168 = smul.addr %s167, 4
      %s169 = scalar_lea.vmem %s0, %s168
      %s170 = smul.u32 2, %s14
      %s171 = smul.u32 2, %s14
      %p172 = scmp.lt.s32.totalorder %s171, 3
      %s173 = scalar_select %p172, %s171, 3
      %s174 = smul.addr %s173, 4
      %s175 = scalar_lea.vmem %s3, %s174
      %s176 = smul.u32 2, %s14
      %v178 = vld [vmem:[%s169] sm:$0xff]
      %v179 = vld [vmem:[%s169 + $0x8] sm:$0xff]
      %v180 = vld [vmem:[%s1] sm:$0xf]
      %v181 = vld [vmem:[%s1 + $0x4] sm:$0xf]
      %v182 = vld [vmem:[%s1 + $0x8] sm:$0xf]
      %v183 = vld [vmem:[%s1 + $0xc] sm:$0xf]
      %v184 = vld [vmem:[%s1 + $0x10] sm:$0xf]
      %v185 = vld [vmem:[%s1 + $0x14] sm:$0xf]
      %v186 = vld [vmem:[%s1 + $0x18] sm:$0xf]
      %v187 = vld [vmem:[%s1 + $0x1c] sm:$0xf]
      %v188 = vld [vmem:[%s1 + $0x20] sm:$0xf]
      %v189 = vld [vmem:[%s1 + $0x24] sm:$0xf]
      %v190 = vld [vmem:[%s1 + $0x28] sm:$0xf]
      %v191 = vld [vmem:[%s1 + $0x2c] sm:$0xf]
      %v192 = vld [vmem:[%s1 + $0x30] sm:$0xf]
      %v193 = vld [vmem:[%s1 + $0x34] sm:$0xf]
      %v194 = vld [vmem:[%s1 + $0x38] sm:$0xf]
      %v195 = vld [vmem:[%s1 + $0x3c] sm:$0xf]
      %v196 = vld [vmem:[%s1 + $0x40] sm:$0xf]
      %v197 = vld [vmem:[%s1 + $0x44] sm:$0xf]
      %v198 = vld [vmem:[%s2] sm:$0x1]
      %v200 = vlaneseq
      %v201 = vshrl.u32 %v200, 7
      %v202 = vsub.s32 0, %v201
      %v203 = vrot.slane %v198, %v202
      %v207 = vunpack.c.l.b16 %v178
      %v208 = vunpack.c.h.b16 %v178
      %v209 = vunpack.c.l.b16 %v179
      %v210 = vunpack.c.h.b16 %v179
      %v211 = vpack.c.b16 %v209, %v207
      %v212 = vpack.c.b16 %v210, %v208
      %v232 = vunpack.c.l.b16 %v180
      %v233 = vunpack.c.l.b16 %v181
      %v234 = vunpack.c.l.b16 %v182
      %v235 = vunpack.c.l.b16 %v183
      %v236 = vunpack.c.l.b16 %v184
      %v237 = vunpack.c.l.b16 %v185
      %v238 = vunpack.c.l.b16 %v186
      %v239 = vunpack.c.l.b16 %v187
      %v240 = vunpack.c.l.b16 %v188
      %v241 = vunpack.c.l.b16 %v189
      %v242 = vunpack.c.l.b16 %v190
      %v243 = vunpack.c.l.b16 %v191
      %v244 = vunpack.c.l.b16 %v192
      %v245 = vunpack.c.l.b16 %v193
      %v246 = vunpack.c.l.b16 %v194
      %v247 = vunpack.c.l.b16 %v195
      %v248 = vunpack.c.l.b16 %v196
      %v249 = vunpack.c.l.b16 %v197
      %v250 = vpack.c.b16 %v233, %v232
      %v251 = vpack.c.b16 %v235, %v234
      %v252 = vpack.c.b16 %v237, %v236
      %v253 = vpack.c.b16 %v239, %v238
      %v254 = vpack.c.b16 %v241, %v240
      %v255 = vpack.c.b16 %v243, %v242
      %v256 = vpack.c.b16 %v245, %v244
      %v257 = vpack.c.b16 %v247, %v246
      %v258 = vpack.c.b16 %v249, %v248
      %vm268 = vcmask 130048
      %v270 = vsel %vm268, %v212, 0
      %272 = vmatprep.subr.bf16.mxu0 0
      %273 = vmatpush1.bf16.msra.mxu0 %v257
      %274 = vmatprep.subr.bf16.mxu0 0
      %275 = vmatpush1.bf16.msra.mxu0 %v256
      %276 = vmatprep.subr.bf16.mxu0 0
      %277 = vmatpush1.bf16.msra.mxu0 %v255
      %278 = vmatprep.subr.bf16.mxu0 0
      %279 = vmatpush1.bf16.msra.mxu0 %v254
      %280 = vmatprep.subr.bf16.mxu0 0
      %281 = vmatpush1.bf16.msra.mxu0 %v253
      %282 = vmatprep.subr.bf16.mxu0 0
      %283 = vmatpush1.bf16.msra.mxu0 %v252
      %284 = vmatprep.subr.bf16.mxu0 0
      %285 = vmatpush1.bf16.msra.mxu0 %v251
      %286 = vmatprep.subr.bf16.mxu0 0
      %287 = vmatpush1.bf16.msra.mxu0 %v250
      %288 = vmatprep.subr.bf16.mxu0 0
      %289 = vmatpush2.bf16.msra.mxu0 0
      %290 = vmatprep.subr.bf16.mxu0 0
      %291 = vmatpush2.bf16.msra.mxu0 0
      %292 = vmatprep.subr.bf16.mxu0 0
      %293 = vmatpush2.bf16.msra.mxu0 0
      %294 = vmatprep.subr.bf16.mxu0 0
      %295 = vmatpush2.bf16.msra.mxu0 0
      %296 = vmatprep.subr.bf16.mxu0 0
      %297 = vmatpush2.bf16.msra.mxu0 0
      %298 = vmatprep.subr.bf16.mxu0 0
      %299 = vmatpush2.bf16.msra.mxu0 0
      %300 = vmatprep.subr.bf16.mxu0 0
      %301 = vmatpush2.bf16.msra.mxu0 0
      %302 = vmatprep.subr.bf16.mxu0 0
      %303 = vmatpush2.bf16.msra.mxu0 %v258
      %304 = vmatprep.mubr.bf16.mxu0 %v270
      %305 = vmatmul.mubr.bf16.gmra.mxu0 %v211
      %v306 = vpop.f32.mrf.mxu0
      %v307 = vadd.f32 %v203, %v306
      %v308 = vpop.f32.mrf.mxu0
      %v309 = vpop.f32.mrf.mxu0
      %v310 = vadd.f32 %v203, %v309
      %v311 = vpop.f32.mrf.mxu0
      %312 = vdwg.mxu0
      %v313 = vmax.f32 %v307, 0.0
      %v314 = vmax.f32 %v310, 0.0
      %v315 = vpack.c.bf16 %v314, %v313
      %v317 = vunpack.c.l.b16 %v315
      %v318 = vunpack.c.h.b16 %v315
      %v319 = vpack.c.b16 %v317, %v317
      %v320 = vpack.c.b16 %v318, %v318
      %323 = vst [vmem:[%s175] sm:$0xf] %v319
      %324 = vst [vmem:[%s175 + $0x4] sm:$0xf] %v320
      %s325 = smul.u32 2, %s14
      %p326 = scmp.lt.s32.totalorder %s325, 3
      %s327 = scalar_select %p326, %s325, 3
      %s328 = smul.addr %s327, 4
      %s329 = scalar_lea.vmem %s3, %s328
      // Predicated region
      $region33: #{_lambda_.44} parent=31 // pred_check
        %p330 = pneg %p100
      $region34: #{_lambda_.44} parent=31 // pred_check_branch
        %332 = sbr.rel (%p330) target = $region36
      $region35: #{_lambda_.44} parent=31 // pred_region
        %s333 = smul.u32 2, %s14
      $region36: #{_lambda_.44} parent=31 // pred_fallthru
        _
    $region32: #{_lambda_.44} parent=5 // pred_fallthru
      _
    %p334 = scmp.le.s32.totalorder 2, %s9
    // Predicated region
    $region37: #{_lambda_.44} parent=5 // pred_check
      %p335 = pneg %p334
    $region38: #{_lambda_.44} parent=5 // pred_check_branch
      %337 = sbr.rel (%p335) target = $region40
    $region39: #{_lambda_.44} parent=5 // pred_region
      %s338 = ssub.s32 %s9, 2
      // Predicated region
      $region41: #{_lambda_.44} parent=39 // pred_check
        %p339 = pneg %p106
      $region42: #{_lambda_.44} parent=39 // pred_check_branch
        %341 = sbr.rel (%p339) target = $region44
      $region43: #{_lambda_.44} parent=39 // pred_region
        %s342 = smul.u32 2, %s15
        %p343 = scmp.lt.s32.totalorder %s342, 3
        %s344 = scalar_select %p343, %s342, 3
        %s345 = smul.addr %s344, 4
        %s346 = scalar_lea.vmem %s3, %s345
      $region44: #{_lambda_.44} parent=39 // pred_fallthru
        _
    $region40: #{_lambda_.44} parent=5 // pred_fallthru
      _
  $region6: #{_lambda_.44} parent=0 // loop_footer
    %s13 = sadd.s32 1, %s9
  $region7: #{_lambda_.44} parent=0 // loop_footer_branch
    %8 = sbr.rel target = $region3
  $region8: #{_lambda_.44} parent=0 // loop_exit
    _

// kernel: _lambda_.45
$region0: #{_lambda_.45}
  #allocation0 [shape = 'u32[]', space=smem, size = 0x4, offset = 0x4, fixed_abs, tag = 'smem constant byte address 0x4 - core index']
  #allocation1 [shape = 'u32[144,128]{1,0:T(1,128)}', space=vmem, size = 0x12000, scoped, tag = 'internal scratch']
  %s0 = inlined_call_operand.vmem [shape: bf16[32,128], index: 0, kind: input, shape index: {}]
  %s1 = inlined_call_operand.vmem [shape: bf16[128,128], index: 1, kind: input, shape index: {}]
  %s2 = inlined_call_operand.vmem [shape: f32[1,128], index: 2, kind: input, shape index: {}]
  %s3 = inlined_call_operand.vmem [shape: bf16[32,128], index: 3, kind: output, shape index: {}]
  %s4 = sld [smem:[#allocation0]]
  $region45: #{_lambda_.45} parent=0
    _
  %s6 = ssub.s32 1, %s4
  %s7 = scalar_select 0, %s6, %s4
  loop: start=0, step=1, limit=4
  $region2: #{_lambda_.45} parent=0 // loop_pre_header
    _
  $region3: #{_lambda_.45} parent=0 // loop_header
    %s9 = sphi 0, %s13
    %p10 = scmp.ge.s32.totalorder %s9, 4
    %s19 = sphi 0, %s21
    %s22 = sphi 0, %s19
    %s23 = sphi 0, %s22
    %s39 = sphi 0, %s23
    %s43 = sphi 0, %s43
    %s45 = sphi 0, %s43
    %s46 = sphi 0, %s45
    %s60 = sphi 0, %s46
    %s64 = sphi 0, %s64
    %s66 = sphi 0, %s64
    %s67 = sphi 0, %s66
    %s81 = sphi 0, %s67
    %s87 = sphi 0, %s89
    %s90 = sphi 0, %s87
    %s91 = sphi 0, %s90
    %s107 = sphi 0, %s91
  $region4: #{_lambda_.45} parent=0 // loop_header_branch
    %12 = sbr.rel (%p10) target = $region8
  $region5: #{_lambda_.45} parent=0 // loop_body
    %s14 = ssub.s32 %s9, 1
    %s15 = ssub.s32 %s9, 2
    %s16 = sadd.s32 %s9, 1
    %s17 = ssub.s32 %s9, %s16
    %p18 = scmp.eq.s32.totalorder %s17, 0
    %s20 = sadd.s32 %s19, 1
    %s21 = scalar_select %p18, %s19, %s20
    %p24 = pneg %p18
    %p25 = scmp.eq.s32.totalorder %s9, 1
    %p26 = por %p24, %p25
    %p27 = scmp.ne.s32.totalorder %s19, %s22
    %p28 = scmp.eq.s32.totalorder %s9, 0
    %p29 = por %p27, %p28
    %p30 = scmp.ne.s32.totalorder %s19, %s22
    %p31 = scmp.eq.s32.totalorder %s14, 1
    %p32 = por %p30, %p31
    %p33 = scmp.ne.s32.totalorder %s22, %s23
    %p34 = scmp.eq.s32.totalorder %s14, 0
    %p35 = por %p33, %p34
    %p36 = scmp.ne.s32.totalorder %s22, %s23
    %p37 = scmp.eq.s32.totalorder %s15, 1
    %p38 = por %p36, %p37
    %p40 = scmp.ne.s32.totalorder %s23, %s39
    %p41 = scmp.eq.s32.totalorder %s15, 0
    %p42 = por %p40, %p41
    %s44 = sadd.s32 %s43, 1
    %p47 = scmp.eq.s32.totalorder %s9, 1
    %p48 = scmp.ne.s32.totalorder %s43, %s45
    %p49 = scmp.eq.s32.totalorder %s9, 0
    %p50 = por %p48, %p49
    %p51 = scmp.ne.s32.totalorder %s43, %s45
    %p52 = scmp.eq.s32.totalorder %s14, 1
    %p53 = por %p51, %p52
    %p54 = scmp.ne.s32.totalorder %s45, %s46
    %p55 = scmp.eq.s32.totalorder %s14, 0
    %p56 = por %p54, %p55
    %p57 = scmp.ne.s32.totalorder %s45, %s46
    %p58 = scmp.eq.s32.totalorder %s15, 1
    %p59 = por %p57, %p58
    %p61 = scmp.ne.s32.totalorder %s46, %s60
    %p62 = scmp.eq.s32.totalorder %s15, 0
    %p63 = por %p61, %p62
    %s65 = sadd.s32 %s64, 1
    %p68 = scmp.eq.s32.totalorder %s9, 1
    %p69 = scmp.ne.s32.totalorder %s64, %s66
    %p70 = scmp.eq.s32.totalorder %s9, 0
    %p71 = por %p69, %p70
    %p72 = scmp.ne.s32.totalorder %s64, %s66
    %p73 = scmp.eq.s32.totalorder %s14, 1
    %p74 = por %p72, %p73
    %p75 = scmp.ne.s32.totalorder %s66, %s67
    %p76 = scmp.eq.s32.totalorder %s14, 0
    %p77 = por %p75, %p76
    %p78 = scmp.ne.s32.totalorder %s66, %s67
    %p79 = scmp.eq.s32.totalorder %s15, 1
    %p80 = por %p78, %p79
    %p82 = scmp.ne.s32.totalorder %s67, %s81
    %p83 = scmp.eq.s32.totalorder %s15, 0
    %p84 = por %p82, %p83
    %s85 = ssub.s32 %s9, %s16
    %p86 = scmp.eq.s32.totalorder %s85, 0
    %s88 = sadd.s32 %s87, 1
    %s89 = scalar_select %p86, %s87, %s88
    %p92 = pneg %p86
    %p93 = scmp.eq.s32.totalorder %s9, 1
    %p94 = por %p92, %p93
    %p95 = scmp.ne.s32.totalorder %s87, %s90
    %p96 = scmp.eq.s32.totalorder %s9, 0
    %p97 = por %p95, %p96
    %p98 = scmp.ne.s32.totalorder %s87, %s90
    %p99 = scmp.eq.s32.totalorder %s14, 1
    %p100 = por %p98, %p99
    %p101 = scmp.ne.s32.totalorder %s90, %s91
    %p102 = scmp.eq.s32.totalorder %s14, 0
    %p103 = por %p101, %p102
    %p104 = scmp.ne.s32.totalorder %s90, %s91
    %p105 = scmp.eq.s32.totalorder %s15, 1
    %p106 = por %p104, %p105
    %p108 = scmp.ne.s32.totalorder %s91, %s107
    %p109 = scmp.eq.s32.totalorder %s15, 0
    %p110 = por %p108, %p109
    %p111 = scmp.le.s32.totalorder 1, %s9
    %p112 = scmp.lt.s32.totalorder %s9, 3
    %p113 = pnand %p111, %p112
    %p114 = pneg %p113
    // Predicated region
    $region9: #{_lambda_.45} parent=5 // pred_check
      _
    $region10: #{_lambda_.45} parent=5 // pred_check_branch
      %116 = sbr.rel (%p113) target = $region12
    $region11: #{_lambda_.45} parent=5 // pred_region
      %s117 = ssub.s32 %s9, 1
      // Predicated region
      $region13: #{_lambda_.45} parent=11 // pred_check
        %p118 = pneg %p56
      $region14: #{_lambda_.45} parent=11 // pred_check_branch
        %120 = sbr.rel (%p118) target = $region16
      $region15: #{_lambda_.45} parent=11 // pred_region
        _
      $region16: #{_lambda_.45} parent=11 // pred_fallthru
        _
      // Predicated region
      $region17: #{_lambda_.45} parent=11 // pred_check
        %p121 = pneg %p77
      $region18: #{_lambda_.45} parent=11 // pred_check_branch
        %123 = sbr.rel (%p121) target = $region20
      $region19: #{_lambda_.45} parent=11 // pred_region
        _
      $region20: #{_lambda_.45} parent=11 // pred_fallthru
        _
    $region12: #{_lambda_.45} parent=5 // pred_fallthru
      _
    %p124 = scmp.lt.s32.totalorder %s9, 2
    // Predicated region
    $region21: #{_lambda_.45} parent=5 // pred_check
      %p125 = pneg %p124
    $region22: #{_lambda_.45} parent=5 // pred_check_branch
      %127 = sbr.rel (%p125) target = $region24
    $region23: #{_lambda_.45} parent=5 // pred_region
      // Predicated region
      $region25: #{_lambda_.45} parent=23 // pred_check
        %p128 = pneg %p29
      $region26: #{_lambda_.45} parent=23 // pred_check_branch
        %130 = sbr.rel (%p128) target = $region28
      $region27: #{_lambda_.45} parent=23 // pred_region
        %s131 = smul.u32 2, %s9
        %p132 = scmp.lt.s32.totalorder %s131, 3
        %s133 = scalar_select %p132, %s131, 3
        %s134 = smul.addr %s133, 4
        %s135 = scalar_lea.vmem %s0, %s134
        %s136 = smul.u32 2, %s9
      $region28: #{_lambda_.45} parent=23 // pred_fallthru
        _
    $region24: #{_lambda_.45} parent=5 // pred_fallthru
      _
    %p137 = scmp.le.s32.totalorder 1, %s9
    %p138 = scmp.lt.s32.totalorder %s9, 3
    %p139 = pnand %p137, %p138
    %p140 = pneg %p139
    // Predicated region
    $region29: #{_lambda_.45} parent=5 // pred_check
      _
    $region30: #{_lambda_.45} parent=5 // pred_check_branch
      %142 = sbr.rel (%p139) target = $region32
    $region31: #{_lambda_.45} parent=5 // pred_region
      %s143 = ssub.s32 %s9, 1
      %s144 = smul.u32 2, %s14
      %p145 = scmp.lt.s32.totalorder %s144, 3
      %s146 = scalar_select %p145, %s144, 3
      %s147 = smul.addr %s146, 4
      %s148 = scalar_lea.vmem %s0, %s147
      %p149 = pneg %p35
      %p150 = pneg %p32
      %p151 = pneg %p56
      %p152 = pneg %p53
      %p153 = pneg %p77
      %p154 = pneg %p74
      %p155 = pneg %p103
      %p156 = pneg %p100
      %s157 = smul.u32 2, %s14
      %p158 = scmp.lt.s32.totalorder %s157, 3
      %s159 = scalar_select %p158, %s157, 3
      %s160 = smul.addr %s159, 4
      %s161 = scalar_lea.vmem %s3, %s160
      %s162 = smul.u32 2, %s14
      %p163 = scmp.lt.s32.totalorder %s162, 3
      %s164 = scalar_select %p163, %s162, 3
      %s165 = smul.addr %s164, 4
      %s166 = scalar_lea.vmem %s0, %s165
      %s167 = smul.u32 2, %s14
      %s168 = smul.u32 2, %s14
      %p169 = scmp.lt.s32.totalorder %s168, 3
      %s170 = scalar_select %p169, %s168, 3
      %s171 = smul.addr %s170, 4
      %s172 = scalar_lea.vmem %s3, %s171
      %s173 = smul.u32 2, %s14
      %v175 = vld [vmem:[%s166] sm:$0xf]
      %v176 = vld [vmem:[%s166 + $0x4] sm:$0xf]
      %v177 = vld [vmem:[%s1] sm:$0xf]
      %v178 = vld [vmem:[%s1 + $0x4] sm:$0xf]
      %v179 = vld [vmem:[%s1 + $0x8] sm:$0xf]
      %v180 = vld [vmem:[%s1 + $0xc] sm:$0xf]
      %v181 = vld [vmem:[%s1 + $0x10] sm:$0xf]
      %v182 = vld [vmem:[%s1 + $0x14] sm:$0xf]
      %v183 = vld [vmem:[%s1 + $0x18] sm:$0xf]
      %v184 = vld [vmem:[%s1 + $0x1c] sm:$0xf]
      %v185 = vld [vmem:[%s1 + $0x20] sm:$0xf]
      %v186 = vld [vmem:[%s1 + $0x24] sm:$0xf]
      %v187 = vld [vmem:[%s1 + $0x28] sm:$0xf]
      %v188 = vld [vmem:[%s1 + $0x2c] sm:$0xf]
      %v189 = vld [vmem:[%s1 + $0x30] sm:$0xf]
      %v190 = vld [vmem:[%s1 + $0x34] sm:$0xf]
      %v191 = vld [vmem:[%s1 + $0x38] sm:$0xf]
      %v192 = vld [vmem:[%s1 + $0x3c] sm:$0xf]
      %v193 = vld [vmem:[%s2] sm:$0x1]
      %v195 = vlaneseq
      %v196 = vshrl.u32 %v195, 7
      %v197 = vsub.s32 0, %v196
      %v198 = vrot.slane %v193, %v197
      %v202 = vunpack.c.l.b16 %v175
      %v203 = vunpack.c.l.b16 %v176
      %v204 = vpack.c.b16 %v203, %v202
      %v222 = vunpack.c.l.b16 %v177
      %v223 = vunpack.c.l.b16 %v178
      %v224 = vunpack.c.l.b16 %v179
      %v225 = vunpack.c.l.b16 %v180
      %v226 = vunpack.c.l.b16 %v181
      %v227 = vunpack.c.l.b16 %v182
      %v228 = vunpack.c.l.b16 %v183
      %v229 = vunpack.c.l.b16 %v184
      %v230 = vunpack.c.l.b16 %v185
      %v231 = vunpack.c.l.b16 %v186
      %v232 = vunpack.c.l.b16 %v187
      %v233 = vunpack.c.l.b16 %v188
      %v234 = vunpack.c.l.b16 %v189
      %v235 = vunpack.c.l.b16 %v190
      %v236 = vunpack.c.l.b16 %v191
      %v237 = vunpack.c.l.b16 %v192
      %v238 = vpack.c.b16 %v223, %v222
      %v239 = vpack.c.b16 %v225, %v224
      %v240 = vpack.c.b16 %v227, %v226
      %v241 = vpack.c.b16 %v229, %v228
      %v242 = vpack.c.b16 %v231, %v230
      %v243 = vpack.c.b16 %v233, %v232
      %v244 = vpack.c.b16 %v235, %v234
      %v245 = vpack.c.b16 %v237, %v236
      %254 = vmatprep.subr.bf16.mxu0 0
      %255 = vmatpush1.bf16.msra.mxu0 %v245
      %256 = vmatprep.subr.bf16.mxu0 0
      %257 = vmatpush1.bf16.msra.mxu0 %v244
      %258 = vmatprep.subr.bf16.mxu0 0
      %259 = vmatpush1.bf16.msra.mxu0 %v243
      %260 = vmatprep.subr.bf16.mxu0 0
      %261 = vmatpush1.bf16.msra.mxu0 %v242
      %262 = vmatprep.subr.bf16.mxu0 0
      %263 = vmatpush1.bf16.msra.mxu0 %v241
      %264 = vmatprep.subr.bf16.mxu0 0
      %265 = vmatpush1.bf16.msra.mxu0 %v240
      %266 = vmatprep.subr.bf16.mxu0 0
      %267 = vmatpush1.bf16.msra.mxu0 %v239
      %268 = vmatprep.subr.bf16.mxu0 0
      %269 = vmatpush1.bf16.msra.mxu0 %v238
      %270 = vmatprep.subr.bf16.mxu0 0
      %271 = vmatpush2.bf16.msra.mxu0 0
      %272 = vmatprep.subr.bf16.mxu0 0
      %273 = vmatpush2.bf16.msra.mxu0 0
      %274 = vmatprep.subr.bf16.mxu0 0
      %275 = vmatpush2.bf16.msra.mxu0 0
      %276 = vmatprep.subr.bf16.mxu0 0
      %277 = vmatpush2.bf16.msra.mxu0 0
      %278 = vmatprep.subr.bf16.mxu0 0
      %279 = vmatpush2.bf16.msra.mxu0 0
      %280 = vmatprep.subr.bf16.mxu0 0
      %281 = vmatpush2.bf16.msra.mxu0 0
      %282 = vmatprep.subr.bf16.mxu0 0
      %283 = vmatpush2.bf16.msra.mxu0 0
      %284 = vmatprep.subr.bf16.mxu0 0
      %285 = vmatpush2.bf16.msra.mxu0 0
      %286 = vmatprep.mubr.bf16.mxu0 0
      %287 = vmatmul.mubr.bf16.gmra.mxu0 %v204
      %v288 = vpop.f32.mrf.mxu0
      %v289 = vadd.f32 %v198, %v288
      %v290 = vpop.f32.mrf.mxu0
      %v291 = vpop.f32.mrf.mxu0
      %v292 = vadd.f32 %v198, %v291
      %v293 = vpop.f32.mrf.mxu0
      %294 = vdwg.mxu0
      %v295 = vmax.f32 %v289, 0.0
      %v296 = vmax.f32 %v292, 0.0
      %v297 = vpack.c.bf16 %v296, %v295
      %v299 = vunpack.c.l.b16 %v297
      %v300 = vunpack.c.h.b16 %v297
      %v301 = vpack.c.b16 %v299, %v299
      %v302 = vpack.c.b16 %v300, %v300
      %305 = vst [vmem:[%s172] sm:$0xf] %v301
      %306 = vst [vmem:[%s172 + $0x4] sm:$0xf] %v302
      %s307 = smul.u32 2, %s14
      %p308 = scmp.lt.s32.totalorder %s307, 3
      %s309 = scalar_select %p308, %s307, 3
      %s310 = smul.addr %s309, 4
      %s311 = scalar_lea.vmem %s3, %s310
      // Predicated region
      $region33: #{_lambda_.45} parent=31 // pred_check
        %p312 = pneg %p100
      $region34: #{_lambda_.45} parent=31 // pred_check_branch
        %314 = sbr.rel (%p312) target = $region36
      $region35: #{_lambda_.45} parent=31 // pred_region
        %s315 = smul.u32 2, %s14
      $region36: #{_lambda_.45} parent=31 // pred_fallthru
        _
    $region32: #{_lambda_.45} parent=5 // pred_fallthru
      _
    %p316 = scmp.le.s32.totalorder 2, %s9
    // Predicated region
    $region37: #{_lambda_.45} parent=5 // pred_check
      %p317 = pneg %p316
    $region38: #{_lambda_.45} parent=5 // pred_check_branch
      %319 = sbr.rel (%p317) target = $region40
    $region39: #{_lambda_.45} parent=5 // pred_region
      %s320 = ssub.s32 %s9, 2
      // Predicated region
      $region41: #{_lambda_.45} parent=39 // pred_check
        %p321 = pneg %p106
      $region42: #{_lambda_.45} parent=39 // pred_check_branch
        %323 = sbr.rel (%p321) target = $region44
      $region43: #{_lambda_.45} parent=39 // pred_region
        %s324 = smul.u32 2, %s15
        %p325 = scmp.lt.s32.totalorder %s324, 3
        %s326 = scalar_select %p325, %s324, 3
        %s327 = smul.addr %s326, 4
        %s328 = scalar_lea.vmem %s3, %s327
      $region44: #{_lambda_.45} parent=39 // pred_fallthru
        _
    $region40: #{_lambda_.45} parent=5 // pred_fallthru
      _
  $region6: #{_lambda_.45} parent=0 // loop_footer
    %s13 = sadd.s32 1, %s9
  $region7: #{_lambda_.45} parent=0 // loop_footer_branch
    %8 = sbr.rel target = $region3
  $region8: #{_lambda_.45} parent=0 // loop_exit
    _

// kernel: _lambda_.50
$region0: #{_lambda_.50}
  #allocation0 [shape = 'u32[]', space=smem, size = 0x4, offset = 0x4, fixed_abs, tag = 'smem constant byte address 0x4 - core index']
  #allocation1 [shape = 'u32[144,128]{1,0:T(1,128)}', space=vmem, size = 0x12000, scoped, tag = 'internal scratch']
  %s0 = inlined_call_operand.vmem [shape: bf16[9,16,128], index: 0, kind: input, shape index: {}]
  %s1 = inlined_call_operand.vmem [shape: f32[9,1,128], index: 1, kind: input, shape index: {}]
  %s2 = inlined_call_operand.vmem [shape: f32[1,128], index: 2, kind: input, shape index: {}]
  %s3 = inlined_call_operand.vmem [shape: bf16[16,128], index: 3, kind: output, shape index: {0}]
  %s4 = inlined_call_operand.vmem [shape: bf16[16,128], index: 4, kind: output, shape index: {1}]
  %5 = xla_tuple %s3, %s4
  %s6 = sld [smem:[#allocation0]]
  $region30: #{_lambda_.50} parent=0
    _
  %s8 = ssub.s32 1, %s6
  %s9 = scalar_select 0, %s8, %s6
  // Predicated region
  $region2: #{_lambda_.50} parent=0 // pred_check
    _
  $region3: #{_lambda_.50} parent=0 // pred_check_branch
    %11 = sbr.rel (0) target = $region5
  $region4: #{_lambda_.50} parent=0 // pred_region
    _
  $region5: #{_lambda_.50} parent=0 // pred_fallthru
    _
  // Predicated region
  $region6: #{_lambda_.50} parent=0 // pred_check
    _
  $region7: #{_lambda_.50} parent=0 // pred_check_branch
    %13 = sbr.rel (0) target = $region9
  $region8: #{_lambda_.50} parent=0 // pred_region
    _
  $region9: #{_lambda_.50} parent=0 // pred_fallthru
    _
  // Predicated region
  $region10: #{_lambda_.50} parent=0 // pred_check
    _
  $region11: #{_lambda_.50} parent=0 // pred_check_branch
    %15 = sbr.rel (0) target = $region13
  $region12: #{_lambda_.50} parent=0 // pred_region
    _
  $region13: #{_lambda_.50} parent=0 // pred_fallthru
    _
  %v16 = vld [vmem:[%s0] sm:$0xf]
  %v17 = vld [vmem:[%s0 + $0x4] sm:$0xf]
  %v18 = vunpack.c.l.bf16 %v16
  %v19 = vunpack.c.l.bf16 %v17
  %v20 = vld [vmem:[%s1] sm:$0x1]
  %v22 = vlaneseq
  %v23 = vshrl.u32 %v22, 7
  %v24 = vsub.s32 0, %v23
  %v25 = vrot.slane %v20, %v24
  %v27 = vmul.f32 %v18, %v25
  %v28 = vmul.f32 %v19, %v25
  %s29 = scalar_lea.vmem %s0, 8
  %v30 = vld [vmem:[%s29] sm:$0xf]
  %v31 = vld [vmem:[%s29 + $0x4] sm:$0xf]
  %v32 = vunpack.c.l.bf16 %v30
  %v33 = vunpack.c.l.bf16 %v31
  %s34 = scalar_lea.vmem %s1, 1
  %v35 = vld [vmem:[%s34] sm:$0x1]
  %v37 = vlaneseq
  %v38 = vshrl.u32 %v37, 7
  %v39 = vsub.s32 0, %v38
  %v40 = vrot.slane %v35, %v39
  %v42 = vmul.f32 %v32, %v40
  %v43 = vmul.f32 %v33, %v40
  %v44 = vadd.f32 %v27, %v42
  %v45 = vadd.f32 %v28, %v43
  %v46 = vadd.f32 %v18, %v32
  %v47 = vadd.f32 %v19, %v33
  %s48 = scalar_lea.vmem %s0, 16
  %v49 = vld [vmem:[%s48] sm:$0xf]
  %v50 = vld [vmem:[%s48 + $0x4] sm:$0xf]
  %v51 = vunpack.c.l.bf16 %v49
  %v52 = vunpack.c.l.bf16 %v50
  %s53 = scalar_lea.vmem %s1, 2
  %v54 = vld [vmem:[%s53] sm:$0x1]
  %v56 = vlaneseq
  %v57 = vshrl.u32 %v56, 7
  %v58 = vsub.s32 0, %v57
  %v59 = vrot.slane %v54, %v58
  %v61 = vmul.f32 %v51, %v59
  %v62 = vmul.f32 %v52, %v59
  %v63 = vadd.f32 %v44, %v61
  %v64 = vadd.f32 %v45, %v62
  %v65 = vadd.f32 %v46, %v51
  %v66 = vadd.f32 %v47, %v52
  %s67 = scalar_lea.vmem %s0, 24
  %v68 = vld [vmem:[%s67] sm:$0xf]
  %v69 = vld [vmem:[%s67 + $0x4] sm:$0xf]
  %v70 = vunpack.c.l.bf16 %v68
  %v71 = vunpack.c.l.bf16 %v69
  %s72 = scalar_lea.vmem %s1, 3
  %v73 = vld [vmem:[%s72] sm:$0x1]
  %v75 = vlaneseq
  %v76 = vshrl.u32 %v75, 7
  %v77 = vsub.s32 0, %v76
  %v78 = vrot.slane %v73, %v77
  %v80 = vmul.f32 %v70, %v78
  %v81 = vmul.f32 %v71, %v78
  %v82 = vadd.f32 %v63, %v80
  %v83 = vadd.f32 %v64, %v81
  %v84 = vadd.f32 %v65, %v70
  %v85 = vadd.f32 %v66, %v71
  %s86 = scalar_lea.vmem %s0, 32
  %v87 = vld [vmem:[%s86] sm:$0xf]
  %v88 = vld [vmem:[%s86 + $0x4] sm:$0xf]
  %v89 = vunpack.c.l.bf16 %v87
  %v90 = vunpack.c.l.bf16 %v88
  %s91 = scalar_lea.vmem %s1, 4
  %v92 = vld [vmem:[%s91] sm:$0x1]
  %v94 = vlaneseq
  %v95 = vshrl.u32 %v94, 7
  %v96 = vsub.s32 0, %v95
  %v97 = vrot.slane %v92, %v96
  %v99 = vmul.f32 %v89, %v97
  %v100 = vmul.f32 %v90, %v97
  %v101 = vadd.f32 %v82, %v99
  %v102 = vadd.f32 %v83, %v100
  %v103 = vadd.f32 %v84, %v89
  %v104 = vadd.f32 %v85, %v90
  %s105 = scalar_lea.vmem %s0, 40
  %v106 = vld [vmem:[%s105] sm:$0xf]
  %v107 = vld [vmem:[%s105 + $0x4] sm:$0xf]
  %v108 = vunpack.c.l.bf16 %v106
  %v109 = vunpack.c.l.bf16 %v107
  %s110 = scalar_lea.vmem %s1, 5
  %v111 = vld [vmem:[%s110] sm:$0x1]
  %v113 = vlaneseq
  %v114 = vshrl.u32 %v113, 7
  %v115 = vsub.s32 0, %v114
  %v116 = vrot.slane %v111, %v115
  %v118 = vmul.f32 %v108, %v116
  %v119 = vmul.f32 %v109, %v116
  %v120 = vadd.f32 %v101, %v118
  %v121 = vadd.f32 %v102, %v119
  %v122 = vadd.f32 %v103, %v108
  %v123 = vadd.f32 %v104, %v109
  %s124 = scalar_lea.vmem %s0, 48
  %v125 = vld [vmem:[%s124] sm:$0xf]
  %v126 = vld [vmem:[%s124 + $0x4] sm:$0xf]
  %v127 = vunpack.c.l.bf16 %v125
  %v128 = vunpack.c.l.bf16 %v126
  %s129 = scalar_lea.vmem %s1, 6
  %v130 = vld [vmem:[%s129] sm:$0x1]
  %v132 = vlaneseq
  %v133 = vshrl.u32 %v132, 7
  %v134 = vsub.s32 0, %v133
  %v135 = vrot.slane %v130, %v134
  %v137 = vmul.f32 %v127, %v135
  %v138 = vmul.f32 %v128, %v135
  %v139 = vadd.f32 %v120, %v137
  %v140 = vadd.f32 %v121, %v138
  %v141 = vadd.f32 %v122, %v127
  %v142 = vadd.f32 %v123, %v128
  %s143 = scalar_lea.vmem %s0, 56
  %v144 = vld [vmem:[%s143] sm:$0xf]
  %v145 = vld [vmem:[%s143 + $0x4] sm:$0xf]
  %v146 = vunpack.c.l.bf16 %v144
  %v147 = vunpack.c.l.bf16 %v145
  %s148 = scalar_lea.vmem %s1, 7
  %v149 = vld [vmem:[%s148] sm:$0x1]
  %v151 = vlaneseq
  %v152 = vshrl.u32 %v151, 7
  %v153 = vsub.s32 0, %v152
  %v154 = vrot.slane %v149, %v153
  %v156 = vmul.f32 %v146, %v154
  %v157 = vmul.f32 %v147, %v154
  %v158 = vadd.f32 %v139, %v156
  %v159 = vadd.f32 %v140, %v157
  %v160 = vadd.f32 %v141, %v146
  %v161 = vadd.f32 %v142, %v147
  %s162 = scalar_lea.vmem %s0, 64
  %v163 = vld [vmem:[%s162] sm:$0xf]
  %v164 = vld [vmem:[%s162 + $0x4] sm:$0xf]
  %v165 = vunpack.c.l.bf16 %v163
  %v166 = vunpack.c.l.bf16 %v164
  %s167 = scalar_lea.vmem %s1, 8
  %v168 = vld [vmem:[%s167] sm:$0x1]
  %v170 = vlaneseq
  %v171 = vshrl.u32 %v170, 7
  %v172 = vsub.s32 0, %v171
  %v173 = vrot.slane %v168, %v172
  %v175 = vmul.f32 %v165, %v173
  %v176 = vmul.f32 %v166, %v173
  %v177 = vadd.f32 %v158, %v175
  %v178 = vadd.f32 %v159, %v176
  %v179 = vadd.f32 %v160, %v165
  %v180 = vadd.f32 %v161, %v166
  %v181 = vld [vmem:[%s2] sm:$0x1]
  %v183 = vlaneseq
  %v184 = vshrl.u32 %v183, 7
  %v185 = vsub.s32 0, %v184
  %v186 = vrot.slane %v181, %v185
  %v188 = vadd.f32 %v177, %v186
  %v189 = vadd.f32 %v178, %v186
  %v190 = vpack.c.bf16 %v189, %v188
  %v192 = vunpack.c.l.b16 %v190
  %v193 = vunpack.c.h.b16 %v190
  %v194 = vpack.c.b16 %v192, %v192
  %v195 = vpack.c.b16 %v193, %v193
  %198 = vst [vmem:[%s3] sm:$0xf] %v194
  %199 = vst [vmem:[%s3 + $0x4] sm:$0xf] %v195
  %v200 = vmul.f32 %v179, 0.11111111
  %v201 = vmul.f32 %v180, 0.11111111
  %v202 = vpack.c.bf16 %v201, %v200
  %v204 = vunpack.c.l.b16 %v202
  %v205 = vunpack.c.h.b16 %v202
  %v206 = vpack.c.b16 %v204, %v204
  %v207 = vpack.c.b16 %v205, %v205
  %210 = vst [vmem:[%s4] sm:$0xf] %v206
  %211 = vst [vmem:[%s4 + $0x4] sm:$0xf] %v207
  // Predicated region
  $region14: #{_lambda_.50} parent=0 // pred_check
    _
  $region15: #{_lambda_.50} parent=0 // pred_check_branch
    %213 = sbr.rel (0) target = $region17
  $region16: #{_lambda_.50} parent=0 // pred_region
    _
  $region17: #{_lambda_.50} parent=0 // pred_fallthru
    _
  // Predicated region
  $region18: #{_lambda_.50} parent=0 // pred_check
    _
  $region19: #{_lambda_.50} parent=0 // pred_check_branch
    %215 = sbr.rel (0) target = $region21
  $region20: #{_lambda_.50} parent=0 // pred_region
    _
  $region21: #{_lambda_.50} parent=0 // pred_fallthru
    _
  // Predicated region
  $region22: #{_lambda_.50} parent=0 // pred_check
    _
  $region23: #{_lambda_.50} parent=0 // pred_check_branch
    %217 = sbr.rel (0) target = $region25
  $region24: #{_lambda_.50} parent=0 // pred_region
    _
  $region25: #{_lambda_.50} parent=0 // pred_fallthru
    _
  // Predicated region
  $region26: #{_lambda_.50} parent=0 // pred_check
    _
  $region27: #{_lambda_.50} parent=0 // pred_check_branch
    %219 = sbr.rel (0) target = $region29
  $region28: #{_lambda_.50} parent=0 // pred_region
    _
  $region29: #{_lambda_.50} parent=0 // pred_fallthru
    _

// kernel: _lambda_.52
$region0: #{_lambda_.52}
  #allocation0 [shape = 'u32[]', space=smem, size = 0x4, offset = 0x4, fixed_abs, tag = 'smem constant byte address 0x4 - core index']
  #allocation1 [shape = 'u32[144,128]{1,0:T(1,128)}', space=vmem, size = 0x12000, scoped, tag = 'internal scratch']
  %s0 = inlined_call_operand.vmem [shape: bf16[16,576], index: 0, kind: input, shape index: {}]
  %s1 = inlined_call_operand.vmem [shape: bf16[576,128], index: 1, kind: input, shape index: {}]
  %s2 = inlined_call_operand.vmem [shape: f32[1,128], index: 2, kind: input, shape index: {}]
  %s3 = inlined_call_operand.vmem [shape: bf16[16,128], index: 3, kind: output, shape index: {}]
  %s4 = sld [smem:[#allocation0]]
  $region22: #{_lambda_.52} parent=0
    _
  %s6 = ssub.s32 1, %s4
  %s7 = scalar_select 0, %s6, %s4
  // Predicated region
  $region2: #{_lambda_.52} parent=0 // pred_check
    _
  $region3: #{_lambda_.52} parent=0 // pred_check_branch
    %9 = sbr.rel (0) target = $region5
  $region4: #{_lambda_.52} parent=0 // pred_region
    _
  $region5: #{_lambda_.52} parent=0 // pred_fallthru
    _
  // Predicated region
  $region6: #{_lambda_.52} parent=0 // pred_check
    _
  $region7: #{_lambda_.52} parent=0 // pred_check_branch
    %11 = sbr.rel (0) target = $region9
  $region8: #{_lambda_.52} parent=0 // pred_region
    _
  $region9: #{_lambda_.52} parent=0 // pred_fallthru
    _
  // Predicated region
  $region10: #{_lambda_.52} parent=0 // pred_check
    _
  $region11: #{_lambda_.52} parent=0 // pred_check_branch
    %13 = sbr.rel (0) target = $region13
  $region12: #{_lambda_.52} parent=0 // pred_region
    _
  $region13: #{_lambda_.52} parent=0 // pred_fallthru
    _
  %v15 = vld [vmem:[%s0] sm:$0xff]
  %v16 = vld [vmem:[%s0 + $0x8] sm:$0xff]
  %v17 = vld [vmem:[%s0 + $0x10] sm:$0xf]
  %v18 = vld [vmem:[%s0 + $0x14] sm:$0xff]
  %v19 = vld [vmem:[%s0 + $0x1c] sm:$0xff]
  %v20 = vld [vmem:[%s0 + $0x24] sm:$0xf]
  %v21 = vld [vmem:[%s1] sm:$0xf]
  %v22 = vld [vmem:[%s1 + $0x4] sm:$0xf]
  %v23 = vld [vmem:[%s1 + $0x8] sm:$0xf]
  %v24 = vld [vmem:[%s1 + $0xc] sm:$0xf]
  %v25 = vld [vmem:[%s1 + $0x10] sm:$0xf]
  %v26 = vld [vmem:[%s1 + $0x14] sm:$0xf]
  %v27 = vld [vmem:[%s1 + $0x18] sm:$0xf]
  %v28 = vld [vmem:[%s1 + $0x1c] sm:$0xf]
  %v29 = vld [vmem:[%s1 + $0x20] sm:$0xf]
  %v30 = vld [vmem:[%s1 + $0x24] sm:$0xf]
  %v31 = vld [vmem:[%s1 + $0x28] sm:$0xf]
  %v32 = vld [vmem:[%s1 + $0x2c] sm:$0xf]
  %v33 = vld [vmem:[%s1 + $0x30] sm:$0xf]
  %v34 = vld [vmem:[%s1 + $0x34] sm:$0xf]
  %v35 = vld [vmem:[%s1 + $0x38] sm:$0xf]
  %v36 = vld [vmem:[%s1 + $0x3c] sm:$0xf]
  %v37 = vld [vmem:[%s1 + $0x40] sm:$0xf]
  %v38 = vld [vmem:[%s1 + $0x44] sm:$0xf]
  %v39 = vld [vmem:[%s1 + $0x48] sm:$0xf]
  %v40 = vld [vmem:[%s1 + $0x4c] sm:$0xf]
  %v41 = vld [vmem:[%s1 + $0x50] sm:$0xf]
  %v42 = vld [vmem:[%s1 + $0x54] sm:$0xf]
  %v43 = vld [vmem:[%s1 + $0x58] sm:$0xf]
  %v44 = vld [vmem:[%s1 + $0x5c] sm:$0xf]
  %v45 = vld [vmem:[%s1 + $0x60] sm:$0xf]
  %v46 = vld [vmem:[%s1 + $0x64] sm:$0xf]
  %v47 = vld [vmem:[%s1 + $0x68] sm:$0xf]
  %v48 = vld [vmem:[%s1 + $0x6c] sm:$0xf]
  %v49 = vld [vmem:[%s1 + $0x70] sm:$0xf]
  %v50 = vld [vmem:[%s1 + $0x74] sm:$0xf]
  %v51 = vld [vmem:[%s1 + $0x78] sm:$0xf]
  %v52 = vld [vmem:[%s1 + $0x7c] sm:$0xf]
  %v53 = vld [vmem:[%s1 + $0x80] sm:$0xf]
  %v54 = vld [vmem:[%s1 + $0x84] sm:$0xf]
  %v55 = vld [vmem:[%s1 + $0x88] sm:$0xf]
  %v56 = vld [vmem:[%s1 + $0x8c] sm:$0xf]
  %v57 = vld [vmem:[%s1 + $0x90] sm:$0xf]
  %v58 = vld [vmem:[%s1 + $0x94] sm:$0xf]
  %v59 = vld [vmem:[%s1 + $0x98] sm:$0xf]
  %v60 = vld [vmem:[%s1 + $0x9c] sm:$0xf]
  %v61 = vld [vmem:[%s1 + $0xa0] sm:$0xf]
  %v62 = vld [vmem:[%s1 + $0xa4] sm:$0xf]
  %v63 = vld [vmem:[%s1 + $0xa8] sm:$0xf]
  %v64 = vld [vmem:[%s1 + $0xac] sm:$0xf]
  %v65 = vld [vmem:[%s1 + $0xb0] sm:$0xf]
  %v66 = vld [vmem:[%s1 + $0xb4] sm:$0xf]
  %v67 = vld [vmem:[%s1 + $0xb8] sm:$0xf]
  %v68 = vld [vmem:[%s1 + $0xbc] sm:$0xf]
  %v69 = vld [vmem:[%s1 + $0xc0] sm:$0xf]
  %v70 = vld [vmem:[%s1 + $0xc4] sm:$0xf]
  %v71 = vld [vmem:[%s1 + $0xc8] sm:$0xf]
  %v72 = vld [vmem:[%s1 + $0xcc] sm:$0xf]
  %v73 = vld [vmem:[%s1 + $0xd0] sm:$0xf]
  %v74 = vld [vmem:[%s1 + $0xd4] sm:$0xf]
  %v75 = vld [vmem:[%s1 + $0xd8] sm:$0xf]
  %v76 = vld [vmem:[%s1 + $0xdc] sm:$0xf]
  %v77 = vld [vmem:[%s1 + $0xe0] sm:$0xf]
  %v78 = vld [vmem:[%s1 + $0xe4] sm:$0xf]
  %v79 = vld [vmem:[%s1 + $0xe8] sm:$0xf]
  %v80 = vld [vmem:[%s1 + $0xec] sm:$0xf]
  %v81 = vld [vmem:[%s1 + $0xf0] sm:$0xf]
  %v82 = vld [vmem:[%s1 + $0xf4] sm:$0xf]
  %v83 = vld [vmem:[%s1 + $0xf8] sm:$0xf]
  %v84 = vld [vmem:[%s1 + $0xfc] sm:$0xf]
  %v85 = vld [vmem:[%s1 + $0x100] sm:$0xf]
  %v86 = vld [vmem:[%s1 + $0x104] sm:$0xf]
  %v87 = vld [vmem:[%s1 + $0x108] sm:$0xf]
  %v88 = vld [vmem:[%s1 + $0x10c] sm:$0xf]
  %v89 = vld [vmem:[%s1 + $0x110] sm:$0xf]
  %v90 = vld [vmem:[%s1 + $0x114] sm:$0xf]
  %v91 = vld [vmem:[%s1 + $0x118] sm:$0xf]
  %v92 = vld [vmem:[%s1 + $0x11c] sm:$0xf]
  %v93 = vld [vmem:[%s2] sm:$0x1]
  %v95 = vlaneseq
  %v96 = vshrl.u32 %v95, 7
  %v97 = vsub.s32 0, %v96
  %v98 = vrot.slane %v93, %v97
  %v106 = vunpack.c.l.b16 %v15
  %v107 = vunpack.c.h.b16 %v15
  %v108 = vunpack.c.l.b16 %v16
  %v109 = vunpack.c.h.b16 %v16
  %v110 = vunpack.c.l.b16 %v17
  %v111 = vunpack.c.l.b16 %v18
  %v112 = vunpack.c.h.b16 %v18
  %v113 = vunpack.c.l.b16 %v19
  %v114 = vunpack.c.h.b16 %v19
  %v115 = vunpack.c.l.b16 %v20
  %v116 = vpack.c.b16 %v111, %v106
  %v117 = vpack.c.b16 %v112, %v107
  %v118 = vpack.c.b16 %v113, %v108
  %v119 = vpack.c.b16 %v114, %v109
  %v120 = vpack.c.b16 %v115, %v110
  %v197 = vunpack.c.l.b16 %v21
  %v198 = vunpack.c.l.b16 %v22
  %v199 = vunpack.c.l.b16 %v23
  %v200 = vunpack.c.l.b16 %v24
  %v201 = vunpack.c.l.b16 %v25
  %v202 = vunpack.c.l.b16 %v26
  %v203 = vunpack.c.l.b16 %v27
  %v204 = vunpack.c.l.b16 %v28
  %v205 = vunpack.c.l.b16 %v29
  %v206 = vunpack.c.l.b16 %v30
  %v207 = vunpack.c.l.b16 %v31
  %v208 = vunpack.c.l.b16 %v32
  %v209 = vunpack.c.l.b16 %v33
  %v210 = vunpack.c.l.b16 %v34
  %v211 = vunpack.c.l.b16 %v35
  %v212 = vunpack.c.l.b16 %v36
  %v213 = vunpack.c.l.b16 %v37
  %v214 = vunpack.c.l.b16 %v38
  %v215 = vunpack.c.l.b16 %v39
  %v216 = vunpack.c.l.b16 %v40
  %v217 = vunpack.c.l.b16 %v41
  %v218 = vunpack.c.l.b16 %v42
  %v219 = vunpack.c.l.b16 %v43
  %v220 = vunpack.c.l.b16 %v44
  %v221 = vunpack.c.l.b16 %v45
  %v222 = vunpack.c.l.b16 %v46
  %v223 = vunpack.c.l.b16 %v47
  %v224 = vunpack.c.l.b16 %v48
  %v225 = vunpack.c.l.b16 %v49
  %v226 = vunpack.c.l.b16 %v50
  %v227 = vunpack.c.l.b16 %v51
  %v228 = vunpack.c.l.b16 %v52
  %v229 = vunpack.c.l.b16 %v53
  %v230 = vunpack.c.l.b16 %v54
  %v231 = vunpack.c.l.b16 %v55
  %v232 = vunpack.c.l.b16 %v56
  %v233 = vunpack.c.l.b16 %v57
  %v234 = vunpack.c.l.b16 %v58
  %v235 = vunpack.c.l.b16 %v59
  %v236 = vunpack.c.l.b16 %v60
  %v237 = vunpack.c.l.b16 %v61
  %v238 = vunpack.c.l.b16 %v62
  %v239 = vunpack.c.l.b16 %v63
  %v240 = vunpack.c.l.b16 %v64
  %v241 = vunpack.c.l.b16 %v65
  %v242 = vunpack.c.l.b16 %v66
  %v243 = vunpack.c.l.b16 %v67
  %v244 = vunpack.c.l.b16 %v68
  %v245 = vunpack.c.l.b16 %v69
  %v246 = vunpack.c.l.b16 %v70
  %v247 = vunpack.c.l.b16 %v71
  %v248 = vunpack.c.l.b16 %v72
  %v249 = vunpack.c.l.b16 %v73
  %v250 = vunpack.c.l.b16 %v74
  %v251 = vunpack.c.l.b16 %v75
  %v252 = vunpack.c.l.b16 %v76
  %v253 = vunpack.c.l.b16 %v77
  %v254 = vunpack.c.l.b16 %v78
  %v255 = vunpack.c.l.b16 %v79
  %v256 = vunpack.c.l.b16 %v80
  %v257 = vunpack.c.l.b16 %v81
  %v258 = vunpack.c.l.b16 %v82
  %v259 = vunpack.c.l.b16 %v83
  %v260 = vunpack.c.l.b16 %v84
  %v261 = vunpack.c.l.b16 %v85
  %v262 = vunpack.c.l.b16 %v86
  %v263 = vunpack.c.l.b16 %v87
  %v264 = vunpack.c.l.b16 %v88
  %v265 = vunpack.c.l.b16 %v89
  %v266 = vunpack.c.l.b16 %v90
  %v267 = vunpack.c.l.b16 %v91
  %v268 = vunpack.c.l.b16 %v92
  %v269 = vpack.c.b16 %v198, %v197
  %v270 = vpack.c.b16 %v200, %v199
  %v271 = vpack.c.b16 %v202, %v201
  %v272 = vpack.c.b16 %v204, %v203
  %v273 = vpack.c.b16 %v206, %v205
  %v274 = vpack.c.b16 %v208, %v207
  %v275 = vpack.c.b16 %v210, %v209
  %v276 = vpack.c.b16 %v212, %v211
  %v277 = vpack.c.b16 %v214, %v213
  %v278 = vpack.c.b16 %v216, %v215
  %v279 = vpack.c.b16 %v218, %v217
  %v280 = vpack.c.b16 %v220, %v219
  %v281 = vpack.c.b16 %v222, %v221
  %v282 = vpack.c.b16 %v224, %v223
  %v283 = vpack.c.b16 %v226, %v225
  %v284 = vpack.c.b16 %v228, %v227
  %v285 = vpack.c.b16 %v230, %v229
  %v286 = vpack.c.b16 %v232, %v231
  %v287 = vpack.c.b16 %v234, %v233
  %v288 = vpack.c.b16 %v236, %v235
  %v289 = vpack.c.b16 %v238, %v237
  %v290 = vpack.c.b16 %v240, %v239
  %v291 = vpack.c.b16 %v242, %v241
  %v292 = vpack.c.b16 %v244, %v243
  %v293 = vpack.c.b16 %v246, %v245
  %v294 = vpack.c.b16 %v248, %v247
  %v295 = vpack.c.b16 %v250, %v249
  %v296 = vpack.c.b16 %v252, %v251
  %v297 = vpack.c.b16 %v254, %v253
  %v298 = vpack.c.b16 %v256, %v255
  %v299 = vpack.c.b16 %v258, %v257
  %v300 = vpack.c.b16 %v260, %v259
  %v301 = vpack.c.b16 %v262, %v261
  %v302 = vpack.c.b16 %v264, %v263
  %v303 = vpack.c.b16 %v266, %v265
  %v304 = vpack.c.b16 %v268, %v267
  %vm341 = vcmask 523264
  %v343 = vsel %vm341, %v120, 0
  %345 = vmatprep.subr.bf16.mxu0 0
  %346 = vmatpush1.bf16.msra.mxu0 %v276
  %347 = vmatprep.subr.bf16.mxu0 0
  %348 = vmatpush1.bf16.msra.mxu0 %v275
  %349 = vmatprep.subr.bf16.mxu0 0
  %350 = vmatpush1.bf16.msra.mxu0 %v274
  %351 = vmatprep.subr.bf16.mxu0 0
  %352 = vmatpush1.bf16.msra.mxu0 %v273
  %353 = vmatprep.subr.bf16.mxu0 0
  %354 = vmatpush1.bf16.msra.mxu0 %v272
  %355 = vmatprep.subr.bf16.mxu0 0
  %356 = vmatpush1.bf16.msra.mxu0 %v271
  %357 = vmatprep.subr.bf16.mxu0 0
  %358 = vmatpush1.bf16.msra.mxu0 %v270
  %359 = vmatprep.subr.bf16.mxu0 0
  %360 = vmatpush1.bf16.msra.mxu0 %v269
  %361 = vmatprep.subr.bf16.mxu0 0
  %362 = vmatpush2.bf16.msra.mxu0 %v284
  %363 = vmatprep.subr.bf16.mxu0 0
  %364 = vmatpush2.bf16.msra.mxu0 %v283
  %365 = vmatprep.subr.bf16.mxu0 0
  %366 = vmatpush2.bf16.msra.mxu0 %v282
  %367 = vmatprep.subr.bf16.mxu0 0
  %368 = vmatpush2.bf16.msra.mxu0 %v281
  %369 = vmatprep.subr.bf16.mxu0 0
  %370 = vmatpush2.bf16.msra.mxu0 %v280
  %371 = vmatprep.subr.bf16.mxu0 0
  %372 = vmatpush2.bf16.msra.mxu0 %v279
  %373 = vmatprep.subr.bf16.mxu0 0
  %374 = vmatpush2.bf16.msra.mxu0 %v278
  %375 = vmatprep.subr.bf16.mxu0 0
  %376 = vmatpush2.bf16.msra.mxu0 %v277
  %377 = vmatprep.mubr.bf16.mxu0 %v117
  %378 = vmatmul.mubr.bf16.gmra.mxu0 %v116
  %v379 = vpop.f32.mrf.mxu0
  %v380 = vadd.f32 %v98, %v379
  %v381 = vpop.f32.mrf.mxu0
  %v382 = vpop.f32.mrf.mxu0
  %v383 = vadd.f32 %v98, %v382
  %v384 = vpop.f32.mrf.mxu0
  %385 = vdwg.mxu0
  %386 = vmatprep.subr.bf16.mxu0 0
  %387 = vmatpush1.bf16.msra.mxu0 %v292
  %388 = vmatprep.subr.bf16.mxu0 0
  %389 = vmatpush1.bf16.msra.mxu0 %v291
  %390 = vmatprep.subr.bf16.mxu0 0
  %391 = vmatpush1.bf16.msra.mxu0 %v290
  %392 = vmatprep.subr.bf16.mxu0 0
  %393 = vmatpush1.bf16.msra.mxu0 %v289
  %394 = vmatprep.subr.bf16.mxu0 0
  %395 = vmatpush1.bf16.msra.mxu0 %v288
  %396 = vmatprep.subr.bf16.mxu0 0
  %397 = vmatpush1.bf16.msra.mxu0 %v287
  %398 = vmatprep.subr.bf16.mxu0 0
  %399 = vmatpush1.bf16.msra.mxu0 %v286
  %400 = vmatprep.subr.bf16.mxu0 0
  %401 = vmatpush1.bf16.msra.mxu0 %v285
  %402 = vmatprep.subr.bf16.mxu0 0
  %403 = vmatpush2.bf16.msra.mxu0 %v300
  %404 = vmatprep.subr.bf16.mxu0 0
  %405 = vmatpush2.bf16.msra.mxu0 %v299
  %406 = vmatprep.subr.bf16.mxu0 0
  %407 = vmatpush2.bf16.msra.mxu0 %v298
  %408 = vmatprep.subr.bf16.mxu0 0
  %409 = vmatpush2.bf16.msra.mxu0 %v297
  %410 = vmatprep.subr.bf16.mxu0 0
  %411 = vmatpush2.bf16.msra.mxu0 %v296
  %412 = vmatprep.subr.bf16.mxu0 0
  %413 = vmatpush2.bf16.msra.mxu0 %v295
  %414 = vmatprep.subr.bf16.mxu0 0
  %415 = vmatpush2.bf16.msra.mxu0 %v294
  %416 = vmatprep.subr.bf16.mxu0 0
  %417 = vmatpush2.bf16.msra.mxu0 %v293
  %418 = vmatprep.mubr.bf16.mxu0 %v119
  %419 = vmatmul.mubr.bf16.gmra.mxu0 %v118
  %v420 = vpop.f32.mrf.mxu0
  %v421 = vadd.f32 %v380, %v420
  %v422 = vpop.f32.mrf.mxu0
  %v423 = vpop.f32.mrf.mxu0
  %v424 = vadd.f32 %v383, %v423
  %v425 = vpop.f32.mrf.mxu0
  %426 = vdwg.mxu0
  %427 = vmatprep.subr.bf16.mxu0 0
  %428 = vmatpush1.bf16.msra.mxu0 0
  %429 = vmatprep.subr.bf16.mxu0 0
  %430 = vmatpush1.bf16.msra.mxu0 0
  %431 = vmatprep.subr.bf16.mxu0 0
  %432 = vmatpush1.bf16.msra.mxu0 0
  %433 = vmatprep.subr.bf16.mxu0 0
  %434 = vmatpush1.bf16.msra.mxu0 0
  %435 = vmatprep.subr.bf16.mxu0 0
  %436 = vmatpush1.bf16.msra.mxu0 %v304
  %437 = vmatprep.subr.bf16.mxu0 0
  %438 = vmatpush1.bf16.msra.mxu0 %v303
  %439 = vmatprep.subr.bf16.mxu0 0
  %440 = vmatpush1.bf16.msra.mxu0 %v302
  %441 = vmatprep.subr.bf16.mxu0 0
  %442 = vmatpush1.bf16.msra.mxu0 %v301
  %443 = vmatprep.subr.bf16.mxu0 0
  %444 = vmatpush2.bf16.msra.mxu0 0
  %445 = vmatprep.subr.bf16.mxu0 0
  %446 = vmatpush2.bf16.msra.mxu0 0
  %447 = vmatprep.subr.bf16.mxu0 0
  %448 = vmatpush2.bf16.msra.mxu0 0
  %449 = vmatprep.subr.bf16.mxu0 0
  %450 = vmatpush2.bf16.msra.mxu0 0
  %451 = vmatprep.subr.bf16.mxu0 0
  %452 = vmatpush2.bf16.msra.mxu0 0
  %453 = vmatprep.subr.bf16.mxu0 0
  %454 = vmatpush2.bf16.msra.mxu0 0
  %455 = vmatprep.subr.bf16.mxu0 0
  %456 = vmatpush2.bf16.msra.mxu0 0
  %457 = vmatprep.subr.bf16.mxu0 0
  %458 = vmatpush2.bf16.msra.mxu0 0
  %459 = vmatprep.mubr.bf16.mxu0 0
  %460 = vmatmul.mubr.bf16.gmra.mxu0 %v343
  %v461 = vpop.f32.mrf.mxu0
  %v462 = vadd.f32 %v421, %v461
  %v463 = vpop.f32.mrf.mxu0
  %v464 = vpop.f32.mrf.mxu0
  %v465 = vadd.f32 %v424, %v464
  %v466 = vpop.f32.mrf.mxu0
  %467 = vdwg.mxu0
  %v468 = vmax.f32 %v462, 0.0
  %v469 = vmax.f32 %v465, 0.0
  %v470 = vpack.c.bf16 %v469, %v468
  %v472 = vunpack.c.l.b16 %v470
  %v473 = vunpack.c.h.b16 %v470
  %v474 = vpack.c.b16 %v472, %v472
  %v475 = vpack.c.b16 %v473, %v473
  %478 = vst [vmem:[%s3] sm:$0xf] %v474
  %479 = vst [vmem:[%s3 + $0x4] sm:$0xf] %v475
  // Predicated region
  $region14: #{_lambda_.52} parent=0 // pred_check
    _
  $region15: #{_lambda_.52} parent=0 // pred_check_branch
    %481 = sbr.rel (0) target = $region17
  $region16: #{_lambda_.52} parent=0 // pred_region
    _
  $region17: #{_lambda_.52} parent=0 // pred_fallthru
    _
  // Predicated region
  $region18: #{_lambda_.52} parent=0 // pred_check
    _
  $region19: #{_lambda_.52} parent=0 // pred_check_branch
    %483 = sbr.rel (0) target = $region21
  $region20: #{_lambda_.52} parent=0 // pred_region
    _
  $region21: #{_lambda_.52} parent=0 // pred_fallthru
    _

// kernel: _lambda_.51
$region0: #{_lambda_.51}
  #allocation0 [shape = 'u32[]', space=smem, size = 0x4, offset = 0x4, fixed_abs, tag = 'smem constant byte address 0x4 - core index']
  #allocation1 [shape = 'u32[144,128]{1,0:T(1,128)}', space=vmem, size = 0x12000, scoped, tag = 'internal scratch']
  %s0 = inlined_call_operand.vmem [shape: bf16[16,1152], index: 0, kind: input, shape index: {}]
  %s1 = inlined_call_operand.vmem [shape: bf16[1152,128], index: 1, kind: input, shape index: {}]
  %s2 = inlined_call_operand.vmem [shape: f32[1,128], index: 2, kind: input, shape index: {}]
  %s3 = inlined_call_operand.vmem [shape: bf16[16,128], index: 3, kind: output, shape index: {}]
  %s4 = sld [smem:[#allocation0]]
  $region22: #{_lambda_.51} parent=0
    _
  %s6 = ssub.s32 1, %s4
  %s7 = scalar_select 0, %s6, %s4
  // Predicated region
  $region2: #{_lambda_.51} parent=0 // pred_check
    _
  $region3: #{_lambda_.51} parent=0 // pred_check_branch
    %9 = sbr.rel (0) target = $region5
  $region4: #{_lambda_.51} parent=0 // pred_region
    _
  $region5: #{_lambda_.51} parent=0 // pred_fallthru
    _
  // Predicated region
  $region6: #{_lambda_.51} parent=0 // pred_check
    _
  $region7: #{_lambda_.51} parent=0 // pred_check_branch
    %11 = sbr.rel (0) target = $region9
  $region8: #{_lambda_.51} parent=0 // pred_region
    _
  $region9: #{_lambda_.51} parent=0 // pred_fallthru
    _
  // Predicated region
  $region10: #{_lambda_.51} parent=0 // pred_check
    _
  $region11: #{_lambda_.51} parent=0 // pred_check_branch
    %13 = sbr.rel (0) target = $region13
  $region12: #{_lambda_.51} parent=0 // pred_region
    _
  $region13: #{_lambda_.51} parent=0 // pred_fallthru
    _
  %v15 = vld [vmem:[%s0] sm:$0xff]
  %v16 = vld [vmem:[%s0 + $0x8] sm:$0xff]
  %v17 = vld [vmem:[%s0 + $0x10] sm:$0xff]
  %v18 = vld [vmem:[%s0 + $0x18] sm:$0xff]
  %v19 = vld [vmem:[%s0 + $0x20] sm:$0xf]
  %v20 = vld [vmem:[%s0 + $0x24] sm:$0xff]
  %v21 = vld [vmem:[%s0 + $0x2c] sm:$0xff]
  %v22 = vld [vmem:[%s0 + $0x34] sm:$0xff]
  %v23 = vld [vmem:[%s0 + $0x3c] sm:$0xff]
  %v24 = vld [vmem:[%s0 + $0x44] sm:$0xf]
  %v25 = vld [vmem:[%s1] sm:$0xf]
  %v26 = vld [vmem:[%s1 + $0x4] sm:$0xf]
  %v27 = vld [vmem:[%s1 + $0x8] sm:$0xf]
  %v28 = vld [vmem:[%s1 + $0xc] sm:$0xf]
  %v29 = vld [vmem:[%s1 + $0x10] sm:$0xf]
  %v30 = vld [vmem:[%s1 + $0x14] sm:$0xf]
  %v31 = vld [vmem:[%s1 + $0x18] sm:$0xf]
  %v32 = vld [vmem:[%s1 + $0x1c] sm:$0xf]
  %v33 = vld [vmem:[%s1 + $0x20] sm:$0xf]
  %v34 = vld [vmem:[%s1 + $0x24] sm:$0xf]
  %v35 = vld [vmem:[%s1 + $0x28] sm:$0xf]
  %v36 = vld [vmem:[%s1 + $0x2c] sm:$0xf]
  %v37 = vld [vmem:[%s1 + $0x30] sm:$0xf]
  %v38 = vld [vmem:[%s1 + $0x34] sm:$0xf]
  %v39 = vld [vmem:[%s1 + $0x38] sm:$0xf]
  %v40 = vld [vmem:[%s1 + $0x3c] sm:$0xf]
  %v41 = vld [vmem:[%s1 + $0x40] sm:$0xf]
  %v42 = vld [vmem:[%s1 + $0x44] sm:$0xf]
  %v43 = vld [vmem:[%s1 + $0x48] sm:$0xf]
  %v44 = vld [vmem:[%s1 + $0x4c] sm:$0xf]
  %v45 = vld [vmem:[%s1 + $0x50] sm:$0xf]
  %v46 = vld [vmem:[%s1 + $0x54] sm:$0xf]
  %v47 = vld [vmem:[%s1 + $0x58] sm:$0xf]
  %v48 = vld [vmem:[%s1 + $0x5c] sm:$0xf]
  %v49 = vld [vmem:[%s1 + $0x60] sm:$0xf]
  %v50 = vld [vmem:[%s1 + $0x64] sm:$0xf]
  %v51 = vld [vmem:[%s1 + $0x68] sm:$0xf]
  %v52 = vld [vmem:[%s1 + $0x6c] sm:$0xf]
  %v53 = vld [vmem:[%s1 + $0x70] sm:$0xf]
  %v54 = vld [vmem:[%s1 + $0x74] sm:$0xf]
  %v55 = vld [vmem:[%s1 + $0x78] sm:$0xf]
  %v56 = vld [vmem:[%s1 + $0x7c] sm:$0xf]
  %v57 = vld [vmem:[%s1 + $0x80] sm:$0xf]
  %v58 = vld [vmem:[%s1 + $0x84] sm:$0xf]
  %v59 = vld [vmem:[%s1 + $0x88] sm:$0xf]
  %v60 = vld [vmem:[%s1 + $0x8c] sm:$0xf]
  %v61 = vld [vmem:[%s1 + $0x90] sm:$0xf]
  %v62 = vld [vmem:[%s1 + $0x94] sm:$0xf]
  %v63 = vld [vmem:[%s1 + $0x98] sm:$0xf]
  %v64 = vld [vmem:[%s1 + $0x9c] sm:$0xf]
  %v65 = vld [vmem:[%s1 + $0xa0] sm:$0xf]
  %v66 = vld [vmem:[%s1 + $0xa4] sm:$0xf]
  %v67 = vld [vmem:[%s1 + $0xa8] sm:$0xf]
  %v68 = vld [vmem:[%s1 + $0xac] sm:$0xf]
  %v69 = vld [vmem:[%s1 + $0xb0] sm:$0xf]
  %v70 = vld [vmem:[%s1 + $0xb4] sm:$0xf]
  %v71 = vld [vmem:[%s1 + $0xb8] sm:$0xf]
  %v72 = vld [vmem:[%s1 + $0xbc] sm:$0xf]
  %v73 = vld [vmem:[%s1 + $0xc0] sm:$0xf]
  %v74 = vld [vmem:[%s1 + $0xc4] sm:$0xf]
  %v75 = vld [vmem:[%s1 + $0xc8] sm:$0xf]
  %v76 = vld [vmem:[%s1 + $0xcc] sm:$0xf]
  %v77 = vld [vmem:[%s1 + $0xd0] sm:$0xf]
  %v78 = vld [vmem:[%s1 + $0xd4] sm:$0xf]
  %v79 = vld [vmem:[%s1 + $0xd8] sm:$0xf]
  %v80 = vld [vmem:[%s1 + $0xdc] sm:$0xf]
  %v81 = vld [vmem:[%s1 + $0xe0] sm:$0xf]
  %v82 = vld [vmem:[%s1 + $0xe4] sm:$0xf]
  %v83 = vld [vmem:[%s1 + $0xe8] sm:$0xf]
  %v84 = vld [vmem:[%s1 + $0xec] sm:$0xf]
  %v85 = vld [vmem:[%s1 + $0xf0] sm:$0xf]
  %v86 = vld [vmem:[%s1 + $0xf4] sm:$0xf]
  %v87 = vld [vmem:[%s1 + $0xf8] sm:$0xf]
  %v88 = vld [vmem:[%s1 + $0xfc] sm:$0xf]
  %v89 = vld [vmem:[%s1 + $0x100] sm:$0xf]
  %v90 = vld [vmem:[%s1 + $0x104] sm:$0xf]
  %v91 = vld [vmem:[%s1 + $0x108] sm:$0xf]
  %v92 = vld [vmem:[%s1 + $0x10c] sm:$0xf]
  %v93 = vld [vmem:[%s1 + $0x110] sm:$0xf]
  %v94 = vld [vmem:[%s1 + $0x114] sm:$0xf]
  %v95 = vld [vmem:[%s1 + $0x118] sm:$0xf]
  %v96 = vld [vmem:[%s1 + $0x11c] sm:$0xf]
  %v97 = vld [vmem:[%s1 + $0x120] sm:$0xf]
  %v98 = vld [vmem:[%s1 + $0x124] sm:$0xf]
  %v99 = vld [vmem:[%s1 + $0x128] sm:$0xf]
  %v100 = vld [vmem:[%s1 + $0x12c] sm:$0xf]
  %v101 = vld [vmem:[%s1 + $0x130] sm:$0xf]
  %v102 = vld [vmem:[%s1 + $0x134] sm:$0xf]
  %v103 = vld [vmem:[%s1 + $0x138] sm:$0xf]
  %v104 = vld [vmem:[%s1 + $0x13c] sm:$0xf]
  %v105 = vld [vmem:[%s1 + $0x140] sm:$0xf]
  %v106 = vld [vmem:[%s1 + $0x144] sm:$0xf]
  %v107 = vld [vmem:[%s1 + $0x148] sm:$0xf]
  %v108 = vld [vmem:[%s1 + $0x14c] sm:$0xf]
  %v109 = vld [vmem:[%s1 + $0x150] sm:$0xf]
  %v110 = vld [vmem:[%s1 + $0x154] sm:$0xf]
  %v111 = vld [vmem:[%s1 + $0x158] sm:$0xf]
  %v112 = vld [vmem:[%s1 + $0x15c] sm:$0xf]
  %v113 = vld [vmem:[%s1 + $0x160] sm:$0xf]
  %v114 = vld [vmem:[%s1 + $0x164] sm:$0xf]
  %v115 = vld [vmem:[%s1 + $0x168] sm:$0xf]
  %v116 = vld [vmem:[%s1 + $0x16c] sm:$0xf]
  %v117 = vld [vmem:[%s1 + $0x170] sm:$0xf]
  %v118 = vld [vmem:[%s1 + $0x174] sm:$0xf]
  %v119 = vld [vmem:[%s1 + $0x178] sm:$0xf]
  %v120 = vld [vmem:[%s1 + $0x17c] sm:$0xf]
  %v121 = vld [vmem:[%s1 + $0x180] sm:$0xf]
  %v122 = vld [vmem:[%s1 + $0x184] sm:$0xf]
  %v123 = vld [vmem:[%s1 + $0x188] sm:$0xf]
  %v124 = vld [vmem:[%s1 + $0x18c] sm:$0xf]
  %v125 = vld [vmem:[%s1 + $0x190] sm:$0xf]
  %v126 = vld [vmem:[%s1 + $0x194] sm:$0xf]
  %v127 = vld [vmem:[%s1 + $0x198] sm:$0xf]
  %v128 = vld [vmem:[%s1 + $0x19c] sm:$0xf]
  %v129 = vld [vmem:[%s1 + $0x1a0] sm:$0xf]
  %v130 = vld [vmem:[%s1 + $0x1a4] sm:$0xf]
  %v131 = vld [vmem:[%s1 + $0x1a8] sm:$0xf]
  %v132 = vld [vmem:[%s1 + $0x1ac] sm:$0xf]
  %v133 = vld [vmem:[%s1 + $0x1b0] sm:$0xf]
  %v134 = vld [vmem:[%s1 + $0x1b4] sm:$0xf]
  %v135 = vld [vmem:[%s1 + $0x1b8] sm:$0xf]
  %v136 = vld [vmem:[%s1 + $0x1bc] sm:$0xf]
  %v137 = vld [vmem:[%s1 + $0x1c0] sm:$0xf]
  %v138 = vld [vmem:[%s1 + $0x1c4] sm:$0xf]
  %v139 = vld [vmem:[%s1 + $0x1c8] sm:$0xf]
  %v140 = vld [vmem:[%s1 + $0x1cc] sm:$0xf]
  %v141 = vld [vmem:[%s1 + $0x1d0] sm:$0xf]
  %v142 = vld [vmem:[%s1 + $0x1d4] sm:$0xf]
  %v143 = vld [vmem:[%s1 + $0x1d8] sm:$0xf]
  %v144 = vld [vmem:[%s1 + $0x1dc] sm:$0xf]
  %v145 = vld [vmem:[%s1 + $0x1e0] sm:$0xf]
  %v146 = vld [vmem:[%s1 + $0x1e4] sm:$0xf]
  %v147 = vld [vmem:[%s1 + $0x1e8] sm:$0xf]
  %v148 = vld [vmem:[%s1 + $0x1ec] sm:$0xf]
  %v149 = vld [vmem:[%s1 + $0x1f0] sm:$0xf]
  %v150 = vld [vmem:[%s1 + $0x1f4] sm:$0xf]
  %v151 = vld [vmem:[%s1 + $0x1f8] sm:$0xf]
  %v152 = vld [vmem:[%s1 + $0x1fc] sm:$0xf]
  %v153 = vld [vmem:[%s1 + $0x200] sm:$0xf]
  %v154 = vld [vmem:[%s1 + $0x204] sm:$0xf]
  %v155 = vld [vmem:[%s1 + $0x208] sm:$0xf]
  %v156 = vld [vmem:[%s1 + $0x20c] sm:$0xf]
  %v157 = vld [vmem:[%s1 + $0x210] sm:$0xf]
  %v158 = vld [vmem:[%s1 + $0x214] sm:$0xf]
  %v159 = vld [vmem:[%s1 + $0x218] sm:$0xf]
  %v160 = vld [vmem:[%s1 + $0x21c] sm:$0xf]
  %v161 = vld [vmem:[%s1 + $0x220] sm:$0xf]
  %v162 = vld [vmem:[%s1 + $0x224] sm:$0xf]
  %v163 = vld [vmem:[%s1 + $0x228] sm:$0xf]
  %v164 = vld [vmem:[%s1 + $0x22c] sm:$0xf]
  %v165 = vld [vmem:[%s1 + $0x230] sm:$0xf]
  %v166 = vld [vmem:[%s1 + $0x234] sm:$0xf]
  %v167 = vld [vmem:[%s1 + $0x238] sm:$0xf]
  %v168 = vld [vmem:[%s1 + $0x23c] sm:$0xf]
  %v169 = vld [vmem:[%s2] sm:$0x1]
  %v171 = vlaneseq
  %v172 = vshrl.u32 %v171, 7
  %v173 = vsub.s32 0, %v172
  %v174 = vrot.slane %v169, %v173
  %v186 = vunpack.c.l.b16 %v15
  %v187 = vunpack.c.h.b16 %v15
  %v188 = vunpack.c.l.b16 %v16
  %v189 = vunpack.c.h.b16 %v16
  %v190 = vunpack.c.l.b16 %v17
  %v191 = vunpack.c.h.b16 %v17
  %v192 = vunpack.c.l.b16 %v18
  %v193 = vunpack.c.h.b16 %v18
  %v194 = vunpack.c.l.b16 %v19
  %v195 = vunpack.c.l.b16 %v20
  %v196 = vunpack.c.h.b16 %v20
  %v197 = vunpack.c.l.b16 %v21
  %v198 = vunpack.c.h.b16 %v21
  %v199 = vunpack.c.l.b16 %v22
  %v200 = vunpack.c.h.b16 %v22
  %v201 = vunpack.c.l.b16 %v23
  %v202 = vunpack.c.h.b16 %v23
  %v203 = vunpack.c.l.b16 %v24
  %v204 = vpack.c.b16 %v195, %v186
  %v205 = vpack.c.b16 %v196, %v187
  %v206 = vpack.c.b16 %v197, %v188
  %v207 = vpack.c.b16 %v198, %v189
  %v208 = vpack.c.b16 %v199, %v190
  %v209 = vpack.c.b16 %v200, %v191
  %v210 = vpack.c.b16 %v201, %v192
  %v211 = vpack.c.b16 %v202, %v193
  %v212 = vpack.c.b16 %v203, %v194
  %v366 = vunpack.c.l.b16 %v25
  %v367 = vunpack.c.l.b16 %v26
  %v368 = vunpack.c.l.b16 %v27
  %v369 = vunpack.c.l.b16 %v28
  %v370 = vunpack.c.l.b16 %v29
  %v371 = vunpack.c.l.b16 %v30
  %v372 = vunpack.c.l.b16 %v31
  %v373 = vunpack.c.l.b16 %v32
  %v374 = vunpack.c.l.b16 %v33
  %v375 = vunpack.c.l.b16 %v34
  %v376 = vunpack.c.l.b16 %v35
  %v377 = vunpack.c.l.b16 %v36
  %v378 = vunpack.c.l.b16 %v37
  %v379 = vunpack.c.l.b16 %v38
  %v380 = vunpack.c.l.b16 %v39
  %v381 = vunpack.c.l.b16 %v40
  %v382 = vunpack.c.l.b16 %v41
  %v383 = vunpack.c.l.b16 %v42
  %v384 = vunpack.c.l.b16 %v43
  %v385 = vunpack.c.l.b16 %v44
  %v386 = vunpack.c.l.b16 %v45
  %v387 = vunpack.c.l.b16 %v46
  %v388 = vunpack.c.l.b16 %v47
  %v389 = vunpack.c.l.b16 %v48
  %v390 = vunpack.c.l.b16 %v49
  %v391 = vunpack.c.l.b16 %v50
  %v392 = vunpack.c.l.b16 %v51
  %v393 = vunpack.c.l.b16 %v52
  %v394 = vunpack.c.l.b16 %v53
  %v395 = vunpack.c.l.b16 %v54
  %v396 = vunpack.c.l.b16 %v55
  %v397 = vunpack.c.l.b16 %v56
  %v398 = vunpack.c.l.b16 %v57
  %v399 = vunpack.c.l.b16 %v58
  %v400 = vunpack.c.l.b16 %v59
  %v401 = vunpack.c.l.b16 %v60
  %v402 = vunpack.c.l.b16 %v61
  %v403 = vunpack.c.l.b16 %v62
  %v404 = vunpack.c.l.b16 %v63
  %v405 = vunpack.c.l.b16 %v64
  %v406 = vunpack.c.l.b16 %v65
  %v407 = vunpack.c.l.b16 %v66
  %v408 = vunpack.c.l.b16 %v67
  %v409 = vunpack.c.l.b16 %v68
  %v410 = vunpack.c.l.b16 %v69
  %v411 = vunpack.c.l.b16 %v70
  %v412 = vunpack.c.l.b16 %v71
  %v413 = vunpack.c.l.b16 %v72
  %v414 = vunpack.c.l.b16 %v73
  %v415 = vunpack.c.l.b16 %v74
  %v416 = vunpack.c.l.b16 %v75
  %v417 = vunpack.c.l.b16 %v76
  %v418 = vunpack.c.l.b16 %v77
  %v419 = vunpack.c.l.b16 %v78
  %v420 = vunpack.c.l.b16 %v79
  %v421 = vunpack.c.l.b16 %v80
  %v422 = vunpack.c.l.b16 %v81
  %v423 = vunpack.c.l.b16 %v82
  %v424 = vunpack.c.l.b16 %v83
  %v425 = vunpack.c.l.b16 %v84
  %v426 = vunpack.c.l.b16 %v85
  %v427 = vunpack.c.l.b16 %v86
  %v428 = vunpack.c.l.b16 %v87
  %v429 = vunpack.c.l.b16 %v88
  %v430 = vunpack.c.l.b16 %v89
  %v431 = vunpack.c.l.b16 %v90
  %v432 = vunpack.c.l.b16 %v91
  %v433 = vunpack.c.l.b16 %v92
  %v434 = vunpack.c.l.b16 %v93
  %v435 = vunpack.c.l.b16 %v94
  %v436 = vunpack.c.l.b16 %v95
  %v437 = vunpack.c.l.b16 %v96
  %v438 = vunpack.c.l.b16 %v97
  %v439 = vunpack.c.l.b16 %v98
  %v440 = vunpack.c.l.b16 %v99
  %v441 = vunpack.c.l.b16 %v100
  %v442 = vunpack.c.l.b16 %v101
  %v443 = vunpack.c.l.b16 %v102
  %v444 = vunpack.c.l.b16 %v103
  %v445 = vunpack.c.l.b16 %v104
  %v446 = vunpack.c.l.b16 %v105
  %v447 = vunpack.c.l.b16 %v106
  %v448 = vunpack.c.l.b16 %v107
  %v449 = vunpack.c.l.b16 %v108
  %v450 = vunpack.c.l.b16 %v109
  %v451 = vunpack.c.l.b16 %v110
  %v452 = vunpack.c.l.b16 %v111
  %v453 = vunpack.c.l.b16 %v112
  %v454 = vunpack.c.l.b16 %v113
  %v455 = vunpack.c.l.b16 %v114
  %v456 = vunpack.c.l.b16 %v115
  %v457 = vunpack.c.l.b16 %v116
  %v458 = vunpack.c.l.b16 %v117
  %v459 = vunpack.c.l.b16 %v118
  %v460 = vunpack.c.l.b16 %v119
  %v461 = vunpack.c.l.b16 %v120
  %v462 = vunpack.c.l.b16 %v121
  %v463 = vunpack.c.l.b16 %v122
  %v464 = vunpack.c.l.b16 %v123
  %v465 = vunpack.c.l.b16 %v124
  %v466 = vunpack.c.l.b16 %v125
  %v467 = vunpack.c.l.b16 %v126
  %v468 = vunpack.c.l.b16 %v127
  %v469 = vunpack.c.l.b16 %v128
  %v470 = vunpack.c.l.b16 %v129
  %v471 = vunpack.c.l.b16 %v130
  %v472 = vunpack.c.l.b16 %v131
  %v473 = vunpack.c.l.b16 %v132
  %v474 = vunpack.c.l.b16 %v133
  %v475 = vunpack.c.l.b16 %v134
  %v476 = vunpack.c.l.b16 %v135
  %v477 = vunpack.c.l.b16 %v136
  %v478 = vunpack.c.l.b16 %v137
  %v479 = vunpack.c.l.b16 %v138
  %v480 = vunpack.c.l.b16 %v139
  %v481 = vunpack.c.l.b16 %v140
  %v482 = vunpack.c.l.b16 %v141
  %v483 = vunpack.c.l.b16 %v142
  %v484 = vunpack.c.l.b16 %v143
  %v485 = vunpack.c.l.b16 %v144
  %v486 = vunpack.c.l.b16 %v145
  %v487 = vunpack.c.l.b16 %v146
  %v488 = vunpack.c.l.b16 %v147
  %v489 = vunpack.c.l.b16 %v148
  %v490 = vunpack.c.l.b16 %v149
  %v491 = vunpack.c.l.b16 %v150
  %v492 = vunpack.c.l.b16 %v151
  %v493 = vunpack.c.l.b16 %v152
  %v494 = vunpack.c.l.b16 %v153
  %v495 = vunpack.c.l.b16 %v154
  %v496 = vunpack.c.l.b16 %v155
  %v497 = vunpack.c.l.b16 %v156
  %v498 = vunpack.c.l.b16 %v157
  %v499 = vunpack.c.l.b16 %v158
  %v500 = vunpack.c.l.b16 %v159
  %v501 = vunpack.c.l.b16 %v160
  %v502 = vunpack.c.l.b16 %v161
  %v503 = vunpack.c.l.b16 %v162
  %v504 = vunpack.c.l.b16 %v163
  %v505 = vunpack.c.l.b16 %v164
  %v506 = vunpack.c.l.b16 %v165
  %v507 = vunpack.c.l.b16 %v166
  %v508 = vunpack.c.l.b16 %v167
  %v509 = vunpack.c.l.b16 %v168
  %v510 = vpack.c.b16 %v367, %v366
  %v511 = vpack.c.b16 %v369, %v368
  %v512 = vpack.c.b16 %v371, %v370
  %v513 = vpack.c.b16 %v373, %v372
  %v514 = vpack.c.b16 %v375, %v374
  %v515 = vpack.c.b16 %v377, %v376
  %v516 = vpack.c.b16 %v379, %v378
  %v517 = vpack.c.b16 %v381, %v380
  %v518 = vpack.c.b16 %v383, %v382
  %v519 = vpack.c.b16 %v385, %v384
  %v520 = vpack.c.b16 %v387, %v386
  %v521 = vpack.c.b16 %v389, %v388
  %v522 = vpack.c.b16 %v391, %v390
  %v523 = vpack.c.b16 %v393, %v392
  %v524 = vpack.c.b16 %v395, %v394
  %v525 = vpack.c.b16 %v397, %v396
  %v526 = vpack.c.b16 %v399, %v398
  %v527 = vpack.c.b16 %v401, %v400
  %v528 = vpack.c.b16 %v403, %v402
  %v529 = vpack.c.b16 %v405, %v404
  %v530 = vpack.c.b16 %v407, %v406
  %v531 = vpack.c.b16 %v409, %v408
  %v532 = vpack.c.b16 %v411, %v410
  %v533 = vpack.c.b16 %v413, %v412
  %v534 = vpack.c.b16 %v415, %v414
  %v535 = vpack.c.b16 %v417, %v416
  %v536 = vpack.c.b16 %v419, %v418
  %v537 = vpack.c.b16 %v421, %v420
  %v538 = vpack.c.b16 %v423, %v422
  %v539 = vpack.c.b16 %v425, %v424
  %v540 = vpack.c.b16 %v427, %v426
  %v541 = vpack.c.b16 %v429, %v428
  %v542 = vpack.c.b16 %v431, %v430
  %v543 = vpack.c.b16 %v433, %v432
  %v544 = vpack.c.b16 %v435, %v434
  %v545 = vpack.c.b16 %v437, %v436
  %v546 = vpack.c.b16 %v439, %v438
  %v547 = vpack.c.b16 %v441, %v440
  %v548 = vpack.c.b16 %v443, %v442
  %v549 = vpack.c.b16 %v445, %v444
  %v550 = vpack.c.b16 %v447, %v446
  %v551 = vpack.c.b16 %v449, %v448
  %v552 = vpack.c.b16 %v451, %v450
  %v553 = vpack.c.b16 %v453, %v452
  %v554 = vpack.c.b16 %v455, %v454
  %v555 = vpack.c.b16 %v457, %v456
  %v556 = vpack.c.b16 %v459, %v458
  %v557 = vpack.c.b16 %v461, %v460
  %v558 = vpack.c.b16 %v463, %v462
  %v559 = vpack.c.b16 %v465, %v464
  %v560 = vpack.c.b16 %v467, %v466
  %v561 = vpack.c.b16 %v469, %v468
  %v562 = vpack.c.b16 %v471, %v470
  %v563 = vpack.c.b16 %v473, %v472
  %v564 = vpack.c.b16 %v475, %v474
  %v565 = vpack.c.b16 %v477, %v476
  %v566 = vpack.c.b16 %v479, %v478
  %v567 = vpack.c.b16 %v481, %v480
  %v568 = vpack.c.b16 %v483, %v482
  %v569 = vpack.c.b16 %v485, %v484
  %v570 = vpack.c.b16 %v487, %v486
  %v571 = vpack.c.b16 %v489, %v488
  %v572 = vpack.c.b16 %v491, %v490
  %v573 = vpack.c.b16 %v493, %v492
  %v574 = vpack.c.b16 %v495, %v494
  %v575 = vpack.c.b16 %v497, %v496
  %v576 = vpack.c.b16 %v499, %v498
  %v577 = vpack.c.b16 %v501, %v500
  %v578 = vpack.c.b16 %v503, %v502
  %v579 = vpack.c.b16 %v505, %v504
  %v580 = vpack.c.b16 %v507, %v506
  %v581 = vpack.c.b16 %v509, %v508
  %654 = vmatprep.subr.bf16.mxu0 0
  %655 = vmatpush1.bf16.msra.mxu0 %v517
  %656 = vmatprep.subr.bf16.mxu0 0
  %657 = vmatpush1.bf16.msra.mxu0 %v516
  %658 = vmatprep.subr.bf16.mxu0 0
  %659 = vmatpush1.bf16.msra.mxu0 %v515
  %660 = vmatprep.subr.bf16.mxu0 0
  %661 = vmatpush1.bf16.msra.mxu0 %v514
  %662 = vmatprep.subr.bf16.mxu0 0
  %663 = vmatpush1.bf16.msra.mxu0 %v513
  %664 = vmatprep.subr.bf16.mxu0 0
  %665 = vmatpush1.bf16.msra.mxu0 %v512
  %666 = vmatprep.subr.bf16.mxu0 0
  %667 = vmatpush1.bf16.msra.mxu0 %v511
  %668 = vmatprep.subr.bf16.mxu0 0
  %669 = vmatpush1.bf16.msra.mxu0 %v510
  %670 = vmatprep.subr.bf16.mxu0 0
  %671 = vmatpush2.bf16.msra.mxu0 %v525
  %672 = vmatprep.subr.bf16.mxu0 0
  %673 = vmatpush2.bf16.msra.mxu0 %v524
  %674 = vmatprep.subr.bf16.mxu0 0
  %675 = vmatpush2.bf16.msra.mxu0 %v523
  %676 = vmatprep.subr.bf16.mxu0 0
  %677 = vmatpush2.bf16.msra.mxu0 %v522
  %678 = vmatprep.subr.bf16.mxu0 0
  %679 = vmatpush2.bf16.msra.mxu0 %v521
  %680 = vmatprep.subr.bf16.mxu0 0
  %681 = vmatpush2.bf16.msra.mxu0 %v520
  %682 = vmatprep.subr.bf16.mxu0 0
  %683 = vmatpush2.bf16.msra.mxu0 %v519
  %684 = vmatprep.subr.bf16.mxu0 0
  %685 = vmatpush2.bf16.msra.mxu0 %v518
  %686 = vmatprep.mubr.bf16.mxu0 %v205
  %687 = vmatmul.mubr.bf16.gmra.mxu0 %v204
  %v688 = vpop.f32.mrf.mxu0
  %v689 = vadd.f32 %v174, %v688
  %v690 = vpop.f32.mrf.mxu0
  %v691 = vpop.f32.mrf.mxu0
  %v692 = vadd.f32 %v174, %v691
  %v693 = vpop.f32.mrf.mxu0
  %694 = vdwg.mxu0
  %695 = vmatprep.subr.bf16.mxu0 0
  %696 = vmatpush1.bf16.msra.mxu0 %v533
  %697 = vmatprep.subr.bf16.mxu0 0
  %698 = vmatpush1.bf16.msra.mxu0 %v532
  %699 = vmatprep.subr.bf16.mxu0 0
  %700 = vmatpush1.bf16.msra.mxu0 %v531
  %701 = vmatprep.subr.bf16.mxu0 0
  %702 = vmatpush1.bf16.msra.mxu0 %v530
  %703 = vmatprep.subr.bf16.mxu0 0
  %704 = vmatpush1.bf16.msra.mxu0 %v529
  %705 = vmatprep.subr.bf16.mxu0 0
  %706 = vmatpush1.bf16.msra.mxu0 %v528
  %707 = vmatprep.subr.bf16.mxu0 0
  %708 = vmatpush1.bf16.msra.mxu0 %v527
  %709 = vmatprep.subr.bf16.mxu0 0
  %710 = vmatpush1.bf16.msra.mxu0 %v526
  %711 = vmatprep.subr.bf16.mxu0 0
  %712 = vmatpush2.bf16.msra.mxu0 %v541
  %713 = vmatprep.subr.bf16.mxu0 0
  %714 = vmatpush2.bf16.msra.mxu0 %v540
  %715 = vmatprep.subr.bf16.mxu0 0
  %716 = vmatpush2.bf16.msra.mxu0 %v539
  %717 = vmatprep.subr.bf16.mxu0 0
  %718 = vmatpush2.bf16.msra.mxu0 %v538
  %719 = vmatprep.subr.bf16.mxu0 0
  %720 = vmatpush2.bf16.msra.mxu0 %v537
  %721 = vmatprep.subr.bf16.mxu0 0
  %722 = vmatpush2.bf16.msra.mxu0 %v536
  %723 = vmatprep.subr.bf16.mxu0 0
  %724 = vmatpush2.bf16.msra.mxu0 %v535
  %725 = vmatprep.subr.bf16.mxu0 0
  %726 = vmatpush2.bf16.msra.mxu0 %v534
  %727 = vmatprep.mubr.bf16.mxu0 %v207
  %728 = vmatmul.mubr.bf16.gmra.mxu0 %v206
  %v729 = vpop.f32.mrf.mxu0
  %v730 = vadd.f32 %v689, %v729
  %v731 = vpop.f32.mrf.mxu0
  %v732 = vpop.f32.mrf.mxu0
  %v733 = vadd.f32 %v692, %v732
  %v734 = vpop.f32.mrf.mxu0
  %735 = vdwg.mxu0
  %736 = vmatprep.subr.bf16.mxu0 0
  %737 = vmatpush1.bf16.msra.mxu0 %v549
  %738 = vmatprep.subr.bf16.mxu0 0
  %739 = vmatpush1.bf16.msra.mxu0 %v548
  %740 = vmatprep.subr.bf16.mxu0 0
  %741 = vmatpush1.bf16.msra.mxu0 %v547
  %742 = vmatprep.subr.bf16.mxu0 0
  %743 = vmatpush1.bf16.msra.mxu0 %v546
  %744 = vmatprep.subr.bf16.mxu0 0
  %745 = vmatpush1.bf16.msra.mxu0 %v545
  %746 = vmatprep.subr.bf16.mxu0 0
  %747 = vmatpush1.bf16.msra.mxu0 %v544
  %748 = vmatprep.subr.bf16.mxu0 0
  %749 = vmatpush1.bf16.msra.mxu0 %v543
  %750 = vmatprep.subr.bf16.mxu0 0
  %751 = vmatpush1.bf16.msra.mxu0 %v542
  %752 = vmatprep.subr.bf16.mxu0 0
  %753 = vmatpush2.bf16.msra.mxu0 %v557
  %754 = vmatprep.subr.bf16.mxu0 0
  %755 = vmatpush2.bf16.msra.mxu0 %v556
  %756 = vmatprep.subr.bf16.mxu0 0
  %757 = vmatpush2.bf16.msra.mxu0 %v555
  %758 = vmatprep.subr.bf16.mxu0 0
  %759 = vmatpush2.bf16.msra.mxu0 %v554
  %760 = vmatprep.subr.bf16.mxu0 0
  %761 = vmatpush2.bf16.msra.mxu0 %v553
  %762 = vmatprep.subr.bf16.mxu0 0
  %763 = vmatpush2.bf16.msra.mxu0 %v552
  %764 = vmatprep.subr.bf16.mxu0 0
  %765 = vmatpush2.bf16.msra.mxu0 %v551
  %766 = vmatprep.subr.bf16.mxu0 0
  %767 = vmatpush2.bf16.msra.mxu0 %v550
  %768 = vmatprep.mubr.bf16.mxu0 %v209
  %769 = vmatmul.mubr.bf16.gmra.mxu0 %v208
  %v770 = vpop.f32.mrf.mxu0
  %v771 = vadd.f32 %v730, %v770
  %v772 = vpop.f32.mrf.mxu0
  %v773 = vpop.f32.mrf.mxu0
  %v774 = vadd.f32 %v733, %v773
  %v775 = vpop.f32.mrf.mxu0
  %776 = vdwg.mxu0
  %777 = vmatprep.subr.bf16.mxu0 0
  %778 = vmatpush1.bf16.msra.mxu0 %v565
  %779 = vmatprep.subr.bf16.mxu0 0
  %780 = vmatpush1.bf16.msra.mxu0 %v564
  %781 = vmatprep.subr.bf16.mxu0 0
  %782 = vmatpush1.bf16.msra.mxu0 %v563
  %783 = vmatprep.subr.bf16.mxu0 0
  %784 = vmatpush1.bf16.msra.mxu0 %v562
  %785 = vmatprep.subr.bf16.mxu0 0
  %786 = vmatpush1.bf16.msra.mxu0 %v561
  %787 = vmatprep.subr.bf16.mxu0 0
  %788 = vmatpush1.bf16.msra.mxu0 %v560
  %789 = vmatprep.subr.bf16.mxu0 0
  %790 = vmatpush1.bf16.msra.mxu0 %v559
  %791 = vmatprep.subr.bf16.mxu0 0
  %792 = vmatpush1.bf16.msra.mxu0 %v558
  %793 = vmatprep.subr.bf16.mxu0 0
  %794 = vmatpush2.bf16.msra.mxu0 %v573
  %795 = vmatprep.subr.bf16.mxu0 0
  %796 = vmatpush2.bf16.msra.mxu0 %v572
  %797 = vmatprep.subr.bf16.mxu0 0
  %798 = vmatpush2.bf16.msra.mxu0 %v571
  %799 = vmatprep.subr.bf16.mxu0 0
  %800 = vmatpush2.bf16.msra.mxu0 %v570
  %801 = vmatprep.subr.bf16.mxu0 0
  %802 = vmatpush2.bf16.msra.mxu0 %v569
  %803 = vmatprep.subr.bf16.mxu0 0
  %804 = vmatpush2.bf16.msra.mxu0 %v568
  %805 = vmatprep.subr.bf16.mxu0 0
  %806 = vmatpush2.bf16.msra.mxu0 %v567
  %807 = vmatprep.subr.bf16.mxu0 0
  %808 = vmatpush2.bf16.msra.mxu0 %v566
  %809 = vmatprep.mubr.bf16.mxu0 %v211
  %810 = vmatmul.mubr.bf16.gmra.mxu0 %v210
  %v811 = vpop.f32.mrf.mxu0
  %v812 = vadd.f32 %v771, %v811
  %v813 = vpop.f32.mrf.mxu0
  %v814 = vpop.f32.mrf.mxu0
  %v815 = vadd.f32 %v774, %v814
  %v816 = vpop.f32.mrf.mxu0
  %817 = vdwg.mxu0
  %818 = vmatprep.subr.bf16.mxu0 0
  %819 = vmatpush1.bf16.msra.mxu0 %v581
  %820 = vmatprep.subr.bf16.mxu0 0
  %821 = vmatpush1.bf16.msra.mxu0 %v580
  %822 = vmatprep.subr.bf16.mxu0 0
  %823 = vmatpush1.bf16.msra.mxu0 %v579
  %824 = vmatprep.subr.bf16.mxu0 0
  %825 = vmatpush1.bf16.msra.mxu0 %v578
  %826 = vmatprep.subr.bf16.mxu0 0
  %827 = vmatpush1.bf16.msra.mxu0 %v577
  %828 = vmatprep.subr.bf16.mxu0 0
  %829 = vmatpush1.bf16.msra.mxu0 %v576
  %830 = vmatprep.subr.bf16.mxu0 0
  %831 = vmatpush1.bf16.msra.mxu0 %v575
  %832 = vmatprep.subr.bf16.mxu0 0
  %833 = vmatpush1.bf16.msra.mxu0 %v574
  %834 = vmatprep.subr.bf16.mxu0 0
  %835 = vmatpush2.bf16.msra.mxu0 0
  %836 = vmatprep.subr.bf16.mxu0 0
  %837 = vmatpush2.bf16.msra.mxu0 0
  %838 = vmatprep.subr.bf16.mxu0 0
  %839 = vmatpush2.bf16.msra.mxu0 0
  %840 = vmatprep.subr.bf16.mxu0 0
  %841 = vmatpush2.bf16.msra.mxu0 0
  %842 = vmatprep.subr.bf16.mxu0 0
  %843 = vmatpush2.bf16.msra.mxu0 0
  %844 = vmatprep.subr.bf16.mxu0 0
  %845 = vmatpush2.bf16.msra.mxu0 0
  %846 = vmatprep.subr.bf16.mxu0 0
  %847 = vmatpush2.bf16.msra.mxu0 0
  %848 = vmatprep.subr.bf16.mxu0 0
  %849 = vmatpush2.bf16.msra.mxu0 0
  %850 = vmatprep.mubr.bf16.mxu0 0
  %851 = vmatmul.mubr.bf16.gmra.mxu0 %v212
  %v852 = vpop.f32.mrf.mxu0
  %v853 = vadd.f32 %v812, %v852
  %v854 = vpop.f32.mrf.mxu0
  %v855 = vpop.f32.mrf.mxu0
  %v856 = vadd.f32 %v815, %v855
  %v857 = vpop.f32.mrf.mxu0
  %858 = vdwg.mxu0
  %v859 = vmax.f32 %v853, 0.0
  %v860 = vmax.f32 %v856, 0.0
  %v861 = vpack.c.bf16 %v860, %v859
  %v863 = vunpack.c.l.b16 %v861
  %v864 = vunpack.c.h.b16 %v861
  %v865 = vpack.c.b16 %v863, %v863
  %v866 = vpack.c.b16 %v864, %v864
  %869 = vst [vmem:[%s3] sm:$0xf] %v865
  %870 = vst [vmem:[%s3 + $0x4] sm:$0xf] %v866
  // Predicated region
  $region14: #{_lambda_.51} parent=0 // pred_check
    _
  $region15: #{_lambda_.51} parent=0 // pred_check_branch
    %872 = sbr.rel (0) target = $region17
  $region16: #{_lambda_.51} parent=0 // pred_region
    _
  $region17: #{_lambda_.51} parent=0 // pred_fallthru
    _
  // Predicated region
  $region18: #{_lambda_.51} parent=0 // pred_check
    _
  $region19: #{_lambda_.51} parent=0 // pred_check_branch
    %874 = sbr.rel (0) target = $region21
  $region20: #{_lambda_.51} parent=0 // pred_region
    _
  $region21: #{_lambda_.51} parent=0 // pred_fallthru
    _

// kernel: _lambda_.54
$region0: #{_lambda_.54}
  #allocation0 [shape = 'u32[]', space=smem, size = 0x4, offset = 0x4, fixed_abs, tag = 'smem constant byte address 0x4 - core index']
  #allocation1 [shape = 'u32[144,128]{1,0:T(1,128)}', space=vmem, size = 0x12000, scoped, tag = 'internal scratch']
  %s0 = inlined_call_operand.vmem [shape: bf16[16,256], index: 0, kind: input, shape index: {}]
  %s1 = inlined_call_operand.vmem [shape: bf16[256,128], index: 1, kind: input, shape index: {}]
  %s2 = inlined_call_operand.vmem [shape: f32[1,128], index: 2, kind: input, shape index: {}]
  %s3 = inlined_call_operand.vmem [shape: bf16[16,128], index: 3, kind: output, shape index: {}]
  %s4 = sld [smem:[#allocation0]]
  $region22: #{_lambda_.54} parent=0
    _
  %s6 = ssub.s32 1, %s4
  %s7 = scalar_select 0, %s6, %s4
  // Predicated region
  $region2: #{_lambda_.54} parent=0 // pred_check
    _
  $region3: #{_lambda_.54} parent=0 // pred_check_branch
    %9 = sbr.rel (0) target = $region5
  $region4: #{_lambda_.54} parent=0 // pred_region
    _
  $region5: #{_lambda_.54} parent=0 // pred_fallthru
    _
  // Predicated region
  $region6: #{_lambda_.54} parent=0 // pred_check
    _
  $region7: #{_lambda_.54} parent=0 // pred_check_branch
    %11 = sbr.rel (0) target = $region9
  $region8: #{_lambda_.54} parent=0 // pred_region
    _
  $region9: #{_lambda_.54} parent=0 // pred_fallthru
    _
  // Predicated region
  $region10: #{_lambda_.54} parent=0 // pred_check
    _
  $region11: #{_lambda_.54} parent=0 // pred_check_branch
    %13 = sbr.rel (0) target = $region13
  $region12: #{_lambda_.54} parent=0 // pred_region
    _
  $region13: #{_lambda_.54} parent=0 // pred_fallthru
    _
  %v15 = vld [vmem:[%s0] sm:$0xff]
  %v16 = vld [vmem:[%s0 + $0x8] sm:$0xff]
  %v17 = vld [vmem:[%s1] sm:$0xf]
  %v18 = vld [vmem:[%s1 + $0x4] sm:$0xf]
  %v19 = vld [vmem:[%s1 + $0x8] sm:$0xf]
  %v20 = vld [vmem:[%s1 + $0xc] sm:$0xf]
  %v21 = vld [vmem:[%s1 + $0x10] sm:$0xf]
  %v22 = vld [vmem:[%s1 + $0x14] sm:$0xf]
  %v23 = vld [vmem:[%s1 + $0x18] sm:$0xf]
  %v24 = vld [vmem:[%s1 + $0x1c] sm:$0xf]
  %v25 = vld [vmem:[%s1 + $0x20] sm:$0xf]
  %v26 = vld [vmem:[%s1 + $0x24] sm:$0xf]
  %v27 = vld [vmem:[%s1 + $0x28] sm:$0xf]
  %v28 = vld [vmem:[%s1 + $0x2c] sm:$0xf]
  %v29 = vld [vmem:[%s1 + $0x30] sm:$0xf]
  %v30 = vld [vmem:[%s1 + $0x34] sm:$0xf]
  %v31 = vld [vmem:[%s1 + $0x38] sm:$0xf]
  %v32 = vld [vmem:[%s1 + $0x3c] sm:$0xf]
  %v33 = vld [vmem:[%s1 + $0x40] sm:$0xf]
  %v34 = vld [vmem:[%s1 + $0x44] sm:$0xf]
  %v35 = vld [vmem:[%s1 + $0x48] sm:$0xf]
  %v36 = vld [vmem:[%s1 + $0x4c] sm:$0xf]
  %v37 = vld [vmem:[%s1 + $0x50] sm:$0xf]
  %v38 = vld [vmem:[%s1 + $0x54] sm:$0xf]
  %v39 = vld [vmem:[%s1 + $0x58] sm:$0xf]
  %v40 = vld [vmem:[%s1 + $0x5c] sm:$0xf]
  %v41 = vld [vmem:[%s1 + $0x60] sm:$0xf]
  %v42 = vld [vmem:[%s1 + $0x64] sm:$0xf]
  %v43 = vld [vmem:[%s1 + $0x68] sm:$0xf]
  %v44 = vld [vmem:[%s1 + $0x6c] sm:$0xf]
  %v45 = vld [vmem:[%s1 + $0x70] sm:$0xf]
  %v46 = vld [vmem:[%s1 + $0x74] sm:$0xf]
  %v47 = vld [vmem:[%s1 + $0x78] sm:$0xf]
  %v48 = vld [vmem:[%s1 + $0x7c] sm:$0xf]
  %v49 = vld [vmem:[%s2] sm:$0x1]
  %v51 = vlaneseq
  %v52 = vshrl.u32 %v51, 7
  %v53 = vsub.s32 0, %v52
  %v54 = vrot.slane %v49, %v53
  %v58 = vunpack.c.l.b16 %v15
  %v59 = vunpack.c.h.b16 %v15
  %v60 = vunpack.c.l.b16 %v16
  %v61 = vunpack.c.h.b16 %v16
  %v62 = vpack.c.b16 %v60, %v58
  %v63 = vpack.c.b16 %v61, %v59
  %v98 = vunpack.c.l.b16 %v17
  %v99 = vunpack.c.l.b16 %v18
  %v100 = vunpack.c.l.b16 %v19
  %v101 = vunpack.c.l.b16 %v20
  %v102 = vunpack.c.l.b16 %v21
  %v103 = vunpack.c.l.b16 %v22
  %v104 = vunpack.c.l.b16 %v23
  %v105 = vunpack.c.l.b16 %v24
  %v106 = vunpack.c.l.b16 %v25
  %v107 = vunpack.c.l.b16 %v26
  %v108 = vunpack.c.l.b16 %v27
  %v109 = vunpack.c.l.b16 %v28
  %v110 = vunpack.c.l.b16 %v29
  %v111 = vunpack.c.l.b16 %v30
  %v112 = vunpack.c.l.b16 %v31
  %v113 = vunpack.c.l.b16 %v32
  %v114 = vunpack.c.l.b16 %v33
  %v115 = vunpack.c.l.b16 %v34
  %v116 = vunpack.c.l.b16 %v35
  %v117 = vunpack.c.l.b16 %v36
  %v118 = vunpack.c.l.b16 %v37
  %v119 = vunpack.c.l.b16 %v38
  %v120 = vunpack.c.l.b16 %v39
  %v121 = vunpack.c.l.b16 %v40
  %v122 = vunpack.c.l.b16 %v41
  %v123 = vunpack.c.l.b16 %v42
  %v124 = vunpack.c.l.b16 %v43
  %v125 = vunpack.c.l.b16 %v44
  %v126 = vunpack.c.l.b16 %v45
  %v127 = vunpack.c.l.b16 %v46
  %v128 = vunpack.c.l.b16 %v47
  %v129 = vunpack.c.l.b16 %v48
  %v130 = vpack.c.b16 %v99, %v98
  %v131 = vpack.c.b16 %v101, %v100
  %v132 = vpack.c.b16 %v103, %v102
  %v133 = vpack.c.b16 %v105, %v104
  %v134 = vpack.c.b16 %v107, %v106
  %v135 = vpack.c.b16 %v109, %v108
  %v136 = vpack.c.b16 %v111, %v110
  %v137 = vpack.c.b16 %v113, %v112
  %v138 = vpack.c.b16 %v115, %v114
  %v139 = vpack.c.b16 %v117, %v116
  %v140 = vpack.c.b16 %v119, %v118
  %v141 = vpack.c.b16 %v121, %v120
  %v142 = vpack.c.b16 %v123, %v122
  %v143 = vpack.c.b16 %v125, %v124
  %v144 = vpack.c.b16 %v127, %v126
  %v145 = vpack.c.b16 %v129, %v128
  %162 = vmatprep.subr.bf16.mxu0 0
  %163 = vmatpush1.bf16.msra.mxu0 %v137
  %164 = vmatprep.subr.bf16.mxu0 0
  %165 = vmatpush1.bf16.msra.mxu0 %v136
  %166 = vmatprep.subr.bf16.mxu0 0
  %167 = vmatpush1.bf16.msra.mxu0 %v135
  %168 = vmatprep.subr.bf16.mxu0 0
  %169 = vmatpush1.bf16.msra.mxu0 %v134
  %170 = vmatprep.subr.bf16.mxu0 0
  %171 = vmatpush1.bf16.msra.mxu0 %v133
  %172 = vmatprep.subr.bf16.mxu0 0
  %173 = vmatpush1.bf16.msra.mxu0 %v132
  %174 = vmatprep.subr.bf16.mxu0 0
  %175 = vmatpush1.bf16.msra.mxu0 %v131
  %176 = vmatprep.subr.bf16.mxu0 0
  %177 = vmatpush1.bf16.msra.mxu0 %v130
  %178 = vmatprep.subr.bf16.mxu0 0
  %179 = vmatpush2.bf16.msra.mxu0 %v145
  %180 = vmatprep.subr.bf16.mxu0 0
  %181 = vmatpush2.bf16.msra.mxu0 %v144
  %182 = vmatprep.subr.bf16.mxu0 0
  %183 = vmatpush2.bf16.msra.mxu0 %v143
  %184 = vmatprep.subr.bf16.mxu0 0
  %185 = vmatpush2.bf16.msra.mxu0 %v142
  %186 = vmatprep.subr.bf16.mxu0 0
  %187 = vmatpush2.bf16.msra.mxu0 %v141
  %188 = vmatprep.subr.bf16.mxu0 0
  %189 = vmatpush2.bf16.msra.mxu0 %v140
  %190 = vmatprep.subr.bf16.mxu0 0
  %191 = vmatpush2.bf16.msra.mxu0 %v139
  %192 = vmatprep.subr.bf16.mxu0 0
  %193 = vmatpush2.bf16.msra.mxu0 %v138
  %194 = vmatprep.mubr.bf16.mxu0 %v63
  %195 = vmatmul.mubr.bf16.gmra.mxu0 %v62
  %v196 = vpop.f32.mrf.mxu0
  %v197 = vadd.f32 %v54, %v196
  %v198 = vpop.f32.mrf.mxu0
  %v199 = vpop.f32.mrf.mxu0
  %v200 = vadd.f32 %v54, %v199
  %v201 = vpop.f32.mrf.mxu0
  %202 = vdwg.mxu0
  %v203 = vmax.f32 %v197, 0.0
  %v204 = vmax.f32 %v200, 0.0
  %v205 = vpack.c.bf16 %v204, %v203
  %v207 = vunpack.c.l.b16 %v205
  %v208 = vunpack.c.h.b16 %v205
  %v209 = vpack.c.b16 %v207, %v207
  %v210 = vpack.c.b16 %v208, %v208
  %213 = vst [vmem:[%s3] sm:$0xf] %v209
  %214 = vst [vmem:[%s3 + $0x4] sm:$0xf] %v210
  // Predicated region
  $region14: #{_lambda_.54} parent=0 // pred_check
    _
  $region15: #{_lambda_.54} parent=0 // pred_check_branch
    %216 = sbr.rel (0) target = $region17
  $region16: #{_lambda_.54} parent=0 // pred_region
    _
  $region17: #{_lambda_.54} parent=0 // pred_fallthru
    _
  // Predicated region
  $region18: #{_lambda_.54} parent=0 // pred_check
    _
  $region19: #{_lambda_.54} parent=0 // pred_check_branch
    %218 = sbr.rel (0) target = $region21
  $region20: #{_lambda_.54} parent=0 // pred_region
    _
  $region21: #{_lambda_.54} parent=0 // pred_fallthru
    _

// kernel: _lambda_.53
$region0: #{_lambda_.53}
  #allocation0 [shape = 'u32[]', space=smem, size = 0x4, offset = 0x4, fixed_abs, tag = 'smem constant byte address 0x4 - core index']
  #allocation1 [shape = 'u32[144,128]{1,0:T(1,128)}', space=vmem, size = 0x12000, scoped, tag = 'internal scratch']
  %s0 = inlined_call_operand.vmem [shape: bf16[16,288], index: 0, kind: input, shape index: {}]
  %s1 = inlined_call_operand.vmem [shape: bf16[288,128], index: 1, kind: input, shape index: {}]
  %s2 = inlined_call_operand.vmem [shape: f32[1,128], index: 2, kind: input, shape index: {}]
  %s3 = inlined_call_operand.vmem [shape: bf16[16,128], index: 3, kind: output, shape index: {}]
  %s4 = sld [smem:[#allocation0]]
  $region22: #{_lambda_.53} parent=0
    _
  %s6 = ssub.s32 1, %s4
  %s7 = scalar_select 0, %s6, %s4
  // Predicated region
  $region2: #{_lambda_.53} parent=0 // pred_check
    _
  $region3: #{_lambda_.53} parent=0 // pred_check_branch
    %9 = sbr.rel (0) target = $region5
  $region4: #{_lambda_.53} parent=0 // pred_region
    _
  $region5: #{_lambda_.53} parent=0 // pred_fallthru
    _
  // Predicated region
  $region6: #{_lambda_.53} parent=0 // pred_check
    _
  $region7: #{_lambda_.53} parent=0 // pred_check_branch
    %11 = sbr.rel (0) target = $region9
  $region8: #{_lambda_.53} parent=0 // pred_region
    _
  $region9: #{_lambda_.53} parent=0 // pred_fallthru
    _
  // Predicated region
  $region10: #{_lambda_.53} parent=0 // pred_check
    _
  $region11: #{_lambda_.53} parent=0 // pred_check_branch
    %13 = sbr.rel (0) target = $region13
  $region12: #{_lambda_.53} parent=0 // pred_region
    _
  $region13: #{_lambda_.53} parent=0 // pred_fallthru
    _
  %v15 = vld [vmem:[%s0] sm:$0xff]
  %v16 = vld [vmem:[%s0 + $0x8] sm:$0xf]
  %v17 = vld [vmem:[%s0 + $0xc] sm:$0xff]
  %v18 = vld [vmem:[%s0 + $0x14] sm:$0xf]
  %v19 = vld [vmem:[%s1] sm:$0xf]
  %v20 = vld [vmem:[%s1 + $0x4] sm:$0xf]
  %v21 = vld [vmem:[%s1 + $0x8] sm:$0xf]
  %v22 = vld [vmem:[%s1 + $0xc] sm:$0xf]
  %v23 = vld [vmem:[%s1 + $0x10] sm:$0xf]
  %v24 = vld [vmem:[%s1 + $0x14] sm:$0xf]
  %v25 = vld [vmem:[%s1 + $0x18] sm:$0xf]
  %v26 = vld [vmem:[%s1 + $0x1c] sm:$0xf]
  %v27 = vld [vmem:[%s1 + $0x20] sm:$0xf]
  %v28 = vld [vmem:[%s1 + $0x24] sm:$0xf]
  %v29 = vld [vmem:[%s1 + $0x28] sm:$0xf]
  %v30 = vld [vmem:[%s1 + $0x2c] sm:$0xf]
  %v31 = vld [vmem:[%s1 + $0x30] sm:$0xf]
  %v32 = vld [vmem:[%s1 + $0x34] sm:$0xf]
  %v33 = vld [vmem:[%s1 + $0x38] sm:$0xf]
  %v34 = vld [vmem:[%s1 + $0x3c] sm:$0xf]
  %v35 = vld [vmem:[%s1 + $0x40] sm:$0xf]
  %v36 = vld [vmem:[%s1 + $0x44] sm:$0xf]
  %v37 = vld [vmem:[%s1 + $0x48] sm:$0xf]
  %v38 = vld [vmem:[%s1 + $0x4c] sm:$0xf]
  %v39 = vld [vmem:[%s1 + $0x50] sm:$0xf]
  %v40 = vld [vmem:[%s1 + $0x54] sm:$0xf]
  %v41 = vld [vmem:[%s1 + $0x58] sm:$0xf]
  %v42 = vld [vmem:[%s1 + $0x5c] sm:$0xf]
  %v43 = vld [vmem:[%s1 + $0x60] sm:$0xf]
  %v44 = vld [vmem:[%s1 + $0x64] sm:$0xf]
  %v45 = vld [vmem:[%s1 + $0x68] sm:$0xf]
  %v46 = vld [vmem:[%s1 + $0x6c] sm:$0xf]
  %v47 = vld [vmem:[%s1 + $0x70] sm:$0xf]
  %v48 = vld [vmem:[%s1 + $0x74] sm:$0xf]
  %v49 = vld [vmem:[%s1 + $0x78] sm:$0xf]
  %v50 = vld [vmem:[%s1 + $0x7c] sm:$0xf]
  %v51 = vld [vmem:[%s1 + $0x80] sm:$0xf]
  %v52 = vld [vmem:[%s1 + $0x84] sm:$0xf]
  %v53 = vld [vmem:[%s1 + $0x88] sm:$0xf]
  %v54 = vld [vmem:[%s1 + $0x8c] sm:$0xf]
  %v55 = vld [vmem:[%s2] sm:$0x1]
  %v57 = vlaneseq
  %v58 = vshrl.u32 %v57, 7
  %v59 = vsub.s32 0, %v58
  %v60 = vrot.slane %v55, %v59
  %v66 = vunpack.c.l.b16 %v15
  %v67 = vunpack.c.h.b16 %v15
  %v68 = vunpack.c.l.b16 %v16
  %v69 = vunpack.c.l.b16 %v17
  %v70 = vunpack.c.h.b16 %v17
  %v71 = vunpack.c.l.b16 %v18
  %v72 = vpack.c.b16 %v69, %v66
  %v73 = vpack.c.b16 %v70, %v67
  %v74 = vpack.c.b16 %v71, %v68
  %v113 = vunpack.c.l.b16 %v19
  %v114 = vunpack.c.l.b16 %v20
  %v115 = vunpack.c.l.b16 %v21
  %v116 = vunpack.c.l.b16 %v22
  %v117 = vunpack.c.l.b16 %v23
  %v118 = vunpack.c.l.b16 %v24
  %v119 = vunpack.c.l.b16 %v25
  %v120 = vunpack.c.l.b16 %v26
  %v121 = vunpack.c.l.b16 %v27
  %v122 = vunpack.c.l.b16 %v28
  %v123 = vunpack.c.l.b16 %v29
  %v124 = vunpack.c.l.b16 %v30
  %v125 = vunpack.c.l.b16 %v31
  %v126 = vunpack.c.l.b16 %v32
  %v127 = vunpack.c.l.b16 %v33
  %v128 = vunpack.c.l.b16 %v34
  %v129 = vunpack.c.l.b16 %v35
  %v130 = vunpack.c.l.b16 %v36
  %v131 = vunpack.c.l.b16 %v37
  %v132 = vunpack.c.l.b16 %v38
  %v133 = vunpack.c.l.b16 %v39
  %v134 = vunpack.c.l.b16 %v40
  %v135 = vunpack.c.l.b16 %v41
  %v136 = vunpack.c.l.b16 %v42
  %v137 = vunpack.c.l.b16 %v43
  %v138 = vunpack.c.l.b16 %v44
  %v139 = vunpack.c.l.b16 %v45
  %v140 = vunpack.c.l.b16 %v46
  %v141 = vunpack.c.l.b16 %v47
  %v142 = vunpack.c.l.b16 %v48
  %v143 = vunpack.c.l.b16 %v49
  %v144 = vunpack.c.l.b16 %v50
  %v145 = vunpack.c.l.b16 %v51
  %v146 = vunpack.c.l.b16 %v52
  %v147 = vunpack.c.l.b16 %v53
  %v148 = vunpack.c.l.b16 %v54
  %v149 = vpack.c.b16 %v114, %v113
  %v150 = vpack.c.b16 %v116, %v115
  %v151 = vpack.c.b16 %v118, %v117
  %v152 = vpack.c.b16 %v120, %v119
  %v153 = vpack.c.b16 %v122, %v121
  %v154 = vpack.c.b16 %v124, %v123
  %v155 = vpack.c.b16 %v126, %v125
  %v156 = vpack.c.b16 %v128, %v127
  %v157 = vpack.c.b16 %v130, %v129
  %v158 = vpack.c.b16 %v132, %v131
  %v159 = vpack.c.b16 %v134, %v133
  %v160 = vpack.c.b16 %v136, %v135
  %v161 = vpack.c.b16 %v138, %v137
  %v162 = vpack.c.b16 %v140, %v139
  %v163 = vpack.c.b16 %v142, %v141
  %v164 = vpack.c.b16 %v144, %v143
  %v165 = vpack.c.b16 %v146, %v145
  %v166 = vpack.c.b16 %v148, %v147
  %vm185 = vcmask 261120
  %v187 = vsel %vm185, %v74, 0
  %189 = vmatprep.subr.bf16.mxu0 0
  %190 = vmatpush1.bf16.msra.mxu0 %v156
  %191 = vmatprep.subr.bf16.mxu0 0
  %192 = vmatpush1.bf16.msra.mxu0 %v155
  %193 = vmatprep.subr.bf16.mxu0 0
  %194 = vmatpush1.bf16.msra.mxu0 %v154
  %195 = vmatprep.subr.bf16.mxu0 0
  %196 = vmatpush1.bf16.msra.mxu0 %v153
  %197 = vmatprep.subr.bf16.mxu0 0
  %198 = vmatpush1.bf16.msra.mxu0 %v152
  %199 = vmatprep.subr.bf16.mxu0 0
  %200 = vmatpush1.bf16.msra.mxu0 %v151
  %201 = vmatprep.subr.bf16.mxu0 0
  %202 = vmatpush1.bf16.msra.mxu0 %v150
  %203 = vmatprep.subr.bf16.mxu0 0
  %204 = vmatpush1.bf16.msra.mxu0 %v149
  %205 = vmatprep.subr.bf16.mxu0 0
  %206 = vmatpush2.bf16.msra.mxu0 %v164
  %207 = vmatprep.subr.bf16.mxu0 0
  %208 = vmatpush2.bf16.msra.mxu0 %v163
  %209 = vmatprep.subr.bf16.mxu0 0
  %210 = vmatpush2.bf16.msra.mxu0 %v162
  %211 = vmatprep.subr.bf16.mxu0 0
  %212 = vmatpush2.bf16.msra.mxu0 %v161
  %213 = vmatprep.subr.bf16.mxu0 0
  %214 = vmatpush2.bf16.msra.mxu0 %v160
  %215 = vmatprep.subr.bf16.mxu0 0
  %216 = vmatpush2.bf16.msra.mxu0 %v159
  %217 = vmatprep.subr.bf16.mxu0 0
  %218 = vmatpush2.bf16.msra.mxu0 %v158
  %219 = vmatprep.subr.bf16.mxu0 0
  %220 = vmatpush2.bf16.msra.mxu0 %v157
  %221 = vmatprep.mubr.bf16.mxu0 %v73
  %222 = vmatmul.mubr.bf16.gmra.mxu0 %v72
  %v223 = vpop.f32.mrf.mxu0
  %v224 = vadd.f32 %v60, %v223
  %v225 = vpop.f32.mrf.mxu0
  %v226 = vpop.f32.mrf.mxu0
  %v227 = vadd.f32 %v60, %v226
  %v228 = vpop.f32.mrf.mxu0
  %229 = vdwg.mxu0
  %230 = vmatprep.subr.bf16.mxu0 0
  %231 = vmatpush1.bf16.msra.mxu0 0
  %232 = vmatprep.subr.bf16.mxu0 0
  %233 = vmatpush1.bf16.msra.mxu0 0
  %234 = vmatprep.subr.bf16.mxu0 0
  %235 = vmatpush1.bf16.msra.mxu0 0
  %236 = vmatprep.subr.bf16.mxu0 0
  %237 = vmatpush1.bf16.msra.mxu0 0
  %238 = vmatprep.subr.bf16.mxu0 0
  %239 = vmatpush1.bf16.msra.mxu0 0
  %240 = vmatprep.subr.bf16.mxu0 0
  %241 = vmatpush1.bf16.msra.mxu0 0
  %242 = vmatprep.subr.bf16.mxu0 0
  %243 = vmatpush1.bf16.msra.mxu0 %v166
  %244 = vmatprep.subr.bf16.mxu0 0
  %245 = vmatpush1.bf16.msra.mxu0 %v165
  %246 = vmatprep.subr.bf16.mxu0 0
  %247 = vmatpush2.bf16.msra.mxu0 0
  %248 = vmatprep.subr.bf16.mxu0 0
  %249 = vmatpush2.bf16.msra.mxu0 0
  %250 = vmatprep.subr.bf16.mxu0 0
  %251 = vmatpush2.bf16.msra.mxu0 0
  %252 = vmatprep.subr.bf16.mxu0 0
  %253 = vmatpush2.bf16.msra.mxu0 0
  %254 = vmatprep.subr.bf16.mxu0 0
  %255 = vmatpush2.bf16.msra.mxu0 0
  %256 = vmatprep.subr.bf16.mxu0 0
  %257 = vmatpush2.bf16.msra.mxu0 0
  %258 = vmatprep.subr.bf16.mxu0 0
  %259 = vmatpush2.bf16.msra.mxu0 0
  %260 = vmatprep.subr.bf16.mxu0 0
  %261 = vmatpush2.bf16.msra.mxu0 0
  %262 = vmatprep.mubr.bf16.mxu0 0
  %263 = vmatmul.mubr.bf16.gmra.mxu0 %v187
  %v264 = vpop.f32.mrf.mxu0
  %v265 = vadd.f32 %v224, %v264
  %v266 = vpop.f32.mrf.mxu0
  %v267 = vpop.f32.mrf.mxu0
  %v268 = vadd.f32 %v227, %v267
  %v269 = vpop.f32.mrf.mxu0
  %270 = vdwg.mxu0
  %v271 = vmax.f32 %v265, 0.0
  %v272 = vmax.f32 %v268, 0.0
  %v273 = vpack.c.bf16 %v272, %v271
  %v275 = vunpack.c.l.b16 %v273
  %v276 = vunpack.c.h.b16 %v273
  %v277 = vpack.c.b16 %v275, %v275
  %v278 = vpack.c.b16 %v276, %v276
  %281 = vst [vmem:[%s3] sm:$0xf] %v277
  %282 = vst [vmem:[%s3 + $0x4] sm:$0xf] %v278
  // Predicated region
  $region14: #{_lambda_.53} parent=0 // pred_check
    _
  $region15: #{_lambda_.53} parent=0 // pred_check_branch
    %284 = sbr.rel (0) target = $region17
  $region16: #{_lambda_.53} parent=0 // pred_region
    _
  $region17: #{_lambda_.53} parent=0 // pred_fallthru
    _
  // Predicated region
  $region18: #{_lambda_.53} parent=0 // pred_check
    _
  $region19: #{_lambda_.53} parent=0 // pred_check_branch
    %286 = sbr.rel (0) target = $region21
  $region20: #{_lambda_.53} parent=0 // pred_region
    _
  $region21: #{_lambda_.53} parent=0 // pred_fallthru
    _

</llo_original>
